<compile_context>
chip_gen: v5e
topology: v5e:2x2
jax: 0.10.0
libtpu: 0.0.40
codegen_flags: <defaults>
</compile_context>

<pallas_src>
import functools

import jax
import jax.numpy as jnp
from jax.experimental import pallas as pl
from jax.experimental.pallas import tpu as pltpu


# ----------------------------- fused network kernel -------------------------

def _fused_net_kernel(x_ref, w1_ref, b1_ref, w2_ref, b2_ref, w3_ref, b3_ref,
                      w4_ref, b4_ref, wf1_ref, bf1_ref, wf2_ref, bf2_ref,
                      o_ref):
    """Entire SimpleConvNet forward for one batch block, fully VMEM-resident.

    x_ref  : (nb, H+2, W+2, 3)  bf16  zero-padded NHWC input
    wK_ref : (9*Cin, Cout)      bf16  conv weights, K order = (ky, kx, cin)
    bK_ref : (1, Cout)          f32
    wf*_ref: fc weights (in, out) bf16 ; bf*_ref: (1, out) f32
    o_ref  : (1, nb, 10)        f32
    """

    def pad1(y):
        # Zero-pad H and W by 1 on each side via border concatenation
        # (keeps the channel/lane axis dense; no partial stores).
        n, h, w, c = y.shape
        zr = jnp.zeros((n, 1, w, c), y.dtype)
        y = jnp.concatenate([zr, y, zr], axis=1)
        zc = jnp.zeros((n, h + 2, 1, c), y.dtype)
        return jnp.concatenate([zc, y, zc], axis=2)

    def conv_relu_pool(xp, w_ref, b_ref):
        # xp: (n, H+2, W+2, Cin) bf16 zero-padded.  One big-K matmul per stage:
        # stack the 9 shifted windows along the contraction (lane) axis so the
        # MXU sees K = 9*Cin instead of nine K = Cin pushes.
        n, hp2, wp2, cin = xp.shape
        h, w = hp2 - 2, wp2 - 2
        cout = w_ref.shape[-1]
        taps = [xp[:, dy:dy + h, dx:dx + w, :]
                for dy in range(3) for dx in range(3)]           # tap t = 3*dy+dx
        xk = jnp.concatenate(taps, axis=-1).reshape(n * h * w, 9 * cin)
        acc = jnp.dot(xk, w_ref[...], preferred_element_type=jnp.float32)
        acc = jnp.maximum(acc + b_ref[...], 0.0)                 # bias + ReLU (f32)
        # Fused 2x2/2 maxpool; channels stay on the lane axis throughout.
        hh, wh = h // 2, w // 2
        a = acc.reshape(n, h, wh, 2, cout)
        a = jnp.maximum(a[:, :, :, 0, :], a[:, :, :, 1, :])      # pool along W
        a = a.reshape(n, hh, 2, wh, cout)
        y = jnp.maximum(a[:, :, 0], a[:, :, 1])                  # pool along H
        return y                                                 # (n, hh, wh, cout) f32

    x = x_ref[...]                                               # bf16, pre-padded
    y = conv_relu_pool(x, w1_ref, b1_ref)                        # (nb, H/2,  W/2,   32)
    y = conv_relu_pool(pad1(y.astype(jnp.bfloat16)), w2_ref, b2_ref)   # (.., /4,  64)
    y = conv_relu_pool(pad1(y.astype(jnp.bfloat16)), w3_ref, b3_ref)   # (.., /8, 128)
    y = conv_relu_pool(pad1(y.astype(jnp.bfloat16)), w4_ref, b4_ref)   # (.., /16,256)

    # Flatten.  fc1's weight rows were reordered in init_params to match this
    # NHWC flatten (identical to torch's NCHW flatten when spatial is 1x1).
    n = y.shape[0]
    feat = y.reshape(n, y.shape[1] * y.shape[2] * y.shape[3]).astype(jnp.bfloat16)

    # Fused fc1 + ReLU + fc2.
    hidden = jnp.dot(feat, wf1_ref[...], preferred_element_type=jnp.float32)
    hidden = jnp.maximum(hidden + bf1_ref[...], 0.0)
    logits = jnp.dot(hidden.astype(jnp.bfloat16), wf2_ref[...],
                     preferred_element_type=jnp.float32) + bf2_ref[...]
    o_ref[0] = logits


# ------------------------------- parameters ---------------------------------

def init_params(key, in_h, in_w):
    """Kaiming-style init matching the torch module's shapes.  All layout work
    (OIHW -> (9*Cin, Cout) with K order (ky, kx, cin), Linear transposes, fc1
    row reordering for NHWC flatten, bf16 casts) happens here once."""
    def kaiming(k, shape, fan_in):
        return jnp.sqrt(2.0 / fan_in) * jax.random.normal(k, shape, jnp.float32)

    chans = [3, 32, 64, 128, 256]
    keys = jax.random.split(key, 6)
    params = {}
    for i in range(4):
        cin, cout = chans[i], chans[i + 1]
        w_oihw = kaiming(keys[i], (cout, cin, 3, 3), cin * 9)
        # (Cout,Cin,kh,kw) -> (kh,kw,Cin,Cout) -> (9*Cin, Cout); row = (3*ky+kx)*Cin+ci.
        wk = jnp.transpose(w_oihw, (2, 3, 1, 0)).reshape(9 * cin, cout)
        params[f"conv{i + 1}"] = (wk.astype(jnp.bfloat16),
                                  jnp.zeros((1, cout), jnp.float32))

    hf, wf = in_h // 16, in_w // 16            # spatial after four 2x2 pools
    fc1_in = 256 * hf * wf                     # lazily-built fc1 in the torch module
    w1 = kaiming(keys[4], (128, fc1_in), fc1_in)       # torch (out, in) layout
    w2 = kaiming(keys[5], (10, 128), 128)
    # Transpose to (in, out) and permute rows from torch's (c, h, w) flatten
    # order to the kernel's (h, w, c) flatten order (identity when hf=wf=1).
    w1_t = jnp.transpose(w1).reshape(256, hf, wf, 128)
    w1_t = jnp.transpose(w1_t, (1, 2, 0, 3)).reshape(fc1_in, 128)
    params["fc1"] = (w1_t.astype(jnp.bfloat16), jnp.zeros((1, 128), jnp.float32))
    params["fc2"] = (jnp.transpose(w2).astype(jnp.bfloat16),
                     jnp.zeros((1, 10), jnp.float32))
    return params


# -------------------------------- forward -----------------------------------

def simple_conv_net_forward(x_nchw, params, *, batch_blocks=1):
    """batch_blocks=1: whole batch folded into the matmul M dim (v5e/v6e).
    batch_blocks=2 on v7x splits the batch over a "parallel" grid axis so both
    TensorCores get independent work."""
    # TODO(synk): SpikingActivation (config.spiking=True) not implemented; this
    # reproduces the default nn.ReLU() path only.
    N, C, H, W = x_nchw.shape
    assert C == 3, "conv1 expects 3 input channels"
    # TODO(synk): torch MaxPool2d(2) floors odd spatial dims; we require /16.
    assert H % 16 == 0 and W % 16 == 0 and N % batch_blocks == 0

    # One tiny XLA prep fusion: NCHW -> NHWC, zero-pad border, cast to bf16.
    x = jnp.transpose(x_nchw, (0, 2, 3, 1)).astype(jnp.bfloat16)
    x = jnp.pad(x, ((0, 0), (1, 1), (1, 1), (0, 0)))

    w1, b1 = params["conv1"]; w2, b2 = params["conv2"]
    w3, b3 = params["conv3"]; w4, b4 = params["conv4"]
    wf1, bf1 = params["fc1"]; wf2, bf2 = params["fc2"]

    nb = N // batch_blocks

    def full(a):  # whole-array block, same for every grid step (loaded once)
        return pl.BlockSpec(a.shape, lambda i, _nd=a.ndim: (0,) * _nd)

    out = pl.pallas_call(
        _fused_net_kernel,
        out_shape=jax.ShapeDtypeStruct((batch_blocks, nb, 10), jnp.float32),
        grid=(batch_blocks,),
        in_specs=[
            pl.BlockSpec((nb, H + 2, W + 2, 3), lambda i: (i, 0, 0, 0)),
            full(w1), full(b1), full(w2), full(b2),
            full(w3), full(b3), full(w4), full(b4),
            full(wf1), full(bf1), full(wf2), full(bf2),
        ],
        out_specs=pl.BlockSpec((1, nb, 10), lambda i: (i, 0, 0)),
        compiler_params=pltpu.CompilerParams(
            dimension_semantics=("parallel",)),
    )(x, w1, b1, w2, b2, w3, b3, w4, b4, wf1, bf1, wf2, bf2)
    return out.reshape(N, 10)


if __name__ == "__main__":
    key = jax.random.PRNGKey(0)
    k_x, k_p = jax.random.split(key)
    # NCHW input: 3 channels (required by conv1), spatial 16 so four maxpools
    # leave a 1x1 map (flatten -> 256 features for the lazily-built fc1).
    x = jax.random.normal(k_x, (2, 3, 16, 16), dtype=jnp.float32)
    params = init_params(k_p, 16, 16)

    fwd = jax.jit(simple_conv_net_forward)     # batch_blocks=1; use 2 on v7x
    out = jax.block_until_ready(fwd(x, params))
    assert out.shape == (2, 10), out.shape
    print("KERNEL_OK")
</pallas_src>

<mosaic_0001>
module attributes {stable_mosaic.version = 11 : i64} {
  func.func @_fused_net_kernel(%arg0: i32, %arg1: memref<2x18x18x3xbf16, #tpu.memory_space<vmem>>, %arg2: memref<27x32xbf16, #tpu.memory_space<vmem>>, %arg3: memref<1x32xf32, #tpu.memory_space<vmem>>, %arg4: memref<288x64xbf16, #tpu.memory_space<vmem>>, %arg5: memref<1x64xf32, #tpu.memory_space<vmem>>, %arg6: memref<576x128xbf16, #tpu.memory_space<vmem>>, %arg7: memref<1x128xf32, #tpu.memory_space<vmem>>, %arg8: memref<1152x256xbf16, #tpu.memory_space<vmem>>, %arg9: memref<1x256xf32, #tpu.memory_space<vmem>>, %arg10: memref<256x128xbf16, #tpu.memory_space<vmem>>, %arg11: memref<1x128xf32, #tpu.memory_space<vmem>>, %arg12: memref<128x10xbf16, #tpu.memory_space<vmem>>, %arg13: memref<1x10xf32, #tpu.memory_space<vmem>>, %arg14: memref<1x2x10xf32, #tpu.memory_space<vmem>>) attributes {dimension_semantics = [#tpu.dimension_semantics<parallel>], iteration_bounds = array<i64: 1>, scalar_prefetch = 0 : i64, scratch_operands = 0 : i64, tpu.core_type = #tpu.core_type<tc>, window_params = [{transform_indices = @transform_0, window_bounds = array<i64: 2, 18, 18, 3>}, {pipeline_mode = #tpu.pipeline_mode<synchronous>, transform_indices = @transform_1, window_bounds = array<i64: 27, 32>}, {pipeline_mode = #tpu.pipeline_mode<synchronous>, transform_indices = @transform_2, window_bounds = array<i64: 1, 32>}, {pipeline_mode = #tpu.pipeline_mode<synchronous>, transform_indices = @transform_3, window_bounds = array<i64: 288, 64>}, {pipeline_mode = #tpu.pipeline_mode<synchronous>, transform_indices = @transform_4, window_bounds = array<i64: 1, 64>}, {pipeline_mode = #tpu.pipeline_mode<synchronous>, transform_indices = @transform_5, window_bounds = array<i64: 576, 128>}, {pipeline_mode = #tpu.pipeline_mode<synchronous>, transform_indices = @transform_6, window_bounds = array<i64: 1, 128>}, {pipeline_mode = #tpu.pipeline_mode<synchronous>, transform_indices = @transform_7, window_bounds = array<i64: 1152, 256>}, {pipeline_mode = #tpu.pipeline_mode<synchronous>, transform_indices = @transform_8, window_bounds = array<i64: 1, 256>}, {pipeline_mode = #tpu.pipeline_mode<synchronous>, transform_indices = @transform_9, window_bounds = array<i64: 256, 128>}, {pipeline_mode = #tpu.pipeline_mode<synchronous>, transform_indices = @transform_10, window_bounds = array<i64: 1, 128>}, {pipeline_mode = #tpu.pipeline_mode<synchronous>, transform_indices = @transform_11, window_bounds = array<i64: 128, 10>}, {pipeline_mode = #tpu.pipeline_mode<synchronous>, transform_indices = @transform_12, window_bounds = array<i64: 1, 10>}, {transform_indices = @transform_13, window_bounds = array<i64: 1, 2, 10>}]} {
    %c0 = arith.constant 0 : index
    %c0_0 = arith.constant 0 : index
    %c0_1 = arith.constant 0 : index
    %c0_2 = arith.constant 0 : index
    %0 = vector.load %arg1[%c0, %c0_0, %c0_1, %c0_2] : memref<2x18x18x3xbf16, #tpu.memory_space<vmem>>, vector<2x18x18x3xbf16>
    %1 = vector.extract_strided_slice %0 {offsets = [0, 0, 0, 0], sizes = [2, 16, 16, 3], strides = [1, 1, 1, 1]} : vector<2x18x18x3xbf16> to vector<2x16x16x3xbf16>
    %2 = vector.extract_strided_slice %0 {offsets = [0, 0, 1, 0], sizes = [2, 16, 16, 3], strides = [1, 1, 1, 1]} : vector<2x18x18x3xbf16> to vector<2x16x16x3xbf16>
    %3 = vector.extract_strided_slice %0 {offsets = [0, 0, 2, 0], sizes = [2, 16, 16, 3], strides = [1, 1, 1, 1]} : vector<2x18x18x3xbf16> to vector<2x16x16x3xbf16>
    %4 = vector.extract_strided_slice %0 {offsets = [0, 1, 0, 0], sizes = [2, 16, 16, 3], strides = [1, 1, 1, 1]} : vector<2x18x18x3xbf16> to vector<2x16x16x3xbf16>
    %5 = vector.extract_strided_slice %0 {offsets = [0, 1, 1, 0], sizes = [2, 16, 16, 3], strides = [1, 1, 1, 1]} : vector<2x18x18x3xbf16> to vector<2x16x16x3xbf16>
    %6 = vector.extract_strided_slice %0 {offsets = [0, 1, 2, 0], sizes = [2, 16, 16, 3], strides = [1, 1, 1, 1]} : vector<2x18x18x3xbf16> to vector<2x16x16x3xbf16>
    %7 = vector.extract_strided_slice %0 {offsets = [0, 2, 0, 0], sizes = [2, 16, 16, 3], strides = [1, 1, 1, 1]} : vector<2x18x18x3xbf16> to vector<2x16x16x3xbf16>
    %8 = vector.extract_strided_slice %0 {offsets = [0, 2, 1, 0], sizes = [2, 16, 16, 3], strides = [1, 1, 1, 1]} : vector<2x18x18x3xbf16> to vector<2x16x16x3xbf16>
    %9 = vector.extract_strided_slice %0 {offsets = [0, 2, 2, 0], sizes = [2, 16, 16, 3], strides = [1, 1, 1, 1]} : vector<2x18x18x3xbf16> to vector<2x16x16x3xbf16>
    %10 = tpu.concatenate %1, %2, %3, %4, %5, %6, %7, %8, %9 in 3 : vector<2x16x16x3xbf16>, vector<2x16x16x3xbf16>, vector<2x16x16x3xbf16>, vector<2x16x16x3xbf16>, vector<2x16x16x3xbf16>, vector<2x16x16x3xbf16>, vector<2x16x16x3xbf16>, vector<2x16x16x3xbf16>, vector<2x16x16x3xbf16> -> vector<2x16x16x27xbf16>
    %11 = vector.shape_cast %10 : vector<2x16x16x27xbf16> to vector<512x27xbf16>
    %c0_3 = arith.constant 0 : index
    %c0_4 = arith.constant 0 : index
    %12 = vector.load %arg2[%c0_3, %c0_4] : memref<27x32xbf16, #tpu.memory_space<vmem>>, vector<27x32xbf16>
    %cst = arith.constant dense<0.000000e+00> : vector<512x32xf32>
    %13 = tpu.matmul %11, %12, %cst {dimension_numbers = #tpu.dot_dimension_numbers<[1], [0], [0], [1], [0, 0, 1, 1], [], []>} : vector<512x27xbf16>, vector<27x32xbf16>, vector<512x32xf32> -> vector<512x32xf32>
    %c0_5 = arith.constant 0 : index
    %c0_6 = arith.constant 0 : index
    %14 = vector.load %arg3[%c0_5, %c0_6] : memref<1x32xf32, #tpu.memory_space<vmem>>, vector<1x32xf32>
    %15 = vector.broadcast %14 : vector<1x32xf32> to vector<512x32xf32>
    %16 = arith.addf %13, %15 : vector<512x32xf32>
    %cst_7 = arith.constant 0.000000e+00 : f32
    %17 = vector.broadcast %cst_7 : f32 to vector<512x32xf32>
    %18 = arith.maximumf %16, %17 : vector<512x32xf32>
    %19 = vector.shape_cast %18 : vector<512x32xf32> to vector<2x16x8x2x32xf32>
    %20 = vector.extract_strided_slice %19 {offsets = [0, 0, 0, 0, 0], sizes = [2, 16, 8, 1, 32], strides = [1, 1, 1, 1, 1]} : vector<2x16x8x2x32xf32> to vector<2x16x8x1x32xf32>
    %21 = vector.shape_cast %20 : vector<2x16x8x1x32xf32> to vector<2x16x8x32xf32>
    %22 = vector.extract_strided_slice %19 {offsets = [0, 0, 0, 1, 0], sizes = [2, 16, 8, 1, 32], strides = [1, 1, 1, 1, 1]} : vector<2x16x8x2x32xf32> to vector<2x16x8x1x32xf32>
    %23 = vector.shape_cast %22 : vector<2x16x8x1x32xf32> to vector<2x16x8x32xf32>
    %24 = arith.maximumf %21, %23 : vector<2x16x8x32xf32>
    %25 = vector.shape_cast %24 : vector<2x16x8x32xf32> to vector<2x8x2x8x32xf32>
    %26 = vector.extract_strided_slice %25 {offsets = [0, 0, 0, 0, 0], sizes = [2, 8, 1, 8, 32], strides = [1, 1, 1, 1, 1]} : vector<2x8x2x8x32xf32> to vector<2x8x1x8x32xf32>
    %27 = vector.shape_cast %26 : vector<2x8x1x8x32xf32> to vector<2x8x8x32xf32>
    %28 = vector.extract_strided_slice %25 {offsets = [0, 0, 1, 0, 0], sizes = [2, 8, 1, 8, 32], strides = [1, 1, 1, 1, 1]} : vector<2x8x2x8x32xf32> to vector<2x8x1x8x32xf32>
    %29 = vector.shape_cast %28 : vector<2x8x1x8x32xf32> to vector<2x8x8x32xf32>
    %30 = arith.maximumf %27, %29 : vector<2x8x8x32xf32>
    %31 = arith.truncf %30 : vector<2x8x8x32xf32> to vector<2x8x8x32xbf16>
    %cst_8 = arith.constant 0.000000e+00 : bf16
    %32 = vector.broadcast %cst_8 : bf16 to vector<2x1x8x32xbf16>
    %33 = tpu.concatenate %32, %31, %32 in 1 : vector<2x1x8x32xbf16>, vector<2x8x8x32xbf16>, vector<2x1x8x32xbf16> -> vector<2x10x8x32xbf16>
    %cst_9 = arith.constant 0.000000e+00 : bf16
    %34 = vector.broadcast %cst_9 : bf16 to vector<2x10x1x32xbf16>
    %35 = tpu.concatenate %34, %33, %34 in 2 : vector<2x10x1x32xbf16>, vector<2x10x8x32xbf16>, vector<2x10x1x32xbf16> -> vector<2x10x10x32xbf16>
    %36 = vector.extract_strided_slice %35 {offsets = [0, 0, 0, 0], sizes = [2, 8, 8, 32], strides = [1, 1, 1, 1]} : vector<2x10x10x32xbf16> to vector<2x8x8x32xbf16>
    %37 = vector.extract_strided_slice %35 {offsets = [0, 0, 1, 0], sizes = [2, 8, 8, 32], strides = [1, 1, 1, 1]} : vector<2x10x10x32xbf16> to vector<2x8x8x32xbf16>
    %38 = vector.extract_strided_slice %35 {offsets = [0, 0, 2, 0], sizes = [2, 8, 8, 32], strides = [1, 1, 1, 1]} : vector<2x10x10x32xbf16> to vector<2x8x8x32xbf16>
    %39 = vector.extract_strided_slice %35 {offsets = [0, 1, 0, 0], sizes = [2, 8, 8, 32], strides = [1, 1, 1, 1]} : vector<2x10x10x32xbf16> to vector<2x8x8x32xbf16>
    %40 = vector.extract_strided_slice %35 {offsets = [0, 1, 1, 0], sizes = [2, 8, 8, 32], strides = [1, 1, 1, 1]} : vector<2x10x10x32xbf16> to vector<2x8x8x32xbf16>
    %41 = vector.extract_strided_slice %35 {offsets = [0, 1, 2, 0], sizes = [2, 8, 8, 32], strides = [1, 1, 1, 1]} : vector<2x10x10x32xbf16> to vector<2x8x8x32xbf16>
    %42 = vector.extract_strided_slice %35 {offsets = [0, 2, 0, 0], sizes = [2, 8, 8, 32], strides = [1, 1, 1, 1]} : vector<2x10x10x32xbf16> to vector<2x8x8x32xbf16>
    %43 = vector.extract_strided_slice %35 {offsets = [0, 2, 1, 0], sizes = [2, 8, 8, 32], strides = [1, 1, 1, 1]} : vector<2x10x10x32xbf16> to vector<2x8x8x32xbf16>
    %44 = vector.extract_strided_slice %35 {offsets = [0, 2, 2, 0], sizes = [2, 8, 8, 32], strides = [1, 1, 1, 1]} : vector<2x10x10x32xbf16> to vector<2x8x8x32xbf16>
    %45 = tpu.concatenate %36, %37, %38, %39, %40, %41, %42, %43, %44 in 3 : vector<2x8x8x32xbf16>, vector<2x8x8x32xbf16>, vector<2x8x8x32xbf16>, vector<2x8x8x32xbf16>, vector<2x8x8x32xbf16>, vector<2x8x8x32xbf16>, vector<2x8x8x32xbf16>, vector<2x8x8x32xbf16>, vector<2x8x8x32xbf16> -> vector<2x8x8x288xbf16>
    %46 = vector.shape_cast %45 : vector<2x8x8x288xbf16> to vector<128x288xbf16>
    %c0_10 = arith.constant 0 : index
    %c0_11 = arith.constant 0 : index
    %47 = vector.load %arg4[%c0_10, %c0_11] : memref<288x64xbf16, #tpu.memory_space<vmem>>, vector<288x64xbf16>
    %cst_12 = arith.constant dense<0.000000e+00> : vector<128x64xf32>
    %48 = tpu.matmul %46, %47, %cst_12 {dimension_numbers = #tpu.dot_dimension_numbers<[1], [0], [0], [1], [0, 0, 1, 1], [], []>} : vector<128x288xbf16>, vector<288x64xbf16>, vector<128x64xf32> -> vector<128x64xf32>
    %c0_13 = arith.constant 0 : index
    %c0_14 = arith.constant 0 : index
    %49 = vector.load %arg5[%c0_13, %c0_14] : memref<1x64xf32, #tpu.memory_space<vmem>>, vector<1x64xf32>
    %50 = vector.broadcast %49 : vector<1x64xf32> to vector<128x64xf32>
    %51 = arith.addf %48, %50 : vector<128x64xf32>
    %cst_15 = arith.constant 0.000000e+00 : f32
    %52 = vector.broadcast %cst_15 : f32 to vector<128x64xf32>
    %53 = arith.maximumf %51, %52 : vector<128x64xf32>
    %54 = vector.shape_cast %53 : vector<128x64xf32> to vector<2x8x4x2x64xf32>
    %55 = vector.extract_strided_slice %54 {offsets = [0, 0, 0, 0, 0], sizes = [2, 8, 4, 1, 64], strides = [1, 1, 1, 1, 1]} : vector<2x8x4x2x64xf32> to vector<2x8x4x1x64xf32>
    %56 = vector.shape_cast %55 : vector<2x8x4x1x64xf32> to vector<2x8x4x64xf32>
    %57 = vector.extract_strided_slice %54 {offsets = [0, 0, 0, 1, 0], sizes = [2, 8, 4, 1, 64], strides = [1, 1, 1, 1, 1]} : vector<2x8x4x2x64xf32> to vector<2x8x4x1x64xf32>
    %58 = vector.shape_cast %57 : vector<2x8x4x1x64xf32> to vector<2x8x4x64xf32>
    %59 = arith.maximumf %56, %58 : vector<2x8x4x64xf32>
    %60 = vector.shape_cast %59 : vector<2x8x4x64xf32> to vector<2x4x2x4x64xf32>
    %61 = vector.extract_strided_slice %60 {offsets = [0, 0, 0, 0, 0], sizes = [2, 4, 1, 4, 64], strides = [1, 1, 1, 1, 1]} : vector<2x4x2x4x64xf32> to vector<2x4x1x4x64xf32>
    %62 = vector.shape_cast %61 : vector<2x4x1x4x64xf32> to vector<2x4x4x64xf32>
    %63 = vector.extract_strided_slice %60 {offsets = [0, 0, 1, 0, 0], sizes = [2, 4, 1, 4, 64], strides = [1, 1, 1, 1, 1]} : vector<2x4x2x4x64xf32> to vector<2x4x1x4x64xf32>
    %64 = vector.shape_cast %63 : vector<2x4x1x4x64xf32> to vector<2x4x4x64xf32>
    %65 = arith.maximumf %62, %64 : vector<2x4x4x64xf32>
    %66 = arith.truncf %65 : vector<2x4x4x64xf32> to vector<2x4x4x64xbf16>
    %cst_16 = arith.constant 0.000000e+00 : bf16
    %67 = vector.broadcast %cst_16 : bf16 to vector<2x1x4x64xbf16>
    %68 = tpu.concatenate %67, %66, %67 in 1 : vector<2x1x4x64xbf16>, vector<2x4x4x64xbf16>, vector<2x1x4x64xbf16> -> vector<2x6x4x64xbf16>
    %cst_17 = arith.constant 0.000000e+00 : bf16
    %69 = vector.broadcast %cst_17 : bf16 to vector<2x6x1x64xbf16>
    %70 = tpu.concatenate %69, %68, %69 in 2 : vector<2x6x1x64xbf16>, vector<2x6x4x64xbf16>, vector<2x6x1x64xbf16> -> vector<2x6x6x64xbf16>
    %71 = vector.extract_strided_slice %70 {offsets = [0, 0, 0, 0], sizes = [2, 4, 4, 64], strides = [1, 1, 1, 1]} : vector<2x6x6x64xbf16> to vector<2x4x4x64xbf16>
    %72 = vector.extract_strided_slice %70 {offsets = [0, 0, 1, 0], sizes = [2, 4, 4, 64], strides = [1, 1, 1, 1]} : vector<2x6x6x64xbf16> to vector<2x4x4x64xbf16>
    %73 = vector.extract_strided_slice %70 {offsets = [0, 0, 2, 0], sizes = [2, 4, 4, 64], strides = [1, 1, 1, 1]} : vector<2x6x6x64xbf16> to vector<2x4x4x64xbf16>
    %74 = vector.extract_strided_slice %70 {offsets = [0, 1, 0, 0], sizes = [2, 4, 4, 64], strides = [1, 1, 1, 1]} : vector<2x6x6x64xbf16> to vector<2x4x4x64xbf16>
    %75 = vector.extract_strided_slice %70 {offsets = [0, 1, 1, 0], sizes = [2, 4, 4, 64], strides = [1, 1, 1, 1]} : vector<2x6x6x64xbf16> to vector<2x4x4x64xbf16>
    %76 = vector.extract_strided_slice %70 {offsets = [0, 1, 2, 0], sizes = [2, 4, 4, 64], strides = [1, 1, 1, 1]} : vector<2x6x6x64xbf16> to vector<2x4x4x64xbf16>
    %77 = vector.extract_strided_slice %70 {offsets = [0, 2, 0, 0], sizes = [2, 4, 4, 64], strides = [1, 1, 1, 1]} : vector<2x6x6x64xbf16> to vector<2x4x4x64xbf16>
    %78 = vector.extract_strided_slice %70 {offsets = [0, 2, 1, 0], sizes = [2, 4, 4, 64], strides = [1, 1, 1, 1]} : vector<2x6x6x64xbf16> to vector<2x4x4x64xbf16>
    %79 = vector.extract_strided_slice %70 {offsets = [0, 2, 2, 0], sizes = [2, 4, 4, 64], strides = [1, 1, 1, 1]} : vector<2x6x6x64xbf16> to vector<2x4x4x64xbf16>
    %80 = tpu.concatenate %71, %72, %73, %74, %75, %76, %77, %78, %79 in 3 : vector<2x4x4x64xbf16>, vector<2x4x4x64xbf16>, vector<2x4x4x64xbf16>, vector<2x4x4x64xbf16>, vector<2x4x4x64xbf16>, vector<2x4x4x64xbf16>, vector<2x4x4x64xbf16>, vector<2x4x4x64xbf16>, vector<2x4x4x64xbf16> -> vector<2x4x4x576xbf16>
    %81 = vector.shape_cast %80 : vector<2x4x4x576xbf16> to vector<32x576xbf16>
    %c0_18 = arith.constant 0 : index
    %c0_19 = arith.constant 0 : index
    %82 = vector.load %arg6[%c0_18, %c0_19] : memref<576x128xbf16, #tpu.memory_space<vmem>>, vector<576x128xbf16>
    %cst_20 = arith.constant dense<0.000000e+00> : vector<32x128xf32>
    %83 = tpu.matmul %81, %82, %cst_20 {dimension_numbers = #tpu.dot_dimension_numbers<[1], [0], [0], [1], [0, 0, 1, 1], [], []>} : vector<32x576xbf16>, vector<576x128xbf16>, vector<32x128xf32> -> vector<32x128xf32>
    %c0_21 = arith.constant 0 : index
    %c0_22 = arith.constant 0 : index
    %84 = vector.load %arg7[%c0_21, %c0_22] : memref<1x128xf32, #tpu.memory_space<vmem>>, vector<1x128xf32>
    %85 = vector.broadcast %84 : vector<1x128xf32> to vector<32x128xf32>
    %86 = arith.addf %83, %85 : vector<32x128xf32>
    %cst_23 = arith.constant 0.000000e+00 : f32
    %87 = vector.broadcast %cst_23 : f32 to vector<32x128xf32>
    %88 = arith.maximumf %86, %87 : vector<32x128xf32>
    %89 = vector.shape_cast %88 : vector<32x128xf32> to vector<2x4x2x2x128xf32>
    %90 = vector.extract_strided_slice %89 {offsets = [0, 0, 0, 0, 0], sizes = [2, 4, 2, 1, 128], strides = [1, 1, 1, 1, 1]} : vector<2x4x2x2x128xf32> to vector<2x4x2x1x128xf32>
    %91 = vector.shape_cast %90 : vector<2x4x2x1x128xf32> to vector<2x4x2x128xf32>
    %92 = vector.extract_strided_slice %89 {offsets = [0, 0, 0, 1, 0], sizes = [2, 4, 2, 1, 128], strides = [1, 1, 1, 1, 1]} : vector<2x4x2x2x128xf32> to vector<2x4x2x1x128xf32>
    %93 = vector.shape_cast %92 : vector<2x4x2x1x128xf32> to vector<2x4x2x128xf32>
    %94 = arith.maximumf %91, %93 : vector<2x4x2x128xf32>
    %95 = vector.shape_cast %94 : vector<2x4x2x128xf32> to vector<2x2x2x2x128xf32>
    %96 = vector.extract_strided_slice %95 {offsets = [0, 0, 0, 0, 0], sizes = [2, 2, 1, 2, 128], strides = [1, 1, 1, 1, 1]} : vector<2x2x2x2x128xf32> to vector<2x2x1x2x128xf32>
    %97 = vector.shape_cast %96 : vector<2x2x1x2x128xf32> to vector<2x2x2x128xf32>
    %98 = vector.extract_strided_slice %95 {offsets = [0, 0, 1, 0, 0], sizes = [2, 2, 1, 2, 128], strides = [1, 1, 1, 1, 1]} : vector<2x2x2x2x128xf32> to vector<2x2x1x2x128xf32>
    %99 = vector.shape_cast %98 : vector<2x2x1x2x128xf32> to vector<2x2x2x128xf32>
    %100 = arith.maximumf %97, %99 : vector<2x2x2x128xf32>
    %101 = arith.truncf %100 : vector<2x2x2x128xf32> to vector<2x2x2x128xbf16>
    %cst_24 = arith.constant 0.000000e+00 : bf16
    %102 = vector.broadcast %cst_24 : bf16 to vector<2x1x2x128xbf16>
    %103 = tpu.concatenate %102, %101, %102 in 1 : vector<2x1x2x128xbf16>, vector<2x2x2x128xbf16>, vector<2x1x2x128xbf16> -> vector<2x4x2x128xbf16>
    %cst_25 = arith.constant 0.000000e+00 : bf16
    %104 = vector.broadcast %cst_25 : bf16 to vector<2x4x1x128xbf16>
    %105 = tpu.concatenate %104, %103, %104 in 2 : vector<2x4x1x128xbf16>, vector<2x4x2x128xbf16>, vector<2x4x1x128xbf16> -> vector<2x4x4x128xbf16>
    %106 = vector.extract_strided_slice %105 {offsets = [0, 0, 0, 0], sizes = [2, 2, 2, 128], strides = [1, 1, 1, 1]} : vector<2x4x4x128xbf16> to vector<2x2x2x128xbf16>
    %107 = vector.extract_strided_slice %105 {offsets = [0, 0, 1, 0], sizes = [2, 2, 2, 128], strides = [1, 1, 1, 1]} : vector<2x4x4x128xbf16> to vector<2x2x2x128xbf16>
    %108 = vector.extract_strided_slice %105 {offsets = [0, 0, 2, 0], sizes = [2, 2, 2, 128], strides = [1, 1, 1, 1]} : vector<2x4x4x128xbf16> to vector<2x2x2x128xbf16>
    %109 = vector.extract_strided_slice %105 {offsets = [0, 1, 0, 0], sizes = [2, 2, 2, 128], strides = [1, 1, 1, 1]} : vector<2x4x4x128xbf16> to vector<2x2x2x128xbf16>
    %110 = vector.extract_strided_slice %105 {offsets = [0, 1, 1, 0], sizes = [2, 2, 2, 128], strides = [1, 1, 1, 1]} : vector<2x4x4x128xbf16> to vector<2x2x2x128xbf16>
    %111 = vector.extract_strided_slice %105 {offsets = [0, 1, 2, 0], sizes = [2, 2, 2, 128], strides = [1, 1, 1, 1]} : vector<2x4x4x128xbf16> to vector<2x2x2x128xbf16>
    %112 = vector.extract_strided_slice %105 {offsets = [0, 2, 0, 0], sizes = [2, 2, 2, 128], strides = [1, 1, 1, 1]} : vector<2x4x4x128xbf16> to vector<2x2x2x128xbf16>
    %113 = vector.extract_strided_slice %105 {offsets = [0, 2, 1, 0], sizes = [2, 2, 2, 128], strides = [1, 1, 1, 1]} : vector<2x4x4x128xbf16> to vector<2x2x2x128xbf16>
    %114 = vector.extract_strided_slice %105 {offsets = [0, 2, 2, 0], sizes = [2, 2, 2, 128], strides = [1, 1, 1, 1]} : vector<2x4x4x128xbf16> to vector<2x2x2x128xbf16>
    %115 = tpu.concatenate %106, %107, %108, %109, %110, %111, %112, %113, %114 in 3 : vector<2x2x2x128xbf16>, vector<2x2x2x128xbf16>, vector<2x2x2x128xbf16>, vector<2x2x2x128xbf16>, vector<2x2x2x128xbf16>, vector<2x2x2x128xbf16>, vector<2x2x2x128xbf16>, vector<2x2x2x128xbf16>, vector<2x2x2x128xbf16> -> vector<2x2x2x1152xbf16>
    %116 = vector.shape_cast %115 : vector<2x2x2x1152xbf16> to vector<8x1152xbf16>
    %c0_26 = arith.constant 0 : index
    %c0_27 = arith.constant 0 : index
    %117 = vector.load %arg8[%c0_26, %c0_27] : memref<1152x256xbf16, #tpu.memory_space<vmem>>, vector<1152x256xbf16>
    %cst_28 = arith.constant dense<0.000000e+00> : vector<8x256xf32>
    %118 = tpu.matmul %116, %117, %cst_28 {dimension_numbers = #tpu.dot_dimension_numbers<[1], [0], [0], [1], [0, 0, 1, 1], [], []>} : vector<8x1152xbf16>, vector<1152x256xbf16>, vector<8x256xf32> -> vector<8x256xf32>
    %c0_29 = arith.constant 0 : index
    %c0_30 = arith.constant 0 : index
    %119 = vector.load %arg9[%c0_29, %c0_30] : memref<1x256xf32, #tpu.memory_space<vmem>>, vector<1x256xf32>
    %120 = vector.broadcast %119 : vector<1x256xf32> to vector<8x256xf32>
    %121 = arith.addf %118, %120 : vector<8x256xf32>
    %cst_31 = arith.constant 0.000000e+00 : f32
    %122 = vector.broadcast %cst_31 : f32 to vector<8x256xf32>
    %123 = arith.maximumf %121, %122 : vector<8x256xf32>
    %124 = vector.shape_cast %123 : vector<8x256xf32> to vector<2x2x1x2x256xf32>
    %125 = vector.extract_strided_slice %124 {offsets = [0, 0, 0, 0, 0], sizes = [2, 2, 1, 1, 256], strides = [1, 1, 1, 1, 1]} : vector<2x2x1x2x256xf32> to vector<2x2x1x1x256xf32>
    %126 = vector.shape_cast %125 : vector<2x2x1x1x256xf32> to vector<2x2x1x256xf32>
    %127 = vector.extract_strided_slice %124 {offsets = [0, 0, 0, 1, 0], sizes = [2, 2, 1, 1, 256], strides = [1, 1, 1, 1, 1]} : vector<2x2x1x2x256xf32> to vector<2x2x1x1x256xf32>
    %128 = vector.shape_cast %127 : vector<2x2x1x1x256xf32> to vector<2x2x1x256xf32>
    %129 = arith.maximumf %126, %128 : vector<2x2x1x256xf32>
    %130 = vector.shape_cast %129 : vector<2x2x1x256xf32> to vector<2x1x2x1x256xf32>
    %131 = vector.extract_strided_slice %130 {offsets = [0, 0, 0, 0, 0], sizes = [2, 1, 1, 1, 256], strides = [1, 1, 1, 1, 1]} : vector<2x1x2x1x256xf32> to vector<2x1x1x1x256xf32>
    %132 = vector.shape_cast %131 : vector<2x1x1x1x256xf32> to vector<2x1x1x256xf32>
    %133 = vector.extract_strided_slice %130 {offsets = [0, 0, 1, 0, 0], sizes = [2, 1, 1, 1, 256], strides = [1, 1, 1, 1, 1]} : vector<2x1x2x1x256xf32> to vector<2x1x1x1x256xf32>
    %134 = vector.shape_cast %133 : vector<2x1x1x1x256xf32> to vector<2x1x1x256xf32>
    %135 = arith.maximumf %132, %134 : vector<2x1x1x256xf32>
    %136 = vector.shape_cast %135 : vector<2x1x1x256xf32> to vector<2x256xf32>
    %137 = arith.truncf %136 : vector<2x256xf32> to vector<2x256xbf16>
    %c0_32 = arith.constant 0 : index
    %c0_33 = arith.constant 0 : index
    %138 = vector.load %arg10[%c0_32, %c0_33] : memref<256x128xbf16, #tpu.memory_space<vmem>>, vector<256x128xbf16>
    %cst_34 = arith.constant dense<0.000000e+00> : vector<2x128xf32>
    %139 = tpu.matmul %137, %138, %cst_34 {dimension_numbers = #tpu.dot_dimension_numbers<[1], [0], [0], [1], [0, 0, 1, 1], [], []>} : vector<2x256xbf16>, vector<256x128xbf16>, vector<2x128xf32> -> vector<2x128xf32>
    %c0_35 = arith.constant 0 : index
    %c0_36 = arith.constant 0 : index
    %140 = vector.load %arg11[%c0_35, %c0_36] : memref<1x128xf32, #tpu.memory_space<vmem>>, vector<1x128xf32>
    %141 = vector.broadcast %140 : vector<1x128xf32> to vector<2x128xf32>
    %142 = arith.addf %139, %141 : vector<2x128xf32>
    %cst_37 = arith.constant 0.000000e+00 : f32
    %143 = vector.broadcast %cst_37 : f32 to vector<2x128xf32>
    %144 = arith.maximumf %142, %143 : vector<2x128xf32>
    %145 = arith.truncf %144 : vector<2x128xf32> to vector<2x128xbf16>
    %c0_38 = arith.constant 0 : index
    %c0_39 = arith.constant 0 : index
    %146 = vector.load %arg12[%c0_38, %c0_39] : memref<128x10xbf16, #tpu.memory_space<vmem>>, vector<128x10xbf16>
    %cst_40 = arith.constant dense<0.000000e+00> : vector<2x10xf32>
    %147 = tpu.matmul %145, %146, %cst_40 {dimension_numbers = #tpu.dot_dimension_numbers<[1], [0], [0], [1], [0, 0, 1, 1], [], []>} : vector<2x128xbf16>, vector<128x10xbf16>, vector<2x10xf32> -> vector<2x10xf32>
    %c0_41 = arith.constant 0 : index
    %c0_42 = arith.constant 0 : index
    %148 = vector.load %arg13[%c0_41, %c0_42] : memref<1x10xf32, #tpu.memory_space<vmem>>, vector<1x10xf32>
    %149 = vector.broadcast %148 : vector<1x10xf32> to vector<2x10xf32>
    %150 = arith.addf %147, %149 : vector<2x10xf32>
    %c0_43 = arith.constant 0 : index
    %c0_44 = arith.constant 0 : index
    %c0_45 = arith.constant 0 : index
    %151 = vector.load %arg14[%c0_43, %c0_44, %c0_45] : memref<1x2x10xf32, #tpu.memory_space<vmem>>, vector<1x2x10xf32>
    %152 = vector.shape_cast %151 : vector<1x2x10xf32> to vector<2x10xf32>
    %153 = vector.shape_cast %150 : vector<2x10xf32> to vector<1x2x10xf32>
    tpu.vector_store %arg14[%c0_43, %c0_44, %c0_45], %153 {strides = array<i32>} : memref<1x2x10xf32, #tpu.memory_space<vmem>>, vector<1x2x10xf32>,
    return
  }
  func.func @transform_0(%arg0: i32) -> (i32, i32, i32, i32) {
    %c0_i32 = arith.constant 0 : i32
    %c0_i32_0 = arith.constant 0 : i32
    %c0_i32_1 = arith.constant 0 : i32
    %c0_i32_2 = arith.constant 0 : i32
    return %arg0, %c0_i32, %c0_i32_0, %c0_i32_1 : i32, i32, i32, i32
  }
  func.func @transform_1(%arg0: i32) -> (i32, i32) {
    %c0_i32 = arith.constant 0 : i32
    %c0_i32_0 = arith.constant 0 : i32
    %c0_i32_1 = arith.constant 0 : i32
    return %c0_i32, %c0_i32_0 : i32, i32
  }
  func.func @transform_2(%arg0: i32) -> (i32, i32) {
    %c0_i32 = arith.constant 0 : i32
    %c0_i32_0 = arith.constant 0 : i32
    %c0_i32_1 = arith.constant 0 : i32
    return %c0_i32, %c0_i32_0 : i32, i32
  }
  func.func @transform_3(%arg0: i32) -> (i32, i32) {
    %c0_i32 = arith.constant 0 : i32
    %c0_i32_0 = arith.constant 0 : i32
    %c0_i32_1 = arith.constant 0 : i32
    return %c0_i32, %c0_i32_0 : i32, i32
  }
  func.func @transform_4(%arg0: i32) -> (i32, i32) {
    %c0_i32 = arith.constant 0 : i32
    %c0_i32_0 = arith.constant 0 : i32
    %c0_i32_1 = arith.constant 0 : i32
    return %c0_i32, %c0_i32_0 : i32, i32
  }
  func.func @transform_5(%arg0: i32) -> (i32, i32) {
    %c0_i32 = arith.constant 0 : i32
    %c0_i32_0 = arith.constant 0 : i32
    %c0_i32_1 = arith.constant 0 : i32
    return %c0_i32, %c0_i32_0 : i32, i32
  }
  func.func @transform_6(%arg0: i32) -> (i32, i32) {
    %c0_i32 = arith.constant 0 : i32
    %c0_i32_0 = arith.constant 0 : i32
    %c0_i32_1 = arith.constant 0 : i32
    return %c0_i32, %c0_i32_0 : i32, i32
  }
  func.func @transform_7(%arg0: i32) -> (i32, i32) {
    %c0_i32 = arith.constant 0 : i32
    %c0_i32_0 = arith.constant 0 : i32
    %c0_i32_1 = arith.constant 0 : i32
    return %c0_i32, %c0_i32_0 : i32, i32
  }
  func.func @transform_8(%arg0: i32) -> (i32, i32) {
    %c0_i32 = arith.constant 0 : i32
    %c0_i32_0 = arith.constant 0 : i32
    %c0_i32_1 = arith.constant 0 : i32
    return %c0_i32, %c0_i32_0 : i32, i32
  }
  func.func @transform_9(%arg0: i32) -> (i32, i32) {
    %c0_i32 = arith.constant 0 : i32
    %c0_i32_0 = arith.constant 0 : i32
    %c0_i32_1 = arith.constant 0 : i32
    return %c0_i32, %c0_i32_0 : i32, i32
  }
  func.func @transform_10(%arg0: i32) -> (i32, i32) {
    %c0_i32 = arith.constant 0 : i32
    %c0_i32_0 = arith.constant 0 : i32
    %c0_i32_1 = arith.constant 0 : i32
    return %c0_i32, %c0_i32_0 : i32, i32
  }
  func.func @transform_11(%arg0: i32) -> (i32, i32) {
    %c0_i32 = arith.constant 0 : i32
    %c0_i32_0 = arith.constant 0 : i32
    %c0_i32_1 = arith.constant 0 : i32
    return %c0_i32, %c0_i32_0 : i32, i32
  }
  func.func @transform_12(%arg0: i32) -> (i32, i32) {
    %c0_i32 = arith.constant 0 : i32
    %c0_i32_0 = arith.constant 0 : i32
    %c0_i32_1 = arith.constant 0 : i32
    return %c0_i32, %c0_i32_0 : i32, i32
  }
  func.func @transform_13(%arg0: i32) -> (i32, i32, i32) {
    %c0_i32 = arith.constant 0 : i32
    %c0_i32_0 = arith.constant 0 : i32
    %c0_i32_1 = arith.constant 0 : i32
    return %arg0, %c0_i32, %c0_i32_0 : i32, i32, i32
  }
}

</mosaic_0001>

<llo_original>
// kernel: simple_conv_net_forward.1
$region0: #{simple_conv_net_forward.1}
  #allocation0 [shape = 'u32[]', space=smem, size = 0x4, offset = 0x4, fixed_abs, tag = 'smem constant byte address 0x4 - core index']
  #allocation1 [shape = 'u32[72,128]{1,0:T(1,128)}', space=vmem, size = 0x9000, scoped, tag = 'internal scratch']
  %s0 = inlined_call_operand.vmem [shape: bf16[2,18,18,3], index: 0, kind: input, shape index: {}]
  %s1 = inlined_call_operand.vmem [shape: bf16[27,32], index: 1, kind: input, shape index: {}]
  %s2 = inlined_call_operand.vmem [shape: f32[1,32], index: 2, kind: input, shape index: {}]
  %s3 = inlined_call_operand.vmem [shape: bf16[288,64], index: 3, kind: input, shape index: {}]
  %s4 = inlined_call_operand.vmem [shape: f32[1,64], index: 4, kind: input, shape index: {}]
  %s5 = inlined_call_operand.vmem [shape: bf16[576,128], index: 5, kind: input, shape index: {}]
  %s6 = inlined_call_operand.vmem [shape: f32[1,128], index: 6, kind: input, shape index: {}]
  %s7 = inlined_call_operand.hbm [shape: bf16[1152,256], index: 7, kind: input, shape index: {}]
  %s8 = inlined_call_operand.vmem [shape: f32[1,256], index: 8, kind: input, shape index: {}]
  %s9 = inlined_call_operand.vmem [shape: bf16[256,128], index: 9, kind: input, shape index: {}]
  %s10 = inlined_call_operand.vmem [shape: f32[1,128], index: 10, kind: input, shape index: {}]
  %s11 = inlined_call_operand.vmem [shape: bf16[128,10], index: 11, kind: input, shape index: {}]
  %s12 = inlined_call_operand.vmem [shape: f32[1,10], index: 12, kind: input, shape index: {}]
  %s13 = inlined_call_operand.hbm [shape: f32[1,2,10], index: 13, kind: output, shape index: {}]
  %s14 = sld [smem:[#allocation0]]
  $region66: #{simple_conv_net_forward.1} parent=0
    _
  %s16 = ssub.s32 1, %s14
  %s17 = scalar_select 0, %s16, %s14
  $region1: #{simple_conv_net_forward.1} parent=0
    #allocation2 [shape = 'u8[589824]{0}', space=vmem, size = 0x90000, scoped, tag = 'input window, operand 7, single buffered']
    #allocation3 [shape = 's32[1]{0}', space=sflag, size = 0x4, scoped, tag = 'scoped memory for simple_conv_net_forward.1']
    #allocation4 [shape = 's32[1]{0}', space=sflag, size = 0x4, scoped, tag = 'scoped memory for simple_conv_net_forward.1']
    #allocation5 [shape = 'u8[1024]{0}', space=vmem, size = 0x400, scoped, tag = 'output window, operand 0, single buffered']
    %18 = vsyncpa [#allocation3], 0
    %19 = vsyncpa [#allocation4], 0
    // Predicated region
    $region2: #{simple_conv_net_forward.1} parent=1 // pred_check
      _
    $region3: #{simple_conv_net_forward.1} parent=1 // pred_check_branch
      %21 = sbr.rel (0) target = $region5
    $region4: #{simple_conv_net_forward.1} parent=1 // pred_region
      _
    $region5: #{simple_conv_net_forward.1} parent=1 // pred_fallthru
      _
    // Predicated region
    $region6: #{simple_conv_net_forward.1} parent=1 // pred_check
      _
    $region7: #{simple_conv_net_forward.1} parent=1 // pred_check_branch
      %23 = sbr.rel (0) target = $region9
    $region8: #{simple_conv_net_forward.1} parent=1 // pred_region
      _
    $region9: #{simple_conv_net_forward.1} parent=1 // pred_fallthru
      _
    // Predicated region
    $region10: #{simple_conv_net_forward.1} parent=1 // pred_check
      _
    $region11: #{simple_conv_net_forward.1} parent=1 // pred_check_branch
      %25 = sbr.rel (0) target = $region13
    $region12: #{simple_conv_net_forward.1} parent=1 // pred_region
      _
    $region13: #{simple_conv_net_forward.1} parent=1 // pred_fallthru
      _
    // Predicated region
    $region14: #{simple_conv_net_forward.1} parent=1 // pred_check
      _
    $region15: #{simple_conv_net_forward.1} parent=1 // pred_check_branch
      %27 = sbr.rel (0) target = $region17
    $region16: #{simple_conv_net_forward.1} parent=1 // pred_region
      _
    $region17: #{simple_conv_net_forward.1} parent=1 // pred_fallthru
      _
    // Predicated region
    $region18: #{simple_conv_net_forward.1} parent=1 // pred_check
      _
    $region19: #{simple_conv_net_forward.1} parent=1 // pred_check_branch
      %29 = sbr.rel (0) target = $region21
    $region20: #{simple_conv_net_forward.1} parent=1 // pred_region
      _
    $region21: #{simple_conv_net_forward.1} parent=1 // pred_fallthru
      _
    // Predicated region
    $region22: #{simple_conv_net_forward.1} parent=1 // pred_check
      _
    $region23: #{simple_conv_net_forward.1} parent=1 // pred_check_branch
      %31 = sbr.rel (0) target = $region25
    $region24: #{simple_conv_net_forward.1} parent=1 // pred_region
      _
    $region25: #{simple_conv_net_forward.1} parent=1 // pred_fallthru
      _
    // Predicated region
    $region26: #{simple_conv_net_forward.1} parent=1 // pred_check
      _
    $region27: #{simple_conv_net_forward.1} parent=1 // pred_check_branch
      %33 = sbr.rel (0) target = $region29
    $region28: #{simple_conv_net_forward.1} parent=1 // pred_region
      _
    $region29: #{simple_conv_net_forward.1} parent=1 // pred_fallthru
      _
    // Predicated region
    $region30: #{simple_conv_net_forward.1} parent=1 // pred_check
      _
    $region31: #{simple_conv_net_forward.1} parent=1 // pred_check_branch
      %35 = sbr.rel (0) target = $region33
    $region32: #{simple_conv_net_forward.1} parent=1 // pred_region
      %37 = vsyncadd [#allocation3], 0
      %s38 = sshll.u32 %s7, 4
      %s39 = int_to_ptr.hbm [resolvable:$true] %s38
      %s40 = sshll.u32 [#allocation2], 4
      %s41 = int_to_ptr.vmem [resolvable:$true] %s40
      %46 = dma.hbm_to_vmem [thread:$0]  %s39, 18432, %s41, [#allocation3], 128, 128, 8
    $region33: #{simple_conv_net_forward.1} parent=1 // pred_fallthru
      _
    // Predicated region
    $region34: #{simple_conv_net_forward.1} parent=1 // pred_check
      _
    $region35: #{simple_conv_net_forward.1} parent=1 // pred_check_branch
      %48 = sbr.rel (0) target = $region37
    $region36: #{simple_conv_net_forward.1} parent=1 // pred_region
      _
    $region37: #{simple_conv_net_forward.1} parent=1 // pred_fallthru
      _
    // Predicated region
    $region38: #{simple_conv_net_forward.1} parent=1 // pred_check
      _
    $region39: #{simple_conv_net_forward.1} parent=1 // pred_check_branch
      %50 = sbr.rel (0) target = $region41
    $region40: #{simple_conv_net_forward.1} parent=1 // pred_region
      _
    $region41: #{simple_conv_net_forward.1} parent=1 // pred_fallthru
      _
    // Predicated region
    $region42: #{simple_conv_net_forward.1} parent=1 // pred_check
      _
    $region43: #{simple_conv_net_forward.1} parent=1 // pred_check_branch
      %52 = sbr.rel (0) target = $region45
    $region44: #{simple_conv_net_forward.1} parent=1 // pred_region
      _
    $region45: #{simple_conv_net_forward.1} parent=1 // pred_fallthru
      _
    // Predicated region
    $region46: #{simple_conv_net_forward.1} parent=1 // pred_check
      _
    $region47: #{simple_conv_net_forward.1} parent=1 // pred_check_branch
      %54 = sbr.rel (0) target = $region49
    $region48: #{simple_conv_net_forward.1} parent=1 // pred_region
      _
    $region49: #{simple_conv_net_forward.1} parent=1 // pred_fallthru
      _
    // Predicated region
    $region50: #{simple_conv_net_forward.1} parent=1 // pred_check
      _
    $region51: #{simple_conv_net_forward.1} parent=1 // pred_check_branch
      %56 = sbr.rel (0) target = $region53
    $region52: #{simple_conv_net_forward.1} parent=1 // pred_region
      _
    $region53: #{simple_conv_net_forward.1} parent=1 // pred_fallthru
      _
    // Predicated region
    $region54: #{simple_conv_net_forward.1} parent=1 // pred_check
      _
    $region55: #{simple_conv_net_forward.1} parent=1 // pred_check_branch
      %58 = sbr.rel (0) target = $region57
    $region56: #{simple_conv_net_forward.1} parent=1 // pred_region
      %60 = dma.done [#allocation3], 18432
    $region57: #{simple_conv_net_forward.1} parent=1 // pred_fallthru
      _
    %v62 = vld [vmem:[%s0] sm:$0xf]
    %v63 = vld [vmem:[%s0 + $0x4] sm:$0xf]
    %v64 = vld [vmem:[%s0 + $0x8] sm:$0x1]
    %v65 = vld [vmem:[%s0 + $0xc] sm:$0xf]
    %v66 = vld [vmem:[%s0 + $0x10] sm:$0xf]
    %v67 = vld [vmem:[%s0 + $0x14] sm:$0x1]
    %v68 = vld [vmem:[%s0 + $0x18] sm:$0xf]
    %v69 = vld [vmem:[%s0 + $0x1c] sm:$0xf]
    %v70 = vld [vmem:[%s0 + $0x20] sm:$0x1]
    %v71 = vld [vmem:[%s0 + $0x24] sm:$0xf]
    %v72 = vld [vmem:[%s0 + $0x28] sm:$0xf]
    %v73 = vld [vmem:[%s0 + $0x2c] sm:$0x1]
    %v74 = vld [vmem:[%s0 + $0x30] sm:$0xf]
    %v75 = vld [vmem:[%s0 + $0x34] sm:$0xf]
    %v76 = vld [vmem:[%s0 + $0x38] sm:$0x1]
    %v77 = vld [vmem:[%s0 + $0x3c] sm:$0xf]
    %v78 = vld [vmem:[%s0 + $0x40] sm:$0xf]
    %v79 = vld [vmem:[%s0 + $0x44] sm:$0x1]
    %v80 = vld [vmem:[%s0 + $0x48] sm:$0xf]
    %v81 = vld [vmem:[%s0 + $0x4c] sm:$0xf]
    %v82 = vld [vmem:[%s0 + $0x50] sm:$0x1]
    %v83 = vld [vmem:[%s0 + $0x54] sm:$0xf]
    %v84 = vld [vmem:[%s0 + $0x58] sm:$0xf]
    %v85 = vld [vmem:[%s0 + $0x5c] sm:$0x1]
    %v86 = vld [vmem:[%s0 + $0x60] sm:$0xf]
    %v87 = vld [vmem:[%s0 + $0x64] sm:$0xf]
    %v88 = vld [vmem:[%s0 + $0x68] sm:$0x1]
    %v89 = vld [vmem:[%s0 + $0x6c] sm:$0xf]
    %v90 = vld [vmem:[%s0 + $0x70] sm:$0xf]
    %v91 = vld [vmem:[%s0 + $0x74] sm:$0x1]
    %v92 = vld [vmem:[%s0 + $0x78] sm:$0xf]
    %v93 = vld [vmem:[%s0 + $0x7c] sm:$0xf]
    %v94 = vld [vmem:[%s0 + $0x80] sm:$0x1]
    %v95 = vld [vmem:[%s0 + $0x84] sm:$0xf]
    %v96 = vld [vmem:[%s0 + $0x88] sm:$0xf]
    %v97 = vld [vmem:[%s0 + $0x8c] sm:$0x1]
    %v98 = vld [vmem:[%s0 + $0x90] sm:$0xf]
    %v99 = vld [vmem:[%s0 + $0x94] sm:$0xf]
    %v100 = vld [vmem:[%s0 + $0x98] sm:$0x1]
    %v101 = vld [vmem:[%s0 + $0x9c] sm:$0xf]
    %v102 = vld [vmem:[%s0 + $0xa0] sm:$0xf]
    %v103 = vld [vmem:[%s0 + $0xa4] sm:$0x1]
    %v104 = vld [vmem:[%s0 + $0xa8] sm:$0xf]
    %v105 = vld [vmem:[%s0 + $0xac] sm:$0xf]
    %v106 = vld [vmem:[%s0 + $0xb0] sm:$0x1]
    %v107 = vld [vmem:[%s0 + $0xb4] sm:$0xf]
    %v108 = vld [vmem:[%s0 + $0xb8] sm:$0xf]
    %v109 = vld [vmem:[%s0 + $0xbc] sm:$0x1]
    %v110 = vld [vmem:[%s0 + $0xc0] sm:$0xf]
    %v111 = vld [vmem:[%s0 + $0xc4] sm:$0xf]
    %v112 = vld [vmem:[%s0 + $0xc8] sm:$0x1]
    %v113 = vld [vmem:[%s0 + $0xcc] sm:$0xf]
    %v114 = vld [vmem:[%s0 + $0xd0] sm:$0xf]
    %v115 = vld [vmem:[%s0 + $0xd4] sm:$0x1]
    %v116 = vld [vmem:[%s0 + $0xd8] sm:$0xf]
    %v117 = vld [vmem:[%s0 + $0xdc] sm:$0xf]
    %v118 = vld [vmem:[%s0 + $0xe0] sm:$0x1]
    %v119 = vld [vmem:[%s0 + $0xe4] sm:$0xf]
    %v120 = vld [vmem:[%s0 + $0xe8] sm:$0xf]
    %v121 = vld [vmem:[%s0 + $0xec] sm:$0x1]
    %v122 = vld [vmem:[%s0 + $0xf0] sm:$0xf]
    %v123 = vld [vmem:[%s0 + $0xf4] sm:$0xf]
    %v124 = vld [vmem:[%s0 + $0xf8] sm:$0x1]
    %v125 = vld [vmem:[%s0 + $0xfc] sm:$0xf]
    %v126 = vld [vmem:[%s0 + $0x100] sm:$0xf]
    %v127 = vld [vmem:[%s0 + $0x104] sm:$0x1]
    %v128 = vld [vmem:[%s0 + $0x108] sm:$0xf]
    %v129 = vld [vmem:[%s0 + $0x10c] sm:$0xf]
    %v130 = vld [vmem:[%s0 + $0x110] sm:$0x1]
    %v131 = vld [vmem:[%s0 + $0x114] sm:$0xf]
    %v132 = vld [vmem:[%s0 + $0x118] sm:$0xf]
    %v133 = vld [vmem:[%s0 + $0x11c] sm:$0x1]
    %v134 = vld [vmem:[%s0 + $0x120] sm:$0xf]
    %v135 = vld [vmem:[%s0 + $0x124] sm:$0xf]
    %v136 = vld [vmem:[%s0 + $0x128] sm:$0x1]
    %v137 = vld [vmem:[%s0 + $0x12c] sm:$0xf]
    %v138 = vld [vmem:[%s0 + $0x130] sm:$0xf]
    %v139 = vld [vmem:[%s0 + $0x134] sm:$0x1]
    %v140 = vld [vmem:[%s0 + $0x138] sm:$0xf]
    %v141 = vld [vmem:[%s0 + $0x13c] sm:$0xf]
    %v142 = vld [vmem:[%s0 + $0x140] sm:$0x1]
    %v143 = vld [vmem:[%s0 + $0x144] sm:$0xf]
    %v144 = vld [vmem:[%s0 + $0x148] sm:$0xf]
    %v145 = vld [vmem:[%s0 + $0x14c] sm:$0x1]
    %v146 = vld [vmem:[%s0 + $0x150] sm:$0xf]
    %v147 = vld [vmem:[%s0 + $0x154] sm:$0xf]
    %v148 = vld [vmem:[%s0 + $0x158] sm:$0x1]
    %v149 = vld [vmem:[%s0 + $0x15c] sm:$0xf]
    %v150 = vld [vmem:[%s0 + $0x160] sm:$0xf]
    %v151 = vld [vmem:[%s0 + $0x164] sm:$0x1]
    %v152 = vld [vmem:[%s0 + $0x168] sm:$0xf]
    %v153 = vld [vmem:[%s0 + $0x16c] sm:$0xf]
    %v154 = vld [vmem:[%s0 + $0x170] sm:$0x1]
    %v155 = vld [vmem:[%s0 + $0x174] sm:$0xf]
    %v156 = vld [vmem:[%s0 + $0x178] sm:$0xf]
    %v157 = vld [vmem:[%s0 + $0x17c] sm:$0x1]
    %v158 = vld [vmem:[%s0 + $0x180] sm:$0xf]
    %v159 = vld [vmem:[%s0 + $0x184] sm:$0xf]
    %v160 = vld [vmem:[%s0 + $0x188] sm:$0x1]
    %v161 = vld [vmem:[%s0 + $0x18c] sm:$0xf]
    %v162 = vld [vmem:[%s0 + $0x190] sm:$0xf]
    %v163 = vld [vmem:[%s0 + $0x194] sm:$0x1]
    %v164 = vld [vmem:[%s0 + $0x198] sm:$0xf]
    %v165 = vld [vmem:[%s0 + $0x19c] sm:$0xf]
    %v166 = vld [vmem:[%s0 + $0x1a0] sm:$0x1]
    %v167 = vld [vmem:[%s0 + $0x1a4] sm:$0xf]
    %v168 = vld [vmem:[%s0 + $0x1a8] sm:$0xf]
    %v169 = vld [vmem:[%s0 + $0x1ac] sm:$0x1]
    %v234 = vunpack.c.l.b16 %v62
    %v235 = vunpack.c.l.b16 %v63
    %v236 = vunpack.c.l.b16 %v65
    %v237 = vunpack.c.l.b16 %v66
    %v238 = vunpack.c.l.b16 %v68
    %v239 = vunpack.c.l.b16 %v69
    %v240 = vunpack.c.l.b16 %v71
    %v241 = vunpack.c.l.b16 %v72
    %v242 = vunpack.c.l.b16 %v74
    %v243 = vunpack.c.l.b16 %v75
    %v244 = vunpack.c.l.b16 %v77
    %v245 = vunpack.c.l.b16 %v78
    %v246 = vunpack.c.l.b16 %v80
    %v247 = vunpack.c.l.b16 %v81
    %v248 = vunpack.c.l.b16 %v83
    %v249 = vunpack.c.l.b16 %v84
    %v250 = vunpack.c.l.b16 %v86
    %v251 = vunpack.c.l.b16 %v87
    %v252 = vunpack.c.l.b16 %v89
    %v253 = vunpack.c.l.b16 %v90
    %v254 = vunpack.c.l.b16 %v92
    %v255 = vunpack.c.l.b16 %v93
    %v256 = vunpack.c.l.b16 %v95
    %v257 = vunpack.c.l.b16 %v96
    %v258 = vunpack.c.l.b16 %v98
    %v259 = vunpack.c.l.b16 %v99
    %v260 = vunpack.c.l.b16 %v101
    %v261 = vunpack.c.l.b16 %v102
    %v262 = vunpack.c.l.b16 %v104
    %v263 = vunpack.c.l.b16 %v105
    %v264 = vunpack.c.l.b16 %v107
    %v265 = vunpack.c.l.b16 %v108
    %v266 = vunpack.c.l.b16 %v116
    %v267 = vunpack.c.l.b16 %v117
    %v268 = vunpack.c.l.b16 %v119
    %v269 = vunpack.c.l.b16 %v120
    %v270 = vunpack.c.l.b16 %v122
    %v271 = vunpack.c.l.b16 %v123
    %v272 = vunpack.c.l.b16 %v125
    %v273 = vunpack.c.l.b16 %v126
    %v274 = vunpack.c.l.b16 %v128
    %v275 = vunpack.c.l.b16 %v129
    %v276 = vunpack.c.l.b16 %v131
    %v277 = vunpack.c.l.b16 %v132
    %v278 = vunpack.c.l.b16 %v134
    %v279 = vunpack.c.l.b16 %v135
    %v280 = vunpack.c.l.b16 %v137
    %v281 = vunpack.c.l.b16 %v138
    %v282 = vunpack.c.l.b16 %v140
    %v283 = vunpack.c.l.b16 %v141
    %v284 = vunpack.c.l.b16 %v143
    %v285 = vunpack.c.l.b16 %v144
    %v286 = vunpack.c.l.b16 %v146
    %v287 = vunpack.c.l.b16 %v147
    %v288 = vunpack.c.l.b16 %v149
    %v289 = vunpack.c.l.b16 %v150
    %v290 = vunpack.c.l.b16 %v152
    %v291 = vunpack.c.l.b16 %v153
    %v292 = vunpack.c.l.b16 %v155
    %v293 = vunpack.c.l.b16 %v156
    %v294 = vunpack.c.l.b16 %v158
    %v295 = vunpack.c.l.b16 %v159
    %v296 = vunpack.c.l.b16 %v161
    %v297 = vunpack.c.l.b16 %v162
    %v298 = vpack.c.b16 %v235, %v234
    %v299 = vpack.c.b16 %v237, %v236
    %v300 = vpack.c.b16 %v239, %v238
    %v301 = vpack.c.b16 %v241, %v240
    %v302 = vpack.c.b16 %v243, %v242
    %v303 = vpack.c.b16 %v245, %v244
    %v304 = vpack.c.b16 %v247, %v246
    %v305 = vpack.c.b16 %v249, %v248
    %v306 = vpack.c.b16 %v251, %v250
    %v307 = vpack.c.b16 %v253, %v252
    %v308 = vpack.c.b16 %v255, %v254
    %v309 = vpack.c.b16 %v257, %v256
    %v310 = vpack.c.b16 %v259, %v258
    %v311 = vpack.c.b16 %v261, %v260
    %v312 = vpack.c.b16 %v263, %v262
    %v313 = vpack.c.b16 %v265, %v264
    %v314 = vpack.c.b16 %v267, %v266
    %v315 = vpack.c.b16 %v269, %v268
    %v316 = vpack.c.b16 %v271, %v270
    %v317 = vpack.c.b16 %v273, %v272
    %v318 = vpack.c.b16 %v275, %v274
    %v319 = vpack.c.b16 %v277, %v276
    %v320 = vpack.c.b16 %v279, %v278
    %v321 = vpack.c.b16 %v281, %v280
    %v322 = vpack.c.b16 %v283, %v282
    %v323 = vpack.c.b16 %v285, %v284
    %v324 = vpack.c.b16 %v287, %v286
    %v325 = vpack.c.b16 %v289, %v288
    %v326 = vpack.c.b16 %v291, %v290
    %v327 = vpack.c.b16 %v293, %v292
    %v328 = vpack.c.b16 %v295, %v294
    %v329 = vpack.c.b16 %v297, %v296
    %v362 = vunpack.c.l.b16 %v64
    %v363 = vunpack.c.l.b16 %v67
    %v364 = vunpack.c.l.b16 %v70
    %v365 = vunpack.c.l.b16 %v73
    %v366 = vunpack.c.l.b16 %v76
    %v367 = vunpack.c.l.b16 %v79
    %v368 = vunpack.c.l.b16 %v82
    %v369 = vunpack.c.l.b16 %v85
    %v370 = vunpack.c.l.b16 %v88
    %v371 = vunpack.c.l.b16 %v91
    %v372 = vunpack.c.l.b16 %v94
    %v373 = vunpack.c.l.b16 %v97
    %v374 = vunpack.c.l.b16 %v100
    %v375 = vunpack.c.l.b16 %v103
    %v376 = vunpack.c.l.b16 %v106
    %v377 = vunpack.c.l.b16 %v109
    %v378 = vunpack.c.l.b16 %v118
    %v379 = vunpack.c.l.b16 %v121
    %v380 = vunpack.c.l.b16 %v124
    %v381 = vunpack.c.l.b16 %v127
    %v382 = vunpack.c.l.b16 %v130
    %v383 = vunpack.c.l.b16 %v133
    %v384 = vunpack.c.l.b16 %v136
    %v385 = vunpack.c.l.b16 %v139
    %v386 = vunpack.c.l.b16 %v142
    %v387 = vunpack.c.l.b16 %v145
    %v388 = vunpack.c.l.b16 %v148
    %v389 = vunpack.c.l.b16 %v151
    %v390 = vunpack.c.l.b16 %v154
    %v391 = vunpack.c.l.b16 %v157
    %v392 = vunpack.c.l.b16 %v160
    %v393 = vunpack.c.l.b16 %v163
    %v394 = vpack.c.b16 %v362, %v362
    %v395 = vpack.c.b16 %v363, %v363
    %v396 = vpack.c.b16 %v364, %v364
    %v397 = vpack.c.b16 %v365, %v365
    %v398 = vpack.c.b16 %v366, %v366
    %v399 = vpack.c.b16 %v367, %v367
    %v400 = vpack.c.b16 %v368, %v368
    %v401 = vpack.c.b16 %v369, %v369
    %v402 = vpack.c.b16 %v370, %v370
    %v403 = vpack.c.b16 %v371, %v371
    %v404 = vpack.c.b16 %v372, %v372
    %v405 = vpack.c.b16 %v373, %v373
    %v406 = vpack.c.b16 %v374, %v374
    %v407 = vpack.c.b16 %v375, %v375
    %v408 = vpack.c.b16 %v376, %v376
    %v409 = vpack.c.b16 %v377, %v377
    %v410 = vpack.c.b16 %v378, %v378
    %v411 = vpack.c.b16 %v379, %v379
    %v412 = vpack.c.b16 %v380, %v380
    %v413 = vpack.c.b16 %v381, %v381
    %v414 = vpack.c.b16 %v382, %v382
    %v415 = vpack.c.b16 %v383, %v383
    %v416 = vpack.c.b16 %v384, %v384
    %v417 = vpack.c.b16 %v385, %v385
    %v418 = vpack.c.b16 %v386, %v386
    %v419 = vpack.c.b16 %v387, %v387
    %v420 = vpack.c.b16 %v388, %v388
    %v421 = vpack.c.b16 %v389, %v389
    %v422 = vpack.c.b16 %v390, %v390
    %v423 = vpack.c.b16 %v391, %v391
    %v424 = vpack.c.b16 %v392, %v392
    %v425 = vpack.c.b16 %v393, %v393
    %vm426 = vsmask.f32 7424
    %v428 = vshrl.u32 %v298, 16
    %v430 = vshll.u32 %v298, 16
    %v432 = vrot.slane %v430, 1
    %v433 = vor.u32 %v428, %v432
    %v435 = vshll.u32 %v394, 16
    %v437 = vrot.slane %v435, 1
    %v438 = vsel %vm426, %v433, %v437
    %v440 = vshrl.u32 %v299, 16
    %v442 = vshll.u32 %v299, 16
    %v444 = vrot.slane %v442, 1
    %v445 = vor.u32 %v440, %v444
    %v447 = vshll.u32 %v395, 16
    %v449 = vrot.slane %v447, 1
    %v450 = vsel %vm426, %v445, %v449
    %v452 = vshrl.u32 %v300, 16
    %v454 = vshll.u32 %v300, 16
    %v456 = vrot.slane %v454, 1
    %v457 = vor.u32 %v452, %v456
    %v459 = vshll.u32 %v396, 16
    %v461 = vrot.slane %v459, 1
    %v462 = vsel %vm426, %v457, %v461
    %v464 = vshrl.u32 %v301, 16
    %v466 = vshll.u32 %v301, 16
    %v468 = vrot.slane %v466, 1
    %v469 = vor.u32 %v464, %v468
    %v471 = vshll.u32 %v397, 16
    %v473 = vrot.slane %v471, 1
    %v474 = vsel %vm426, %v469, %v473
    %v476 = vshrl.u32 %v302, 16
    %v478 = vshll.u32 %v302, 16
    %v480 = vrot.slane %v478, 1
    %v481 = vor.u32 %v476, %v480
    %v483 = vshll.u32 %v398, 16
    %v485 = vrot.slane %v483, 1
    %v486 = vsel %vm426, %v481, %v485
    %v488 = vshrl.u32 %v303, 16
    %v490 = vshll.u32 %v303, 16
    %v492 = vrot.slane %v490, 1
    %v493 = vor.u32 %v488, %v492
    %v495 = vshll.u32 %v399, 16
    %v497 = vrot.slane %v495, 1
    %v498 = vsel %vm426, %v493, %v497
    %v500 = vshrl.u32 %v304, 16
    %v502 = vshll.u32 %v304, 16
    %v504 = vrot.slane %v502, 1
    %v505 = vor.u32 %v500, %v504
    %v507 = vshll.u32 %v400, 16
    %v509 = vrot.slane %v507, 1
    %v510 = vsel %vm426, %v505, %v509
    %v512 = vshrl.u32 %v305, 16
    %v514 = vshll.u32 %v305, 16
    %v516 = vrot.slane %v514, 1
    %v517 = vor.u32 %v512, %v516
    %v519 = vshll.u32 %v401, 16
    %v521 = vrot.slane %v519, 1
    %v522 = vsel %vm426, %v517, %v521
    %v524 = vshrl.u32 %v306, 16
    %v526 = vshll.u32 %v306, 16
    %v528 = vrot.slane %v526, 1
    %v529 = vor.u32 %v524, %v528
    %v531 = vshll.u32 %v402, 16
    %v533 = vrot.slane %v531, 1
    %v534 = vsel %vm426, %v529, %v533
    %v536 = vshrl.u32 %v307, 16
    %v538 = vshll.u32 %v307, 16
    %v540 = vrot.slane %v538, 1
    %v541 = vor.u32 %v536, %v540
    %v543 = vshll.u32 %v403, 16
    %v545 = vrot.slane %v543, 1
    %v546 = vsel %vm426, %v541, %v545
    %v548 = vshrl.u32 %v308, 16
    %v550 = vshll.u32 %v308, 16
    %v552 = vrot.slane %v550, 1
    %v553 = vor.u32 %v548, %v552
    %v555 = vshll.u32 %v404, 16
    %v557 = vrot.slane %v555, 1
    %v558 = vsel %vm426, %v553, %v557
    %v560 = vshrl.u32 %v309, 16
    %v562 = vshll.u32 %v309, 16
    %v564 = vrot.slane %v562, 1
    %v565 = vor.u32 %v560, %v564
    %v567 = vshll.u32 %v405, 16
    %v569 = vrot.slane %v567, 1
    %v570 = vsel %vm426, %v565, %v569
    %v572 = vshrl.u32 %v310, 16
    %v574 = vshll.u32 %v310, 16
    %v576 = vrot.slane %v574, 1
    %v577 = vor.u32 %v572, %v576
    %v579 = vshll.u32 %v406, 16
    %v581 = vrot.slane %v579, 1
    %v582 = vsel %vm426, %v577, %v581
    %v584 = vshrl.u32 %v311, 16
    %v586 = vshll.u32 %v311, 16
    %v588 = vrot.slane %v586, 1
    %v589 = vor.u32 %v584, %v588
    %v591 = vshll.u32 %v407, 16
    %v593 = vrot.slane %v591, 1
    %v594 = vsel %vm426, %v589, %v593
    %v596 = vshrl.u32 %v312, 16
    %v598 = vshll.u32 %v312, 16
    %v600 = vrot.slane %v598, 1
    %v601 = vor.u32 %v596, %v600
    %v603 = vshll.u32 %v408, 16
    %v605 = vrot.slane %v603, 1
    %v606 = vsel %vm426, %v601, %v605
    %v608 = vshrl.u32 %v313, 16
    %v610 = vshll.u32 %v313, 16
    %v612 = vrot.slane %v610, 1
    %v613 = vor.u32 %v608, %v612
    %v615 = vshll.u32 %v409, 16
    %v617 = vrot.slane %v615, 1
    %v618 = vsel %vm426, %v613, %v617
    %v620 = vshrl.u32 %v314, 16
    %v622 = vshll.u32 %v314, 16
    %v624 = vrot.slane %v622, 1
    %v625 = vor.u32 %v620, %v624
    %v627 = vshll.u32 %v410, 16
    %v629 = vrot.slane %v627, 1
    %v630 = vsel %vm426, %v625, %v629
    %v632 = vshrl.u32 %v315, 16
    %v634 = vshll.u32 %v315, 16
    %v636 = vrot.slane %v634, 1
    %v637 = vor.u32 %v632, %v636
    %v639 = vshll.u32 %v411, 16
    %v641 = vrot.slane %v639, 1
    %v642 = vsel %vm426, %v637, %v641
    %v644 = vshrl.u32 %v316, 16
    %v646 = vshll.u32 %v316, 16
    %v648 = vrot.slane %v646, 1
    %v649 = vor.u32 %v644, %v648
    %v651 = vshll.u32 %v412, 16
    %v653 = vrot.slane %v651, 1
    %v654 = vsel %vm426, %v649, %v653
    %v656 = vshrl.u32 %v317, 16
    %v658 = vshll.u32 %v317, 16
    %v660 = vrot.slane %v658, 1
    %v661 = vor.u32 %v656, %v660
    %v663 = vshll.u32 %v413, 16
    %v665 = vrot.slane %v663, 1
    %v666 = vsel %vm426, %v661, %v665
    %v668 = vshrl.u32 %v318, 16
    %v670 = vshll.u32 %v318, 16
    %v672 = vrot.slane %v670, 1
    %v673 = vor.u32 %v668, %v672
    %v675 = vshll.u32 %v414, 16
    %v677 = vrot.slane %v675, 1
    %v678 = vsel %vm426, %v673, %v677
    %v680 = vshrl.u32 %v319, 16
    %v682 = vshll.u32 %v319, 16
    %v684 = vrot.slane %v682, 1
    %v685 = vor.u32 %v680, %v684
    %v687 = vshll.u32 %v415, 16
    %v689 = vrot.slane %v687, 1
    %v690 = vsel %vm426, %v685, %v689
    %v692 = vshrl.u32 %v320, 16
    %v694 = vshll.u32 %v320, 16
    %v696 = vrot.slane %v694, 1
    %v697 = vor.u32 %v692, %v696
    %v699 = vshll.u32 %v416, 16
    %v701 = vrot.slane %v699, 1
    %v702 = vsel %vm426, %v697, %v701
    %v704 = vshrl.u32 %v321, 16
    %v706 = vshll.u32 %v321, 16
    %v708 = vrot.slane %v706, 1
    %v709 = vor.u32 %v704, %v708
    %v711 = vshll.u32 %v417, 16
    %v713 = vrot.slane %v711, 1
    %v714 = vsel %vm426, %v709, %v713
    %v716 = vshrl.u32 %v322, 16
    %v718 = vshll.u32 %v322, 16
    %v720 = vrot.slane %v718, 1
    %v721 = vor.u32 %v716, %v720
    %v723 = vshll.u32 %v418, 16
    %v725 = vrot.slane %v723, 1
    %v726 = vsel %vm426, %v721, %v725
    %v728 = vshrl.u32 %v323, 16
    %v730 = vshll.u32 %v323, 16
    %v732 = vrot.slane %v730, 1
    %v733 = vor.u32 %v728, %v732
    %v735 = vshll.u32 %v419, 16
    %v737 = vrot.slane %v735, 1
    %v738 = vsel %vm426, %v733, %v737
    %v740 = vshrl.u32 %v324, 16
    %v742 = vshll.u32 %v324, 16
    %v744 = vrot.slane %v742, 1
    %v745 = vor.u32 %v740, %v744
    %v747 = vshll.u32 %v420, 16
    %v749 = vrot.slane %v747, 1
    %v750 = vsel %vm426, %v745, %v749
    %v752 = vshrl.u32 %v325, 16
    %v754 = vshll.u32 %v325, 16
    %v756 = vrot.slane %v754, 1
    %v757 = vor.u32 %v752, %v756
    %v759 = vshll.u32 %v421, 16
    %v761 = vrot.slane %v759, 1
    %v762 = vsel %vm426, %v757, %v761
    %v764 = vshrl.u32 %v326, 16
    %v766 = vshll.u32 %v326, 16
    %v768 = vrot.slane %v766, 1
    %v769 = vor.u32 %v764, %v768
    %v771 = vshll.u32 %v422, 16
    %v773 = vrot.slane %v771, 1
    %v774 = vsel %vm426, %v769, %v773
    %v776 = vshrl.u32 %v327, 16
    %v778 = vshll.u32 %v327, 16
    %v780 = vrot.slane %v778, 1
    %v781 = vor.u32 %v776, %v780
    %v783 = vshll.u32 %v423, 16
    %v785 = vrot.slane %v783, 1
    %v786 = vsel %vm426, %v781, %v785
    %v788 = vshrl.u32 %v328, 16
    %v790 = vshll.u32 %v328, 16
    %v792 = vrot.slane %v790, 1
    %v793 = vor.u32 %v788, %v792
    %v795 = vshll.u32 %v424, 16
    %v797 = vrot.slane %v795, 1
    %v798 = vsel %vm426, %v793, %v797
    %v800 = vshrl.u32 %v329, 16
    %v802 = vshll.u32 %v329, 16
    %v804 = vrot.slane %v802, 1
    %v805 = vor.u32 %v800, %v804
    %v807 = vshll.u32 %v425, 16
    %v809 = vrot.slane %v807, 1
    %v810 = vsel %vm426, %v805, %v809
    %811 = vrot.lane.b32.xlu0 %v438, 3
    %v812 = vpop.permute.xlu0 %811
    %813 = vrot.lane.b32.xlu0 %v450, 3
    %v814 = vpop.permute.xlu0 %813
    %815 = vrot.lane.b32.xlu0 %v462, 3
    %v816 = vpop.permute.xlu0 %815
    %817 = vrot.lane.b32.xlu0 %v474, 3
    %v818 = vpop.permute.xlu0 %817
    %819 = vrot.lane.b32.xlu0 %v486, 3
    %v820 = vpop.permute.xlu0 %819
    %821 = vrot.lane.b32.xlu0 %v498, 3
    %v822 = vpop.permute.xlu0 %821
    %823 = vrot.lane.b32.xlu0 %v510, 3
    %v824 = vpop.permute.xlu0 %823
    %825 = vrot.lane.b32.xlu0 %v522, 3
    %v826 = vpop.permute.xlu0 %825
    %827 = vrot.lane.b32.xlu0 %v534, 3
    %v828 = vpop.permute.xlu0 %827
    %829 = vrot.lane.b32.xlu0 %v546, 3
    %v830 = vpop.permute.xlu0 %829
    %831 = vrot.lane.b32.xlu0 %v558, 3
    %v832 = vpop.permute.xlu0 %831
    %833 = vrot.lane.b32.xlu0 %v570, 3
    %v834 = vpop.permute.xlu0 %833
    %835 = vrot.lane.b32.xlu0 %v582, 3
    %v836 = vpop.permute.xlu0 %835
    %837 = vrot.lane.b32.xlu0 %v594, 3
    %v838 = vpop.permute.xlu0 %837
    %839 = vrot.lane.b32.xlu0 %v606, 3
    %v840 = vpop.permute.xlu0 %839
    %841 = vrot.lane.b32.xlu0 %v618, 3
    %v842 = vpop.permute.xlu0 %841
    %843 = vrot.lane.b32.xlu0 %v630, 3
    %v844 = vpop.permute.xlu0 %843
    %845 = vrot.lane.b32.xlu0 %v642, 3
    %v846 = vpop.permute.xlu0 %845
    %847 = vrot.lane.b32.xlu0 %v654, 3
    %v848 = vpop.permute.xlu0 %847
    %849 = vrot.lane.b32.xlu0 %v666, 3
    %v850 = vpop.permute.xlu0 %849
    %851 = vrot.lane.b32.xlu0 %v678, 3
    %v852 = vpop.permute.xlu0 %851
    %853 = vrot.lane.b32.xlu0 %v690, 3
    %v854 = vpop.permute.xlu0 %853
    %855 = vrot.lane.b32.xlu0 %v702, 3
    %v856 = vpop.permute.xlu0 %855
    %857 = vrot.lane.b32.xlu0 %v714, 3
    %v858 = vpop.permute.xlu0 %857
    %859 = vrot.lane.b32.xlu0 %v726, 3
    %v860 = vpop.permute.xlu0 %859
    %861 = vrot.lane.b32.xlu0 %v738, 3
    %v862 = vpop.permute.xlu0 %861
    %863 = vrot.lane.b32.xlu0 %v750, 3
    %v864 = vpop.permute.xlu0 %863
    %865 = vrot.lane.b32.xlu0 %v762, 3
    %v866 = vpop.permute.xlu0 %865
    %867 = vrot.lane.b32.xlu0 %v774, 3
    %v868 = vpop.permute.xlu0 %867
    %869 = vrot.lane.b32.xlu0 %v786, 3
    %v870 = vpop.permute.xlu0 %869
    %871 = vrot.lane.b32.xlu0 %v798, 3
    %v872 = vpop.permute.xlu0 %871
    %873 = vrot.lane.b32.xlu0 %v810, 3
    %v874 = vpop.permute.xlu0 %873
    %vm875 = vcmask 1046528
    %v876 = vrot.slane %v298, 1
    %v877 = vrot.slane %v394, 1
    %v878 = vsel %vm875, %v876, %v877
    %v879 = vrot.slane %v299, 1
    %v880 = vrot.slane %v395, 1
    %v881 = vsel %vm875, %v879, %v880
    %v882 = vrot.slane %v300, 1
    %v883 = vrot.slane %v396, 1
    %v884 = vsel %vm875, %v882, %v883
    %v885 = vrot.slane %v301, 1
    %v886 = vrot.slane %v397, 1
    %v887 = vsel %vm875, %v885, %v886
    %v888 = vrot.slane %v302, 1
    %v889 = vrot.slane %v398, 1
    %v890 = vsel %vm875, %v888, %v889
    %v891 = vrot.slane %v303, 1
    %v892 = vrot.slane %v399, 1
    %v893 = vsel %vm875, %v891, %v892
    %v894 = vrot.slane %v304, 1
    %v895 = vrot.slane %v400, 1
    %v896 = vsel %vm875, %v894, %v895
    %v897 = vrot.slane %v305, 1
    %v898 = vrot.slane %v401, 1
    %v899 = vsel %vm875, %v897, %v898
    %v900 = vrot.slane %v306, 1
    %v901 = vrot.slane %v402, 1
    %v902 = vsel %vm875, %v900, %v901
    %v903 = vrot.slane %v307, 1
    %v904 = vrot.slane %v403, 1
    %v905 = vsel %vm875, %v903, %v904
    %v906 = vrot.slane %v308, 1
    %v907 = vrot.slane %v404, 1
    %v908 = vsel %vm875, %v906, %v907
    %v909 = vrot.slane %v309, 1
    %v910 = vrot.slane %v405, 1
    %v911 = vsel %vm875, %v909, %v910
    %v912 = vrot.slane %v310, 1
    %v913 = vrot.slane %v406, 1
    %v914 = vsel %vm875, %v912, %v913
    %v915 = vrot.slane %v311, 1
    %v916 = vrot.slane %v407, 1
    %v917 = vsel %vm875, %v915, %v916
    %v918 = vrot.slane %v312, 1
    %v919 = vrot.slane %v408, 1
    %v920 = vsel %vm875, %v918, %v919
    %v921 = vrot.slane %v313, 1
    %v922 = vrot.slane %v409, 1
    %v923 = vsel %vm875, %v921, %v922
    %v924 = vrot.slane %v314, 1
    %v925 = vrot.slane %v410, 1
    %v926 = vsel %vm875, %v924, %v925
    %v927 = vrot.slane %v315, 1
    %v928 = vrot.slane %v411, 1
    %v929 = vsel %vm875, %v927, %v928
    %v930 = vrot.slane %v316, 1
    %v931 = vrot.slane %v412, 1
    %v932 = vsel %vm875, %v930, %v931
    %v933 = vrot.slane %v317, 1
    %v934 = vrot.slane %v413, 1
    %v935 = vsel %vm875, %v933, %v934
    %v936 = vrot.slane %v318, 1
    %v937 = vrot.slane %v414, 1
    %v938 = vsel %vm875, %v936, %v937
    %v939 = vrot.slane %v319, 1
    %v940 = vrot.slane %v415, 1
    %v941 = vsel %vm875, %v939, %v940
    %v942 = vrot.slane %v320, 1
    %v943 = vrot.slane %v416, 1
    %v944 = vsel %vm875, %v942, %v943
    %v945 = vrot.slane %v321, 1
    %v946 = vrot.slane %v417, 1
    %v947 = vsel %vm875, %v945, %v946
    %v948 = vrot.slane %v322, 1
    %v949 = vrot.slane %v418, 1
    %v950 = vsel %vm875, %v948, %v949
    %v951 = vrot.slane %v323, 1
    %v952 = vrot.slane %v419, 1
    %v953 = vsel %vm875, %v951, %v952
    %v954 = vrot.slane %v324, 1
    %v955 = vrot.slane %v420, 1
    %v956 = vsel %vm875, %v954, %v955
    %v957 = vrot.slane %v325, 1
    %v958 = vrot.slane %v421, 1
    %v959 = vsel %vm875, %v957, %v958
    %v960 = vrot.slane %v326, 1
    %v961 = vrot.slane %v422, 1
    %v962 = vsel %vm875, %v960, %v961
    %v963 = vrot.slane %v327, 1
    %v964 = vrot.slane %v423, 1
    %v965 = vsel %vm875, %v963, %v964
    %v966 = vrot.slane %v328, 1
    %v967 = vrot.slane %v424, 1
    %v968 = vsel %vm875, %v966, %v967
    %v969 = vrot.slane %v329, 1
    %v970 = vrot.slane %v425, 1
    %v971 = vsel %vm875, %v969, %v970
    %972 = vrot.lane.b32.xlu0 %v878, 6
    %v973 = vpop.permute.xlu0 %972
    %974 = vrot.lane.b32.xlu0 %v881, 6
    %v975 = vpop.permute.xlu0 %974
    %976 = vrot.lane.b32.xlu0 %v884, 6
    %v977 = vpop.permute.xlu0 %976
    %978 = vrot.lane.b32.xlu0 %v887, 6
    %v979 = vpop.permute.xlu0 %978
    %980 = vrot.lane.b32.xlu0 %v890, 6
    %v981 = vpop.permute.xlu0 %980
    %982 = vrot.lane.b32.xlu0 %v893, 6
    %v983 = vpop.permute.xlu0 %982
    %984 = vrot.lane.b32.xlu0 %v896, 6
    %v985 = vpop.permute.xlu0 %984
    %986 = vrot.lane.b32.xlu0 %v899, 6
    %v987 = vpop.permute.xlu0 %986
    %988 = vrot.lane.b32.xlu0 %v902, 6
    %v989 = vpop.permute.xlu0 %988
    %990 = vrot.lane.b32.xlu0 %v905, 6
    %v991 = vpop.permute.xlu0 %990
    %992 = vrot.lane.b32.xlu0 %v908, 6
    %v993 = vpop.permute.xlu0 %992
    %994 = vrot.lane.b32.xlu0 %v911, 6
    %v995 = vpop.permute.xlu0 %994
    %996 = vrot.lane.b32.xlu0 %v914, 6
    %v997 = vpop.permute.xlu0 %996
    %998 = vrot.lane.b32.xlu0 %v917, 6
    %v999 = vpop.permute.xlu0 %998
    %1000 = vrot.lane.b32.xlu0 %v920, 6
    %v1001 = vpop.permute.xlu0 %1000
    %1002 = vrot.lane.b32.xlu0 %v923, 6
    %v1003 = vpop.permute.xlu0 %1002
    %1004 = vrot.lane.b32.xlu0 %v926, 6
    %v1005 = vpop.permute.xlu0 %1004
    %1006 = vrot.lane.b32.xlu0 %v929, 6
    %v1007 = vpop.permute.xlu0 %1006
    %1008 = vrot.lane.b32.xlu0 %v932, 6
    %v1009 = vpop.permute.xlu0 %1008
    %1010 = vrot.lane.b32.xlu0 %v935, 6
    %v1011 = vpop.permute.xlu0 %1010
    %1012 = vrot.lane.b32.xlu0 %v938, 6
    %v1013 = vpop.permute.xlu0 %1012
    %1014 = vrot.lane.b32.xlu0 %v941, 6
    %v1015 = vpop.permute.xlu0 %1014
    %1016 = vrot.lane.b32.xlu0 %v944, 6
    %v1017 = vpop.permute.xlu0 %1016
    %1018 = vrot.lane.b32.xlu0 %v947, 6
    %v1019 = vpop.permute.xlu0 %1018
    %1020 = vrot.lane.b32.xlu0 %v950, 6
    %v1021 = vpop.permute.xlu0 %1020
    %1022 = vrot.lane.b32.xlu0 %v953, 6
    %v1023 = vpop.permute.xlu0 %1022
    %1024 = vrot.lane.b32.xlu0 %v956, 6
    %v1025 = vpop.permute.xlu0 %1024
    %1026 = vrot.lane.b32.xlu0 %v959, 6
    %v1027 = vpop.permute.xlu0 %1026
    %1028 = vrot.lane.b32.xlu0 %v962, 6
    %v1029 = vpop.permute.xlu0 %1028
    %1030 = vrot.lane.b32.xlu0 %v965, 6
    %v1031 = vpop.permute.xlu0 %1030
    %1032 = vrot.lane.b32.xlu0 %v968, 6
    %v1033 = vpop.permute.xlu0 %1032
    %1034 = vrot.lane.b32.xlu0 %v971, 6
    %v1035 = vpop.permute.xlu0 %1034
    %v1040 = vunpack.c.l.b16 %v110
    %v1041 = vunpack.c.l.b16 %v111
    %v1042 = vunpack.c.l.b16 %v164
    %v1043 = vunpack.c.l.b16 %v165
    %v1044 = vpack.c.b16 %v1041, %v1040
    %v1045 = vpack.c.b16 %v1043, %v1042
    %1046 = vrot.lane.b32.xlu0 %v299, 9
    %v1047 = vpop.permute.xlu0 %1046
    %1048 = vrot.lane.b32.xlu0 %v300, 9
    %v1049 = vpop.permute.xlu0 %1048
    %1050 = vrot.lane.b32.xlu0 %v301, 9
    %v1051 = vpop.permute.xlu0 %1050
    %1052 = vrot.lane.b32.xlu0 %v302, 9
    %v1053 = vpop.permute.xlu0 %1052
    %1054 = vrot.lane.b32.xlu0 %v303, 9
    %v1055 = vpop.permute.xlu0 %1054
    %1056 = vrot.lane.b32.xlu0 %v304, 9
    %v1057 = vpop.permute.xlu0 %1056
    %1058 = vrot.lane.b32.xlu0 %v305, 9
    %v1059 = vpop.permute.xlu0 %1058
    %1060 = vrot.lane.b32.xlu0 %v306, 9
    %v1061 = vpop.permute.xlu0 %1060
    %1062 = vrot.lane.b32.xlu0 %v307, 9
    %v1063 = vpop.permute.xlu0 %1062
    %1064 = vrot.lane.b32.xlu0 %v308, 9
    %v1065 = vpop.permute.xlu0 %1064
    %1066 = vrot.lane.b32.xlu0 %v309, 9
    %v1067 = vpop.permute.xlu0 %1066
    %1068 = vrot.lane.b32.xlu0 %v310, 9
    %v1069 = vpop.permute.xlu0 %1068
    %1070 = vrot.lane.b32.xlu0 %v311, 9
    %v1071 = vpop.permute.xlu0 %1070
    %1072 = vrot.lane.b32.xlu0 %v312, 9
    %v1073 = vpop.permute.xlu0 %1072
    %1074 = vrot.lane.b32.xlu0 %v313, 9
    %v1075 = vpop.permute.xlu0 %1074
    %1076 = vrot.lane.b32.xlu0 %v1044, 9
    %v1077 = vpop.permute.xlu0 %1076
    %1078 = vrot.lane.b32.xlu0 %v315, 9
    %v1079 = vpop.permute.xlu0 %1078
    %1080 = vrot.lane.b32.xlu0 %v316, 9
    %v1081 = vpop.permute.xlu0 %1080
    %1082 = vrot.lane.b32.xlu0 %v317, 9
    %v1083 = vpop.permute.xlu0 %1082
    %1084 = vrot.lane.b32.xlu0 %v318, 9
    %v1085 = vpop.permute.xlu0 %1084
    %1086 = vrot.lane.b32.xlu0 %v319, 9
    %v1087 = vpop.permute.xlu0 %1086
    %1088 = vrot.lane.b32.xlu0 %v320, 9
    %v1089 = vpop.permute.xlu0 %1088
    %1090 = vrot.lane.b32.xlu0 %v321, 9
    %v1091 = vpop.permute.xlu0 %1090
    %1092 = vrot.lane.b32.xlu0 %v322, 9
    %v1093 = vpop.permute.xlu0 %1092
    %1094 = vrot.lane.b32.xlu0 %v323, 9
    %v1095 = vpop.permute.xlu0 %1094
    %1096 = vrot.lane.b32.xlu0 %v324, 9
    %v1097 = vpop.permute.xlu0 %1096
    %1098 = vrot.lane.b32.xlu0 %v325, 9
    %v1099 = vpop.permute.xlu0 %1098
    %1100 = vrot.lane.b32.xlu0 %v326, 9
    %v1101 = vpop.permute.xlu0 %1100
    %1102 = vrot.lane.b32.xlu0 %v327, 9
    %v1103 = vpop.permute.xlu0 %1102
    %1104 = vrot.lane.b32.xlu0 %v328, 9
    %v1105 = vpop.permute.xlu0 %1104
    %1106 = vrot.lane.b32.xlu0 %v329, 9
    %v1107 = vpop.permute.xlu0 %1106
    %1108 = vrot.lane.b32.xlu0 %v1045, 9
    %v1109 = vpop.permute.xlu0 %1108
    %v1112 = vunpack.c.l.b16 %v112
    %v1113 = vunpack.c.l.b16 %v166
    %v1114 = vpack.c.b16 %v1112, %v1112
    %v1115 = vpack.c.b16 %v1113, %v1113
    %v1117 = vshrl.u32 %v1044, 16
    %v1119 = vshll.u32 %v1044, 16
    %v1121 = vrot.slane %v1119, 1
    %v1122 = vor.u32 %v1117, %v1121
    %v1124 = vshll.u32 %v1114, 16
    %v1126 = vrot.slane %v1124, 1
    %v1127 = vsel %vm426, %v1122, %v1126
    %v1129 = vshrl.u32 %v1045, 16
    %v1131 = vshll.u32 %v1045, 16
    %v1133 = vrot.slane %v1131, 1
    %v1134 = vor.u32 %v1129, %v1133
    %v1136 = vshll.u32 %v1115, 16
    %v1138 = vrot.slane %v1136, 1
    %v1139 = vsel %vm426, %v1134, %v1138
    %1140 = vrot.lane.b32.xlu0 %v450, 12
    %v1141 = vpop.permute.xlu0 %1140
    %1142 = vrot.lane.b32.xlu0 %v462, 12
    %v1143 = vpop.permute.xlu0 %1142
    %1144 = vrot.lane.b32.xlu0 %v474, 12
    %v1145 = vpop.permute.xlu0 %1144
    %1146 = vrot.lane.b32.xlu0 %v486, 12
    %v1147 = vpop.permute.xlu0 %1146
    %1148 = vrot.lane.b32.xlu0 %v498, 12
    %v1149 = vpop.permute.xlu0 %1148
    %1150 = vrot.lane.b32.xlu0 %v510, 12
    %v1151 = vpop.permute.xlu0 %1150
    %1152 = vrot.lane.b32.xlu0 %v522, 12
    %v1153 = vpop.permute.xlu0 %1152
    %1154 = vrot.lane.b32.xlu0 %v534, 12
    %v1155 = vpop.permute.xlu0 %1154
    %1156 = vrot.lane.b32.xlu0 %v546, 12
    %v1157 = vpop.permute.xlu0 %1156
    %1158 = vrot.lane.b32.xlu0 %v558, 12
    %v1159 = vpop.permute.xlu0 %1158
    %1160 = vrot.lane.b32.xlu0 %v570, 12
    %v1161 = vpop.permute.xlu0 %1160
    %1162 = vrot.lane.b32.xlu0 %v582, 12
    %v1163 = vpop.permute.xlu0 %1162
    %1164 = vrot.lane.b32.xlu0 %v594, 12
    %v1165 = vpop.permute.xlu0 %1164
    %1166 = vrot.lane.b32.xlu0 %v606, 12
    %v1167 = vpop.permute.xlu0 %1166
    %1168 = vrot.lane.b32.xlu0 %v618, 12
    %v1169 = vpop.permute.xlu0 %1168
    %1170 = vrot.lane.b32.xlu0 %v1127, 12
    %v1171 = vpop.permute.xlu0 %1170
    %1172 = vrot.lane.b32.xlu0 %v642, 12
    %v1173 = vpop.permute.xlu0 %1172
    %1174 = vrot.lane.b32.xlu0 %v654, 12
    %v1175 = vpop.permute.xlu0 %1174
    %1176 = vrot.lane.b32.xlu0 %v666, 12
    %v1177 = vpop.permute.xlu0 %1176
    %1178 = vrot.lane.b32.xlu0 %v678, 12
    %v1179 = vpop.permute.xlu0 %1178
    %1180 = vrot.lane.b32.xlu0 %v690, 12
    %v1181 = vpop.permute.xlu0 %1180
    %1182 = vrot.lane.b32.xlu0 %v702, 12
    %v1183 = vpop.permute.xlu0 %1182
    %1184 = vrot.lane.b32.xlu0 %v714, 12
    %v1185 = vpop.permute.xlu0 %1184
    %1186 = vrot.lane.b32.xlu0 %v726, 12
    %v1187 = vpop.permute.xlu0 %1186
    %1188 = vrot.lane.b32.xlu0 %v738, 12
    %v1189 = vpop.permute.xlu0 %1188
    %1190 = vrot.lane.b32.xlu0 %v750, 12
    %v1191 = vpop.permute.xlu0 %1190
    %1192 = vrot.lane.b32.xlu0 %v762, 12
    %v1193 = vpop.permute.xlu0 %1192
    %1194 = vrot.lane.b32.xlu0 %v774, 12
    %v1195 = vpop.permute.xlu0 %1194
    %1196 = vrot.lane.b32.xlu0 %v786, 12
    %v1197 = vpop.permute.xlu0 %1196
    %1198 = vrot.lane.b32.xlu0 %v798, 12
    %v1199 = vpop.permute.xlu0 %1198
    %1200 = vrot.lane.b32.xlu0 %v810, 12
    %v1201 = vpop.permute.xlu0 %1200
    %1202 = vrot.lane.b32.xlu0 %v1139, 12
    %v1203 = vpop.permute.xlu0 %1202
    %v1204 = vrot.slane %v1044, 1
    %v1205 = vrot.slane %v1114, 1
    %v1206 = vsel %vm875, %v1204, %v1205
    %v1207 = vrot.slane %v1045, 1
    %v1208 = vrot.slane %v1115, 1
    %v1209 = vsel %vm875, %v1207, %v1208
    %1210 = vrot.lane.b32.xlu0 %v881, 15
    %v1211 = vpop.permute.xlu0 %1210
    %1212 = vrot.lane.b32.xlu0 %v884, 15
    %v1213 = vpop.permute.xlu0 %1212
    %1214 = vrot.lane.b32.xlu0 %v887, 15
    %v1215 = vpop.permute.xlu0 %1214
    %1216 = vrot.lane.b32.xlu0 %v890, 15
    %v1217 = vpop.permute.xlu0 %1216
    %1218 = vrot.lane.b32.xlu0 %v893, 15
    %v1219 = vpop.permute.xlu0 %1218
    %1220 = vrot.lane.b32.xlu0 %v896, 15
    %v1221 = vpop.permute.xlu0 %1220
    %1222 = vrot.lane.b32.xlu0 %v899, 15
    %v1223 = vpop.permute.xlu0 %1222
    %1224 = vrot.lane.b32.xlu0 %v902, 15
    %v1225 = vpop.permute.xlu0 %1224
    %1226 = vrot.lane.b32.xlu0 %v905, 15
    %v1227 = vpop.permute.xlu0 %1226
    %1228 = vrot.lane.b32.xlu0 %v908, 15
    %v1229 = vpop.permute.xlu0 %1228
    %1230 = vrot.lane.b32.xlu0 %v911, 15
    %v1231 = vpop.permute.xlu0 %1230
    %1232 = vrot.lane.b32.xlu0 %v914, 15
    %v1233 = vpop.permute.xlu0 %1232
    %1234 = vrot.lane.b32.xlu0 %v917, 15
    %v1235 = vpop.permute.xlu0 %1234
    %1236 = vrot.lane.b32.xlu0 %v920, 15
    %v1237 = vpop.permute.xlu0 %1236
    %1238 = vrot.lane.b32.xlu0 %v923, 15
    %v1239 = vpop.permute.xlu0 %1238
    %1240 = vrot.lane.b32.xlu0 %v1206, 15
    %v1241 = vpop.permute.xlu0 %1240
    %1242 = vrot.lane.b32.xlu0 %v929, 15
    %v1243 = vpop.permute.xlu0 %1242
    %1244 = vrot.lane.b32.xlu0 %v932, 15
    %v1245 = vpop.permute.xlu0 %1244
    %1246 = vrot.lane.b32.xlu0 %v935, 15
    %v1247 = vpop.permute.xlu0 %1246
    %1248 = vrot.lane.b32.xlu0 %v938, 15
    %v1249 = vpop.permute.xlu0 %1248
    %1250 = vrot.lane.b32.xlu0 %v941, 15
    %v1251 = vpop.permute.xlu0 %1250
    %1252 = vrot.lane.b32.xlu0 %v944, 15
    %v1253 = vpop.permute.xlu0 %1252
    %1254 = vrot.lane.b32.xlu0 %v947, 15
    %v1255 = vpop.permute.xlu0 %1254
    %1256 = vrot.lane.b32.xlu0 %v950, 15
    %v1257 = vpop.permute.xlu0 %1256
    %1258 = vrot.lane.b32.xlu0 %v953, 15
    %v1259 = vpop.permute.xlu0 %1258
    %1260 = vrot.lane.b32.xlu0 %v956, 15
    %v1261 = vpop.permute.xlu0 %1260
    %1262 = vrot.lane.b32.xlu0 %v959, 15
    %v1263 = vpop.permute.xlu0 %1262
    %1264 = vrot.lane.b32.xlu0 %v962, 15
    %v1265 = vpop.permute.xlu0 %1264
    %1266 = vrot.lane.b32.xlu0 %v965, 15
    %v1267 = vpop.permute.xlu0 %1266
    %1268 = vrot.lane.b32.xlu0 %v968, 15
    %v1269 = vpop.permute.xlu0 %1268
    %1270 = vrot.lane.b32.xlu0 %v971, 15
    %v1271 = vpop.permute.xlu0 %1270
    %1272 = vrot.lane.b32.xlu0 %v1209, 15
    %v1273 = vpop.permute.xlu0 %1272
    %v1278 = vunpack.c.l.b16 %v113
    %v1279 = vunpack.c.l.b16 %v114
    %v1280 = vunpack.c.l.b16 %v167
    %v1281 = vunpack.c.l.b16 %v168
    %v1282 = vpack.c.b16 %v1279, %v1278
    %v1283 = vpack.c.b16 %v1281, %v1280
    %1284 = vrot.lane.b32.xlu0 %v300, 18
    %v1285 = vpop.permute.xlu0 %1284
    %1286 = vrot.lane.b32.xlu0 %v301, 18
    %v1287 = vpop.permute.xlu0 %1286
    %1288 = vrot.lane.b32.xlu0 %v302, 18
    %v1289 = vpop.permute.xlu0 %1288
    %1290 = vrot.lane.b32.xlu0 %v303, 18
    %v1291 = vpop.permute.xlu0 %1290
    %1292 = vrot.lane.b32.xlu0 %v304, 18
    %v1293 = vpop.permute.xlu0 %1292
    %1294 = vrot.lane.b32.xlu0 %v305, 18
    %v1295 = vpop.permute.xlu0 %1294
    %1296 = vrot.lane.b32.xlu0 %v306, 18
    %v1297 = vpop.permute.xlu0 %1296
    %1298 = vrot.lane.b32.xlu0 %v307, 18
    %v1299 = vpop.permute.xlu0 %1298
    %1300 = vrot.lane.b32.xlu0 %v308, 18
    %v1301 = vpop.permute.xlu0 %1300
    %1302 = vrot.lane.b32.xlu0 %v309, 18
    %v1303 = vpop.permute.xlu0 %1302
    %1304 = vrot.lane.b32.xlu0 %v310, 18
    %v1305 = vpop.permute.xlu0 %1304
    %1306 = vrot.lane.b32.xlu0 %v311, 18
    %v1307 = vpop.permute.xlu0 %1306
    %1308 = vrot.lane.b32.xlu0 %v312, 18
    %v1309 = vpop.permute.xlu0 %1308
    %1310 = vrot.lane.b32.xlu0 %v313, 18
    %v1311 = vpop.permute.xlu0 %1310
    %1312 = vrot.lane.b32.xlu0 %v1044, 18
    %v1313 = vpop.permute.xlu0 %1312
    %1314 = vrot.lane.b32.xlu0 %v1282, 18
    %v1315 = vpop.permute.xlu0 %1314
    %1316 = vrot.lane.b32.xlu0 %v316, 18
    %v1317 = vpop.permute.xlu0 %1316
    %1318 = vrot.lane.b32.xlu0 %v317, 18
    %v1319 = vpop.permute.xlu0 %1318
    %1320 = vrot.lane.b32.xlu0 %v318, 18
    %v1321 = vpop.permute.xlu0 %1320
    %1322 = vrot.lane.b32.xlu0 %v319, 18
    %v1323 = vpop.permute.xlu0 %1322
    %1324 = vrot.lane.b32.xlu0 %v320, 18
    %v1325 = vpop.permute.xlu0 %1324
    %1326 = vrot.lane.b32.xlu0 %v321, 18
    %v1327 = vpop.permute.xlu0 %1326
    %1328 = vrot.lane.b32.xlu0 %v322, 18
    %v1329 = vpop.permute.xlu0 %1328
    %1330 = vrot.lane.b32.xlu0 %v323, 18
    %v1331 = vpop.permute.xlu0 %1330
    %1332 = vrot.lane.b32.xlu0 %v324, 18
    %v1333 = vpop.permute.xlu0 %1332
    %1334 = vrot.lane.b32.xlu0 %v325, 18
    %v1335 = vpop.permute.xlu0 %1334
    %1336 = vrot.lane.b32.xlu0 %v326, 18
    %v1337 = vpop.permute.xlu0 %1336
    %1338 = vrot.lane.b32.xlu0 %v327, 18
    %v1339 = vpop.permute.xlu0 %1338
    %1340 = vrot.lane.b32.xlu0 %v328, 18
    %v1341 = vpop.permute.xlu0 %1340
    %1342 = vrot.lane.b32.xlu0 %v329, 18
    %v1343 = vpop.permute.xlu0 %1342
    %1344 = vrot.lane.b32.xlu0 %v1045, 18
    %v1345 = vpop.permute.xlu0 %1344
    %1346 = vrot.lane.b32.xlu0 %v1283, 18
    %v1347 = vpop.permute.xlu0 %1346
    %v1350 = vunpack.c.l.b16 %v115
    %v1351 = vunpack.c.l.b16 %v169
    %v1352 = vpack.c.b16 %v1350, %v1350
    %v1353 = vpack.c.b16 %v1351, %v1351
    %v1355 = vshrl.u32 %v1282, 16
    %v1357 = vshll.u32 %v1282, 16
    %v1359 = vrot.slane %v1357, 1
    %v1360 = vor.u32 %v1355, %v1359
    %v1362 = vshll.u32 %v1352, 16
    %v1364 = vrot.slane %v1362, 1
    %v1365 = vsel %vm426, %v1360, %v1364
    %v1367 = vshrl.u32 %v1283, 16
    %v1369 = vshll.u32 %v1283, 16
    %v1371 = vrot.slane %v1369, 1
    %v1372 = vor.u32 %v1367, %v1371
    %v1374 = vshll.u32 %v1353, 16
    %v1376 = vrot.slane %v1374, 1
    %v1377 = vsel %vm426, %v1372, %v1376
    %1378 = vrot.lane.b32.xlu0 %v462, 21
    %v1379 = vpop.permute.xlu0 %1378
    %1380 = vrot.lane.b32.xlu0 %v474, 21
    %v1381 = vpop.permute.xlu0 %1380
    %1382 = vrot.lane.b32.xlu0 %v486, 21
    %v1383 = vpop.permute.xlu0 %1382
    %1384 = vrot.lane.b32.xlu0 %v498, 21
    %v1385 = vpop.permute.xlu0 %1384
    %1386 = vrot.lane.b32.xlu0 %v510, 21
    %v1387 = vpop.permute.xlu0 %1386
    %1388 = vrot.lane.b32.xlu0 %v522, 21
    %v1389 = vpop.permute.xlu0 %1388
    %1390 = vrot.lane.b32.xlu0 %v534, 21
    %v1391 = vpop.permute.xlu0 %1390
    %1392 = vrot.lane.b32.xlu0 %v546, 21
    %v1393 = vpop.permute.xlu0 %1392
    %1394 = vrot.lane.b32.xlu0 %v558, 21
    %v1395 = vpop.permute.xlu0 %1394
    %1396 = vrot.lane.b32.xlu0 %v570, 21
    %v1397 = vpop.permute.xlu0 %1396
    %1398 = vrot.lane.b32.xlu0 %v582, 21
    %v1399 = vpop.permute.xlu0 %1398
    %1400 = vrot.lane.b32.xlu0 %v594, 21
    %v1401 = vpop.permute.xlu0 %1400
    %1402 = vrot.lane.b32.xlu0 %v606, 21
    %v1403 = vpop.permute.xlu0 %1402
    %1404 = vrot.lane.b32.xlu0 %v618, 21
    %v1405 = vpop.permute.xlu0 %1404
    %1406 = vrot.lane.b32.xlu0 %v1127, 21
    %v1407 = vpop.permute.xlu0 %1406
    %1408 = vrot.lane.b32.xlu0 %v1365, 21
    %v1409 = vpop.permute.xlu0 %1408
    %1410 = vrot.lane.b32.xlu0 %v654, 21
    %v1411 = vpop.permute.xlu0 %1410
    %1412 = vrot.lane.b32.xlu0 %v666, 21
    %v1413 = vpop.permute.xlu0 %1412
    %1414 = vrot.lane.b32.xlu0 %v678, 21
    %v1415 = vpop.permute.xlu0 %1414
    %1416 = vrot.lane.b32.xlu0 %v690, 21
    %v1417 = vpop.permute.xlu0 %1416
    %1418 = vrot.lane.b32.xlu0 %v702, 21
    %v1419 = vpop.permute.xlu0 %1418
    %1420 = vrot.lane.b32.xlu0 %v714, 21
    %v1421 = vpop.permute.xlu0 %1420
    %1422 = vrot.lane.b32.xlu0 %v726, 21
    %v1423 = vpop.permute.xlu0 %1422
    %1424 = vrot.lane.b32.xlu0 %v738, 21
    %v1425 = vpop.permute.xlu0 %1424
    %1426 = vrot.lane.b32.xlu0 %v750, 21
    %v1427 = vpop.permute.xlu0 %1426
    %1428 = vrot.lane.b32.xlu0 %v762, 21
    %v1429 = vpop.permute.xlu0 %1428
    %1430 = vrot.lane.b32.xlu0 %v774, 21
    %v1431 = vpop.permute.xlu0 %1430
    %1432 = vrot.lane.b32.xlu0 %v786, 21
    %v1433 = vpop.permute.xlu0 %1432
    %1434 = vrot.lane.b32.xlu0 %v798, 21
    %v1435 = vpop.permute.xlu0 %1434
    %1436 = vrot.lane.b32.xlu0 %v810, 21
    %v1437 = vpop.permute.xlu0 %1436
    %1438 = vrot.lane.b32.xlu0 %v1139, 21
    %v1439 = vpop.permute.xlu0 %1438
    %1440 = vrot.lane.b32.xlu0 %v1377, 21
    %v1441 = vpop.permute.xlu0 %1440
    %v1442 = vrot.slane %v1282, 1
    %v1443 = vrot.slane %v1352, 1
    %v1444 = vsel %vm875, %v1442, %v1443
    %v1445 = vrot.slane %v1283, 1
    %v1446 = vrot.slane %v1353, 1
    %v1447 = vsel %vm875, %v1445, %v1446
    %1448 = vrot.lane.b32.xlu0 %v884, 24
    %v1449 = vpop.permute.xlu0 %1448
    %1450 = vrot.lane.b32.xlu0 %v887, 24
    %v1451 = vpop.permute.xlu0 %1450
    %1452 = vrot.lane.b32.xlu0 %v890, 24
    %v1453 = vpop.permute.xlu0 %1452
    %1454 = vrot.lane.b32.xlu0 %v893, 24
    %v1455 = vpop.permute.xlu0 %1454
    %1456 = vrot.lane.b32.xlu0 %v896, 24
    %v1457 = vpop.permute.xlu0 %1456
    %1458 = vrot.lane.b32.xlu0 %v899, 24
    %v1459 = vpop.permute.xlu0 %1458
    %1460 = vrot.lane.b32.xlu0 %v902, 24
    %v1461 = vpop.permute.xlu0 %1460
    %1462 = vrot.lane.b32.xlu0 %v905, 24
    %v1463 = vpop.permute.xlu0 %1462
    %1464 = vrot.lane.b32.xlu0 %v908, 24
    %v1465 = vpop.permute.xlu0 %1464
    %1466 = vrot.lane.b32.xlu0 %v911, 24
    %v1467 = vpop.permute.xlu0 %1466
    %1468 = vrot.lane.b32.xlu0 %v914, 24
    %v1469 = vpop.permute.xlu0 %1468
    %1470 = vrot.lane.b32.xlu0 %v917, 24
    %v1471 = vpop.permute.xlu0 %1470
    %1472 = vrot.lane.b32.xlu0 %v920, 24
    %v1473 = vpop.permute.xlu0 %1472
    %1474 = vrot.lane.b32.xlu0 %v923, 24
    %v1475 = vpop.permute.xlu0 %1474
    %1476 = vrot.lane.b32.xlu0 %v1206, 24
    %v1477 = vpop.permute.xlu0 %1476
    %1478 = vrot.lane.b32.xlu0 %v1444, 24
    %v1479 = vpop.permute.xlu0 %1478
    %1480 = vrot.lane.b32.xlu0 %v932, 24
    %v1481 = vpop.permute.xlu0 %1480
    %1482 = vrot.lane.b32.xlu0 %v935, 24
    %v1483 = vpop.permute.xlu0 %1482
    %1484 = vrot.lane.b32.xlu0 %v938, 24
    %v1485 = vpop.permute.xlu0 %1484
    %1486 = vrot.lane.b32.xlu0 %v941, 24
    %v1487 = vpop.permute.xlu0 %1486
    %1488 = vrot.lane.b32.xlu0 %v944, 24
    %v1489 = vpop.permute.xlu0 %1488
    %1490 = vrot.lane.b32.xlu0 %v947, 24
    %v1491 = vpop.permute.xlu0 %1490
    %1492 = vrot.lane.b32.xlu0 %v950, 24
    %v1493 = vpop.permute.xlu0 %1492
    %1494 = vrot.lane.b32.xlu0 %v953, 24
    %v1495 = vpop.permute.xlu0 %1494
    %1496 = vrot.lane.b32.xlu0 %v956, 24
    %v1497 = vpop.permute.xlu0 %1496
    %1498 = vrot.lane.b32.xlu0 %v959, 24
    %v1499 = vpop.permute.xlu0 %1498
    %1500 = vrot.lane.b32.xlu0 %v962, 24
    %v1501 = vpop.permute.xlu0 %1500
    %1502 = vrot.lane.b32.xlu0 %v965, 24
    %v1503 = vpop.permute.xlu0 %1502
    %1504 = vrot.lane.b32.xlu0 %v968, 24
    %v1505 = vpop.permute.xlu0 %1504
    %1506 = vrot.lane.b32.xlu0 %v971, 24
    %v1507 = vpop.permute.xlu0 %1506
    %1508 = vrot.lane.b32.xlu0 %v1209, 24
    %v1509 = vpop.permute.xlu0 %1508
    %1510 = vrot.lane.b32.xlu0 %v1447, 24
    %v1511 = vpop.permute.xlu0 %1510
    %vm1512 = vcmask 23552
    %v1514 = vsel %vm1512, %v298, %v812
    %v1516 = vsel %vm1512, %v299, %v814
    %v1518 = vsel %vm1512, %v300, %v816
    %v1520 = vsel %vm1512, %v301, %v818
    %v1522 = vsel %vm1512, %v302, %v820
    %v1524 = vsel %vm1512, %v303, %v822
    %v1526 = vsel %vm1512, %v304, %v824
    %v1528 = vsel %vm1512, %v305, %v826
    %v1530 = vsel %vm1512, %v306, %v828
    %v1532 = vsel %vm1512, %v307, %v830
    %v1534 = vsel %vm1512, %v308, %v832
    %v1536 = vsel %vm1512, %v309, %v834
    %v1538 = vsel %vm1512, %v310, %v836
    %v1540 = vsel %vm1512, %v311, %v838
    %v1542 = vsel %vm1512, %v312, %v840
    %v1544 = vsel %vm1512, %v313, %v842
    %v1546 = vsel %vm1512, %v314, %v844
    %v1548 = vsel %vm1512, %v315, %v846
    %v1550 = vsel %vm1512, %v316, %v848
    %v1552 = vsel %vm1512, %v317, %v850
    %v1554 = vsel %vm1512, %v318, %v852
    %v1556 = vsel %vm1512, %v319, %v854
    %v1558 = vsel %vm1512, %v320, %v856
    %v1560 = vsel %vm1512, %v321, %v858
    %v1562 = vsel %vm1512, %v322, %v860
    %v1564 = vsel %vm1512, %v323, %v862
    %v1566 = vsel %vm1512, %v324, %v864
    %v1568 = vsel %vm1512, %v325, %v866
    %v1570 = vsel %vm1512, %v326, %v868
    %v1572 = vsel %vm1512, %v327, %v870
    %v1574 = vsel %vm1512, %v328, %v872
    %v1576 = vsel %vm1512, %v329, %v874
    %vm1577 = vcmask 48128
    %v1579 = vsel %vm1577, %v1514, %v973
    %v1581 = vsel %vm1577, %v1516, %v975
    %v1583 = vsel %vm1577, %v1518, %v977
    %v1585 = vsel %vm1577, %v1520, %v979
    %v1587 = vsel %vm1577, %v1522, %v981
    %v1589 = vsel %vm1577, %v1524, %v983
    %v1591 = vsel %vm1577, %v1526, %v985
    %v1593 = vsel %vm1577, %v1528, %v987
    %v1595 = vsel %vm1577, %v1530, %v989
    %v1597 = vsel %vm1577, %v1532, %v991
    %v1599 = vsel %vm1577, %v1534, %v993
    %v1601 = vsel %vm1577, %v1536, %v995
    %v1603 = vsel %vm1577, %v1538, %v997
    %v1605 = vsel %vm1577, %v1540, %v999
    %v1607 = vsel %vm1577, %v1542, %v1001
    %v1609 = vsel %vm1577, %v1544, %v1003
    %v1611 = vsel %vm1577, %v1546, %v1005
    %v1613 = vsel %vm1577, %v1548, %v1007
    %v1615 = vsel %vm1577, %v1550, %v1009
    %v1617 = vsel %vm1577, %v1552, %v1011
    %v1619 = vsel %vm1577, %v1554, %v1013
    %v1621 = vsel %vm1577, %v1556, %v1015
    %v1623 = vsel %vm1577, %v1558, %v1017
    %v1625 = vsel %vm1577, %v1560, %v1019
    %v1627 = vsel %vm1577, %v1562, %v1021
    %v1629 = vsel %vm1577, %v1564, %v1023
    %v1631 = vsel %vm1577, %v1566, %v1025
    %v1633 = vsel %vm1577, %v1568, %v1027
    %v1635 = vsel %vm1577, %v1570, %v1029
    %v1637 = vsel %vm1577, %v1572, %v1031
    %v1639 = vsel %vm1577, %v1574, %v1033
    %v1641 = vsel %vm1577, %v1576, %v1035
    %vm1642 = vcmask 72704
    %v1644 = vsel %vm1642, %v1579, %v1047
    %v1646 = vsel %vm1642, %v1581, %v1049
    %v1648 = vsel %vm1642, %v1583, %v1051
    %v1650 = vsel %vm1642, %v1585, %v1053
    %v1652 = vsel %vm1642, %v1587, %v1055
    %v1654 = vsel %vm1642, %v1589, %v1057
    %v1656 = vsel %vm1642, %v1591, %v1059
    %v1658 = vsel %vm1642, %v1593, %v1061
    %v1660 = vsel %vm1642, %v1595, %v1063
    %v1662 = vsel %vm1642, %v1597, %v1065
    %v1664 = vsel %vm1642, %v1599, %v1067
    %v1666 = vsel %vm1642, %v1601, %v1069
    %v1668 = vsel %vm1642, %v1603, %v1071
    %v1670 = vsel %vm1642, %v1605, %v1073
    %v1672 = vsel %vm1642, %v1607, %v1075
    %v1674 = vsel %vm1642, %v1609, %v1077
    %v1676 = vsel %vm1642, %v1611, %v1079
    %v1678 = vsel %vm1642, %v1613, %v1081
    %v1680 = vsel %vm1642, %v1615, %v1083
    %v1682 = vsel %vm1642, %v1617, %v1085
    %v1684 = vsel %vm1642, %v1619, %v1087
    %v1686 = vsel %vm1642, %v1621, %v1089
    %v1688 = vsel %vm1642, %v1623, %v1091
    %v1690 = vsel %vm1642, %v1625, %v1093
    %v1692 = vsel %vm1642, %v1627, %v1095
    %v1694 = vsel %vm1642, %v1629, %v1097
    %v1696 = vsel %vm1642, %v1631, %v1099
    %v1698 = vsel %vm1642, %v1633, %v1101
    %v1700 = vsel %vm1642, %v1635, %v1103
    %v1702 = vsel %vm1642, %v1637, %v1105
    %v1704 = vsel %vm1642, %v1639, %v1107
    %v1706 = vsel %vm1642, %v1641, %v1109
    %vm1707 = vcmask 97280
    %v1709 = vsel %vm1707, %v1644, %v1141
    %v1711 = vsel %vm1707, %v1646, %v1143
    %v1713 = vsel %vm1707, %v1648, %v1145
    %v1715 = vsel %vm1707, %v1650, %v1147
    %v1717 = vsel %vm1707, %v1652, %v1149
    %v1719 = vsel %vm1707, %v1654, %v1151
    %v1721 = vsel %vm1707, %v1656, %v1153
    %v1723 = vsel %vm1707, %v1658, %v1155
    %v1725 = vsel %vm1707, %v1660, %v1157
    %v1727 = vsel %vm1707, %v1662, %v1159
    %v1729 = vsel %vm1707, %v1664, %v1161
    %v1731 = vsel %vm1707, %v1666, %v1163
    %v1733 = vsel %vm1707, %v1668, %v1165
    %v1735 = vsel %vm1707, %v1670, %v1167
    %v1737 = vsel %vm1707, %v1672, %v1169
    %v1739 = vsel %vm1707, %v1674, %v1171
    %v1741 = vsel %vm1707, %v1676, %v1173
    %v1743 = vsel %vm1707, %v1678, %v1175
    %v1745 = vsel %vm1707, %v1680, %v1177
    %v1747 = vsel %vm1707, %v1682, %v1179
    %v1749 = vsel %vm1707, %v1684, %v1181
    %v1751 = vsel %vm1707, %v1686, %v1183
    %v1753 = vsel %vm1707, %v1688, %v1185
    %v1755 = vsel %vm1707, %v1690, %v1187
    %v1757 = vsel %vm1707, %v1692, %v1189
    %v1759 = vsel %vm1707, %v1694, %v1191
    %v1761 = vsel %vm1707, %v1696, %v1193
    %v1763 = vsel %vm1707, %v1698, %v1195
    %v1765 = vsel %vm1707, %v1700, %v1197
    %v1767 = vsel %vm1707, %v1702, %v1199
    %v1769 = vsel %vm1707, %v1704, %v1201
    %v1771 = vsel %vm1707, %v1706, %v1203
    %vm1772 = vcmask 121856
    %v1774 = vsel %vm1772, %v1709, %v1211
    %v1776 = vsel %vm1772, %v1711, %v1213
    %v1778 = vsel %vm1772, %v1713, %v1215
    %v1780 = vsel %vm1772, %v1715, %v1217
    %v1782 = vsel %vm1772, %v1717, %v1219
    %v1784 = vsel %vm1772, %v1719, %v1221
    %v1786 = vsel %vm1772, %v1721, %v1223
    %v1788 = vsel %vm1772, %v1723, %v1225
    %v1790 = vsel %vm1772, %v1725, %v1227
    %v1792 = vsel %vm1772, %v1727, %v1229
    %v1794 = vsel %vm1772, %v1729, %v1231
    %v1796 = vsel %vm1772, %v1731, %v1233
    %v1798 = vsel %vm1772, %v1733, %v1235
    %v1800 = vsel %vm1772, %v1735, %v1237
    %v1802 = vsel %vm1772, %v1737, %v1239
    %v1804 = vsel %vm1772, %v1739, %v1241
    %v1806 = vsel %vm1772, %v1741, %v1243
    %v1808 = vsel %vm1772, %v1743, %v1245
    %v1810 = vsel %vm1772, %v1745, %v1247
    %v1812 = vsel %vm1772, %v1747, %v1249
    %v1814 = vsel %vm1772, %v1749, %v1251
    %v1816 = vsel %vm1772, %v1751, %v1253
    %v1818 = vsel %vm1772, %v1753, %v1255
    %v1820 = vsel %vm1772, %v1755, %v1257
    %v1822 = vsel %vm1772, %v1757, %v1259
    %v1824 = vsel %vm1772, %v1759, %v1261
    %v1826 = vsel %vm1772, %v1761, %v1263
    %v1828 = vsel %vm1772, %v1763, %v1265
    %v1830 = vsel %vm1772, %v1765, %v1267
    %v1832 = vsel %vm1772, %v1767, %v1269
    %v1834 = vsel %vm1772, %v1769, %v1271
    %v1836 = vsel %vm1772, %v1771, %v1273
    %vm1837 = vcmask 146432
    %v1839 = vsel %vm1837, %v1774, %v1285
    %v1841 = vsel %vm1837, %v1776, %v1287
    %v1843 = vsel %vm1837, %v1778, %v1289
    %v1845 = vsel %vm1837, %v1780, %v1291
    %v1847 = vsel %vm1837, %v1782, %v1293
    %v1849 = vsel %vm1837, %v1784, %v1295
    %v1851 = vsel %vm1837, %v1786, %v1297
    %v1853 = vsel %vm1837, %v1788, %v1299
    %v1855 = vsel %vm1837, %v1790, %v1301
    %v1857 = vsel %vm1837, %v1792, %v1303
    %v1859 = vsel %vm1837, %v1794, %v1305
    %v1861 = vsel %vm1837, %v1796, %v1307
    %v1863 = vsel %vm1837, %v1798, %v1309
    %v1865 = vsel %vm1837, %v1800, %v1311
    %v1867 = vsel %vm1837, %v1802, %v1313
    %v1869 = vsel %vm1837, %v1804, %v1315
    %v1871 = vsel %vm1837, %v1806, %v1317
    %v1873 = vsel %vm1837, %v1808, %v1319
    %v1875 = vsel %vm1837, %v1810, %v1321
    %v1877 = vsel %vm1837, %v1812, %v1323
    %v1879 = vsel %vm1837, %v1814, %v1325
    %v1881 = vsel %vm1837, %v1816, %v1327
    %v1883 = vsel %vm1837, %v1818, %v1329
    %v1885 = vsel %vm1837, %v1820, %v1331
    %v1887 = vsel %vm1837, %v1822, %v1333
    %v1889 = vsel %vm1837, %v1824, %v1335
    %v1891 = vsel %vm1837, %v1826, %v1337
    %v1893 = vsel %vm1837, %v1828, %v1339
    %v1895 = vsel %vm1837, %v1830, %v1341
    %v1897 = vsel %vm1837, %v1832, %v1343
    %v1899 = vsel %vm1837, %v1834, %v1345
    %v1901 = vsel %vm1837, %v1836, %v1347
    %vm1902 = vcmask 171008
    %v1904 = vsel %vm1902, %v1839, %v1379
    %v1906 = vsel %vm1902, %v1841, %v1381
    %v1908 = vsel %vm1902, %v1843, %v1383
    %v1910 = vsel %vm1902, %v1845, %v1385
    %v1912 = vsel %vm1902, %v1847, %v1387
    %v1914 = vsel %vm1902, %v1849, %v1389
    %v1916 = vsel %vm1902, %v1851, %v1391
    %v1918 = vsel %vm1902, %v1853, %v1393
    %v1920 = vsel %vm1902, %v1855, %v1395
    %v1922 = vsel %vm1902, %v1857, %v1397
    %v1924 = vsel %vm1902, %v1859, %v1399
    %v1926 = vsel %vm1902, %v1861, %v1401
    %v1928 = vsel %vm1902, %v1863, %v1403
    %v1930 = vsel %vm1902, %v1865, %v1405
    %v1932 = vsel %vm1902, %v1867, %v1407
    %v1934 = vsel %vm1902, %v1869, %v1409
    %v1936 = vsel %vm1902, %v1871, %v1411
    %v1938 = vsel %vm1902, %v1873, %v1413
    %v1940 = vsel %vm1902, %v1875, %v1415
    %v1942 = vsel %vm1902, %v1877, %v1417
    %v1944 = vsel %vm1902, %v1879, %v1419
    %v1946 = vsel %vm1902, %v1881, %v1421
    %v1948 = vsel %vm1902, %v1883, %v1423
    %v1950 = vsel %vm1902, %v1885, %v1425
    %v1952 = vsel %vm1902, %v1887, %v1427
    %v1954 = vsel %vm1902, %v1889, %v1429
    %v1956 = vsel %vm1902, %v1891, %v1431
    %v1958 = vsel %vm1902, %v1893, %v1433
    %v1960 = vsel %vm1902, %v1895, %v1435
    %v1962 = vsel %vm1902, %v1897, %v1437
    %v1964 = vsel %vm1902, %v1899, %v1439
    %v1966 = vsel %vm1902, %v1901, %v1441
    %vm1967 = vcmask 195584
    %v1969 = vsel %vm1967, %v1904, %v1449
    %v1971 = vsel %vm1967, %v1906, %v1451
    %v1973 = vsel %vm1967, %v1908, %v1453
    %v1975 = vsel %vm1967, %v1910, %v1455
    %v1977 = vsel %vm1967, %v1912, %v1457
    %v1979 = vsel %vm1967, %v1914, %v1459
    %v1981 = vsel %vm1967, %v1916, %v1461
    %v1983 = vsel %vm1967, %v1918, %v1463
    %v1985 = vsel %vm1967, %v1920, %v1465
    %v1987 = vsel %vm1967, %v1922, %v1467
    %v1989 = vsel %vm1967, %v1924, %v1469
    %v1991 = vsel %vm1967, %v1926, %v1471
    %v1993 = vsel %vm1967, %v1928, %v1473
    %v1995 = vsel %vm1967, %v1930, %v1475
    %v1997 = vsel %vm1967, %v1932, %v1477
    %v1999 = vsel %vm1967, %v1934, %v1479
    %v2001 = vsel %vm1967, %v1936, %v1481
    %v2003 = vsel %vm1967, %v1938, %v1483
    %v2005 = vsel %vm1967, %v1940, %v1485
    %v2007 = vsel %vm1967, %v1942, %v1487
    %v2009 = vsel %vm1967, %v1944, %v1489
    %v2011 = vsel %vm1967, %v1946, %v1491
    %v2013 = vsel %vm1967, %v1948, %v1493
    %v2015 = vsel %vm1967, %v1950, %v1495
    %v2017 = vsel %vm1967, %v1952, %v1497
    %v2019 = vsel %vm1967, %v1954, %v1499
    %v2021 = vsel %vm1967, %v1956, %v1501
    %v2023 = vsel %vm1967, %v1958, %v1503
    %v2025 = vsel %vm1967, %v1960, %v1505
    %v2027 = vsel %vm1967, %v1962, %v1507
    %v2029 = vsel %vm1967, %v1964, %v1509
    %v2031 = vsel %vm1967, %v1966, %v1511
    %v2032 = vld [vmem:[%s1] sm:$0xf]
    %v2033 = vld [vmem:[%s1 + $0x4] sm:$0xf]
    %v2034 = vld [vmem:[%s1 + $0x8] sm:$0xf]
    %v2035 = vld [vmem:[%s1 + $0xc] sm:$0x3]
    %v2036 = vld [vmem:[%s2] sm:$0x1]
    %v2038 = vperm.slane %v2036, 0
    %v2044 = vunpack.c.l.b16 %v2032
    %v2045 = vunpack.c.l.b16 %v2033
    %v2046 = vunpack.c.l.b16 %v2034
    %v2047 = vunpack.c.l.b16 %v2035
    %v2048 = vpack.c.b16 %v2045, %v2044
    %v2049 = vpack.c.b16 %v2047, %v2046
    %vm2051 = vcmask 220160
    %v2052 = vsel %vm2051, %v1969, 0
    %v2054 = vsel %vm2051, %v1971, 0
    %v2056 = vsel %vm2051, %v1973, 0
    %v2058 = vsel %vm2051, %v1975, 0
    %v2060 = vsel %vm2051, %v1977, 0
    %v2062 = vsel %vm2051, %v1979, 0
    %v2064 = vsel %vm2051, %v1981, 0
    %v2066 = vsel %vm2051, %v1983, 0
    %v2068 = vsel %vm2051, %v1985, 0
    %v2070 = vsel %vm2051, %v1987, 0
    %v2072 = vsel %vm2051, %v1989, 0
    %v2074 = vsel %vm2051, %v1991, 0
    %v2076 = vsel %vm2051, %v1993, 0
    %v2078 = vsel %vm2051, %v1995, 0
    %v2080 = vsel %vm2051, %v1997, 0
    %v2082 = vsel %vm2051, %v1999, 0
    %v2084 = vsel %vm2051, %v2001, 0
    %v2086 = vsel %vm2051, %v2003, 0
    %v2088 = vsel %vm2051, %v2005, 0
    %v2090 = vsel %vm2051, %v2007, 0
    %v2092 = vsel %vm2051, %v2009, 0
    %v2094 = vsel %vm2051, %v2011, 0
    %v2096 = vsel %vm2051, %v2013, 0
    %v2098 = vsel %vm2051, %v2015, 0
    %v2100 = vsel %vm2051, %v2017, 0
    %v2102 = vsel %vm2051, %v2019, 0
    %v2104 = vsel %vm2051, %v2021, 0
    %v2106 = vsel %vm2051, %v2023, 0
    %v2108 = vsel %vm2051, %v2025, 0
    %v2110 = vsel %vm2051, %v2027, 0
    %v2112 = vsel %vm2051, %v2029, 0
    %v2114 = vsel %vm2051, %v2031, 0
    %vm2116 = vcmask 1044480
    %vm2117 = vcmask 1045504
    %v2118 = vsel %vm2116, 4294967295, 65535
    %v2119 = vsel %vm2117, %v2118, 0
    %v2121 = vand.u32 %v2049, %v2119
    %2123 = vmatpush.bf16.msra.mxu0 0
    %2124 = vmatpush.bf16.msra.mxu0 0
    %2125 = vmatpush.bf16.msra.mxu0 0
    %2126 = vmatpush.bf16.msra.mxu0 0
    %2127 = vmatpush.bf16.msra.mxu0 0
    %2128 = vmatpush.bf16.msra.mxu0 0
    %2129 = vmatpush.bf16.msra.mxu0 %v2121
    %2130 = vmatpush.bf16.msra.mxu0 %v2048
    %2131 = vmatmul.bf16.gmra.mxu0 %v2052
    %v2132 = vpop.f32.mrf.mxu0
    %v2133 = vadd.f32 %v2038, %v2132
    %v2134 = vpop.f32.mrf.mxu0
    %v2135 = vadd.f32 %v2038, %v2134
    %2136 = vmatmul.bf16.gmra.mxu0 %v2054
    %v2137 = vpop.f32.mrf.mxu0
    %v2138 = vadd.f32 %v2038, %v2137
    %v2139 = vpop.f32.mrf.mxu0
    %v2140 = vadd.f32 %v2038, %v2139
    %2141 = vmatmul.bf16.gmra.mxu0 %v2056
    %v2142 = vpop.f32.mrf.mxu0
    %v2143 = vadd.f32 %v2038, %v2142
    %v2144 = vpop.f32.mrf.mxu0
    %v2145 = vadd.f32 %v2038, %v2144
    %2146 = vmatmul.bf16.gmra.mxu0 %v2058
    %v2147 = vpop.f32.mrf.mxu0
    %v2148 = vadd.f32 %v2038, %v2147
    %v2149 = vpop.f32.mrf.mxu0
    %v2150 = vadd.f32 %v2038, %v2149
    %2151 = vmatmul.bf16.gmra.mxu0 %v2060
    %v2152 = vpop.f32.mrf.mxu0
    %v2153 = vadd.f32 %v2038, %v2152
    %v2154 = vpop.f32.mrf.mxu0
    %v2155 = vadd.f32 %v2038, %v2154
    %2156 = vmatmul.bf16.gmra.mxu0 %v2062
    %v2157 = vpop.f32.mrf.mxu0
    %v2158 = vadd.f32 %v2038, %v2157
    %v2159 = vpop.f32.mrf.mxu0
    %v2160 = vadd.f32 %v2038, %v2159
    %2161 = vmatmul.bf16.gmra.mxu0 %v2064
    %v2162 = vpop.f32.mrf.mxu0
    %v2163 = vadd.f32 %v2038, %v2162
    %v2164 = vpop.f32.mrf.mxu0
    %v2165 = vadd.f32 %v2038, %v2164
    %2166 = vmatmul.bf16.gmra.mxu0 %v2066
    %v2167 = vpop.f32.mrf.mxu0
    %v2168 = vadd.f32 %v2038, %v2167
    %v2169 = vpop.f32.mrf.mxu0
    %v2170 = vadd.f32 %v2038, %v2169
    %2171 = vmatmul.bf16.gmra.mxu0 %v2068
    %v2172 = vpop.f32.mrf.mxu0
    %v2173 = vadd.f32 %v2038, %v2172
    %v2174 = vpop.f32.mrf.mxu0
    %v2175 = vadd.f32 %v2038, %v2174
    %2176 = vmatmul.bf16.gmra.mxu0 %v2070
    %v2177 = vpop.f32.mrf.mxu0
    %v2178 = vadd.f32 %v2038, %v2177
    %v2179 = vpop.f32.mrf.mxu0
    %v2180 = vadd.f32 %v2038, %v2179
    %2181 = vmatmul.bf16.gmra.mxu0 %v2072
    %v2182 = vpop.f32.mrf.mxu0
    %v2183 = vadd.f32 %v2038, %v2182
    %v2184 = vpop.f32.mrf.mxu0
    %v2185 = vadd.f32 %v2038, %v2184
    %2186 = vmatmul.bf16.gmra.mxu0 %v2074
    %v2187 = vpop.f32.mrf.mxu0
    %v2188 = vadd.f32 %v2038, %v2187
    %v2189 = vpop.f32.mrf.mxu0
    %v2190 = vadd.f32 %v2038, %v2189
    %2191 = vmatmul.bf16.gmra.mxu0 %v2076
    %v2192 = vpop.f32.mrf.mxu0
    %v2193 = vadd.f32 %v2038, %v2192
    %v2194 = vpop.f32.mrf.mxu0
    %v2195 = vadd.f32 %v2038, %v2194
    %2196 = vmatmul.bf16.gmra.mxu0 %v2078
    %v2197 = vpop.f32.mrf.mxu0
    %v2198 = vadd.f32 %v2038, %v2197
    %v2199 = vpop.f32.mrf.mxu0
    %v2200 = vadd.f32 %v2038, %v2199
    %2201 = vmatmul.bf16.gmra.mxu0 %v2080
    %v2202 = vpop.f32.mrf.mxu0
    %v2203 = vadd.f32 %v2038, %v2202
    %v2204 = vpop.f32.mrf.mxu0
    %v2205 = vadd.f32 %v2038, %v2204
    %2206 = vmatmul.bf16.gmra.mxu0 %v2082
    %v2207 = vpop.f32.mrf.mxu0
    %v2208 = vadd.f32 %v2038, %v2207
    %v2209 = vpop.f32.mrf.mxu0
    %v2210 = vadd.f32 %v2038, %v2209
    %2211 = vmatmul.bf16.gmra.mxu0 %v2084
    %v2212 = vpop.f32.mrf.mxu0
    %v2213 = vadd.f32 %v2038, %v2212
    %v2214 = vpop.f32.mrf.mxu0
    %v2215 = vadd.f32 %v2038, %v2214
    %2216 = vmatmul.bf16.gmra.mxu0 %v2086
    %v2217 = vpop.f32.mrf.mxu0
    %v2218 = vadd.f32 %v2038, %v2217
    %v2219 = vpop.f32.mrf.mxu0
    %v2220 = vadd.f32 %v2038, %v2219
    %2221 = vmatmul.bf16.gmra.mxu0 %v2088
    %v2222 = vpop.f32.mrf.mxu0
    %v2223 = vadd.f32 %v2038, %v2222
    %v2224 = vpop.f32.mrf.mxu0
    %v2225 = vadd.f32 %v2038, %v2224
    %2226 = vmatmul.bf16.gmra.mxu0 %v2090
    %v2227 = vpop.f32.mrf.mxu0
    %v2228 = vadd.f32 %v2038, %v2227
    %v2229 = vpop.f32.mrf.mxu0
    %v2230 = vadd.f32 %v2038, %v2229
    %2231 = vmatmul.bf16.gmra.mxu0 %v2092
    %v2232 = vpop.f32.mrf.mxu0
    %v2233 = vadd.f32 %v2038, %v2232
    %v2234 = vpop.f32.mrf.mxu0
    %v2235 = vadd.f32 %v2038, %v2234
    %2236 = vmatmul.bf16.gmra.mxu0 %v2094
    %v2237 = vpop.f32.mrf.mxu0
    %v2238 = vadd.f32 %v2038, %v2237
    %v2239 = vpop.f32.mrf.mxu0
    %v2240 = vadd.f32 %v2038, %v2239
    %2241 = vmatmul.bf16.gmra.mxu0 %v2096
    %v2242 = vpop.f32.mrf.mxu0
    %v2243 = vadd.f32 %v2038, %v2242
    %v2244 = vpop.f32.mrf.mxu0
    %v2245 = vadd.f32 %v2038, %v2244
    %2246 = vmatmul.bf16.gmra.mxu0 %v2098
    %v2247 = vpop.f32.mrf.mxu0
    %v2248 = vadd.f32 %v2038, %v2247
    %v2249 = vpop.f32.mrf.mxu0
    %v2250 = vadd.f32 %v2038, %v2249
    %2251 = vmatmul.bf16.gmra.mxu0 %v2100
    %v2252 = vpop.f32.mrf.mxu0
    %v2253 = vadd.f32 %v2038, %v2252
    %v2254 = vpop.f32.mrf.mxu0
    %v2255 = vadd.f32 %v2038, %v2254
    %2256 = vmatmul.bf16.gmra.mxu0 %v2102
    %v2257 = vpop.f32.mrf.mxu0
    %v2258 = vadd.f32 %v2038, %v2257
    %v2259 = vpop.f32.mrf.mxu0
    %v2260 = vadd.f32 %v2038, %v2259
    %2261 = vmatmul.bf16.gmra.mxu0 %v2104
    %v2262 = vpop.f32.mrf.mxu0
    %v2263 = vadd.f32 %v2038, %v2262
    %v2264 = vpop.f32.mrf.mxu0
    %v2265 = vadd.f32 %v2038, %v2264
    %2266 = vmatmul.bf16.gmra.mxu0 %v2106
    %v2267 = vpop.f32.mrf.mxu0
    %v2268 = vadd.f32 %v2038, %v2267
    %v2269 = vpop.f32.mrf.mxu0
    %v2270 = vadd.f32 %v2038, %v2269
    %2271 = vmatmul.bf16.gmra.mxu0 %v2108
    %v2272 = vpop.f32.mrf.mxu0
    %v2273 = vadd.f32 %v2038, %v2272
    %v2274 = vpop.f32.mrf.mxu0
    %v2275 = vadd.f32 %v2038, %v2274
    %2276 = vmatmul.bf16.gmra.mxu0 %v2110
    %v2277 = vpop.f32.mrf.mxu0
    %v2278 = vadd.f32 %v2038, %v2277
    %v2279 = vpop.f32.mrf.mxu0
    %v2280 = vadd.f32 %v2038, %v2279
    %2281 = vmatmul.bf16.gmra.mxu0 %v2112
    %v2282 = vpop.f32.mrf.mxu0
    %v2283 = vadd.f32 %v2038, %v2282
    %v2284 = vpop.f32.mrf.mxu0
    %v2285 = vadd.f32 %v2038, %v2284
    %2286 = vmatmul.bf16.gmra.mxu0 %v2114
    %v2287 = vpop.f32.mrf.mxu0
    %v2288 = vadd.f32 %v2038, %v2287
    %v2289 = vpop.f32.mrf.mxu0
    %v2290 = vadd.f32 %v2038, %v2289
    %2291 = vdwg.mxu0
    %v2292 = vmax.f32 %v2133, 0.0
    %v2293 = vmax.f32 %v2135, 0.0
    %v2294 = vmax.f32 %v2138, 0.0
    %v2295 = vmax.f32 %v2140, 0.0
    %v2296 = vmax.f32 %v2143, 0.0
    %v2297 = vmax.f32 %v2145, 0.0
    %v2298 = vmax.f32 %v2148, 0.0
    %v2299 = vmax.f32 %v2150, 0.0
    %v2300 = vmax.f32 %v2153, 0.0
    %v2301 = vmax.f32 %v2155, 0.0
    %v2302 = vmax.f32 %v2158, 0.0
    %v2303 = vmax.f32 %v2160, 0.0
    %v2304 = vmax.f32 %v2163, 0.0
    %v2305 = vmax.f32 %v2165, 0.0
    %v2306 = vmax.f32 %v2168, 0.0
    %v2307 = vmax.f32 %v2170, 0.0
    %v2308 = vmax.f32 %v2173, 0.0
    %v2309 = vmax.f32 %v2175, 0.0
    %v2310 = vmax.f32 %v2178, 0.0
    %v2311 = vmax.f32 %v2180, 0.0
    %v2312 = vmax.f32 %v2183, 0.0
    %v2313 = vmax.f32 %v2185, 0.0
    %v2314 = vmax.f32 %v2188, 0.0
    %v2315 = vmax.f32 %v2190, 0.0
    %v2316 = vmax.f32 %v2193, 0.0
    %v2317 = vmax.f32 %v2195, 0.0
    %v2318 = vmax.f32 %v2198, 0.0
    %v2319 = vmax.f32 %v2200, 0.0
    %v2320 = vmax.f32 %v2203, 0.0
    %v2321 = vmax.f32 %v2205, 0.0
    %v2322 = vmax.f32 %v2208, 0.0
    %v2323 = vmax.f32 %v2210, 0.0
    %v2324 = vmax.f32 %v2213, 0.0
    %v2325 = vmax.f32 %v2215, 0.0
    %v2326 = vmax.f32 %v2218, 0.0
    %v2327 = vmax.f32 %v2220, 0.0
    %v2328 = vmax.f32 %v2223, 0.0
    %v2329 = vmax.f32 %v2225, 0.0
    %v2330 = vmax.f32 %v2228, 0.0
    %v2331 = vmax.f32 %v2230, 0.0
    %v2332 = vmax.f32 %v2233, 0.0
    %v2333 = vmax.f32 %v2235, 0.0
    %v2334 = vmax.f32 %v2238, 0.0
    %v2335 = vmax.f32 %v2240, 0.0
    %v2336 = vmax.f32 %v2243, 0.0
    %v2337 = vmax.f32 %v2245, 0.0
    %v2338 = vmax.f32 %v2248, 0.0
    %v2339 = vmax.f32 %v2250, 0.0
    %v2340 = vmax.f32 %v2253, 0.0
    %v2341 = vmax.f32 %v2255, 0.0
    %v2342 = vmax.f32 %v2258, 0.0
    %v2343 = vmax.f32 %v2260, 0.0
    %v2344 = vmax.f32 %v2263, 0.0
    %v2345 = vmax.f32 %v2265, 0.0
    %v2346 = vmax.f32 %v2268, 0.0
    %v2347 = vmax.f32 %v2270, 0.0
    %v2348 = vmax.f32 %v2273, 0.0
    %v2349 = vmax.f32 %v2275, 0.0
    %v2350 = vmax.f32 %v2278, 0.0
    %v2351 = vmax.f32 %v2280, 0.0
    %v2352 = vmax.f32 %v2283, 0.0
    %v2353 = vmax.f32 %v2285, 0.0
    %v2354 = vmax.f32 %v2288, 0.0
    %v2355 = vmax.f32 %v2290, 0.0
    %v2420 = vrot.slane %v2292, 2
    %v2421 = vrot.slane %v2292, 4
    %v2422 = vrot.slane %v2292, 6
    %v2423 = vrot.slane %v2293, 2
    %v2424 = vrot.slane %v2293, 4
    %v2425 = vrot.slane %v2293, 6
    %v2426 = vrot.slane %v2294, 2
    %v2427 = vrot.slane %v2294, 4
    %v2428 = vrot.slane %v2294, 6
    %v2429 = vrot.slane %v2295, 2
    %v2430 = vrot.slane %v2295, 4
    %v2431 = vrot.slane %v2295, 6
    %v2432 = vrot.slane %v2296, 2
    %v2433 = vrot.slane %v2296, 4
    %v2434 = vrot.slane %v2296, 6
    %v2435 = vrot.slane %v2297, 2
    %v2436 = vrot.slane %v2297, 4
    %v2437 = vrot.slane %v2297, 6
    %v2438 = vrot.slane %v2298, 2
    %v2439 = vrot.slane %v2298, 4
    %v2440 = vrot.slane %v2298, 6
    %v2441 = vrot.slane %v2299, 2
    %v2442 = vrot.slane %v2299, 4
    %v2443 = vrot.slane %v2299, 6
    %v2444 = vrot.slane %v2300, 2
    %v2445 = vrot.slane %v2300, 4
    %v2446 = vrot.slane %v2300, 6
    %v2447 = vrot.slane %v2301, 2
    %v2448 = vrot.slane %v2301, 4
    %v2449 = vrot.slane %v2301, 6
    %v2450 = vrot.slane %v2302, 2
    %v2451 = vrot.slane %v2302, 4
    %v2452 = vrot.slane %v2302, 6
    %v2453 = vrot.slane %v2303, 2
    %v2454 = vrot.slane %v2303, 4
    %v2455 = vrot.slane %v2303, 6
    %v2456 = vrot.slane %v2304, 2
    %v2457 = vrot.slane %v2304, 4
    %v2458 = vrot.slane %v2304, 6
    %v2459 = vrot.slane %v2305, 2
    %v2460 = vrot.slane %v2305, 4
    %v2461 = vrot.slane %v2305, 6
    %v2462 = vrot.slane %v2306, 2
    %v2463 = vrot.slane %v2306, 4
    %v2464 = vrot.slane %v2306, 6
    %v2465 = vrot.slane %v2307, 2
    %v2466 = vrot.slane %v2307, 4
    %v2467 = vrot.slane %v2307, 6
    %v2468 = vrot.slane %v2308, 2
    %v2469 = vrot.slane %v2308, 4
    %v2470 = vrot.slane %v2308, 6
    %v2471 = vrot.slane %v2309, 2
    %v2472 = vrot.slane %v2309, 4
    %v2473 = vrot.slane %v2309, 6
    %v2474 = vrot.slane %v2310, 2
    %v2475 = vrot.slane %v2310, 4
    %v2476 = vrot.slane %v2310, 6
    %v2477 = vrot.slane %v2311, 2
    %v2478 = vrot.slane %v2311, 4
    %v2479 = vrot.slane %v2311, 6
    %v2480 = vrot.slane %v2312, 2
    %v2481 = vrot.slane %v2312, 4
    %v2482 = vrot.slane %v2312, 6
    %v2483 = vrot.slane %v2313, 2
    %v2484 = vrot.slane %v2313, 4
    %v2485 = vrot.slane %v2313, 6
    %v2486 = vrot.slane %v2314, 2
    %v2487 = vrot.slane %v2314, 4
    %v2488 = vrot.slane %v2314, 6
    %v2489 = vrot.slane %v2315, 2
    %v2490 = vrot.slane %v2315, 4
    %v2491 = vrot.slane %v2315, 6
    %v2492 = vrot.slane %v2316, 2
    %v2493 = vrot.slane %v2316, 4
    %v2494 = vrot.slane %v2316, 6
    %v2495 = vrot.slane %v2317, 2
    %v2496 = vrot.slane %v2317, 4
    %v2497 = vrot.slane %v2317, 6
    %v2498 = vrot.slane %v2318, 2
    %v2499 = vrot.slane %v2318, 4
    %v2500 = vrot.slane %v2318, 6
    %v2501 = vrot.slane %v2319, 2
    %v2502 = vrot.slane %v2319, 4
    %v2503 = vrot.slane %v2319, 6
    %v2504 = vrot.slane %v2320, 2
    %v2505 = vrot.slane %v2320, 4
    %v2506 = vrot.slane %v2320, 6
    %v2507 = vrot.slane %v2321, 2
    %v2508 = vrot.slane %v2321, 4
    %v2509 = vrot.slane %v2321, 6
    %v2510 = vrot.slane %v2322, 2
    %v2511 = vrot.slane %v2322, 4
    %v2512 = vrot.slane %v2322, 6
    %v2513 = vrot.slane %v2323, 2
    %v2514 = vrot.slane %v2323, 4
    %v2515 = vrot.slane %v2323, 6
    %v2516 = vrot.slane %v2324, 2
    %v2517 = vrot.slane %v2324, 4
    %v2518 = vrot.slane %v2324, 6
    %v2519 = vrot.slane %v2325, 2
    %v2520 = vrot.slane %v2325, 4
    %v2521 = vrot.slane %v2325, 6
    %v2522 = vrot.slane %v2326, 2
    %v2523 = vrot.slane %v2326, 4
    %v2524 = vrot.slane %v2326, 6
    %v2525 = vrot.slane %v2327, 2
    %v2526 = vrot.slane %v2327, 4
    %v2527 = vrot.slane %v2327, 6
    %v2528 = vrot.slane %v2328, 2
    %v2529 = vrot.slane %v2328, 4
    %v2530 = vrot.slane %v2328, 6
    %v2531 = vrot.slane %v2329, 2
    %v2532 = vrot.slane %v2329, 4
    %v2533 = vrot.slane %v2329, 6
    %v2534 = vrot.slane %v2330, 2
    %v2535 = vrot.slane %v2330, 4
    %v2536 = vrot.slane %v2330, 6
    %v2537 = vrot.slane %v2331, 2
    %v2538 = vrot.slane %v2331, 4
    %v2539 = vrot.slane %v2331, 6
    %v2540 = vrot.slane %v2332, 2
    %v2541 = vrot.slane %v2332, 4
    %v2542 = vrot.slane %v2332, 6
    %v2543 = vrot.slane %v2333, 2
    %v2544 = vrot.slane %v2333, 4
    %v2545 = vrot.slane %v2333, 6
    %v2546 = vrot.slane %v2334, 2
    %v2547 = vrot.slane %v2334, 4
    %v2548 = vrot.slane %v2334, 6
    %v2549 = vrot.slane %v2335, 2
    %v2550 = vrot.slane %v2335, 4
    %v2551 = vrot.slane %v2335, 6
    %v2552 = vrot.slane %v2336, 2
    %v2553 = vrot.slane %v2336, 4
    %v2554 = vrot.slane %v2336, 6
    %v2555 = vrot.slane %v2337, 2
    %v2556 = vrot.slane %v2337, 4
    %v2557 = vrot.slane %v2337, 6
    %v2558 = vrot.slane %v2338, 2
    %v2559 = vrot.slane %v2338, 4
    %v2560 = vrot.slane %v2338, 6
    %v2561 = vrot.slane %v2339, 2
    %v2562 = vrot.slane %v2339, 4
    %v2563 = vrot.slane %v2339, 6
    %v2564 = vrot.slane %v2340, 2
    %v2565 = vrot.slane %v2340, 4
    %v2566 = vrot.slane %v2340, 6
    %v2567 = vrot.slane %v2341, 2
    %v2568 = vrot.slane %v2341, 4
    %v2569 = vrot.slane %v2341, 6
    %v2570 = vrot.slane %v2342, 2
    %v2571 = vrot.slane %v2342, 4
    %v2572 = vrot.slane %v2342, 6
    %v2573 = vrot.slane %v2343, 2
    %v2574 = vrot.slane %v2343, 4
    %v2575 = vrot.slane %v2343, 6
    %v2576 = vrot.slane %v2344, 2
    %v2577 = vrot.slane %v2344, 4
    %v2578 = vrot.slane %v2344, 6
    %v2579 = vrot.slane %v2345, 2
    %v2580 = vrot.slane %v2345, 4
    %v2581 = vrot.slane %v2345, 6
    %v2582 = vrot.slane %v2346, 2
    %v2583 = vrot.slane %v2346, 4
    %v2584 = vrot.slane %v2346, 6
    %v2585 = vrot.slane %v2347, 2
    %v2586 = vrot.slane %v2347, 4
    %v2587 = vrot.slane %v2347, 6
    %v2588 = vrot.slane %v2348, 2
    %v2589 = vrot.slane %v2348, 4
    %v2590 = vrot.slane %v2348, 6
    %v2591 = vrot.slane %v2349, 2
    %v2592 = vrot.slane %v2349, 4
    %v2593 = vrot.slane %v2349, 6
    %v2594 = vrot.slane %v2350, 2
    %v2595 = vrot.slane %v2350, 4
    %v2596 = vrot.slane %v2350, 6
    %v2597 = vrot.slane %v2351, 2
    %v2598 = vrot.slane %v2351, 4
    %v2599 = vrot.slane %v2351, 6
    %v2600 = vrot.slane %v2352, 2
    %v2601 = vrot.slane %v2352, 4
    %v2602 = vrot.slane %v2352, 6
    %v2603 = vrot.slane %v2353, 2
    %v2604 = vrot.slane %v2353, 4
    %v2605 = vrot.slane %v2353, 6
    %v2606 = vrot.slane %v2354, 2
    %v2607 = vrot.slane %v2354, 4
    %v2608 = vrot.slane %v2354, 6
    %v2609 = vrot.slane %v2355, 2
    %v2610 = vrot.slane %v2355, 4
    %v2611 = vrot.slane %v2355, 6
    %v2804 = vrot.slane %v2292, 7
    %v2805 = vrot.slane %v2804, 2
    %v2806 = vrot.slane %v2420, 7
    %v2807 = vrot.slane %v2806, 2
    %v2808 = vrot.slane %v2421, 7
    %v2809 = vrot.slane %v2808, 2
    %v2810 = vrot.slane %v2422, 7
    %v2811 = vrot.slane %v2810, 2
    %v2812 = vrot.slane %v2293, 7
    %v2813 = vrot.slane %v2812, 2
    %v2814 = vrot.slane %v2423, 7
    %v2815 = vrot.slane %v2814, 2
    %v2816 = vrot.slane %v2424, 7
    %v2817 = vrot.slane %v2816, 2
    %v2818 = vrot.slane %v2425, 7
    %v2819 = vrot.slane %v2818, 2
    %v2820 = vrot.slane %v2294, 7
    %v2821 = vrot.slane %v2820, 2
    %v2822 = vrot.slane %v2426, 7
    %v2823 = vrot.slane %v2822, 2
    %v2824 = vrot.slane %v2427, 7
    %v2825 = vrot.slane %v2824, 2
    %v2826 = vrot.slane %v2428, 7
    %v2827 = vrot.slane %v2826, 2
    %v2828 = vrot.slane %v2295, 7
    %v2829 = vrot.slane %v2828, 2
    %v2830 = vrot.slane %v2429, 7
    %v2831 = vrot.slane %v2830, 2
    %v2832 = vrot.slane %v2430, 7
    %v2833 = vrot.slane %v2832, 2
    %v2834 = vrot.slane %v2431, 7
    %v2835 = vrot.slane %v2834, 2
    %v2836 = vrot.slane %v2296, 7
    %v2837 = vrot.slane %v2836, 2
    %v2838 = vrot.slane %v2432, 7
    %v2839 = vrot.slane %v2838, 2
    %v2840 = vrot.slane %v2433, 7
    %v2841 = vrot.slane %v2840, 2
    %v2842 = vrot.slane %v2434, 7
    %v2843 = vrot.slane %v2842, 2
    %v2844 = vrot.slane %v2297, 7
    %v2845 = vrot.slane %v2844, 2
    %v2846 = vrot.slane %v2435, 7
    %v2847 = vrot.slane %v2846, 2
    %v2848 = vrot.slane %v2436, 7
    %v2849 = vrot.slane %v2848, 2
    %v2850 = vrot.slane %v2437, 7
    %v2851 = vrot.slane %v2850, 2
    %v2852 = vrot.slane %v2298, 7
    %v2853 = vrot.slane %v2852, 2
    %v2854 = vrot.slane %v2438, 7
    %v2855 = vrot.slane %v2854, 2
    %v2856 = vrot.slane %v2439, 7
    %v2857 = vrot.slane %v2856, 2
    %v2858 = vrot.slane %v2440, 7
    %v2859 = vrot.slane %v2858, 2
    %v2860 = vrot.slane %v2299, 7
    %v2861 = vrot.slane %v2860, 2
    %v2862 = vrot.slane %v2441, 7
    %v2863 = vrot.slane %v2862, 2
    %v2864 = vrot.slane %v2442, 7
    %v2865 = vrot.slane %v2864, 2
    %v2866 = vrot.slane %v2443, 7
    %v2867 = vrot.slane %v2866, 2
    %v2868 = vrot.slane %v2300, 7
    %v2869 = vrot.slane %v2868, 2
    %v2870 = vrot.slane %v2444, 7
    %v2871 = vrot.slane %v2870, 2
    %v2872 = vrot.slane %v2445, 7
    %v2873 = vrot.slane %v2872, 2
    %v2874 = vrot.slane %v2446, 7
    %v2875 = vrot.slane %v2874, 2
    %v2876 = vrot.slane %v2301, 7
    %v2877 = vrot.slane %v2876, 2
    %v2878 = vrot.slane %v2447, 7
    %v2879 = vrot.slane %v2878, 2
    %v2880 = vrot.slane %v2448, 7
    %v2881 = vrot.slane %v2880, 2
    %v2882 = vrot.slane %v2449, 7
    %v2883 = vrot.slane %v2882, 2
    %v2884 = vrot.slane %v2302, 7
    %v2885 = vrot.slane %v2884, 2
    %v2886 = vrot.slane %v2450, 7
    %v2887 = vrot.slane %v2886, 2
    %v2888 = vrot.slane %v2451, 7
    %v2889 = vrot.slane %v2888, 2
    %v2890 = vrot.slane %v2452, 7
    %v2891 = vrot.slane %v2890, 2
    %v2892 = vrot.slane %v2303, 7
    %v2893 = vrot.slane %v2892, 2
    %v2894 = vrot.slane %v2453, 7
    %v2895 = vrot.slane %v2894, 2
    %v2896 = vrot.slane %v2454, 7
    %v2897 = vrot.slane %v2896, 2
    %v2898 = vrot.slane %v2455, 7
    %v2899 = vrot.slane %v2898, 2
    %v2900 = vrot.slane %v2304, 7
    %v2901 = vrot.slane %v2900, 2
    %v2902 = vrot.slane %v2456, 7
    %v2903 = vrot.slane %v2902, 2
    %v2904 = vrot.slane %v2457, 7
    %v2905 = vrot.slane %v2904, 2
    %v2906 = vrot.slane %v2458, 7
    %v2907 = vrot.slane %v2906, 2
    %v2908 = vrot.slane %v2305, 7
    %v2909 = vrot.slane %v2908, 2
    %v2910 = vrot.slane %v2459, 7
    %v2911 = vrot.slane %v2910, 2
    %v2912 = vrot.slane %v2460, 7
    %v2913 = vrot.slane %v2912, 2
    %v2914 = vrot.slane %v2461, 7
    %v2915 = vrot.slane %v2914, 2
    %v2916 = vrot.slane %v2306, 7
    %v2917 = vrot.slane %v2916, 2
    %v2918 = vrot.slane %v2462, 7
    %v2919 = vrot.slane %v2918, 2
    %v2920 = vrot.slane %v2463, 7
    %v2921 = vrot.slane %v2920, 2
    %v2922 = vrot.slane %v2464, 7
    %v2923 = vrot.slane %v2922, 2
    %v2924 = vrot.slane %v2307, 7
    %v2925 = vrot.slane %v2924, 2
    %v2926 = vrot.slane %v2465, 7
    %v2927 = vrot.slane %v2926, 2
    %v2928 = vrot.slane %v2466, 7
    %v2929 = vrot.slane %v2928, 2
    %v2930 = vrot.slane %v2467, 7
    %v2931 = vrot.slane %v2930, 2
    %v2932 = vrot.slane %v2308, 7
    %v2933 = vrot.slane %v2932, 2
    %v2934 = vrot.slane %v2468, 7
    %v2935 = vrot.slane %v2934, 2
    %v2936 = vrot.slane %v2469, 7
    %v2937 = vrot.slane %v2936, 2
    %v2938 = vrot.slane %v2470, 7
    %v2939 = vrot.slane %v2938, 2
    %v2940 = vrot.slane %v2309, 7
    %v2941 = vrot.slane %v2940, 2
    %v2942 = vrot.slane %v2471, 7
    %v2943 = vrot.slane %v2942, 2
    %v2944 = vrot.slane %v2472, 7
    %v2945 = vrot.slane %v2944, 2
    %v2946 = vrot.slane %v2473, 7
    %v2947 = vrot.slane %v2946, 2
    %v2948 = vrot.slane %v2310, 7
    %v2949 = vrot.slane %v2948, 2
    %v2950 = vrot.slane %v2474, 7
    %v2951 = vrot.slane %v2950, 2
    %v2952 = vrot.slane %v2475, 7
    %v2953 = vrot.slane %v2952, 2
    %v2954 = vrot.slane %v2476, 7
    %v2955 = vrot.slane %v2954, 2
    %v2956 = vrot.slane %v2311, 7
    %v2957 = vrot.slane %v2956, 2
    %v2958 = vrot.slane %v2477, 7
    %v2959 = vrot.slane %v2958, 2
    %v2960 = vrot.slane %v2478, 7
    %v2961 = vrot.slane %v2960, 2
    %v2962 = vrot.slane %v2479, 7
    %v2963 = vrot.slane %v2962, 2
    %v2964 = vrot.slane %v2312, 7
    %v2965 = vrot.slane %v2964, 2
    %v2966 = vrot.slane %v2480, 7
    %v2967 = vrot.slane %v2966, 2
    %v2968 = vrot.slane %v2481, 7
    %v2969 = vrot.slane %v2968, 2
    %v2970 = vrot.slane %v2482, 7
    %v2971 = vrot.slane %v2970, 2
    %v2972 = vrot.slane %v2313, 7
    %v2973 = vrot.slane %v2972, 2
    %v2974 = vrot.slane %v2483, 7
    %v2975 = vrot.slane %v2974, 2
    %v2976 = vrot.slane %v2484, 7
    %v2977 = vrot.slane %v2976, 2
    %v2978 = vrot.slane %v2485, 7
    %v2979 = vrot.slane %v2978, 2
    %v2980 = vrot.slane %v2314, 7
    %v2981 = vrot.slane %v2980, 2
    %v2982 = vrot.slane %v2486, 7
    %v2983 = vrot.slane %v2982, 2
    %v2984 = vrot.slane %v2487, 7
    %v2985 = vrot.slane %v2984, 2
    %v2986 = vrot.slane %v2488, 7
    %v2987 = vrot.slane %v2986, 2
    %v2988 = vrot.slane %v2315, 7
    %v2989 = vrot.slane %v2988, 2
    %v2990 = vrot.slane %v2489, 7
    %v2991 = vrot.slane %v2990, 2
    %v2992 = vrot.slane %v2490, 7
    %v2993 = vrot.slane %v2992, 2
    %v2994 = vrot.slane %v2491, 7
    %v2995 = vrot.slane %v2994, 2
    %v2996 = vrot.slane %v2316, 7
    %v2997 = vrot.slane %v2996, 2
    %v2998 = vrot.slane %v2492, 7
    %v2999 = vrot.slane %v2998, 2
    %v3000 = vrot.slane %v2493, 7
    %v3001 = vrot.slane %v3000, 2
    %v3002 = vrot.slane %v2494, 7
    %v3003 = vrot.slane %v3002, 2
    %v3004 = vrot.slane %v2317, 7
    %v3005 = vrot.slane %v3004, 2
    %v3006 = vrot.slane %v2495, 7
    %v3007 = vrot.slane %v3006, 2
    %v3008 = vrot.slane %v2496, 7
    %v3009 = vrot.slane %v3008, 2
    %v3010 = vrot.slane %v2497, 7
    %v3011 = vrot.slane %v3010, 2
    %v3012 = vrot.slane %v2318, 7
    %v3013 = vrot.slane %v3012, 2
    %v3014 = vrot.slane %v2498, 7
    %v3015 = vrot.slane %v3014, 2
    %v3016 = vrot.slane %v2499, 7
    %v3017 = vrot.slane %v3016, 2
    %v3018 = vrot.slane %v2500, 7
    %v3019 = vrot.slane %v3018, 2
    %v3020 = vrot.slane %v2319, 7
    %v3021 = vrot.slane %v3020, 2
    %v3022 = vrot.slane %v2501, 7
    %v3023 = vrot.slane %v3022, 2
    %v3024 = vrot.slane %v2502, 7
    %v3025 = vrot.slane %v3024, 2
    %v3026 = vrot.slane %v2503, 7
    %v3027 = vrot.slane %v3026, 2
    %v3028 = vrot.slane %v2320, 7
    %v3029 = vrot.slane %v3028, 2
    %v3030 = vrot.slane %v2504, 7
    %v3031 = vrot.slane %v3030, 2
    %v3032 = vrot.slane %v2505, 7
    %v3033 = vrot.slane %v3032, 2
    %v3034 = vrot.slane %v2506, 7
    %v3035 = vrot.slane %v3034, 2
    %v3036 = vrot.slane %v2321, 7
    %v3037 = vrot.slane %v3036, 2
    %v3038 = vrot.slane %v2507, 7
    %v3039 = vrot.slane %v3038, 2
    %v3040 = vrot.slane %v2508, 7
    %v3041 = vrot.slane %v3040, 2
    %v3042 = vrot.slane %v2509, 7
    %v3043 = vrot.slane %v3042, 2
    %v3044 = vrot.slane %v2322, 7
    %v3045 = vrot.slane %v3044, 2
    %v3046 = vrot.slane %v2510, 7
    %v3047 = vrot.slane %v3046, 2
    %v3048 = vrot.slane %v2511, 7
    %v3049 = vrot.slane %v3048, 2
    %v3050 = vrot.slane %v2512, 7
    %v3051 = vrot.slane %v3050, 2
    %v3052 = vrot.slane %v2323, 7
    %v3053 = vrot.slane %v3052, 2
    %v3054 = vrot.slane %v2513, 7
    %v3055 = vrot.slane %v3054, 2
    %v3056 = vrot.slane %v2514, 7
    %v3057 = vrot.slane %v3056, 2
    %v3058 = vrot.slane %v2515, 7
    %v3059 = vrot.slane %v3058, 2
    %v3060 = vrot.slane %v2324, 7
    %v3061 = vrot.slane %v3060, 2
    %v3062 = vrot.slane %v2516, 7
    %v3063 = vrot.slane %v3062, 2
    %v3064 = vrot.slane %v2517, 7
    %v3065 = vrot.slane %v3064, 2
    %v3066 = vrot.slane %v2518, 7
    %v3067 = vrot.slane %v3066, 2
    %v3068 = vrot.slane %v2325, 7
    %v3069 = vrot.slane %v3068, 2
    %v3070 = vrot.slane %v2519, 7
    %v3071 = vrot.slane %v3070, 2
    %v3072 = vrot.slane %v2520, 7
    %v3073 = vrot.slane %v3072, 2
    %v3074 = vrot.slane %v2521, 7
    %v3075 = vrot.slane %v3074, 2
    %v3076 = vrot.slane %v2326, 7
    %v3077 = vrot.slane %v3076, 2
    %v3078 = vrot.slane %v2522, 7
    %v3079 = vrot.slane %v3078, 2
    %v3080 = vrot.slane %v2523, 7
    %v3081 = vrot.slane %v3080, 2
    %v3082 = vrot.slane %v2524, 7
    %v3083 = vrot.slane %v3082, 2
    %v3084 = vrot.slane %v2327, 7
    %v3085 = vrot.slane %v3084, 2
    %v3086 = vrot.slane %v2525, 7
    %v3087 = vrot.slane %v3086, 2
    %v3088 = vrot.slane %v2526, 7
    %v3089 = vrot.slane %v3088, 2
    %v3090 = vrot.slane %v2527, 7
    %v3091 = vrot.slane %v3090, 2
    %v3092 = vrot.slane %v2328, 7
    %v3093 = vrot.slane %v3092, 2
    %v3094 = vrot.slane %v2528, 7
    %v3095 = vrot.slane %v3094, 2
    %v3096 = vrot.slane %v2529, 7
    %v3097 = vrot.slane %v3096, 2
    %v3098 = vrot.slane %v2530, 7
    %v3099 = vrot.slane %v3098, 2
    %v3100 = vrot.slane %v2329, 7
    %v3101 = vrot.slane %v3100, 2
    %v3102 = vrot.slane %v2531, 7
    %v3103 = vrot.slane %v3102, 2
    %v3104 = vrot.slane %v2532, 7
    %v3105 = vrot.slane %v3104, 2
    %v3106 = vrot.slane %v2533, 7
    %v3107 = vrot.slane %v3106, 2
    %v3108 = vrot.slane %v2330, 7
    %v3109 = vrot.slane %v3108, 2
    %v3110 = vrot.slane %v2534, 7
    %v3111 = vrot.slane %v3110, 2
    %v3112 = vrot.slane %v2535, 7
    %v3113 = vrot.slane %v3112, 2
    %v3114 = vrot.slane %v2536, 7
    %v3115 = vrot.slane %v3114, 2
    %v3116 = vrot.slane %v2331, 7
    %v3117 = vrot.slane %v3116, 2
    %v3118 = vrot.slane %v2537, 7
    %v3119 = vrot.slane %v3118, 2
    %v3120 = vrot.slane %v2538, 7
    %v3121 = vrot.slane %v3120, 2
    %v3122 = vrot.slane %v2539, 7
    %v3123 = vrot.slane %v3122, 2
    %v3124 = vrot.slane %v2332, 7
    %v3125 = vrot.slane %v3124, 2
    %v3126 = vrot.slane %v2540, 7
    %v3127 = vrot.slane %v3126, 2
    %v3128 = vrot.slane %v2541, 7
    %v3129 = vrot.slane %v3128, 2
    %v3130 = vrot.slane %v2542, 7
    %v3131 = vrot.slane %v3130, 2
    %v3132 = vrot.slane %v2333, 7
    %v3133 = vrot.slane %v3132, 2
    %v3134 = vrot.slane %v2543, 7
    %v3135 = vrot.slane %v3134, 2
    %v3136 = vrot.slane %v2544, 7
    %v3137 = vrot.slane %v3136, 2
    %v3138 = vrot.slane %v2545, 7
    %v3139 = vrot.slane %v3138, 2
    %v3140 = vrot.slane %v2334, 7
    %v3141 = vrot.slane %v3140, 2
    %v3142 = vrot.slane %v2546, 7
    %v3143 = vrot.slane %v3142, 2
    %v3144 = vrot.slane %v2547, 7
    %v3145 = vrot.slane %v3144, 2
    %v3146 = vrot.slane %v2548, 7
    %v3147 = vrot.slane %v3146, 2
    %v3148 = vrot.slane %v2335, 7
    %v3149 = vrot.slane %v3148, 2
    %v3150 = vrot.slane %v2549, 7
    %v3151 = vrot.slane %v3150, 2
    %v3152 = vrot.slane %v2550, 7
    %v3153 = vrot.slane %v3152, 2
    %v3154 = vrot.slane %v2551, 7
    %v3155 = vrot.slane %v3154, 2
    %v3156 = vrot.slane %v2336, 7
    %v3157 = vrot.slane %v3156, 2
    %v3158 = vrot.slane %v2552, 7
    %v3159 = vrot.slane %v3158, 2
    %v3160 = vrot.slane %v2553, 7
    %v3161 = vrot.slane %v3160, 2
    %v3162 = vrot.slane %v2554, 7
    %v3163 = vrot.slane %v3162, 2
    %v3164 = vrot.slane %v2337, 7
    %v3165 = vrot.slane %v3164, 2
    %v3166 = vrot.slane %v2555, 7
    %v3167 = vrot.slane %v3166, 2
    %v3168 = vrot.slane %v2556, 7
    %v3169 = vrot.slane %v3168, 2
    %v3170 = vrot.slane %v2557, 7
    %v3171 = vrot.slane %v3170, 2
    %v3172 = vrot.slane %v2338, 7
    %v3173 = vrot.slane %v3172, 2
    %v3174 = vrot.slane %v2558, 7
    %v3175 = vrot.slane %v3174, 2
    %v3176 = vrot.slane %v2559, 7
    %v3177 = vrot.slane %v3176, 2
    %v3178 = vrot.slane %v2560, 7
    %v3179 = vrot.slane %v3178, 2
    %v3180 = vrot.slane %v2339, 7
    %v3181 = vrot.slane %v3180, 2
    %v3182 = vrot.slane %v2561, 7
    %v3183 = vrot.slane %v3182, 2
    %v3184 = vrot.slane %v2562, 7
    %v3185 = vrot.slane %v3184, 2
    %v3186 = vrot.slane %v2563, 7
    %v3187 = vrot.slane %v3186, 2
    %v3188 = vrot.slane %v2340, 7
    %v3189 = vrot.slane %v3188, 2
    %v3190 = vrot.slane %v2564, 7
    %v3191 = vrot.slane %v3190, 2
    %v3192 = vrot.slane %v2565, 7
    %v3193 = vrot.slane %v3192, 2
    %v3194 = vrot.slane %v2566, 7
    %v3195 = vrot.slane %v3194, 2
    %v3196 = vrot.slane %v2341, 7
    %v3197 = vrot.slane %v3196, 2
    %v3198 = vrot.slane %v2567, 7
    %v3199 = vrot.slane %v3198, 2
    %v3200 = vrot.slane %v2568, 7
    %v3201 = vrot.slane %v3200, 2
    %v3202 = vrot.slane %v2569, 7
    %v3203 = vrot.slane %v3202, 2
    %v3204 = vrot.slane %v2342, 7
    %v3205 = vrot.slane %v3204, 2
    %v3206 = vrot.slane %v2570, 7
    %v3207 = vrot.slane %v3206, 2
    %v3208 = vrot.slane %v2571, 7
    %v3209 = vrot.slane %v3208, 2
    %v3210 = vrot.slane %v2572, 7
    %v3211 = vrot.slane %v3210, 2
    %v3212 = vrot.slane %v2343, 7
    %v3213 = vrot.slane %v3212, 2
    %v3214 = vrot.slane %v2573, 7
    %v3215 = vrot.slane %v3214, 2
    %v3216 = vrot.slane %v2574, 7
    %v3217 = vrot.slane %v3216, 2
    %v3218 = vrot.slane %v2575, 7
    %v3219 = vrot.slane %v3218, 2
    %v3220 = vrot.slane %v2344, 7
    %v3221 = vrot.slane %v3220, 2
    %v3222 = vrot.slane %v2576, 7
    %v3223 = vrot.slane %v3222, 2
    %v3224 = vrot.slane %v2577, 7
    %v3225 = vrot.slane %v3224, 2
    %v3226 = vrot.slane %v2578, 7
    %v3227 = vrot.slane %v3226, 2
    %v3228 = vrot.slane %v2345, 7
    %v3229 = vrot.slane %v3228, 2
    %v3230 = vrot.slane %v2579, 7
    %v3231 = vrot.slane %v3230, 2
    %v3232 = vrot.slane %v2580, 7
    %v3233 = vrot.slane %v3232, 2
    %v3234 = vrot.slane %v2581, 7
    %v3235 = vrot.slane %v3234, 2
    %v3236 = vrot.slane %v2346, 7
    %v3237 = vrot.slane %v3236, 2
    %v3238 = vrot.slane %v2582, 7
    %v3239 = vrot.slane %v3238, 2
    %v3240 = vrot.slane %v2583, 7
    %v3241 = vrot.slane %v3240, 2
    %v3242 = vrot.slane %v2584, 7
    %v3243 = vrot.slane %v3242, 2
    %v3244 = vrot.slane %v2347, 7
    %v3245 = vrot.slane %v3244, 2
    %v3246 = vrot.slane %v2585, 7
    %v3247 = vrot.slane %v3246, 2
    %v3248 = vrot.slane %v2586, 7
    %v3249 = vrot.slane %v3248, 2
    %v3250 = vrot.slane %v2587, 7
    %v3251 = vrot.slane %v3250, 2
    %v3252 = vrot.slane %v2348, 7
    %v3253 = vrot.slane %v3252, 2
    %v3254 = vrot.slane %v2588, 7
    %v3255 = vrot.slane %v3254, 2
    %v3256 = vrot.slane %v2589, 7
    %v3257 = vrot.slane %v3256, 2
    %v3258 = vrot.slane %v2590, 7
    %v3259 = vrot.slane %v3258, 2
    %v3260 = vrot.slane %v2349, 7
    %v3261 = vrot.slane %v3260, 2
    %v3262 = vrot.slane %v2591, 7
    %v3263 = vrot.slane %v3262, 2
    %v3264 = vrot.slane %v2592, 7
    %v3265 = vrot.slane %v3264, 2
    %v3266 = vrot.slane %v2593, 7
    %v3267 = vrot.slane %v3266, 2
    %v3268 = vrot.slane %v2350, 7
    %v3269 = vrot.slane %v3268, 2
    %v3270 = vrot.slane %v2594, 7
    %v3271 = vrot.slane %v3270, 2
    %v3272 = vrot.slane %v2595, 7
    %v3273 = vrot.slane %v3272, 2
    %v3274 = vrot.slane %v2596, 7
    %v3275 = vrot.slane %v3274, 2
    %v3276 = vrot.slane %v2351, 7
    %v3277 = vrot.slane %v3276, 2
    %v3278 = vrot.slane %v2597, 7
    %v3279 = vrot.slane %v3278, 2
    %v3280 = vrot.slane %v2598, 7
    %v3281 = vrot.slane %v3280, 2
    %v3282 = vrot.slane %v2599, 7
    %v3283 = vrot.slane %v3282, 2
    %v3284 = vrot.slane %v2352, 7
    %v3285 = vrot.slane %v3284, 2
    %v3286 = vrot.slane %v2600, 7
    %v3287 = vrot.slane %v3286, 2
    %v3288 = vrot.slane %v2601, 7
    %v3289 = vrot.slane %v3288, 2
    %v3290 = vrot.slane %v2602, 7
    %v3291 = vrot.slane %v3290, 2
    %v3292 = vrot.slane %v2353, 7
    %v3293 = vrot.slane %v3292, 2
    %v3294 = vrot.slane %v2603, 7
    %v3295 = vrot.slane %v3294, 2
    %v3296 = vrot.slane %v2604, 7
    %v3297 = vrot.slane %v3296, 2
    %v3298 = vrot.slane %v2605, 7
    %v3299 = vrot.slane %v3298, 2
    %v3300 = vrot.slane %v2354, 7
    %v3301 = vrot.slane %v3300, 2
    %v3302 = vrot.slane %v2606, 7
    %v3303 = vrot.slane %v3302, 2
    %v3304 = vrot.slane %v2607, 7
    %v3305 = vrot.slane %v3304, 2
    %v3306 = vrot.slane %v2608, 7
    %v3307 = vrot.slane %v3306, 2
    %v3308 = vrot.slane %v2355, 7
    %v3309 = vrot.slane %v3308, 2
    %v3310 = vrot.slane %v2609, 7
    %v3311 = vrot.slane %v3310, 2
    %v3312 = vrot.slane %v2610, 7
    %v3313 = vrot.slane %v3312, 2
    %v3314 = vrot.slane %v2611, 7
    %v3315 = vrot.slane %v3314, 2
    %v3572 = vmax.f32 %v2292, %v2805
    %v3573 = vmax.f32 %v2420, %v2807
    %v3574 = vmax.f32 %v2421, %v2809
    %v3575 = vmax.f32 %v2422, %v2811
    %v3576 = vmax.f32 %v2293, %v2813
    %v3577 = vmax.f32 %v2423, %v2815
    %v3578 = vmax.f32 %v2424, %v2817
    %v3579 = vmax.f32 %v2425, %v2819
    %v3580 = vmax.f32 %v2294, %v2821
    %v3581 = vmax.f32 %v2426, %v2823
    %v3582 = vmax.f32 %v2427, %v2825
    %v3583 = vmax.f32 %v2428, %v2827
    %v3584 = vmax.f32 %v2295, %v2829
    %v3585 = vmax.f32 %v2429, %v2831
    %v3586 = vmax.f32 %v2430, %v2833
    %v3587 = vmax.f32 %v2431, %v2835
    %v3588 = vmax.f32 %v2296, %v2837
    %v3589 = vmax.f32 %v2432, %v2839
    %v3590 = vmax.f32 %v2433, %v2841
    %v3591 = vmax.f32 %v2434, %v2843
    %v3592 = vmax.f32 %v2297, %v2845
    %v3593 = vmax.f32 %v2435, %v2847
    %v3594 = vmax.f32 %v2436, %v2849
    %v3595 = vmax.f32 %v2437, %v2851
    %v3596 = vmax.f32 %v2298, %v2853
    %v3597 = vmax.f32 %v2438, %v2855
    %v3598 = vmax.f32 %v2439, %v2857
    %v3599 = vmax.f32 %v2440, %v2859
    %v3600 = vmax.f32 %v2299, %v2861
    %v3601 = vmax.f32 %v2441, %v2863
    %v3602 = vmax.f32 %v2442, %v2865
    %v3603 = vmax.f32 %v2443, %v2867
    %v3604 = vmax.f32 %v2300, %v2869
    %v3605 = vmax.f32 %v2444, %v2871
    %v3606 = vmax.f32 %v2445, %v2873
    %v3607 = vmax.f32 %v2446, %v2875
    %v3608 = vmax.f32 %v2301, %v2877
    %v3609 = vmax.f32 %v2447, %v2879
    %v3610 = vmax.f32 %v2448, %v2881
    %v3611 = vmax.f32 %v2449, %v2883
    %v3612 = vmax.f32 %v2302, %v2885
    %v3613 = vmax.f32 %v2450, %v2887
    %v3614 = vmax.f32 %v2451, %v2889
    %v3615 = vmax.f32 %v2452, %v2891
    %v3616 = vmax.f32 %v2303, %v2893
    %v3617 = vmax.f32 %v2453, %v2895
    %v3618 = vmax.f32 %v2454, %v2897
    %v3619 = vmax.f32 %v2455, %v2899
    %v3620 = vmax.f32 %v2304, %v2901
    %v3621 = vmax.f32 %v2456, %v2903
    %v3622 = vmax.f32 %v2457, %v2905
    %v3623 = vmax.f32 %v2458, %v2907
    %v3624 = vmax.f32 %v2305, %v2909
    %v3625 = vmax.f32 %v2459, %v2911
    %v3626 = vmax.f32 %v2460, %v2913
    %v3627 = vmax.f32 %v2461, %v2915
    %v3628 = vmax.f32 %v2306, %v2917
    %v3629 = vmax.f32 %v2462, %v2919
    %v3630 = vmax.f32 %v2463, %v2921
    %v3631 = vmax.f32 %v2464, %v2923
    %v3632 = vmax.f32 %v2307, %v2925
    %v3633 = vmax.f32 %v2465, %v2927
    %v3634 = vmax.f32 %v2466, %v2929
    %v3635 = vmax.f32 %v2467, %v2931
    %v3636 = vmax.f32 %v2308, %v2933
    %v3637 = vmax.f32 %v2468, %v2935
    %v3638 = vmax.f32 %v2469, %v2937
    %v3639 = vmax.f32 %v2470, %v2939
    %v3640 = vmax.f32 %v2309, %v2941
    %v3641 = vmax.f32 %v2471, %v2943
    %v3642 = vmax.f32 %v2472, %v2945
    %v3643 = vmax.f32 %v2473, %v2947
    %v3644 = vmax.f32 %v2310, %v2949
    %v3645 = vmax.f32 %v2474, %v2951
    %v3646 = vmax.f32 %v2475, %v2953
    %v3647 = vmax.f32 %v2476, %v2955
    %v3648 = vmax.f32 %v2311, %v2957
    %v3649 = vmax.f32 %v2477, %v2959
    %v3650 = vmax.f32 %v2478, %v2961
    %v3651 = vmax.f32 %v2479, %v2963
    %v3652 = vmax.f32 %v2312, %v2965
    %v3653 = vmax.f32 %v2480, %v2967
    %v3654 = vmax.f32 %v2481, %v2969
    %v3655 = vmax.f32 %v2482, %v2971
    %v3656 = vmax.f32 %v2313, %v2973
    %v3657 = vmax.f32 %v2483, %v2975
    %v3658 = vmax.f32 %v2484, %v2977
    %v3659 = vmax.f32 %v2485, %v2979
    %v3660 = vmax.f32 %v2314, %v2981
    %v3661 = vmax.f32 %v2486, %v2983
    %v3662 = vmax.f32 %v2487, %v2985
    %v3663 = vmax.f32 %v2488, %v2987
    %v3664 = vmax.f32 %v2315, %v2989
    %v3665 = vmax.f32 %v2489, %v2991
    %v3666 = vmax.f32 %v2490, %v2993
    %v3667 = vmax.f32 %v2491, %v2995
    %v3668 = vmax.f32 %v2316, %v2997
    %v3669 = vmax.f32 %v2492, %v2999
    %v3670 = vmax.f32 %v2493, %v3001
    %v3671 = vmax.f32 %v2494, %v3003
    %v3672 = vmax.f32 %v2317, %v3005
    %v3673 = vmax.f32 %v2495, %v3007
    %v3674 = vmax.f32 %v2496, %v3009
    %v3675 = vmax.f32 %v2497, %v3011
    %v3676 = vmax.f32 %v2318, %v3013
    %v3677 = vmax.f32 %v2498, %v3015
    %v3678 = vmax.f32 %v2499, %v3017
    %v3679 = vmax.f32 %v2500, %v3019
    %v3680 = vmax.f32 %v2319, %v3021
    %v3681 = vmax.f32 %v2501, %v3023
    %v3682 = vmax.f32 %v2502, %v3025
    %v3683 = vmax.f32 %v2503, %v3027
    %v3684 = vmax.f32 %v2320, %v3029
    %v3685 = vmax.f32 %v2504, %v3031
    %v3686 = vmax.f32 %v2505, %v3033
    %v3687 = vmax.f32 %v2506, %v3035
    %v3688 = vmax.f32 %v2321, %v3037
    %v3689 = vmax.f32 %v2507, %v3039
    %v3690 = vmax.f32 %v2508, %v3041
    %v3691 = vmax.f32 %v2509, %v3043
    %v3692 = vmax.f32 %v2322, %v3045
    %v3693 = vmax.f32 %v2510, %v3047
    %v3694 = vmax.f32 %v2511, %v3049
    %v3695 = vmax.f32 %v2512, %v3051
    %v3696 = vmax.f32 %v2323, %v3053
    %v3697 = vmax.f32 %v2513, %v3055
    %v3698 = vmax.f32 %v2514, %v3057
    %v3699 = vmax.f32 %v2515, %v3059
    %v3700 = vmax.f32 %v2324, %v3061
    %v3701 = vmax.f32 %v2516, %v3063
    %v3702 = vmax.f32 %v2517, %v3065
    %v3703 = vmax.f32 %v2518, %v3067
    %v3704 = vmax.f32 %v2325, %v3069
    %v3705 = vmax.f32 %v2519, %v3071
    %v3706 = vmax.f32 %v2520, %v3073
    %v3707 = vmax.f32 %v2521, %v3075
    %v3708 = vmax.f32 %v2326, %v3077
    %v3709 = vmax.f32 %v2522, %v3079
    %v3710 = vmax.f32 %v2523, %v3081
    %v3711 = vmax.f32 %v2524, %v3083
    %v3712 = vmax.f32 %v2327, %v3085
    %v3713 = vmax.f32 %v2525, %v3087
    %v3714 = vmax.f32 %v2526, %v3089
    %v3715 = vmax.f32 %v2527, %v3091
    %v3716 = vmax.f32 %v2328, %v3093
    %v3717 = vmax.f32 %v2528, %v3095
    %v3718 = vmax.f32 %v2529, %v3097
    %v3719 = vmax.f32 %v2530, %v3099
    %v3720 = vmax.f32 %v2329, %v3101
    %v3721 = vmax.f32 %v2531, %v3103
    %v3722 = vmax.f32 %v2532, %v3105
    %v3723 = vmax.f32 %v2533, %v3107
    %v3724 = vmax.f32 %v2330, %v3109
    %v3725 = vmax.f32 %v2534, %v3111
    %v3726 = vmax.f32 %v2535, %v3113
    %v3727 = vmax.f32 %v2536, %v3115
    %v3728 = vmax.f32 %v2331, %v3117
    %v3729 = vmax.f32 %v2537, %v3119
    %v3730 = vmax.f32 %v2538, %v3121
    %v3731 = vmax.f32 %v2539, %v3123
    %v3732 = vmax.f32 %v2332, %v3125
    %v3733 = vmax.f32 %v2540, %v3127
    %v3734 = vmax.f32 %v2541, %v3129
    %v3735 = vmax.f32 %v2542, %v3131
    %v3736 = vmax.f32 %v2333, %v3133
    %v3737 = vmax.f32 %v2543, %v3135
    %v3738 = vmax.f32 %v2544, %v3137
    %v3739 = vmax.f32 %v2545, %v3139
    %v3740 = vmax.f32 %v2334, %v3141
    %v3741 = vmax.f32 %v2546, %v3143
    %v3742 = vmax.f32 %v2547, %v3145
    %v3743 = vmax.f32 %v2548, %v3147
    %v3744 = vmax.f32 %v2335, %v3149
    %v3745 = vmax.f32 %v2549, %v3151
    %v3746 = vmax.f32 %v2550, %v3153
    %v3747 = vmax.f32 %v2551, %v3155
    %v3748 = vmax.f32 %v2336, %v3157
    %v3749 = vmax.f32 %v2552, %v3159
    %v3750 = vmax.f32 %v2553, %v3161
    %v3751 = vmax.f32 %v2554, %v3163
    %v3752 = vmax.f32 %v2337, %v3165
    %v3753 = vmax.f32 %v2555, %v3167
    %v3754 = vmax.f32 %v2556, %v3169
    %v3755 = vmax.f32 %v2557, %v3171
    %v3756 = vmax.f32 %v2338, %v3173
    %v3757 = vmax.f32 %v2558, %v3175
    %v3758 = vmax.f32 %v2559, %v3177
    %v3759 = vmax.f32 %v2560, %v3179
    %v3760 = vmax.f32 %v2339, %v3181
    %v3761 = vmax.f32 %v2561, %v3183
    %v3762 = vmax.f32 %v2562, %v3185
    %v3763 = vmax.f32 %v2563, %v3187
    %v3764 = vmax.f32 %v2340, %v3189
    %v3765 = vmax.f32 %v2564, %v3191
    %v3766 = vmax.f32 %v2565, %v3193
    %v3767 = vmax.f32 %v2566, %v3195
    %v3768 = vmax.f32 %v2341, %v3197
    %v3769 = vmax.f32 %v2567, %v3199
    %v3770 = vmax.f32 %v2568, %v3201
    %v3771 = vmax.f32 %v2569, %v3203
    %v3772 = vmax.f32 %v2342, %v3205
    %v3773 = vmax.f32 %v2570, %v3207
    %v3774 = vmax.f32 %v2571, %v3209
    %v3775 = vmax.f32 %v2572, %v3211
    %v3776 = vmax.f32 %v2343, %v3213
    %v3777 = vmax.f32 %v2573, %v3215
    %v3778 = vmax.f32 %v2574, %v3217
    %v3779 = vmax.f32 %v2575, %v3219
    %v3780 = vmax.f32 %v2344, %v3221
    %v3781 = vmax.f32 %v2576, %v3223
    %v3782 = vmax.f32 %v2577, %v3225
    %v3783 = vmax.f32 %v2578, %v3227
    %v3784 = vmax.f32 %v2345, %v3229
    %v3785 = vmax.f32 %v2579, %v3231
    %v3786 = vmax.f32 %v2580, %v3233
    %v3787 = vmax.f32 %v2581, %v3235
    %v3788 = vmax.f32 %v2346, %v3237
    %v3789 = vmax.f32 %v2582, %v3239
    %v3790 = vmax.f32 %v2583, %v3241
    %v3791 = vmax.f32 %v2584, %v3243
    %v3792 = vmax.f32 %v2347, %v3245
    %v3793 = vmax.f32 %v2585, %v3247
    %v3794 = vmax.f32 %v2586, %v3249
    %v3795 = vmax.f32 %v2587, %v3251
    %v3796 = vmax.f32 %v2348, %v3253
    %v3797 = vmax.f32 %v2588, %v3255
    %v3798 = vmax.f32 %v2589, %v3257
    %v3799 = vmax.f32 %v2590, %v3259
    %v3800 = vmax.f32 %v2349, %v3261
    %v3801 = vmax.f32 %v2591, %v3263
    %v3802 = vmax.f32 %v2592, %v3265
    %v3803 = vmax.f32 %v2593, %v3267
    %v3804 = vmax.f32 %v2350, %v3269
    %v3805 = vmax.f32 %v2594, %v3271
    %v3806 = vmax.f32 %v2595, %v3273
    %v3807 = vmax.f32 %v2596, %v3275
    %v3808 = vmax.f32 %v2351, %v3277
    %v3809 = vmax.f32 %v2597, %v3279
    %v3810 = vmax.f32 %v2598, %v3281
    %v3811 = vmax.f32 %v2599, %v3283
    %v3812 = vmax.f32 %v2352, %v3285
    %v3813 = vmax.f32 %v2600, %v3287
    %v3814 = vmax.f32 %v2601, %v3289
    %v3815 = vmax.f32 %v2602, %v3291
    %v3816 = vmax.f32 %v2353, %v3293
    %v3817 = vmax.f32 %v2603, %v3295
    %v3818 = vmax.f32 %v2604, %v3297
    %v3819 = vmax.f32 %v2605, %v3299
    %v3820 = vmax.f32 %v2354, %v3301
    %v3821 = vmax.f32 %v2606, %v3303
    %v3822 = vmax.f32 %v2607, %v3305
    %v3823 = vmax.f32 %v2608, %v3307
    %v3824 = vmax.f32 %v2355, %v3309
    %v3825 = vmax.f32 %v2609, %v3311
    %v3826 = vmax.f32 %v2610, %v3313
    %v3827 = vmax.f32 %v2611, %v3315
    %v3828 = vmax.f32 %v3572, %v3580
    %v3829 = vmax.f32 %v3573, %v3581
    %v3830 = vmax.f32 %v3574, %v3582
    %v3831 = vmax.f32 %v3575, %v3583
    %v3832 = vmax.f32 %v3576, %v3584
    %v3833 = vmax.f32 %v3577, %v3585
    %v3834 = vmax.f32 %v3578, %v3586
    %v3835 = vmax.f32 %v3579, %v3587
    %v3836 = vmax.f32 %v3588, %v3596
    %v3837 = vmax.f32 %v3589, %v3597
    %v3838 = vmax.f32 %v3590, %v3598
    %v3839 = vmax.f32 %v3591, %v3599
    %v3840 = vmax.f32 %v3592, %v3600
    %v3841 = vmax.f32 %v3593, %v3601
    %v3842 = vmax.f32 %v3594, %v3602
    %v3843 = vmax.f32 %v3595, %v3603
    %v3844 = vmax.f32 %v3604, %v3612
    %v3845 = vmax.f32 %v3605, %v3613
    %v3846 = vmax.f32 %v3606, %v3614
    %v3847 = vmax.f32 %v3607, %v3615
    %v3848 = vmax.f32 %v3608, %v3616
    %v3849 = vmax.f32 %v3609, %v3617
    %v3850 = vmax.f32 %v3610, %v3618
    %v3851 = vmax.f32 %v3611, %v3619
    %v3852 = vmax.f32 %v3620, %v3628
    %v3853 = vmax.f32 %v3621, %v3629
    %v3854 = vmax.f32 %v3622, %v3630
    %v3855 = vmax.f32 %v3623, %v3631
    %v3856 = vmax.f32 %v3624, %v3632
    %v3857 = vmax.f32 %v3625, %v3633
    %v3858 = vmax.f32 %v3626, %v3634
    %v3859 = vmax.f32 %v3627, %v3635
    %v3860 = vmax.f32 %v3636, %v3644
    %v3861 = vmax.f32 %v3637, %v3645
    %v3862 = vmax.f32 %v3638, %v3646
    %v3863 = vmax.f32 %v3639, %v3647
    %v3864 = vmax.f32 %v3640, %v3648
    %v3865 = vmax.f32 %v3641, %v3649
    %v3866 = vmax.f32 %v3642, %v3650
    %v3867 = vmax.f32 %v3643, %v3651
    %v3868 = vmax.f32 %v3652, %v3660
    %v3869 = vmax.f32 %v3653, %v3661
    %v3870 = vmax.f32 %v3654, %v3662
    %v3871 = vmax.f32 %v3655, %v3663
    %v3872 = vmax.f32 %v3656, %v3664
    %v3873 = vmax.f32 %v3657, %v3665
    %v3874 = vmax.f32 %v3658, %v3666
    %v3875 = vmax.f32 %v3659, %v3667
    %v3876 = vmax.f32 %v3668, %v3676
    %v3877 = vmax.f32 %v3669, %v3677
    %v3878 = vmax.f32 %v3670, %v3678
    %v3879 = vmax.f32 %v3671, %v3679
    %v3880 = vmax.f32 %v3672, %v3680
    %v3881 = vmax.f32 %v3673, %v3681
    %v3882 = vmax.f32 %v3674, %v3682
    %v3883 = vmax.f32 %v3675, %v3683
    %v3884 = vmax.f32 %v3684, %v3692
    %v3885 = vmax.f32 %v3685, %v3693
    %v3886 = vmax.f32 %v3686, %v3694
    %v3887 = vmax.f32 %v3687, %v3695
    %v3888 = vmax.f32 %v3688, %v3696
    %v3889 = vmax.f32 %v3689, %v3697
    %v3890 = vmax.f32 %v3690, %v3698
    %v3891 = vmax.f32 %v3691, %v3699
    %v3892 = vmax.f32 %v3700, %v3708
    %v3893 = vmax.f32 %v3701, %v3709
    %v3894 = vmax.f32 %v3702, %v3710
    %v3895 = vmax.f32 %v3703, %v3711
    %v3896 = vmax.f32 %v3704, %v3712
    %v3897 = vmax.f32 %v3705, %v3713
    %v3898 = vmax.f32 %v3706, %v3714
    %v3899 = vmax.f32 %v3707, %v3715
    %v3900 = vmax.f32 %v3716, %v3724
    %v3901 = vmax.f32 %v3717, %v3725
    %v3902 = vmax.f32 %v3718, %v3726
    %v3903 = vmax.f32 %v3719, %v3727
    %v3904 = vmax.f32 %v3720, %v3728
    %v3905 = vmax.f32 %v3721, %v3729
    %v3906 = vmax.f32 %v3722, %v3730
    %v3907 = vmax.f32 %v3723, %v3731
    %v3908 = vmax.f32 %v3732, %v3740
    %v3909 = vmax.f32 %v3733, %v3741
    %v3910 = vmax.f32 %v3734, %v3742
    %v3911 = vmax.f32 %v3735, %v3743
    %v3912 = vmax.f32 %v3736, %v3744
    %v3913 = vmax.f32 %v3737, %v3745
    %v3914 = vmax.f32 %v3738, %v3746
    %v3915 = vmax.f32 %v3739, %v3747
    %v3916 = vmax.f32 %v3748, %v3756
    %v3917 = vmax.f32 %v3749, %v3757
    %v3918 = vmax.f32 %v3750, %v3758
    %v3919 = vmax.f32 %v3751, %v3759
    %v3920 = vmax.f32 %v3752, %v3760
    %v3921 = vmax.f32 %v3753, %v3761
    %v3922 = vmax.f32 %v3754, %v3762
    %v3923 = vmax.f32 %v3755, %v3763
    %v3924 = vmax.f32 %v3764, %v3772
    %v3925 = vmax.f32 %v3765, %v3773
    %v3926 = vmax.f32 %v3766, %v3774
    %v3927 = vmax.f32 %v3767, %v3775
    %v3928 = vmax.f32 %v3768, %v3776
    %v3929 = vmax.f32 %v3769, %v3777
    %v3930 = vmax.f32 %v3770, %v3778
    %v3931 = vmax.f32 %v3771, %v3779
    %v3932 = vmax.f32 %v3780, %v3788
    %v3933 = vmax.f32 %v3781, %v3789
    %v3934 = vmax.f32 %v3782, %v3790
    %v3935 = vmax.f32 %v3783, %v3791
    %v3936 = vmax.f32 %v3784, %v3792
    %v3937 = vmax.f32 %v3785, %v3793
    %v3938 = vmax.f32 %v3786, %v3794
    %v3939 = vmax.f32 %v3787, %v3795
    %v3940 = vmax.f32 %v3796, %v3804
    %v3941 = vmax.f32 %v3797, %v3805
    %v3942 = vmax.f32 %v3798, %v3806
    %v3943 = vmax.f32 %v3799, %v3807
    %v3944 = vmax.f32 %v3800, %v3808
    %v3945 = vmax.f32 %v3801, %v3809
    %v3946 = vmax.f32 %v3802, %v3810
    %v3947 = vmax.f32 %v3803, %v3811
    %v3948 = vmax.f32 %v3812, %v3820
    %v3949 = vmax.f32 %v3813, %v3821
    %v3950 = vmax.f32 %v3814, %v3822
    %v3951 = vmax.f32 %v3815, %v3823
    %v3952 = vmax.f32 %v3816, %v3824
    %v3953 = vmax.f32 %v3817, %v3825
    %v3954 = vmax.f32 %v3818, %v3826
    %v3955 = vmax.f32 %v3819, %v3827
    %v3956 = vpack.c.bf16 %v3828, %v3828
    %v3957 = vpack.c.bf16 %v3829, %v3829
    %v3958 = vpack.c.bf16 %v3830, %v3830
    %v3959 = vpack.c.bf16 %v3831, %v3831
    %v3960 = vpack.c.bf16 %v3832, %v3832
    %v3961 = vpack.c.bf16 %v3833, %v3833
    %v3962 = vpack.c.bf16 %v3834, %v3834
    %v3963 = vpack.c.bf16 %v3835, %v3835
    %v3964 = vpack.c.bf16 %v3836, %v3836
    %v3965 = vpack.c.bf16 %v3837, %v3837
    %v3966 = vpack.c.bf16 %v3838, %v3838
    %v3967 = vpack.c.bf16 %v3839, %v3839
    %v3968 = vpack.c.bf16 %v3840, %v3840
    %v3969 = vpack.c.bf16 %v3841, %v3841
    %v3970 = vpack.c.bf16 %v3842, %v3842
    %v3971 = vpack.c.bf16 %v3843, %v3843
    %v3972 = vpack.c.bf16 %v3844, %v3844
    %v3973 = vpack.c.bf16 %v3845, %v3845
    %v3974 = vpack.c.bf16 %v3846, %v3846
    %v3975 = vpack.c.bf16 %v3847, %v3847
    %v3976 = vpack.c.bf16 %v3848, %v3848
    %v3977 = vpack.c.bf16 %v3849, %v3849
    %v3978 = vpack.c.bf16 %v3850, %v3850
    %v3979 = vpack.c.bf16 %v3851, %v3851
    %v3980 = vpack.c.bf16 %v3852, %v3852
    %v3981 = vpack.c.bf16 %v3853, %v3853
    %v3982 = vpack.c.bf16 %v3854, %v3854
    %v3983 = vpack.c.bf16 %v3855, %v3855
    %v3984 = vpack.c.bf16 %v3856, %v3856
    %v3985 = vpack.c.bf16 %v3857, %v3857
    %v3986 = vpack.c.bf16 %v3858, %v3858
    %v3987 = vpack.c.bf16 %v3859, %v3859
    %v3988 = vpack.c.bf16 %v3860, %v3860
    %v3989 = vpack.c.bf16 %v3861, %v3861
    %v3990 = vpack.c.bf16 %v3862, %v3862
    %v3991 = vpack.c.bf16 %v3863, %v3863
    %v3992 = vpack.c.bf16 %v3864, %v3864
    %v3993 = vpack.c.bf16 %v3865, %v3865
    %v3994 = vpack.c.bf16 %v3866, %v3866
    %v3995 = vpack.c.bf16 %v3867, %v3867
    %v3996 = vpack.c.bf16 %v3868, %v3868
    %v3997 = vpack.c.bf16 %v3869, %v3869
    %v3998 = vpack.c.bf16 %v3870, %v3870
    %v3999 = vpack.c.bf16 %v3871, %v3871
    %v4000 = vpack.c.bf16 %v3872, %v3872
    %v4001 = vpack.c.bf16 %v3873, %v3873
    %v4002 = vpack.c.bf16 %v3874, %v3874
    %v4003 = vpack.c.bf16 %v3875, %v3875
    %v4004 = vpack.c.bf16 %v3876, %v3876
    %v4005 = vpack.c.bf16 %v3877, %v3877
    %v4006 = vpack.c.bf16 %v3878, %v3878
    %v4007 = vpack.c.bf16 %v3879, %v3879
    %v4008 = vpack.c.bf16 %v3880, %v3880
    %v4009 = vpack.c.bf16 %v3881, %v3881
    %v4010 = vpack.c.bf16 %v3882, %v3882
    %v4011 = vpack.c.bf16 %v3883, %v3883
    %v4012 = vpack.c.bf16 %v3884, %v3884
    %v4013 = vpack.c.bf16 %v3885, %v3885
    %v4014 = vpack.c.bf16 %v3886, %v3886
    %v4015 = vpack.c.bf16 %v3887, %v3887
    %v4016 = vpack.c.bf16 %v3888, %v3888
    %v4017 = vpack.c.bf16 %v3889, %v3889
    %v4018 = vpack.c.bf16 %v3890, %v3890
    %v4019 = vpack.c.bf16 %v3891, %v3891
    %v4020 = vpack.c.bf16 %v3892, %v3892
    %v4021 = vpack.c.bf16 %v3893, %v3893
    %v4022 = vpack.c.bf16 %v3894, %v3894
    %v4023 = vpack.c.bf16 %v3895, %v3895
    %v4024 = vpack.c.bf16 %v3896, %v3896
    %v4025 = vpack.c.bf16 %v3897, %v3897
    %v4026 = vpack.c.bf16 %v3898, %v3898
    %v4027 = vpack.c.bf16 %v3899, %v3899
    %v4028 = vpack.c.bf16 %v3900, %v3900
    %v4029 = vpack.c.bf16 %v3901, %v3901
    %v4030 = vpack.c.bf16 %v3902, %v3902
    %v4031 = vpack.c.bf16 %v3903, %v3903
    %v4032 = vpack.c.bf16 %v3904, %v3904
    %v4033 = vpack.c.bf16 %v3905, %v3905
    %v4034 = vpack.c.bf16 %v3906, %v3906
    %v4035 = vpack.c.bf16 %v3907, %v3907
    %v4036 = vpack.c.bf16 %v3908, %v3908
    %v4037 = vpack.c.bf16 %v3909, %v3909
    %v4038 = vpack.c.bf16 %v3910, %v3910
    %v4039 = vpack.c.bf16 %v3911, %v3911
    %v4040 = vpack.c.bf16 %v3912, %v3912
    %v4041 = vpack.c.bf16 %v3913, %v3913
    %v4042 = vpack.c.bf16 %v3914, %v3914
    %v4043 = vpack.c.bf16 %v3915, %v3915
    %v4044 = vpack.c.bf16 %v3916, %v3916
    %v4045 = vpack.c.bf16 %v3917, %v3917
    %v4046 = vpack.c.bf16 %v3918, %v3918
    %v4047 = vpack.c.bf16 %v3919, %v3919
    %v4048 = vpack.c.bf16 %v3920, %v3920
    %v4049 = vpack.c.bf16 %v3921, %v3921
    %v4050 = vpack.c.bf16 %v3922, %v3922
    %v4051 = vpack.c.bf16 %v3923, %v3923
    %v4052 = vpack.c.bf16 %v3924, %v3924
    %v4053 = vpack.c.bf16 %v3925, %v3925
    %v4054 = vpack.c.bf16 %v3926, %v3926
    %v4055 = vpack.c.bf16 %v3927, %v3927
    %v4056 = vpack.c.bf16 %v3928, %v3928
    %v4057 = vpack.c.bf16 %v3929, %v3929
    %v4058 = vpack.c.bf16 %v3930, %v3930
    %v4059 = vpack.c.bf16 %v3931, %v3931
    %v4060 = vpack.c.bf16 %v3932, %v3932
    %v4061 = vpack.c.bf16 %v3933, %v3933
    %v4062 = vpack.c.bf16 %v3934, %v3934
    %v4063 = vpack.c.bf16 %v3935, %v3935
    %v4064 = vpack.c.bf16 %v3936, %v3936
    %v4065 = vpack.c.bf16 %v3937, %v3937
    %v4066 = vpack.c.bf16 %v3938, %v3938
    %v4067 = vpack.c.bf16 %v3939, %v3939
    %v4068 = vpack.c.bf16 %v3940, %v3940
    %v4069 = vpack.c.bf16 %v3941, %v3941
    %v4070 = vpack.c.bf16 %v3942, %v3942
    %v4071 = vpack.c.bf16 %v3943, %v3943
    %v4072 = vpack.c.bf16 %v3944, %v3944
    %v4073 = vpack.c.bf16 %v3945, %v3945
    %v4074 = vpack.c.bf16 %v3946, %v3946
    %v4075 = vpack.c.bf16 %v3947, %v3947
    %v4076 = vpack.c.bf16 %v3948, %v3948
    %v4077 = vpack.c.bf16 %v3949, %v3949
    %v4078 = vpack.c.bf16 %v3950, %v3950
    %v4079 = vpack.c.bf16 %v3951, %v3951
    %v4080 = vpack.c.bf16 %v3952, %v3952
    %v4081 = vpack.c.bf16 %v3953, %v3953
    %v4082 = vpack.c.bf16 %v3954, %v3954
    %v4083 = vpack.c.bf16 %v3955, %v3955
    %v4212 = vunpack.c.l.b16 %v3956
    %v4213 = vunpack.c.l.b16 %v3957
    %v4214 = vunpack.c.l.b16 %v3958
    %v4215 = vunpack.c.l.b16 %v3959
    %v4216 = vunpack.c.l.b16 %v3960
    %v4217 = vunpack.c.l.b16 %v3961
    %v4218 = vunpack.c.l.b16 %v3962
    %v4219 = vunpack.c.l.b16 %v3963
    %v4220 = vunpack.c.l.b16 %v3964
    %v4221 = vunpack.c.l.b16 %v3965
    %v4222 = vunpack.c.l.b16 %v3966
    %v4223 = vunpack.c.l.b16 %v3967
    %v4224 = vunpack.c.l.b16 %v3968
    %v4225 = vunpack.c.l.b16 %v3969
    %v4226 = vunpack.c.l.b16 %v3970
    %v4227 = vunpack.c.l.b16 %v3971
    %v4228 = vunpack.c.l.b16 %v3972
    %v4229 = vunpack.c.l.b16 %v3973
    %v4230 = vunpack.c.l.b16 %v3974
    %v4231 = vunpack.c.l.b16 %v3975
    %v4232 = vunpack.c.l.b16 %v3976
    %v4233 = vunpack.c.l.b16 %v3977
    %v4234 = vunpack.c.l.b16 %v3978
    %v4235 = vunpack.c.l.b16 %v3979
    %v4236 = vunpack.c.l.b16 %v3980
    %v4237 = vunpack.c.l.b16 %v3981
    %v4238 = vunpack.c.l.b16 %v3982
    %v4239 = vunpack.c.l.b16 %v3983
    %v4240 = vunpack.c.l.b16 %v3984
    %v4241 = vunpack.c.l.b16 %v3985
    %v4242 = vunpack.c.l.b16 %v3986
    %v4243 = vunpack.c.l.b16 %v3987
    %v4244 = vunpack.c.l.b16 %v3988
    %v4245 = vunpack.c.l.b16 %v3989
    %v4246 = vunpack.c.l.b16 %v3990
    %v4247 = vunpack.c.l.b16 %v3991
    %v4248 = vunpack.c.l.b16 %v3992
    %v4249 = vunpack.c.l.b16 %v3993
    %v4250 = vunpack.c.l.b16 %v3994
    %v4251 = vunpack.c.l.b16 %v3995
    %v4252 = vunpack.c.l.b16 %v3996
    %v4253 = vunpack.c.l.b16 %v3997
    %v4254 = vunpack.c.l.b16 %v3998
    %v4255 = vunpack.c.l.b16 %v3999
    %v4256 = vunpack.c.l.b16 %v4000
    %v4257 = vunpack.c.l.b16 %v4001
    %v4258 = vunpack.c.l.b16 %v4002
    %v4259 = vunpack.c.l.b16 %v4003
    %v4260 = vunpack.c.l.b16 %v4004
    %v4261 = vunpack.c.l.b16 %v4005
    %v4262 = vunpack.c.l.b16 %v4006
    %v4263 = vunpack.c.l.b16 %v4007
    %v4264 = vunpack.c.l.b16 %v4008
    %v4265 = vunpack.c.l.b16 %v4009
    %v4266 = vunpack.c.l.b16 %v4010
    %v4267 = vunpack.c.l.b16 %v4011
    %v4268 = vunpack.c.l.b16 %v4012
    %v4269 = vunpack.c.l.b16 %v4013
    %v4270 = vunpack.c.l.b16 %v4014
    %v4271 = vunpack.c.l.b16 %v4015
    %v4272 = vunpack.c.l.b16 %v4016
    %v4273 = vunpack.c.l.b16 %v4017
    %v4274 = vunpack.c.l.b16 %v4018
    %v4275 = vunpack.c.l.b16 %v4019
    %v4276 = vunpack.c.l.b16 %v4020
    %v4277 = vunpack.c.l.b16 %v4021
    %v4278 = vunpack.c.l.b16 %v4022
    %v4279 = vunpack.c.l.b16 %v4023
    %v4280 = vunpack.c.l.b16 %v4024
    %v4281 = vunpack.c.l.b16 %v4025
    %v4282 = vunpack.c.l.b16 %v4026
    %v4283 = vunpack.c.l.b16 %v4027
    %v4284 = vunpack.c.l.b16 %v4028
    %v4285 = vunpack.c.l.b16 %v4029
    %v4286 = vunpack.c.l.b16 %v4030
    %v4287 = vunpack.c.l.b16 %v4031
    %v4288 = vunpack.c.l.b16 %v4032
    %v4289 = vunpack.c.l.b16 %v4033
    %v4290 = vunpack.c.l.b16 %v4034
    %v4291 = vunpack.c.l.b16 %v4035
    %v4292 = vunpack.c.l.b16 %v4036
    %v4293 = vunpack.c.l.b16 %v4037
    %v4294 = vunpack.c.l.b16 %v4038
    %v4295 = vunpack.c.l.b16 %v4039
    %v4296 = vunpack.c.l.b16 %v4040
    %v4297 = vunpack.c.l.b16 %v4041
    %v4298 = vunpack.c.l.b16 %v4042
    %v4299 = vunpack.c.l.b16 %v4043
    %v4300 = vunpack.c.l.b16 %v4044
    %v4301 = vunpack.c.l.b16 %v4045
    %v4302 = vunpack.c.l.b16 %v4046
    %v4303 = vunpack.c.l.b16 %v4047
    %v4304 = vunpack.c.l.b16 %v4048
    %v4305 = vunpack.c.l.b16 %v4049
    %v4306 = vunpack.c.l.b16 %v4050
    %v4307 = vunpack.c.l.b16 %v4051
    %v4308 = vunpack.c.l.b16 %v4052
    %v4309 = vunpack.c.l.b16 %v4053
    %v4310 = vunpack.c.l.b16 %v4054
    %v4311 = vunpack.c.l.b16 %v4055
    %v4312 = vunpack.c.l.b16 %v4056
    %v4313 = vunpack.c.l.b16 %v4057
    %v4314 = vunpack.c.l.b16 %v4058
    %v4315 = vunpack.c.l.b16 %v4059
    %v4316 = vunpack.c.l.b16 %v4060
    %v4317 = vunpack.c.l.b16 %v4061
    %v4318 = vunpack.c.l.b16 %v4062
    %v4319 = vunpack.c.l.b16 %v4063
    %v4320 = vunpack.c.l.b16 %v4064
    %v4321 = vunpack.c.l.b16 %v4065
    %v4322 = vunpack.c.l.b16 %v4066
    %v4323 = vunpack.c.l.b16 %v4067
    %v4324 = vunpack.c.l.b16 %v4068
    %v4325 = vunpack.c.l.b16 %v4069
    %v4326 = vunpack.c.l.b16 %v4070
    %v4327 = vunpack.c.l.b16 %v4071
    %v4328 = vunpack.c.l.b16 %v4072
    %v4329 = vunpack.c.l.b16 %v4073
    %v4330 = vunpack.c.l.b16 %v4074
    %v4331 = vunpack.c.l.b16 %v4075
    %v4332 = vunpack.c.l.b16 %v4076
    %v4333 = vunpack.c.l.b16 %v4077
    %v4334 = vunpack.c.l.b16 %v4078
    %v4335 = vunpack.c.l.b16 %v4079
    %v4336 = vunpack.c.l.b16 %v4080
    %v4337 = vunpack.c.l.b16 %v4081
    %v4338 = vunpack.c.l.b16 %v4082
    %v4339 = vunpack.c.l.b16 %v4083
    %v4340 = vpack.c.b16 %v4212, %v4212
    %v4341 = vpack.c.b16 %v4213, %v4213
    %v4342 = vpack.c.b16 %v4214, %v4214
    %v4343 = vpack.c.b16 %v4215, %v4215
    %v4344 = vpack.c.b16 %v4216, %v4216
    %v4345 = vpack.c.b16 %v4217, %v4217
    %v4346 = vpack.c.b16 %v4218, %v4218
    %v4347 = vpack.c.b16 %v4219, %v4219
    %v4348 = vpack.c.b16 %v4220, %v4220
    %v4349 = vpack.c.b16 %v4221, %v4221
    %v4350 = vpack.c.b16 %v4222, %v4222
    %v4351 = vpack.c.b16 %v4223, %v4223
    %v4352 = vpack.c.b16 %v4224, %v4224
    %v4353 = vpack.c.b16 %v4225, %v4225
    %v4354 = vpack.c.b16 %v4226, %v4226
    %v4355 = vpack.c.b16 %v4227, %v4227
    %v4356 = vpack.c.b16 %v4228, %v4228
    %v4357 = vpack.c.b16 %v4229, %v4229
    %v4358 = vpack.c.b16 %v4230, %v4230
    %v4359 = vpack.c.b16 %v4231, %v4231
    %v4360 = vpack.c.b16 %v4232, %v4232
    %v4361 = vpack.c.b16 %v4233, %v4233
    %v4362 = vpack.c.b16 %v4234, %v4234
    %v4363 = vpack.c.b16 %v4235, %v4235
    %v4364 = vpack.c.b16 %v4236, %v4236
    %v4365 = vpack.c.b16 %v4237, %v4237
    %v4366 = vpack.c.b16 %v4238, %v4238
    %v4367 = vpack.c.b16 %v4239, %v4239
    %v4368 = vpack.c.b16 %v4240, %v4240
    %v4369 = vpack.c.b16 %v4241, %v4241
    %v4370 = vpack.c.b16 %v4242, %v4242
    %v4371 = vpack.c.b16 %v4243, %v4243
    %v4372 = vpack.c.b16 %v4244, %v4244
    %v4373 = vpack.c.b16 %v4245, %v4245
    %v4374 = vpack.c.b16 %v4246, %v4246
    %v4375 = vpack.c.b16 %v4247, %v4247
    %v4376 = vpack.c.b16 %v4248, %v4248
    %v4377 = vpack.c.b16 %v4249, %v4249
    %v4378 = vpack.c.b16 %v4250, %v4250
    %v4379 = vpack.c.b16 %v4251, %v4251
    %v4380 = vpack.c.b16 %v4252, %v4252
    %v4381 = vpack.c.b16 %v4253, %v4253
    %v4382 = vpack.c.b16 %v4254, %v4254
    %v4383 = vpack.c.b16 %v4255, %v4255
    %v4384 = vpack.c.b16 %v4256, %v4256
    %v4385 = vpack.c.b16 %v4257, %v4257
    %v4386 = vpack.c.b16 %v4258, %v4258
    %v4387 = vpack.c.b16 %v4259, %v4259
    %v4388 = vpack.c.b16 %v4260, %v4260
    %v4389 = vpack.c.b16 %v4261, %v4261
    %v4390 = vpack.c.b16 %v4262, %v4262
    %v4391 = vpack.c.b16 %v4263, %v4263
    %v4392 = vpack.c.b16 %v4264, %v4264
    %v4393 = vpack.c.b16 %v4265, %v4265
    %v4394 = vpack.c.b16 %v4266, %v4266
    %v4395 = vpack.c.b16 %v4267, %v4267
    %v4396 = vpack.c.b16 %v4268, %v4268
    %v4397 = vpack.c.b16 %v4269, %v4269
    %v4398 = vpack.c.b16 %v4270, %v4270
    %v4399 = vpack.c.b16 %v4271, %v4271
    %v4400 = vpack.c.b16 %v4272, %v4272
    %v4401 = vpack.c.b16 %v4273, %v4273
    %v4402 = vpack.c.b16 %v4274, %v4274
    %v4403 = vpack.c.b16 %v4275, %v4275
    %v4404 = vpack.c.b16 %v4276, %v4276
    %v4405 = vpack.c.b16 %v4277, %v4277
    %v4406 = vpack.c.b16 %v4278, %v4278
    %v4407 = vpack.c.b16 %v4279, %v4279
    %v4408 = vpack.c.b16 %v4280, %v4280
    %v4409 = vpack.c.b16 %v4281, %v4281
    %v4410 = vpack.c.b16 %v4282, %v4282
    %v4411 = vpack.c.b16 %v4283, %v4283
    %v4412 = vpack.c.b16 %v4284, %v4284
    %v4413 = vpack.c.b16 %v4285, %v4285
    %v4414 = vpack.c.b16 %v4286, %v4286
    %v4415 = vpack.c.b16 %v4287, %v4287
    %v4416 = vpack.c.b16 %v4288, %v4288
    %v4417 = vpack.c.b16 %v4289, %v4289
    %v4418 = vpack.c.b16 %v4290, %v4290
    %v4419 = vpack.c.b16 %v4291, %v4291
    %v4420 = vpack.c.b16 %v4292, %v4292
    %v4421 = vpack.c.b16 %v4293, %v4293
    %v4422 = vpack.c.b16 %v4294, %v4294
    %v4423 = vpack.c.b16 %v4295, %v4295
    %v4424 = vpack.c.b16 %v4296, %v4296
    %v4425 = vpack.c.b16 %v4297, %v4297
    %v4426 = vpack.c.b16 %v4298, %v4298
    %v4427 = vpack.c.b16 %v4299, %v4299
    %v4428 = vpack.c.b16 %v4300, %v4300
    %v4429 = vpack.c.b16 %v4301, %v4301
    %v4430 = vpack.c.b16 %v4302, %v4302
    %v4431 = vpack.c.b16 %v4303, %v4303
    %v4432 = vpack.c.b16 %v4304, %v4304
    %v4433 = vpack.c.b16 %v4305, %v4305
    %v4434 = vpack.c.b16 %v4306, %v4306
    %v4435 = vpack.c.b16 %v4307, %v4307
    %v4436 = vpack.c.b16 %v4308, %v4308
    %v4437 = vpack.c.b16 %v4309, %v4309
    %v4438 = vpack.c.b16 %v4310, %v4310
    %v4439 = vpack.c.b16 %v4311, %v4311
    %v4440 = vpack.c.b16 %v4312, %v4312
    %v4441 = vpack.c.b16 %v4313, %v4313
    %v4442 = vpack.c.b16 %v4314, %v4314
    %v4443 = vpack.c.b16 %v4315, %v4315
    %v4444 = vpack.c.b16 %v4316, %v4316
    %v4445 = vpack.c.b16 %v4317, %v4317
    %v4446 = vpack.c.b16 %v4318, %v4318
    %v4447 = vpack.c.b16 %v4319, %v4319
    %v4448 = vpack.c.b16 %v4320, %v4320
    %v4449 = vpack.c.b16 %v4321, %v4321
    %v4450 = vpack.c.b16 %v4322, %v4322
    %v4451 = vpack.c.b16 %v4323, %v4323
    %v4452 = vpack.c.b16 %v4324, %v4324
    %v4453 = vpack.c.b16 %v4325, %v4325
    %v4454 = vpack.c.b16 %v4326, %v4326
    %v4455 = vpack.c.b16 %v4327, %v4327
    %v4456 = vpack.c.b16 %v4328, %v4328
    %v4457 = vpack.c.b16 %v4329, %v4329
    %v4458 = vpack.c.b16 %v4330, %v4330
    %v4459 = vpack.c.b16 %v4331, %v4331
    %v4460 = vpack.c.b16 %v4332, %v4332
    %v4461 = vpack.c.b16 %v4333, %v4333
    %v4462 = vpack.c.b16 %v4334, %v4334
    %v4463 = vpack.c.b16 %v4335, %v4335
    %v4464 = vpack.c.b16 %v4336, %v4336
    %v4465 = vpack.c.b16 %v4337, %v4337
    %v4466 = vpack.c.b16 %v4338, %v4338
    %v4467 = vpack.c.b16 %v4339, %v4339
    %v4468 = vunpack.c.l.b16 %v4340
    %v4469 = vunpack.c.l.b16 %v4341
    %v4470 = vunpack.c.l.b16 %v4342
    %v4471 = vunpack.c.l.b16 %v4343
    %v4472 = vunpack.c.l.b16 %v4344
    %v4473 = vunpack.c.l.b16 %v4345
    %v4474 = vunpack.c.l.b16 %v4346
    %v4475 = vunpack.c.l.b16 %v4347
    %v4476 = vunpack.c.l.b16 %v4348
    %v4477 = vunpack.c.l.b16 %v4349
    %v4478 = vunpack.c.l.b16 %v4350
    %v4479 = vunpack.c.l.b16 %v4351
    %v4480 = vunpack.c.l.b16 %v4352
    %v4481 = vunpack.c.l.b16 %v4353
    %v4482 = vunpack.c.l.b16 %v4354
    %v4483 = vunpack.c.l.b16 %v4355
    %v4484 = vunpack.c.l.b16 %v4356
    %v4485 = vunpack.c.l.b16 %v4357
    %v4486 = vunpack.c.l.b16 %v4358
    %v4487 = vunpack.c.l.b16 %v4359
    %v4488 = vunpack.c.l.b16 %v4360
    %v4489 = vunpack.c.l.b16 %v4361
    %v4490 = vunpack.c.l.b16 %v4362
    %v4491 = vunpack.c.l.b16 %v4363
    %v4492 = vunpack.c.l.b16 %v4364
    %v4493 = vunpack.c.l.b16 %v4365
    %v4494 = vunpack.c.l.b16 %v4366
    %v4495 = vunpack.c.l.b16 %v4367
    %v4496 = vunpack.c.l.b16 %v4368
    %v4497 = vunpack.c.l.b16 %v4369
    %v4498 = vunpack.c.l.b16 %v4370
    %v4499 = vunpack.c.l.b16 %v4371
    %v4500 = vunpack.c.l.b16 %v4372
    %v4501 = vunpack.c.l.b16 %v4373
    %v4502 = vunpack.c.l.b16 %v4374
    %v4503 = vunpack.c.l.b16 %v4375
    %v4504 = vunpack.c.l.b16 %v4376
    %v4505 = vunpack.c.l.b16 %v4377
    %v4506 = vunpack.c.l.b16 %v4378
    %v4507 = vunpack.c.l.b16 %v4379
    %v4508 = vunpack.c.l.b16 %v4380
    %v4509 = vunpack.c.l.b16 %v4381
    %v4510 = vunpack.c.l.b16 %v4382
    %v4511 = vunpack.c.l.b16 %v4383
    %v4512 = vunpack.c.l.b16 %v4384
    %v4513 = vunpack.c.l.b16 %v4385
    %v4514 = vunpack.c.l.b16 %v4386
    %v4515 = vunpack.c.l.b16 %v4387
    %v4516 = vunpack.c.l.b16 %v4388
    %v4517 = vunpack.c.l.b16 %v4389
    %v4518 = vunpack.c.l.b16 %v4390
    %v4519 = vunpack.c.l.b16 %v4391
    %v4520 = vunpack.c.l.b16 %v4392
    %v4521 = vunpack.c.l.b16 %v4393
    %v4522 = vunpack.c.l.b16 %v4394
    %v4523 = vunpack.c.l.b16 %v4395
    %v4524 = vunpack.c.l.b16 %v4396
    %v4525 = vunpack.c.l.b16 %v4397
    %v4526 = vunpack.c.l.b16 %v4398
    %v4527 = vunpack.c.l.b16 %v4399
    %v4528 = vunpack.c.l.b16 %v4400
    %v4529 = vunpack.c.l.b16 %v4401
    %v4530 = vunpack.c.l.b16 %v4402
    %v4531 = vunpack.c.l.b16 %v4403
    %v4532 = vunpack.c.l.b16 %v4404
    %v4533 = vunpack.c.l.b16 %v4405
    %v4534 = vunpack.c.l.b16 %v4406
    %v4535 = vunpack.c.l.b16 %v4407
    %v4536 = vunpack.c.l.b16 %v4408
    %v4537 = vunpack.c.l.b16 %v4409
    %v4538 = vunpack.c.l.b16 %v4410
    %v4539 = vunpack.c.l.b16 %v4411
    %v4540 = vunpack.c.l.b16 %v4412
    %v4541 = vunpack.c.l.b16 %v4413
    %v4542 = vunpack.c.l.b16 %v4414
    %v4543 = vunpack.c.l.b16 %v4415
    %v4544 = vunpack.c.l.b16 %v4416
    %v4545 = vunpack.c.l.b16 %v4417
    %v4546 = vunpack.c.l.b16 %v4418
    %v4547 = vunpack.c.l.b16 %v4419
    %v4548 = vunpack.c.l.b16 %v4420
    %v4549 = vunpack.c.l.b16 %v4421
    %v4550 = vunpack.c.l.b16 %v4422
    %v4551 = vunpack.c.l.b16 %v4423
    %v4552 = vunpack.c.l.b16 %v4424
    %v4553 = vunpack.c.l.b16 %v4425
    %v4554 = vunpack.c.l.b16 %v4426
    %v4555 = vunpack.c.l.b16 %v4427
    %v4556 = vunpack.c.l.b16 %v4428
    %v4557 = vunpack.c.l.b16 %v4429
    %v4558 = vunpack.c.l.b16 %v4430
    %v4559 = vunpack.c.l.b16 %v4431
    %v4560 = vunpack.c.l.b16 %v4432
    %v4561 = vunpack.c.l.b16 %v4433
    %v4562 = vunpack.c.l.b16 %v4434
    %v4563 = vunpack.c.l.b16 %v4435
    %v4564 = vunpack.c.l.b16 %v4436
    %v4565 = vunpack.c.l.b16 %v4437
    %v4566 = vunpack.c.l.b16 %v4438
    %v4567 = vunpack.c.l.b16 %v4439
    %v4568 = vunpack.c.l.b16 %v4440
    %v4569 = vunpack.c.l.b16 %v4441
    %v4570 = vunpack.c.l.b16 %v4442
    %v4571 = vunpack.c.l.b16 %v4443
    %v4572 = vunpack.c.l.b16 %v4444
    %v4573 = vunpack.c.l.b16 %v4445
    %v4574 = vunpack.c.l.b16 %v4446
    %v4575 = vunpack.c.l.b16 %v4447
    %v4576 = vunpack.c.l.b16 %v4448
    %v4577 = vunpack.c.l.b16 %v4449
    %v4578 = vunpack.c.l.b16 %v4450
    %v4579 = vunpack.c.l.b16 %v4451
    %v4580 = vunpack.c.l.b16 %v4452
    %v4581 = vunpack.c.l.b16 %v4453
    %v4582 = vunpack.c.l.b16 %v4454
    %v4583 = vunpack.c.l.b16 %v4455
    %v4584 = vunpack.c.l.b16 %v4456
    %v4585 = vunpack.c.l.b16 %v4457
    %v4586 = vunpack.c.l.b16 %v4458
    %v4587 = vunpack.c.l.b16 %v4459
    %v4588 = vunpack.c.l.b16 %v4460
    %v4589 = vunpack.c.l.b16 %v4461
    %v4590 = vunpack.c.l.b16 %v4462
    %v4591 = vunpack.c.l.b16 %v4463
    %v4592 = vunpack.c.l.b16 %v4464
    %v4593 = vunpack.c.l.b16 %v4465
    %v4594 = vunpack.c.l.b16 %v4466
    %v4595 = vunpack.c.l.b16 %v4467
    %v4596 = vrot.slane %v4469, 7
    %vm4597 = vcmask 1041409
    %v4598 = vsel %vm4597, %v4596, %v4468
    %v4599 = vrot.slane %v4470, 6
    %vm4600 = vcmask 1042434
    %v4601 = vsel %vm4600, %v4599, %v4598
    %v4602 = vrot.slane %v4471, 5
    %vm4603 = vcmask 1043459
    %v4604 = vsel %vm4603, %v4602, %v4601
    %v4605 = vrot.slane %v4472, 4
    %vm4606 = vcmask 1044484
    %v4607 = vsel %vm4606, %v4605, %v4604
    %v4608 = vrot.slane %v4473, 3
    %vm4609 = vcmask 1045509
    %v4610 = vsel %vm4609, %v4608, %v4607
    %v4611 = vrot.slane %v4474, 2
    %vm4612 = vcmask 1046534
    %v4613 = vsel %vm4612, %v4611, %v4610
    %v4614 = vrot.slane %v4475, 1
    %vm4615 = vcmask 1047559
    %v4616 = vsel %vm4615, %v4614, %v4613
    %v4617 = vrot.slane %v4477, 7
    %v4618 = vsel %vm4597, %v4617, %v4476
    %v4619 = vrot.slane %v4478, 6
    %v4620 = vsel %vm4600, %v4619, %v4618
    %v4621 = vrot.slane %v4479, 5
    %v4622 = vsel %vm4603, %v4621, %v4620
    %v4623 = vrot.slane %v4480, 4
    %v4624 = vsel %vm4606, %v4623, %v4622
    %v4625 = vrot.slane %v4481, 3
    %v4626 = vsel %vm4609, %v4625, %v4624
    %v4627 = vrot.slane %v4482, 2
    %v4628 = vsel %vm4612, %v4627, %v4626
    %v4629 = vrot.slane %v4483, 1
    %v4630 = vsel %vm4615, %v4629, %v4628
    %v4631 = vrot.slane %v4485, 7
    %v4632 = vsel %vm4597, %v4631, %v4484
    %v4633 = vrot.slane %v4486, 6
    %v4634 = vsel %vm4600, %v4633, %v4632
    %v4635 = vrot.slane %v4487, 5
    %v4636 = vsel %vm4603, %v4635, %v4634
    %v4637 = vrot.slane %v4488, 4
    %v4638 = vsel %vm4606, %v4637, %v4636
    %v4639 = vrot.slane %v4489, 3
    %v4640 = vsel %vm4609, %v4639, %v4638
    %v4641 = vrot.slane %v4490, 2
    %v4642 = vsel %vm4612, %v4641, %v4640
    %v4643 = vrot.slane %v4491, 1
    %v4644 = vsel %vm4615, %v4643, %v4642
    %v4645 = vrot.slane %v4493, 7
    %v4646 = vsel %vm4597, %v4645, %v4492
    %v4647 = vrot.slane %v4494, 6
    %v4648 = vsel %vm4600, %v4647, %v4646
    %v4649 = vrot.slane %v4495, 5
    %v4650 = vsel %vm4603, %v4649, %v4648
    %v4651 = vrot.slane %v4496, 4
    %v4652 = vsel %vm4606, %v4651, %v4650
    %v4653 = vrot.slane %v4497, 3
    %v4654 = vsel %vm4609, %v4653, %v4652
    %v4655 = vrot.slane %v4498, 2
    %v4656 = vsel %vm4612, %v4655, %v4654
    %v4657 = vrot.slane %v4499, 1
    %v4658 = vsel %vm4615, %v4657, %v4656
    %v4659 = vrot.slane %v4501, 7
    %v4660 = vsel %vm4597, %v4659, %v4500
    %v4661 = vrot.slane %v4502, 6
    %v4662 = vsel %vm4600, %v4661, %v4660
    %v4663 = vrot.slane %v4503, 5
    %v4664 = vsel %vm4603, %v4663, %v4662
    %v4665 = vrot.slane %v4504, 4
    %v4666 = vsel %vm4606, %v4665, %v4664
    %v4667 = vrot.slane %v4505, 3
    %v4668 = vsel %vm4609, %v4667, %v4666
    %v4669 = vrot.slane %v4506, 2
    %v4670 = vsel %vm4612, %v4669, %v4668
    %v4671 = vrot.slane %v4507, 1
    %v4672 = vsel %vm4615, %v4671, %v4670
    %v4673 = vrot.slane %v4509, 7
    %v4674 = vsel %vm4597, %v4673, %v4508
    %v4675 = vrot.slane %v4510, 6
    %v4676 = vsel %vm4600, %v4675, %v4674
    %v4677 = vrot.slane %v4511, 5
    %v4678 = vsel %vm4603, %v4677, %v4676
    %v4679 = vrot.slane %v4512, 4
    %v4680 = vsel %vm4606, %v4679, %v4678
    %v4681 = vrot.slane %v4513, 3
    %v4682 = vsel %vm4609, %v4681, %v4680
    %v4683 = vrot.slane %v4514, 2
    %v4684 = vsel %vm4612, %v4683, %v4682
    %v4685 = vrot.slane %v4515, 1
    %v4686 = vsel %vm4615, %v4685, %v4684
    %v4687 = vrot.slane %v4517, 7
    %v4688 = vsel %vm4597, %v4687, %v4516
    %v4689 = vrot.slane %v4518, 6
    %v4690 = vsel %vm4600, %v4689, %v4688
    %v4691 = vrot.slane %v4519, 5
    %v4692 = vsel %vm4603, %v4691, %v4690
    %v4693 = vrot.slane %v4520, 4
    %v4694 = vsel %vm4606, %v4693, %v4692
    %v4695 = vrot.slane %v4521, 3
    %v4696 = vsel %vm4609, %v4695, %v4694
    %v4697 = vrot.slane %v4522, 2
    %v4698 = vsel %vm4612, %v4697, %v4696
    %v4699 = vrot.slane %v4523, 1
    %v4700 = vsel %vm4615, %v4699, %v4698
    %v4701 = vrot.slane %v4525, 7
    %v4702 = vsel %vm4597, %v4701, %v4524
    %v4703 = vrot.slane %v4526, 6
    %v4704 = vsel %vm4600, %v4703, %v4702
    %v4705 = vrot.slane %v4527, 5
    %v4706 = vsel %vm4603, %v4705, %v4704
    %v4707 = vrot.slane %v4528, 4
    %v4708 = vsel %vm4606, %v4707, %v4706
    %v4709 = vrot.slane %v4529, 3
    %v4710 = vsel %vm4609, %v4709, %v4708
    %v4711 = vrot.slane %v4530, 2
    %v4712 = vsel %vm4612, %v4711, %v4710
    %v4713 = vrot.slane %v4531, 1
    %v4714 = vsel %vm4615, %v4713, %v4712
    %v4715 = vrot.slane %v4533, 7
    %v4716 = vsel %vm4597, %v4715, %v4532
    %v4717 = vrot.slane %v4534, 6
    %v4718 = vsel %vm4600, %v4717, %v4716
    %v4719 = vrot.slane %v4535, 5
    %v4720 = vsel %vm4603, %v4719, %v4718
    %v4721 = vrot.slane %v4536, 4
    %v4722 = vsel %vm4606, %v4721, %v4720
    %v4723 = vrot.slane %v4537, 3
    %v4724 = vsel %vm4609, %v4723, %v4722
    %v4725 = vrot.slane %v4538, 2
    %v4726 = vsel %vm4612, %v4725, %v4724
    %v4727 = vrot.slane %v4539, 1
    %v4728 = vsel %vm4615, %v4727, %v4726
    %v4729 = vrot.slane %v4541, 7
    %v4730 = vsel %vm4597, %v4729, %v4540
    %v4731 = vrot.slane %v4542, 6
    %v4732 = vsel %vm4600, %v4731, %v4730
    %v4733 = vrot.slane %v4543, 5
    %v4734 = vsel %vm4603, %v4733, %v4732
    %v4735 = vrot.slane %v4544, 4
    %v4736 = vsel %vm4606, %v4735, %v4734
    %v4737 = vrot.slane %v4545, 3
    %v4738 = vsel %vm4609, %v4737, %v4736
    %v4739 = vrot.slane %v4546, 2
    %v4740 = vsel %vm4612, %v4739, %v4738
    %v4741 = vrot.slane %v4547, 1
    %v4742 = vsel %vm4615, %v4741, %v4740
    %v4743 = vrot.slane %v4549, 7
    %v4744 = vsel %vm4597, %v4743, %v4548
    %v4745 = vrot.slane %v4550, 6
    %v4746 = vsel %vm4600, %v4745, %v4744
    %v4747 = vrot.slane %v4551, 5
    %v4748 = vsel %vm4603, %v4747, %v4746
    %v4749 = vrot.slane %v4552, 4
    %v4750 = vsel %vm4606, %v4749, %v4748
    %v4751 = vrot.slane %v4553, 3
    %v4752 = vsel %vm4609, %v4751, %v4750
    %v4753 = vrot.slane %v4554, 2
    %v4754 = vsel %vm4612, %v4753, %v4752
    %v4755 = vrot.slane %v4555, 1
    %v4756 = vsel %vm4615, %v4755, %v4754
    %v4757 = vrot.slane %v4557, 7
    %v4758 = vsel %vm4597, %v4757, %v4556
    %v4759 = vrot.slane %v4558, 6
    %v4760 = vsel %vm4600, %v4759, %v4758
    %v4761 = vrot.slane %v4559, 5
    %v4762 = vsel %vm4603, %v4761, %v4760
    %v4763 = vrot.slane %v4560, 4
    %v4764 = vsel %vm4606, %v4763, %v4762
    %v4765 = vrot.slane %v4561, 3
    %v4766 = vsel %vm4609, %v4765, %v4764
    %v4767 = vrot.slane %v4562, 2
    %v4768 = vsel %vm4612, %v4767, %v4766
    %v4769 = vrot.slane %v4563, 1
    %v4770 = vsel %vm4615, %v4769, %v4768
    %v4771 = vrot.slane %v4565, 7
    %v4772 = vsel %vm4597, %v4771, %v4564
    %v4773 = vrot.slane %v4566, 6
    %v4774 = vsel %vm4600, %v4773, %v4772
    %v4775 = vrot.slane %v4567, 5
    %v4776 = vsel %vm4603, %v4775, %v4774
    %v4777 = vrot.slane %v4568, 4
    %v4778 = vsel %vm4606, %v4777, %v4776
    %v4779 = vrot.slane %v4569, 3
    %v4780 = vsel %vm4609, %v4779, %v4778
    %v4781 = vrot.slane %v4570, 2
    %v4782 = vsel %vm4612, %v4781, %v4780
    %v4783 = vrot.slane %v4571, 1
    %v4784 = vsel %vm4615, %v4783, %v4782
    %v4785 = vrot.slane %v4573, 7
    %v4786 = vsel %vm4597, %v4785, %v4572
    %v4787 = vrot.slane %v4574, 6
    %v4788 = vsel %vm4600, %v4787, %v4786
    %v4789 = vrot.slane %v4575, 5
    %v4790 = vsel %vm4603, %v4789, %v4788
    %v4791 = vrot.slane %v4576, 4
    %v4792 = vsel %vm4606, %v4791, %v4790
    %v4793 = vrot.slane %v4577, 3
    %v4794 = vsel %vm4609, %v4793, %v4792
    %v4795 = vrot.slane %v4578, 2
    %v4796 = vsel %vm4612, %v4795, %v4794
    %v4797 = vrot.slane %v4579, 1
    %v4798 = vsel %vm4615, %v4797, %v4796
    %v4799 = vrot.slane %v4581, 7
    %v4800 = vsel %vm4597, %v4799, %v4580
    %v4801 = vrot.slane %v4582, 6
    %v4802 = vsel %vm4600, %v4801, %v4800
    %v4803 = vrot.slane %v4583, 5
    %v4804 = vsel %vm4603, %v4803, %v4802
    %v4805 = vrot.slane %v4584, 4
    %v4806 = vsel %vm4606, %v4805, %v4804
    %v4807 = vrot.slane %v4585, 3
    %v4808 = vsel %vm4609, %v4807, %v4806
    %v4809 = vrot.slane %v4586, 2
    %v4810 = vsel %vm4612, %v4809, %v4808
    %v4811 = vrot.slane %v4587, 1
    %v4812 = vsel %vm4615, %v4811, %v4810
    %v4813 = vrot.slane %v4589, 7
    %v4814 = vsel %vm4597, %v4813, %v4588
    %v4815 = vrot.slane %v4590, 6
    %v4816 = vsel %vm4600, %v4815, %v4814
    %v4817 = vrot.slane %v4591, 5
    %v4818 = vsel %vm4603, %v4817, %v4816
    %v4819 = vrot.slane %v4592, 4
    %v4820 = vsel %vm4606, %v4819, %v4818
    %v4821 = vrot.slane %v4593, 3
    %v4822 = vsel %vm4609, %v4821, %v4820
    %v4823 = vrot.slane %v4594, 2
    %v4824 = vsel %vm4612, %v4823, %v4822
    %v4825 = vrot.slane %v4595, 1
    %v4826 = vsel %vm4615, %v4825, %v4824
    %v4827 = vpack.c.b16 %v4616, %v4616
    %v4828 = vpack.c.b16 %v4630, %v4630
    %v4829 = vpack.c.b16 %v4644, %v4644
    %v4830 = vpack.c.b16 %v4658, %v4658
    %v4831 = vpack.c.b16 %v4672, %v4672
    %v4832 = vpack.c.b16 %v4686, %v4686
    %v4833 = vpack.c.b16 %v4700, %v4700
    %v4834 = vpack.c.b16 %v4714, %v4714
    %v4835 = vpack.c.b16 %v4728, %v4728
    %v4836 = vpack.c.b16 %v4742, %v4742
    %v4837 = vpack.c.b16 %v4756, %v4756
    %v4838 = vpack.c.b16 %v4770, %v4770
    %v4839 = vpack.c.b16 %v4784, %v4784
    %v4840 = vpack.c.b16 %v4798, %v4798
    %v4841 = vpack.c.b16 %v4812, %v4812
    %v4842 = vpack.c.b16 %v4826, %v4826
    %v4844 = vshrl.u32 0, 16
    %v4846 = vrot.slane %v4844, 7
    %v4847 = vshll.u32 0, 16
    %v4849 = vor.u32 %v4846, %v4847
    %v4851 = vshrl.u32 %v4827, 16
    %v4853 = vrot.slane %v4851, 7
    %v4854 = vshll.u32 %v4827, 16
    %v4856 = vor.u32 %v4853, %v4854
    %v4858 = vshrl.u32 %v4828, 16
    %v4860 = vrot.slane %v4858, 7
    %v4861 = vshll.u32 %v4828, 16
    %v4863 = vor.u32 %v4860, %v4861
    %v4865 = vshrl.u32 %v4829, 16
    %v4867 = vrot.slane %v4865, 7
    %v4868 = vshll.u32 %v4829, 16
    %v4870 = vor.u32 %v4867, %v4868
    %v4872 = vshrl.u32 %v4830, 16
    %v4874 = vrot.slane %v4872, 7
    %v4875 = vshll.u32 %v4830, 16
    %v4877 = vor.u32 %v4874, %v4875
    %v4879 = vshrl.u32 %v4831, 16
    %v4881 = vrot.slane %v4879, 7
    %v4882 = vshll.u32 %v4831, 16
    %v4884 = vor.u32 %v4881, %v4882
    %v4886 = vshrl.u32 %v4832, 16
    %v4888 = vrot.slane %v4886, 7
    %v4889 = vshll.u32 %v4832, 16
    %v4891 = vor.u32 %v4888, %v4889
    %v4893 = vshrl.u32 %v4833, 16
    %v4895 = vrot.slane %v4893, 7
    %v4896 = vshll.u32 %v4833, 16
    %v4898 = vor.u32 %v4895, %v4896
    %v4900 = vshrl.u32 %v4834, 16
    %v4902 = vrot.slane %v4900, 7
    %v4903 = vshll.u32 %v4834, 16
    %v4905 = vor.u32 %v4902, %v4903
    %v4907 = vshrl.u32 %v4835, 16
    %v4909 = vrot.slane %v4907, 7
    %v4910 = vshll.u32 %v4835, 16
    %v4912 = vor.u32 %v4909, %v4910
    %v4914 = vshrl.u32 %v4836, 16
    %v4916 = vrot.slane %v4914, 7
    %v4917 = vshll.u32 %v4836, 16
    %v4919 = vor.u32 %v4916, %v4917
    %v4921 = vshrl.u32 %v4837, 16
    %v4923 = vrot.slane %v4921, 7
    %v4924 = vshll.u32 %v4837, 16
    %v4926 = vor.u32 %v4923, %v4924
    %v4928 = vshrl.u32 %v4838, 16
    %v4930 = vrot.slane %v4928, 7
    %v4931 = vshll.u32 %v4838, 16
    %v4933 = vor.u32 %v4930, %v4931
    %v4935 = vshrl.u32 %v4839, 16
    %v4937 = vrot.slane %v4935, 7
    %v4938 = vshll.u32 %v4839, 16
    %v4940 = vor.u32 %v4937, %v4938
    %v4942 = vshrl.u32 %v4840, 16
    %v4944 = vrot.slane %v4942, 7
    %v4945 = vshll.u32 %v4840, 16
    %v4947 = vor.u32 %v4944, %v4945
    %v4949 = vshrl.u32 %v4841, 16
    %v4951 = vrot.slane %v4949, 7
    %v4952 = vshll.u32 %v4841, 16
    %v4954 = vor.u32 %v4951, %v4952
    %v4956 = vshrl.u32 %v4842, 16
    %v4958 = vrot.slane %v4956, 7
    %v4959 = vshll.u32 %v4842, 16
    %v4961 = vor.u32 %v4958, %v4959
    %vm4979 = vcmask 1040384
    %vm4980 = vsmask.f32 256
    %vm4981 = vmand %vm4979, %vm4980
    %v4982 = vsel %vm4981, 0, %v4849
    %v4983 = vsel %vm4981, 0, %v4856
    %v4984 = vsel %vm4981, 0, %v4863
    %v4985 = vsel %vm4981, 0, %v4870
    %v4986 = vsel %vm4981, 0, %v4877
    %v4987 = vsel %vm4981, 0, %v4884
    %v4988 = vsel %vm4981, 0, %v4891
    %v4989 = vsel %vm4981, 0, %v4898
    %v4990 = vsel %vm4981, 0, %v4905
    %v4991 = vsel %vm4981, 0, %v4912
    %v4992 = vsel %vm4981, 0, %v4919
    %v4993 = vsel %vm4981, 0, %v4926
    %v4994 = vsel %vm4981, 0, %v4933
    %v4995 = vsel %vm4981, 0, %v4940
    %v4996 = vsel %vm4981, 0, %v4947
    %v4997 = vsel %vm4981, 0, %v4954
    %v4998 = vsel %vm4981, 0, %v4961
    %vm4999 = vcmask 1044480
    %vm5000 = vsmask.f32 4352
    %vm5001 = vmand %vm4999, %vm5000
    %v5002 = vsel %vm5001, %v4982, 0
    %v5003 = vsel %vm5001, %v4983, 0
    %v5004 = vsel %vm5001, %v4984, 0
    %v5005 = vsel %vm5001, %v4985, 0
    %v5006 = vsel %vm5001, %v4986, 0
    %v5007 = vsel %vm5001, %v4987, 0
    %v5008 = vsel %vm5001, %v4988, 0
    %v5009 = vsel %vm5001, %v4989, 0
    %v5010 = vsel %vm5001, %v4990, 0
    %v5011 = vsel %vm5001, %v4991, 0
    %v5012 = vsel %vm5001, %v4992, 0
    %v5013 = vsel %vm5001, %v4993, 0
    %v5014 = vsel %vm5001, %v4994, 0
    %v5015 = vsel %vm5001, %v4995, 0
    %v5016 = vsel %vm5001, %v4996, 0
    %v5017 = vsel %vm5001, %v4997, 0
    %v5018 = vsel %vm5001, %v4998, 0
    %v5020 = vshrl.u32 %v5002, 16
    %v5022 = vshll.u32 %v5002, 16
    %v5024 = vrot.slane %v5022, 1
    %v5025 = vor.u32 %v5020, %v5024
    %v5027 = vshrl.u32 %v5003, 16
    %v5029 = vshll.u32 %v5003, 16
    %v5031 = vrot.slane %v5029, 1
    %v5032 = vor.u32 %v5027, %v5031
    %v5034 = vshrl.u32 %v5004, 16
    %v5036 = vshll.u32 %v5004, 16
    %v5038 = vrot.slane %v5036, 1
    %v5039 = vor.u32 %v5034, %v5038
    %v5041 = vshrl.u32 %v5005, 16
    %v5043 = vshll.u32 %v5005, 16
    %v5045 = vrot.slane %v5043, 1
    %v5046 = vor.u32 %v5041, %v5045
    %v5048 = vshrl.u32 %v5006, 16
    %v5050 = vshll.u32 %v5006, 16
    %v5052 = vrot.slane %v5050, 1
    %v5053 = vor.u32 %v5048, %v5052
    %v5055 = vshrl.u32 %v5007, 16
    %v5057 = vshll.u32 %v5007, 16
    %v5059 = vrot.slane %v5057, 1
    %v5060 = vor.u32 %v5055, %v5059
    %v5062 = vshrl.u32 %v5008, 16
    %v5064 = vshll.u32 %v5008, 16
    %v5066 = vrot.slane %v5064, 1
    %v5067 = vor.u32 %v5062, %v5066
    %v5069 = vshrl.u32 %v5009, 16
    %v5071 = vshll.u32 %v5009, 16
    %v5073 = vrot.slane %v5071, 1
    %v5074 = vor.u32 %v5069, %v5073
    %v5076 = vshrl.u32 %v5011, 16
    %v5078 = vshll.u32 %v5011, 16
    %v5080 = vrot.slane %v5078, 1
    %v5081 = vor.u32 %v5076, %v5080
    %v5083 = vshrl.u32 %v5012, 16
    %v5085 = vshll.u32 %v5012, 16
    %v5087 = vrot.slane %v5085, 1
    %v5088 = vor.u32 %v5083, %v5087
    %v5090 = vshrl.u32 %v5013, 16
    %v5092 = vshll.u32 %v5013, 16
    %v5094 = vrot.slane %v5092, 1
    %v5095 = vor.u32 %v5090, %v5094
    %v5097 = vshrl.u32 %v5014, 16
    %v5099 = vshll.u32 %v5014, 16
    %v5101 = vrot.slane %v5099, 1
    %v5102 = vor.u32 %v5097, %v5101
    %v5104 = vshrl.u32 %v5015, 16
    %v5106 = vshll.u32 %v5015, 16
    %v5108 = vrot.slane %v5106, 1
    %v5109 = vor.u32 %v5104, %v5108
    %v5111 = vshrl.u32 %v5016, 16
    %v5113 = vshll.u32 %v5016, 16
    %v5115 = vrot.slane %v5113, 1
    %v5116 = vor.u32 %v5111, %v5115
    %v5118 = vshrl.u32 %v5017, 16
    %v5120 = vshll.u32 %v5017, 16
    %v5122 = vrot.slane %v5120, 1
    %v5123 = vor.u32 %v5118, %v5122
    %5124 = vrot.lane.b32.xlu0 %v5025, 32
    %v5125 = vpop.permute.xlu0 %5124
    %5126 = vrot.lane.b32.xlu0 %v5032, 32
    %v5127 = vpop.permute.xlu0 %5126
    %5128 = vrot.lane.b32.xlu0 %v5039, 32
    %v5129 = vpop.permute.xlu0 %5128
    %5130 = vrot.lane.b32.xlu0 %v5046, 32
    %v5131 = vpop.permute.xlu0 %5130
    %5132 = vrot.lane.b32.xlu0 %v5053, 32
    %v5133 = vpop.permute.xlu0 %5132
    %5134 = vrot.lane.b32.xlu0 %v5060, 32
    %v5135 = vpop.permute.xlu0 %5134
    %5136 = vrot.lane.b32.xlu0 %v5067, 32
    %v5137 = vpop.permute.xlu0 %5136
    %5138 = vrot.lane.b32.xlu0 %v5074, 32
    %v5139 = vpop.permute.xlu0 %5138
    %5140 = vrot.lane.b32.xlu0 %v5081, 32
    %v5141 = vpop.permute.xlu0 %5140
    %5142 = vrot.lane.b32.xlu0 %v5088, 32
    %v5143 = vpop.permute.xlu0 %5142
    %5144 = vrot.lane.b32.xlu0 %v5095, 32
    %v5145 = vpop.permute.xlu0 %5144
    %5146 = vrot.lane.b32.xlu0 %v5102, 32
    %v5147 = vpop.permute.xlu0 %5146
    %5148 = vrot.lane.b32.xlu0 %v5109, 32
    %v5149 = vpop.permute.xlu0 %5148
    %5150 = vrot.lane.b32.xlu0 %v5116, 32
    %v5151 = vpop.permute.xlu0 %5150
    %5152 = vrot.lane.b32.xlu0 %v5123, 32
    %v5153 = vpop.permute.xlu0 %5152
    %v5169 = vrot.slane %v5002, 1
    %v5170 = vrot.slane %v5003, 1
    %v5171 = vrot.slane %v5004, 1
    %v5172 = vrot.slane %v5005, 1
    %v5173 = vrot.slane %v5006, 1
    %v5174 = vrot.slane %v5007, 1
    %v5175 = vrot.slane %v5008, 1
    %v5176 = vrot.slane %v5009, 1
    %v5177 = vrot.slane %v5011, 1
    %v5178 = vrot.slane %v5012, 1
    %v5179 = vrot.slane %v5013, 1
    %v5180 = vrot.slane %v5014, 1
    %v5181 = vrot.slane %v5015, 1
    %v5182 = vrot.slane %v5016, 1
    %v5183 = vrot.slane %v5017, 1
    %5184 = vrot.lane.b32.xlu0 %v5169, 64
    %v5185 = vpop.permute.xlu0 %5184
    %5186 = vrot.lane.b32.xlu0 %v5170, 64
    %v5187 = vpop.permute.xlu0 %5186
    %5188 = vrot.lane.b32.xlu0 %v5171, 64
    %v5189 = vpop.permute.xlu0 %5188
    %5190 = vrot.lane.b32.xlu0 %v5172, 64
    %v5191 = vpop.permute.xlu0 %5190
    %5192 = vrot.lane.b32.xlu0 %v5173, 64
    %v5193 = vpop.permute.xlu0 %5192
    %5194 = vrot.lane.b32.xlu0 %v5174, 64
    %v5195 = vpop.permute.xlu0 %5194
    %5196 = vrot.lane.b32.xlu0 %v5175, 64
    %v5197 = vpop.permute.xlu0 %5196
    %5198 = vrot.lane.b32.xlu0 %v5176, 64
    %v5199 = vpop.permute.xlu0 %5198
    %5200 = vrot.lane.b32.xlu0 %v5177, 64
    %v5201 = vpop.permute.xlu0 %5200
    %5202 = vrot.lane.b32.xlu0 %v5178, 64
    %v5203 = vpop.permute.xlu0 %5202
    %5204 = vrot.lane.b32.xlu0 %v5179, 64
    %v5205 = vpop.permute.xlu0 %5204
    %5206 = vrot.lane.b32.xlu0 %v5180, 64
    %v5207 = vpop.permute.xlu0 %5206
    %5208 = vrot.lane.b32.xlu0 %v5181, 64
    %v5209 = vpop.permute.xlu0 %5208
    %5210 = vrot.lane.b32.xlu0 %v5182, 64
    %v5211 = vpop.permute.xlu0 %5210
    %5212 = vrot.lane.b32.xlu0 %v5183, 64
    %v5213 = vpop.permute.xlu0 %5212
    %5216 = vrot.lane.b32.xlu0 %v5003, 96
    %v5217 = vpop.permute.xlu0 %5216
    %5218 = vrot.lane.b32.xlu0 %v5004, 96
    %v5219 = vpop.permute.xlu0 %5218
    %5220 = vrot.lane.b32.xlu0 %v5005, 96
    %v5221 = vpop.permute.xlu0 %5220
    %5222 = vrot.lane.b32.xlu0 %v5006, 96
    %v5223 = vpop.permute.xlu0 %5222
    %5224 = vrot.lane.b32.xlu0 %v5007, 96
    %v5225 = vpop.permute.xlu0 %5224
    %5226 = vrot.lane.b32.xlu0 %v5008, 96
    %v5227 = vpop.permute.xlu0 %5226
    %5228 = vrot.lane.b32.xlu0 %v5009, 96
    %v5229 = vpop.permute.xlu0 %5228
    %5230 = vrot.lane.b32.xlu0 %v5010, 96
    %v5231 = vpop.permute.xlu0 %5230
    %5232 = vrot.lane.b32.xlu0 %v5011, 96
    %v5233 = vpop.permute.xlu0 %5232
    %5234 = vrot.lane.b32.xlu0 %v5012, 96
    %v5235 = vpop.permute.xlu0 %5234
    %5236 = vrot.lane.b32.xlu0 %v5013, 96
    %v5237 = vpop.permute.xlu0 %5236
    %5238 = vrot.lane.b32.xlu0 %v5014, 96
    %v5239 = vpop.permute.xlu0 %5238
    %5240 = vrot.lane.b32.xlu0 %v5015, 96
    %v5241 = vpop.permute.xlu0 %5240
    %5242 = vrot.lane.b32.xlu0 %v5016, 96
    %v5243 = vpop.permute.xlu0 %5242
    %5244 = vrot.lane.b32.xlu0 %v5017, 96
    %v5245 = vpop.permute.xlu0 %5244
    %5246 = vrot.lane.b32.xlu0 %v5018, 96
    %v5247 = vpop.permute.xlu0 %5246
    %v5249 = vshrl.u32 %v5010, 16
    %v5251 = vshll.u32 %v5010, 16
    %v5253 = vrot.slane %v5251, 1
    %v5254 = vor.u32 %v5249, %v5253
    %v5256 = vshrl.u32 %v5018, 16
    %v5258 = vshll.u32 %v5018, 16
    %v5260 = vrot.slane %v5258, 1
    %v5261 = vor.u32 %v5256, %v5260
    %v5262 = vrot.slane %v5010, 1
    %v5263 = vrot.slane %v5018, 1
    %5264 = vrot.lane.b32.xlu0 %v5170, 32
    %v5265 = vpop.permute.xlu0 %5264
    %5266 = vrot.lane.b32.xlu0 %v5171, 32
    %v5267 = vpop.permute.xlu0 %5266
    %5268 = vrot.lane.b32.xlu0 %v5172, 32
    %v5269 = vpop.permute.xlu0 %5268
    %5270 = vrot.lane.b32.xlu0 %v5173, 32
    %v5271 = vpop.permute.xlu0 %5270
    %5272 = vrot.lane.b32.xlu0 %v5174, 32
    %v5273 = vpop.permute.xlu0 %5272
    %5274 = vrot.lane.b32.xlu0 %v5175, 32
    %v5275 = vpop.permute.xlu0 %5274
    %5276 = vrot.lane.b32.xlu0 %v5176, 32
    %v5277 = vpop.permute.xlu0 %5276
    %5278 = vrot.lane.b32.xlu0 %v5262, 32
    %v5279 = vpop.permute.xlu0 %5278
    %5280 = vrot.lane.b32.xlu0 %v5177, 32
    %v5281 = vpop.permute.xlu0 %5280
    %5282 = vrot.lane.b32.xlu0 %v5178, 32
    %v5283 = vpop.permute.xlu0 %5282
    %5284 = vrot.lane.b32.xlu0 %v5179, 32
    %v5285 = vpop.permute.xlu0 %5284
    %5286 = vrot.lane.b32.xlu0 %v5180, 32
    %v5287 = vpop.permute.xlu0 %5286
    %5288 = vrot.lane.b32.xlu0 %v5181, 32
    %v5289 = vpop.permute.xlu0 %5288
    %5290 = vrot.lane.b32.xlu0 %v5182, 32
    %v5291 = vpop.permute.xlu0 %5290
    %5292 = vrot.lane.b32.xlu0 %v5183, 32
    %v5293 = vpop.permute.xlu0 %5292
    %5294 = vrot.lane.b32.xlu0 %v5263, 32
    %v5295 = vpop.permute.xlu0 %5294
    %5296 = vrot.lane.b32.xlu0 %v5004, 64
    %v5297 = vpop.permute.xlu0 %5296
    %5298 = vrot.lane.b32.xlu0 %v5005, 64
    %v5299 = vpop.permute.xlu0 %5298
    %5300 = vrot.lane.b32.xlu0 %v5006, 64
    %v5301 = vpop.permute.xlu0 %5300
    %5302 = vrot.lane.b32.xlu0 %v5007, 64
    %v5303 = vpop.permute.xlu0 %5302
    %5304 = vrot.lane.b32.xlu0 %v5008, 64
    %v5305 = vpop.permute.xlu0 %5304
    %5306 = vrot.lane.b32.xlu0 %v5009, 64
    %v5307 = vpop.permute.xlu0 %5306
    %5308 = vrot.lane.b32.xlu0 %v5010, 64
    %v5309 = vpop.permute.xlu0 %5308
    %5310 = vrot.lane.b32.xlu0 %v5002, 64
    %v5311 = vpop.permute.xlu0 %5310
    %5312 = vrot.lane.b32.xlu0 %v5012, 64
    %v5313 = vpop.permute.xlu0 %5312
    %5314 = vrot.lane.b32.xlu0 %v5013, 64
    %v5315 = vpop.permute.xlu0 %5314
    %5316 = vrot.lane.b32.xlu0 %v5014, 64
    %v5317 = vpop.permute.xlu0 %5316
    %5318 = vrot.lane.b32.xlu0 %v5015, 64
    %v5319 = vpop.permute.xlu0 %5318
    %5320 = vrot.lane.b32.xlu0 %v5016, 64
    %v5321 = vpop.permute.xlu0 %5320
    %5322 = vrot.lane.b32.xlu0 %v5017, 64
    %v5323 = vpop.permute.xlu0 %5322
    %5324 = vrot.lane.b32.xlu0 %v5018, 64
    %v5325 = vpop.permute.xlu0 %5324
    %5326 = vrot.lane.b32.xlu0 %v5039, 96
    %v5327 = vpop.permute.xlu0 %5326
    %5328 = vrot.lane.b32.xlu0 %v5046, 96
    %v5329 = vpop.permute.xlu0 %5328
    %5330 = vrot.lane.b32.xlu0 %v5053, 96
    %v5331 = vpop.permute.xlu0 %5330
    %5332 = vrot.lane.b32.xlu0 %v5060, 96
    %v5333 = vpop.permute.xlu0 %5332
    %5334 = vrot.lane.b32.xlu0 %v5067, 96
    %v5335 = vpop.permute.xlu0 %5334
    %5336 = vrot.lane.b32.xlu0 %v5074, 96
    %v5337 = vpop.permute.xlu0 %5336
    %5338 = vrot.lane.b32.xlu0 %v5254, 96
    %v5339 = vpop.permute.xlu0 %5338
    %5340 = vrot.lane.b32.xlu0 %v5025, 96
    %v5341 = vpop.permute.xlu0 %5340
    %5342 = vrot.lane.b32.xlu0 %v5088, 96
    %v5343 = vpop.permute.xlu0 %5342
    %5344 = vrot.lane.b32.xlu0 %v5095, 96
    %v5345 = vpop.permute.xlu0 %5344
    %5346 = vrot.lane.b32.xlu0 %v5102, 96
    %v5347 = vpop.permute.xlu0 %5346
    %5348 = vrot.lane.b32.xlu0 %v5109, 96
    %v5349 = vpop.permute.xlu0 %5348
    %5350 = vrot.lane.b32.xlu0 %v5116, 96
    %v5351 = vpop.permute.xlu0 %5350
    %5352 = vrot.lane.b32.xlu0 %v5123, 96
    %v5353 = vpop.permute.xlu0 %5352
    %5354 = vrot.lane.b32.xlu0 %v5261, 96
    %v5355 = vpop.permute.xlu0 %5354
    %vm5356 = vcmask 261120
    %v5358 = vsel %vm5356, %v5002, %v5125
    %v5360 = vsel %vm5356, %v5003, %v5127
    %v5362 = vsel %vm5356, %v5004, %v5129
    %v5364 = vsel %vm5356, %v5005, %v5131
    %v5366 = vsel %vm5356, %v5006, %v5133
    %v5368 = vsel %vm5356, %v5007, %v5135
    %v5370 = vsel %vm5356, %v5008, %v5137
    %v5372 = vsel %vm5356, %v5009, %v5139
    %v5374 = vsel %vm5356, %v5011, %v5141
    %v5376 = vsel %vm5356, %v5012, %v5143
    %v5378 = vsel %vm5356, %v5013, %v5145
    %v5380 = vsel %vm5356, %v5014, %v5147
    %v5382 = vsel %vm5356, %v5015, %v5149
    %v5384 = vsel %vm5356, %v5016, %v5151
    %v5386 = vsel %vm5356, %v5017, %v5153
    %vm5387 = vcmask 523264
    %v5389 = vsel %vm5387, %v5358, %v5185
    %v5391 = vsel %vm5387, %v5360, %v5187
    %v5393 = vsel %vm5387, %v5362, %v5189
    %v5395 = vsel %vm5387, %v5364, %v5191
    %v5397 = vsel %vm5387, %v5366, %v5193
    %v5399 = vsel %vm5387, %v5368, %v5195
    %v5401 = vsel %vm5387, %v5370, %v5197
    %v5403 = vsel %vm5387, %v5372, %v5199
    %v5405 = vsel %vm5387, %v5374, %v5201
    %v5407 = vsel %vm5387, %v5376, %v5203
    %v5409 = vsel %vm5387, %v5378, %v5205
    %v5411 = vsel %vm5387, %v5380, %v5207
    %v5413 = vsel %vm5387, %v5382, %v5209
    %v5415 = vsel %vm5387, %v5384, %v5211
    %v5417 = vsel %vm5387, %v5386, %v5213
    %vm5418 = vcmask 785408
    %v5420 = vsel %vm5418, %v5389, %v5217
    %v5422 = vsel %vm5418, %v5391, %v5219
    %v5424 = vsel %vm5418, %v5393, %v5221
    %v5426 = vsel %vm5418, %v5395, %v5223
    %v5428 = vsel %vm5418, %v5397, %v5225
    %v5430 = vsel %vm5418, %v5399, %v5227
    %v5432 = vsel %vm5418, %v5401, %v5229
    %v5434 = vsel %vm5418, %v5403, %v5231
    %v5436 = vsel %vm5418, %v5389, %v5233
    %v5438 = vsel %vm5418, %v5405, %v5235
    %v5440 = vsel %vm5418, %v5407, %v5237
    %v5442 = vsel %vm5418, %v5409, %v5239
    %v5444 = vsel %vm5418, %v5411, %v5241
    %v5446 = vsel %vm5418, %v5413, %v5243
    %v5448 = vsel %vm5418, %v5415, %v5245
    %v5450 = vsel %vm5418, %v5417, %v5247
    %v5453 = vsel %vm5356, %v5032, %v5265
    %v5456 = vsel %vm5356, %v5039, %v5267
    %v5459 = vsel %vm5356, %v5046, %v5269
    %v5462 = vsel %vm5356, %v5053, %v5271
    %v5465 = vsel %vm5356, %v5060, %v5273
    %v5468 = vsel %vm5356, %v5067, %v5275
    %v5471 = vsel %vm5356, %v5074, %v5277
    %v5474 = vsel %vm5356, %v5254, %v5279
    %v5477 = vsel %vm5356, %v5081, %v5281
    %v5480 = vsel %vm5356, %v5088, %v5283
    %v5483 = vsel %vm5356, %v5095, %v5285
    %v5486 = vsel %vm5356, %v5102, %v5287
    %v5489 = vsel %vm5356, %v5109, %v5289
    %v5492 = vsel %vm5356, %v5116, %v5291
    %v5495 = vsel %vm5356, %v5123, %v5293
    %v5498 = vsel %vm5356, %v5261, %v5295
    %v5500 = vsel %vm5387, %v5453, %v5297
    %v5502 = vsel %vm5387, %v5456, %v5299
    %v5504 = vsel %vm5387, %v5459, %v5301
    %v5506 = vsel %vm5387, %v5462, %v5303
    %v5508 = vsel %vm5387, %v5465, %v5305
    %v5510 = vsel %vm5387, %v5468, %v5307
    %v5512 = vsel %vm5387, %v5471, %v5309
    %v5514 = vsel %vm5387, %v5474, %v5311
    %v5516 = vsel %vm5387, %v5477, %v5313
    %v5518 = vsel %vm5387, %v5480, %v5315
    %v5520 = vsel %vm5387, %v5483, %v5317
    %v5522 = vsel %vm5387, %v5486, %v5319
    %v5524 = vsel %vm5387, %v5489, %v5321
    %v5526 = vsel %vm5387, %v5492, %v5323
    %v5528 = vsel %vm5387, %v5495, %v5325
    %v5529 = vsel %vm5387, %v5498, %v5311
    %v5531 = vsel %vm5418, %v5500, %v5327
    %v5533 = vsel %vm5418, %v5502, %v5329
    %v5535 = vsel %vm5418, %v5504, %v5331
    %v5537 = vsel %vm5418, %v5506, %v5333
    %v5539 = vsel %vm5418, %v5508, %v5335
    %v5541 = vsel %vm5418, %v5510, %v5337
    %v5543 = vsel %vm5418, %v5512, %v5339
    %v5545 = vsel %vm5418, %v5514, %v5341
    %v5547 = vsel %vm5418, %v5516, %v5343
    %v5549 = vsel %vm5418, %v5518, %v5345
    %v5551 = vsel %vm5418, %v5520, %v5347
    %v5553 = vsel %vm5418, %v5522, %v5349
    %v5555 = vsel %vm5418, %v5524, %v5351
    %v5557 = vsel %vm5418, %v5526, %v5353
    %v5559 = vsel %vm5418, %v5528, %v5355
    %v5560 = vsel %vm5418, %v5529, %v5341
    %v5593 = vunpack.c.l.b16 %v5420
    %v5594 = vunpack.c.l.b16 %v5531
    %v5595 = vunpack.c.l.b16 %v5171
    %v5596 = vunpack.c.l.b16 %v5422
    %v5597 = vunpack.c.l.b16 %v5533
    %v5598 = vunpack.c.l.b16 %v5172
    %v5599 = vunpack.c.l.b16 %v5424
    %v5600 = vunpack.c.l.b16 %v5535
    %v5601 = vunpack.c.l.b16 %v5173
    %v5602 = vunpack.c.l.b16 %v5426
    %v5603 = vunpack.c.l.b16 %v5537
    %v5604 = vunpack.c.l.b16 %v5174
    %v5605 = vunpack.c.l.b16 %v5428
    %v5606 = vunpack.c.l.b16 %v5539
    %v5607 = vunpack.c.l.b16 %v5175
    %v5608 = vunpack.c.l.b16 %v5430
    %v5609 = vunpack.c.l.b16 %v5541
    %v5610 = vunpack.c.l.b16 %v5176
    %v5611 = vunpack.c.l.b16 %v5432
    %v5612 = vunpack.c.l.b16 %v5543
    %v5613 = vunpack.c.l.b16 %v5262
    %v5614 = vunpack.c.l.b16 %v5434
    %v5615 = vunpack.c.l.b16 %v5545
    %v5616 = vunpack.c.l.b16 %v5169
    %v5617 = vunpack.c.l.b16 %v5436
    %v5618 = vunpack.c.l.b16 %v5547
    %v5619 = vunpack.c.l.b16 %v5178
    %v5620 = vunpack.c.l.b16 %v5438
    %v5621 = vunpack.c.l.b16 %v5549
    %v5622 = vunpack.c.l.b16 %v5179
    %v5623 = vunpack.c.l.b16 %v5440
    %v5624 = vunpack.c.l.b16 %v5551
    %v5625 = vunpack.c.l.b16 %v5180
    %v5626 = vunpack.c.l.b16 %v5442
    %v5627 = vunpack.c.l.b16 %v5553
    %v5628 = vunpack.c.l.b16 %v5181
    %v5629 = vunpack.c.l.b16 %v5444
    %v5630 = vunpack.c.l.b16 %v5555
    %v5631 = vunpack.c.l.b16 %v5182
    %v5632 = vunpack.c.l.b16 %v5446
    %v5633 = vunpack.c.l.b16 %v5557
    %v5634 = vunpack.c.l.b16 %v5183
    %v5635 = vunpack.c.l.b16 %v5448
    %v5636 = vunpack.c.l.b16 %v5559
    %v5637 = vunpack.c.l.b16 %v5263
    %v5638 = vunpack.c.l.b16 %v5450
    %v5639 = vunpack.c.l.b16 %v5560
    %v5640 = vld [vmem:[%s3] sm:$0xf]
    %v5641 = vld [vmem:[%s3 + $0x4] sm:$0xf]
    %v5642 = vld [vmem:[%s3 + $0x8] sm:$0xf]
    %v5643 = vld [vmem:[%s3 + $0xc] sm:$0xf]
    %v5644 = vld [vmem:[%s3 + $0x10] sm:$0xf]
    %v5645 = vld [vmem:[%s3 + $0x14] sm:$0xf]
    %v5646 = vld [vmem:[%s3 + $0x18] sm:$0xf]
    %v5647 = vld [vmem:[%s3 + $0x1c] sm:$0xf]
    %v5648 = vld [vmem:[%s3 + $0x20] sm:$0xf]
    %v5649 = vld [vmem:[%s3 + $0x24] sm:$0xf]
    %v5650 = vld [vmem:[%s3 + $0x28] sm:$0xf]
    %v5651 = vld [vmem:[%s3 + $0x2c] sm:$0xf]
    %v5652 = vld [vmem:[%s3 + $0x30] sm:$0xf]
    %v5653 = vld [vmem:[%s3 + $0x34] sm:$0xf]
    %v5654 = vld [vmem:[%s3 + $0x38] sm:$0xf]
    %v5655 = vld [vmem:[%s3 + $0x3c] sm:$0xf]
    %v5656 = vld [vmem:[%s3 + $0x40] sm:$0xf]
    %v5657 = vld [vmem:[%s3 + $0x44] sm:$0xf]
    %v5658 = vld [vmem:[%s3 + $0x48] sm:$0xf]
    %v5659 = vld [vmem:[%s3 + $0x4c] sm:$0xf]
    %v5660 = vld [vmem:[%s3 + $0x50] sm:$0xf]
    %v5661 = vld [vmem:[%s3 + $0x54] sm:$0xf]
    %v5662 = vld [vmem:[%s3 + $0x58] sm:$0xf]
    %v5663 = vld [vmem:[%s3 + $0x5c] sm:$0xf]
    %v5664 = vld [vmem:[%s3 + $0x60] sm:$0xf]
    %v5665 = vld [vmem:[%s3 + $0x64] sm:$0xf]
    %v5666 = vld [vmem:[%s3 + $0x68] sm:$0xf]
    %v5667 = vld [vmem:[%s3 + $0x6c] sm:$0xf]
    %v5668 = vld [vmem:[%s3 + $0x70] sm:$0xf]
    %v5669 = vld [vmem:[%s3 + $0x74] sm:$0xf]
    %v5670 = vld [vmem:[%s3 + $0x78] sm:$0xf]
    %v5671 = vld [vmem:[%s3 + $0x7c] sm:$0xf]
    %v5672 = vld [vmem:[%s3 + $0x80] sm:$0xf]
    %v5673 = vld [vmem:[%s3 + $0x84] sm:$0xf]
    %v5674 = vld [vmem:[%s3 + $0x88] sm:$0xf]
    %v5675 = vld [vmem:[%s3 + $0x8c] sm:$0xf]
    %v5676 = vld [vmem:[%s4] sm:$0x1]
    %v5678 = vperm.slane %v5676, 0
    %v5680 = vpack.c.b16 %v5596, %v5593
    %v5681 = vpack.c.b16 %v5597, %v5594
    %v5682 = vpack.c.b16 %v5598, %v5595
    %v5683 = vpack.c.b16 %v5602, %v5599
    %v5684 = vpack.c.b16 %v5603, %v5600
    %v5685 = vpack.c.b16 %v5604, %v5601
    %v5686 = vpack.c.b16 %v5608, %v5605
    %v5687 = vpack.c.b16 %v5609, %v5606
    %v5688 = vpack.c.b16 %v5610, %v5607
    %v5689 = vpack.c.b16 %v5614, %v5611
    %v5690 = vpack.c.b16 %v5615, %v5612
    %v5691 = vpack.c.b16 %v5616, %v5613
    %v5692 = vpack.c.b16 %v5620, %v5617
    %v5693 = vpack.c.b16 %v5621, %v5618
    %v5694 = vpack.c.b16 %v5622, %v5619
    %v5695 = vpack.c.b16 %v5626, %v5623
    %v5696 = vpack.c.b16 %v5627, %v5624
    %v5697 = vpack.c.b16 %v5628, %v5625
    %v5698 = vpack.c.b16 %v5632, %v5629
    %v5699 = vpack.c.b16 %v5633, %v5630
    %v5700 = vpack.c.b16 %v5634, %v5631
    %v5701 = vpack.c.b16 %v5638, %v5635
    %v5702 = vpack.c.b16 %v5639, %v5636
    %v5703 = vpack.c.b16 %v5616, %v5637
    %v5756 = vunpack.c.l.b16 %v5640
    %v5757 = vunpack.c.l.b16 %v5641
    %v5758 = vunpack.c.l.b16 %v5642
    %v5759 = vunpack.c.l.b16 %v5643
    %v5760 = vunpack.c.l.b16 %v5644
    %v5761 = vunpack.c.l.b16 %v5645
    %v5762 = vunpack.c.l.b16 %v5646
    %v5763 = vunpack.c.l.b16 %v5647
    %v5764 = vunpack.c.l.b16 %v5648
    %v5765 = vunpack.c.l.b16 %v5649
    %v5766 = vunpack.c.l.b16 %v5650
    %v5767 = vunpack.c.l.b16 %v5651
    %v5768 = vunpack.c.l.b16 %v5652
    %v5769 = vunpack.c.l.b16 %v5653
    %v5770 = vunpack.c.l.b16 %v5654
    %v5771 = vunpack.c.l.b16 %v5655
    %v5772 = vunpack.c.l.b16 %v5656
    %v5773 = vunpack.c.l.b16 %v5657
    %v5774 = vunpack.c.l.b16 %v5658
    %v5775 = vunpack.c.l.b16 %v5659
    %v5776 = vunpack.c.l.b16 %v5660
    %v5777 = vunpack.c.l.b16 %v5661
    %v5778 = vunpack.c.l.b16 %v5662
    %v5779 = vunpack.c.l.b16 %v5663
    %v5780 = vunpack.c.l.b16 %v5664
    %v5781 = vunpack.c.l.b16 %v5665
    %v5782 = vunpack.c.l.b16 %v5666
    %v5783 = vunpack.c.l.b16 %v5667
    %v5784 = vunpack.c.l.b16 %v5668
    %v5785 = vunpack.c.l.b16 %v5669
    %v5786 = vunpack.c.l.b16 %v5670
    %v5787 = vunpack.c.l.b16 %v5671
    %v5788 = vunpack.c.l.b16 %v5672
    %v5789 = vunpack.c.l.b16 %v5673
    %v5790 = vunpack.c.l.b16 %v5674
    %v5791 = vunpack.c.l.b16 %v5675
    %v5792 = vpack.c.b16 %v5757, %v5756
    %v5793 = vpack.c.b16 %v5759, %v5758
    %v5794 = vpack.c.b16 %v5761, %v5760
    %v5795 = vpack.c.b16 %v5763, %v5762
    %v5796 = vpack.c.b16 %v5765, %v5764
    %v5797 = vpack.c.b16 %v5767, %v5766
    %v5798 = vpack.c.b16 %v5769, %v5768
    %v5799 = vpack.c.b16 %v5771, %v5770
    %v5800 = vpack.c.b16 %v5773, %v5772
    %v5801 = vpack.c.b16 %v5775, %v5774
    %v5802 = vpack.c.b16 %v5777, %v5776
    %v5803 = vpack.c.b16 %v5779, %v5778
    %v5804 = vpack.c.b16 %v5781, %v5780
    %v5805 = vpack.c.b16 %v5783, %v5782
    %v5806 = vpack.c.b16 %v5785, %v5784
    %v5807 = vpack.c.b16 %v5787, %v5786
    %v5808 = vpack.c.b16 %v5789, %v5788
    %v5809 = vpack.c.b16 %v5791, %v5790
    %v5829 = vsel %vm5356, %v5682, 0
    %v5832 = vsel %vm5356, %v5685, 0
    %v5835 = vsel %vm5356, %v5688, 0
    %v5838 = vsel %vm5356, %v5691, 0
    %v5841 = vsel %vm5356, %v5694, 0
    %v5844 = vsel %vm5356, %v5697, 0
    %v5847 = vsel %vm5356, %v5700, 0
    %v5850 = vsel %vm5356, %v5703, 0
    %5852 = vmatpush.bf16.msra.mxu0 %v5799
    %5853 = vmatpush.bf16.msra.mxu0 %v5798
    %5854 = vmatpush.bf16.msra.mxu0 %v5797
    %5855 = vmatpush.bf16.msra.mxu0 %v5796
    %5856 = vmatpush.bf16.msra.mxu0 %v5795
    %5857 = vmatpush.bf16.msra.mxu0 %v5794
    %5858 = vmatpush.bf16.msra.mxu0 %v5793
    %5859 = vmatpush.bf16.msra.mxu0 %v5792
    %5860 = vmatmul.bf16.gmra.mxu0 %v5680
    %v5861 = vpop.f32.mrf.mxu0
    %v5862 = vadd.f32 %v5678, %v5861
    %v5863 = vpop.f32.mrf.mxu0
    %v5864 = vadd.f32 %v5678, %v5863
    %5865 = vmatmul.bf16.gmra.mxu0 %v5683
    %v5866 = vpop.f32.mrf.mxu0
    %v5867 = vadd.f32 %v5678, %v5866
    %v5868 = vpop.f32.mrf.mxu0
    %v5869 = vadd.f32 %v5678, %v5868
    %5870 = vmatmul.bf16.gmra.mxu0 %v5686
    %v5871 = vpop.f32.mrf.mxu0
    %v5872 = vadd.f32 %v5678, %v5871
    %v5873 = vpop.f32.mrf.mxu0
    %v5874 = vadd.f32 %v5678, %v5873
    %5875 = vmatmul.bf16.gmra.mxu0 %v5689
    %v5876 = vpop.f32.mrf.mxu0
    %v5877 = vadd.f32 %v5678, %v5876
    %v5878 = vpop.f32.mrf.mxu0
    %v5879 = vadd.f32 %v5678, %v5878
    %5880 = vmatmul.bf16.gmra.mxu0 %v5692
    %v5881 = vpop.f32.mrf.mxu0
    %v5882 = vadd.f32 %v5678, %v5881
    %v5883 = vpop.f32.mrf.mxu0
    %v5884 = vadd.f32 %v5678, %v5883
    %5885 = vmatmul.bf16.gmra.mxu0 %v5695
    %v5886 = vpop.f32.mrf.mxu0
    %v5887 = vadd.f32 %v5678, %v5886
    %v5888 = vpop.f32.mrf.mxu0
    %v5889 = vadd.f32 %v5678, %v5888
    %5890 = vmatmul.bf16.gmra.mxu0 %v5698
    %v5891 = vpop.f32.mrf.mxu0
    %v5892 = vadd.f32 %v5678, %v5891
    %v5893 = vpop.f32.mrf.mxu0
    %v5894 = vadd.f32 %v5678, %v5893
    %5895 = vmatmul.bf16.gmra.mxu0 %v5701
    %v5896 = vpop.f32.mrf.mxu0
    %v5897 = vadd.f32 %v5678, %v5896
    %v5898 = vpop.f32.mrf.mxu0
    %v5899 = vadd.f32 %v5678, %v5898
    %5900 = vdwg.mxu0
    %5901 = vmatpush.bf16.msra.mxu0 %v5807
    %5902 = vmatpush.bf16.msra.mxu0 %v5806
    %5903 = vmatpush.bf16.msra.mxu0 %v5805
    %5904 = vmatpush.bf16.msra.mxu0 %v5804
    %5905 = vmatpush.bf16.msra.mxu0 %v5803
    %5906 = vmatpush.bf16.msra.mxu0 %v5802
    %5907 = vmatpush.bf16.msra.mxu0 %v5801
    %5908 = vmatpush.bf16.msra.mxu0 %v5800
    %5909 = vmatmul.bf16.gmra.mxu0 %v5681
    %v5910 = vpop.f32.mrf.mxu0
    %v5911 = vadd.f32 %v5862, %v5910
    %v5912 = vpop.f32.mrf.mxu0
    %v5913 = vadd.f32 %v5864, %v5912
    %5914 = vmatmul.bf16.gmra.mxu0 %v5684
    %v5915 = vpop.f32.mrf.mxu0
    %v5916 = vadd.f32 %v5867, %v5915
    %v5917 = vpop.f32.mrf.mxu0
    %v5918 = vadd.f32 %v5869, %v5917
    %5919 = vmatmul.bf16.gmra.mxu0 %v5687
    %v5920 = vpop.f32.mrf.mxu0
    %v5921 = vadd.f32 %v5872, %v5920
    %v5922 = vpop.f32.mrf.mxu0
    %v5923 = vadd.f32 %v5874, %v5922
    %5924 = vmatmul.bf16.gmra.mxu0 %v5690
    %v5925 = vpop.f32.mrf.mxu0
    %v5926 = vadd.f32 %v5877, %v5925
    %v5927 = vpop.f32.mrf.mxu0
    %v5928 = vadd.f32 %v5879, %v5927
    %5929 = vmatmul.bf16.gmra.mxu0 %v5693
    %v5930 = vpop.f32.mrf.mxu0
    %v5931 = vadd.f32 %v5882, %v5930
    %v5932 = vpop.f32.mrf.mxu0
    %v5933 = vadd.f32 %v5884, %v5932
    %5934 = vmatmul.bf16.gmra.mxu0 %v5696
    %v5935 = vpop.f32.mrf.mxu0
    %v5936 = vadd.f32 %v5887, %v5935
    %v5937 = vpop.f32.mrf.mxu0
    %v5938 = vadd.f32 %v5889, %v5937
    %5939 = vmatmul.bf16.gmra.mxu0 %v5699
    %v5940 = vpop.f32.mrf.mxu0
    %v5941 = vadd.f32 %v5892, %v5940
    %v5942 = vpop.f32.mrf.mxu0
    %v5943 = vadd.f32 %v5894, %v5942
    %5944 = vmatmul.bf16.gmra.mxu0 %v5702
    %v5945 = vpop.f32.mrf.mxu0
    %v5946 = vadd.f32 %v5897, %v5945
    %v5947 = vpop.f32.mrf.mxu0
    %v5948 = vadd.f32 %v5899, %v5947
    %5949 = vdwg.mxu0
    %5950 = vmatpush.bf16.msra.mxu0 0
    %5951 = vmatpush.bf16.msra.mxu0 0
    %5952 = vmatpush.bf16.msra.mxu0 0
    %5953 = vmatpush.bf16.msra.mxu0 0
    %5954 = vmatpush.bf16.msra.mxu0 0
    %5955 = vmatpush.bf16.msra.mxu0 0
    %5956 = vmatpush.bf16.msra.mxu0 %v5809
    %5957 = vmatpush.bf16.msra.mxu0 %v5808
    %5958 = vmatmul.bf16.gmra.mxu0 %v5829
    %v5959 = vpop.f32.mrf.mxu0
    %v5960 = vadd.f32 %v5911, %v5959
    %v5961 = vpop.f32.mrf.mxu0
    %v5962 = vadd.f32 %v5913, %v5961
    %5963 = vmatmul.bf16.gmra.mxu0 %v5832
    %v5964 = vpop.f32.mrf.mxu0
    %v5965 = vadd.f32 %v5916, %v5964
    %v5966 = vpop.f32.mrf.mxu0
    %v5967 = vadd.f32 %v5918, %v5966
    %5968 = vmatmul.bf16.gmra.mxu0 %v5835
    %v5969 = vpop.f32.mrf.mxu0
    %v5970 = vadd.f32 %v5921, %v5969
    %v5971 = vpop.f32.mrf.mxu0
    %v5972 = vadd.f32 %v5923, %v5971
    %5973 = vmatmul.bf16.gmra.mxu0 %v5838
    %v5974 = vpop.f32.mrf.mxu0
    %v5975 = vadd.f32 %v5926, %v5974
    %v5976 = vpop.f32.mrf.mxu0
    %v5977 = vadd.f32 %v5928, %v5976
    %5978 = vmatmul.bf16.gmra.mxu0 %v5841
    %v5979 = vpop.f32.mrf.mxu0
    %v5980 = vadd.f32 %v5931, %v5979
    %v5981 = vpop.f32.mrf.mxu0
    %v5982 = vadd.f32 %v5933, %v5981
    %5983 = vmatmul.bf16.gmra.mxu0 %v5844
    %v5984 = vpop.f32.mrf.mxu0
    %v5985 = vadd.f32 %v5936, %v5984
    %v5986 = vpop.f32.mrf.mxu0
    %v5987 = vadd.f32 %v5938, %v5986
    %5988 = vmatmul.bf16.gmra.mxu0 %v5847
    %v5989 = vpop.f32.mrf.mxu0
    %v5990 = vadd.f32 %v5941, %v5989
    %v5991 = vpop.f32.mrf.mxu0
    %v5992 = vadd.f32 %v5943, %v5991
    %5993 = vmatmul.bf16.gmra.mxu0 %v5850
    %v5994 = vpop.f32.mrf.mxu0
    %v5995 = vadd.f32 %v5946, %v5994
    %v5996 = vpop.f32.mrf.mxu0
    %v5997 = vadd.f32 %v5948, %v5996
    %5998 = vdwg.mxu0
    %v5999 = vmax.f32 %v5960, 0.0
    %v6000 = vmax.f32 %v5962, 0.0
    %v6001 = vmax.f32 %v5965, 0.0
    %v6002 = vmax.f32 %v5967, 0.0
    %v6003 = vmax.f32 %v5970, 0.0
    %v6004 = vmax.f32 %v5972, 0.0
    %v6005 = vmax.f32 %v5975, 0.0
    %v6006 = vmax.f32 %v5977, 0.0
    %v6007 = vmax.f32 %v5980, 0.0
    %v6008 = vmax.f32 %v5982, 0.0
    %v6009 = vmax.f32 %v5985, 0.0
    %v6010 = vmax.f32 %v5987, 0.0
    %v6011 = vmax.f32 %v5990, 0.0
    %v6012 = vmax.f32 %v5992, 0.0
    %v6013 = vmax.f32 %v5995, 0.0
    %v6014 = vmax.f32 %v5997, 0.0
    %v6031 = vrot.slane %v5999, 2
    %v6032 = vrot.slane %v5999, 4
    %v6033 = vrot.slane %v5999, 6
    %v6034 = vrot.slane %v6000, 2
    %v6035 = vrot.slane %v6000, 4
    %v6036 = vrot.slane %v6000, 6
    %v6037 = vrot.slane %v6001, 2
    %v6038 = vrot.slane %v6001, 4
    %v6039 = vrot.slane %v6001, 6
    %v6040 = vrot.slane %v6002, 2
    %v6041 = vrot.slane %v6002, 4
    %v6042 = vrot.slane %v6002, 6
    %v6043 = vrot.slane %v6003, 2
    %v6044 = vrot.slane %v6003, 4
    %v6045 = vrot.slane %v6003, 6
    %v6046 = vrot.slane %v6004, 2
    %v6047 = vrot.slane %v6004, 4
    %v6048 = vrot.slane %v6004, 6
    %v6049 = vrot.slane %v6005, 2
    %v6050 = vrot.slane %v6005, 4
    %v6051 = vrot.slane %v6005, 6
    %v6052 = vrot.slane %v6006, 2
    %v6053 = vrot.slane %v6006, 4
    %v6054 = vrot.slane %v6006, 6
    %v6055 = vrot.slane %v6007, 2
    %v6056 = vrot.slane %v6007, 4
    %v6057 = vrot.slane %v6007, 6
    %v6058 = vrot.slane %v6008, 2
    %v6059 = vrot.slane %v6008, 4
    %v6060 = vrot.slane %v6008, 6
    %v6061 = vrot.slane %v6009, 2
    %v6062 = vrot.slane %v6009, 4
    %v6063 = vrot.slane %v6009, 6
    %v6064 = vrot.slane %v6010, 2
    %v6065 = vrot.slane %v6010, 4
    %v6066 = vrot.slane %v6010, 6
    %v6067 = vrot.slane %v6011, 2
    %v6068 = vrot.slane %v6011, 4
    %v6069 = vrot.slane %v6011, 6
    %v6070 = vrot.slane %v6012, 2
    %v6071 = vrot.slane %v6012, 4
    %v6072 = vrot.slane %v6012, 6
    %v6073 = vrot.slane %v6013, 2
    %v6074 = vrot.slane %v6013, 4
    %v6075 = vrot.slane %v6013, 6
    %v6076 = vrot.slane %v6014, 2
    %v6077 = vrot.slane %v6014, 4
    %v6078 = vrot.slane %v6014, 6
    %v6127 = vrot.slane %v5999, 7
    %v6128 = vrot.slane %v6127, 2
    %v6129 = vrot.slane %v6031, 7
    %v6130 = vrot.slane %v6129, 2
    %v6131 = vrot.slane %v6032, 7
    %v6132 = vrot.slane %v6131, 2
    %v6133 = vrot.slane %v6033, 7
    %v6134 = vrot.slane %v6133, 2
    %v6135 = vrot.slane %v6000, 7
    %v6136 = vrot.slane %v6135, 2
    %v6137 = vrot.slane %v6034, 7
    %v6138 = vrot.slane %v6137, 2
    %v6139 = vrot.slane %v6035, 7
    %v6140 = vrot.slane %v6139, 2
    %v6141 = vrot.slane %v6036, 7
    %v6142 = vrot.slane %v6141, 2
    %v6143 = vrot.slane %v6001, 7
    %v6144 = vrot.slane %v6143, 2
    %v6145 = vrot.slane %v6037, 7
    %v6146 = vrot.slane %v6145, 2
    %v6147 = vrot.slane %v6038, 7
    %v6148 = vrot.slane %v6147, 2
    %v6149 = vrot.slane %v6039, 7
    %v6150 = vrot.slane %v6149, 2
    %v6151 = vrot.slane %v6002, 7
    %v6152 = vrot.slane %v6151, 2
    %v6153 = vrot.slane %v6040, 7
    %v6154 = vrot.slane %v6153, 2
    %v6155 = vrot.slane %v6041, 7
    %v6156 = vrot.slane %v6155, 2
    %v6157 = vrot.slane %v6042, 7
    %v6158 = vrot.slane %v6157, 2
    %v6159 = vrot.slane %v6003, 7
    %v6160 = vrot.slane %v6159, 2
    %v6161 = vrot.slane %v6043, 7
    %v6162 = vrot.slane %v6161, 2
    %v6163 = vrot.slane %v6044, 7
    %v6164 = vrot.slane %v6163, 2
    %v6165 = vrot.slane %v6045, 7
    %v6166 = vrot.slane %v6165, 2
    %v6167 = vrot.slane %v6004, 7
    %v6168 = vrot.slane %v6167, 2
    %v6169 = vrot.slane %v6046, 7
    %v6170 = vrot.slane %v6169, 2
    %v6171 = vrot.slane %v6047, 7
    %v6172 = vrot.slane %v6171, 2
    %v6173 = vrot.slane %v6048, 7
    %v6174 = vrot.slane %v6173, 2
    %v6175 = vrot.slane %v6005, 7
    %v6176 = vrot.slane %v6175, 2
    %v6177 = vrot.slane %v6049, 7
    %v6178 = vrot.slane %v6177, 2
    %v6179 = vrot.slane %v6050, 7
    %v6180 = vrot.slane %v6179, 2
    %v6181 = vrot.slane %v6051, 7
    %v6182 = vrot.slane %v6181, 2
    %v6183 = vrot.slane %v6006, 7
    %v6184 = vrot.slane %v6183, 2
    %v6185 = vrot.slane %v6052, 7
    %v6186 = vrot.slane %v6185, 2
    %v6187 = vrot.slane %v6053, 7
    %v6188 = vrot.slane %v6187, 2
    %v6189 = vrot.slane %v6054, 7
    %v6190 = vrot.slane %v6189, 2
    %v6191 = vrot.slane %v6007, 7
    %v6192 = vrot.slane %v6191, 2
    %v6193 = vrot.slane %v6055, 7
    %v6194 = vrot.slane %v6193, 2
    %v6195 = vrot.slane %v6056, 7
    %v6196 = vrot.slane %v6195, 2
    %v6197 = vrot.slane %v6057, 7
    %v6198 = vrot.slane %v6197, 2
    %v6199 = vrot.slane %v6008, 7
    %v6200 = vrot.slane %v6199, 2
    %v6201 = vrot.slane %v6058, 7
    %v6202 = vrot.slane %v6201, 2
    %v6203 = vrot.slane %v6059, 7
    %v6204 = vrot.slane %v6203, 2
    %v6205 = vrot.slane %v6060, 7
    %v6206 = vrot.slane %v6205, 2
    %v6207 = vrot.slane %v6009, 7
    %v6208 = vrot.slane %v6207, 2
    %v6209 = vrot.slane %v6061, 7
    %v6210 = vrot.slane %v6209, 2
    %v6211 = vrot.slane %v6062, 7
    %v6212 = vrot.slane %v6211, 2
    %v6213 = vrot.slane %v6063, 7
    %v6214 = vrot.slane %v6213, 2
    %v6215 = vrot.slane %v6010, 7
    %v6216 = vrot.slane %v6215, 2
    %v6217 = vrot.slane %v6064, 7
    %v6218 = vrot.slane %v6217, 2
    %v6219 = vrot.slane %v6065, 7
    %v6220 = vrot.slane %v6219, 2
    %v6221 = vrot.slane %v6066, 7
    %v6222 = vrot.slane %v6221, 2
    %v6223 = vrot.slane %v6011, 7
    %v6224 = vrot.slane %v6223, 2
    %v6225 = vrot.slane %v6067, 7
    %v6226 = vrot.slane %v6225, 2
    %v6227 = vrot.slane %v6068, 7
    %v6228 = vrot.slane %v6227, 2
    %v6229 = vrot.slane %v6069, 7
    %v6230 = vrot.slane %v6229, 2
    %v6231 = vrot.slane %v6012, 7
    %v6232 = vrot.slane %v6231, 2
    %v6233 = vrot.slane %v6070, 7
    %v6234 = vrot.slane %v6233, 2
    %v6235 = vrot.slane %v6071, 7
    %v6236 = vrot.slane %v6235, 2
    %v6237 = vrot.slane %v6072, 7
    %v6238 = vrot.slane %v6237, 2
    %v6239 = vrot.slane %v6013, 7
    %v6240 = vrot.slane %v6239, 2
    %v6241 = vrot.slane %v6073, 7
    %v6242 = vrot.slane %v6241, 2
    %v6243 = vrot.slane %v6074, 7
    %v6244 = vrot.slane %v6243, 2
    %v6245 = vrot.slane %v6075, 7
    %v6246 = vrot.slane %v6245, 2
    %v6247 = vrot.slane %v6014, 7
    %v6248 = vrot.slane %v6247, 2
    %v6249 = vrot.slane %v6076, 7
    %v6250 = vrot.slane %v6249, 2
    %v6251 = vrot.slane %v6077, 7
    %v6252 = vrot.slane %v6251, 2
    %v6253 = vrot.slane %v6078, 7
    %v6254 = vrot.slane %v6253, 2
    %v6319 = vmax.f32 %v5999, %v6128
    %v6320 = vmax.f32 %v6031, %v6130
    %v6321 = vmax.f32 %v6032, %v6132
    %v6322 = vmax.f32 %v6033, %v6134
    %v6323 = vmax.f32 %v6000, %v6136
    %v6324 = vmax.f32 %v6034, %v6138
    %v6325 = vmax.f32 %v6035, %v6140
    %v6326 = vmax.f32 %v6036, %v6142
    %v6327 = vmax.f32 %v6001, %v6144
    %v6328 = vmax.f32 %v6037, %v6146
    %v6329 = vmax.f32 %v6038, %v6148
    %v6330 = vmax.f32 %v6039, %v6150
    %v6331 = vmax.f32 %v6002, %v6152
    %v6332 = vmax.f32 %v6040, %v6154
    %v6333 = vmax.f32 %v6041, %v6156
    %v6334 = vmax.f32 %v6042, %v6158
    %v6335 = vmax.f32 %v6003, %v6160
    %v6336 = vmax.f32 %v6043, %v6162
    %v6337 = vmax.f32 %v6044, %v6164
    %v6338 = vmax.f32 %v6045, %v6166
    %v6339 = vmax.f32 %v6004, %v6168
    %v6340 = vmax.f32 %v6046, %v6170
    %v6341 = vmax.f32 %v6047, %v6172
    %v6342 = vmax.f32 %v6048, %v6174
    %v6343 = vmax.f32 %v6005, %v6176
    %v6344 = vmax.f32 %v6049, %v6178
    %v6345 = vmax.f32 %v6050, %v6180
    %v6346 = vmax.f32 %v6051, %v6182
    %v6347 = vmax.f32 %v6006, %v6184
    %v6348 = vmax.f32 %v6052, %v6186
    %v6349 = vmax.f32 %v6053, %v6188
    %v6350 = vmax.f32 %v6054, %v6190
    %v6351 = vmax.f32 %v6007, %v6192
    %v6352 = vmax.f32 %v6055, %v6194
    %v6353 = vmax.f32 %v6056, %v6196
    %v6354 = vmax.f32 %v6057, %v6198
    %v6355 = vmax.f32 %v6008, %v6200
    %v6356 = vmax.f32 %v6058, %v6202
    %v6357 = vmax.f32 %v6059, %v6204
    %v6358 = vmax.f32 %v6060, %v6206
    %v6359 = vmax.f32 %v6009, %v6208
    %v6360 = vmax.f32 %v6061, %v6210
    %v6361 = vmax.f32 %v6062, %v6212
    %v6362 = vmax.f32 %v6063, %v6214
    %v6363 = vmax.f32 %v6010, %v6216
    %v6364 = vmax.f32 %v6064, %v6218
    %v6365 = vmax.f32 %v6065, %v6220
    %v6366 = vmax.f32 %v6066, %v6222
    %v6367 = vmax.f32 %v6011, %v6224
    %v6368 = vmax.f32 %v6067, %v6226
    %v6369 = vmax.f32 %v6068, %v6228
    %v6370 = vmax.f32 %v6069, %v6230
    %v6371 = vmax.f32 %v6012, %v6232
    %v6372 = vmax.f32 %v6070, %v6234
    %v6373 = vmax.f32 %v6071, %v6236
    %v6374 = vmax.f32 %v6072, %v6238
    %v6375 = vmax.f32 %v6013, %v6240
    %v6376 = vmax.f32 %v6073, %v6242
    %v6377 = vmax.f32 %v6074, %v6244
    %v6378 = vmax.f32 %v6075, %v6246
    %v6379 = vmax.f32 %v6014, %v6248
    %v6380 = vmax.f32 %v6076, %v6250
    %v6381 = vmax.f32 %v6077, %v6252
    %v6382 = vmax.f32 %v6078, %v6254
    %v6383 = vmax.f32 %v6319, %v6323
    %v6384 = vmax.f32 %v6320, %v6324
    %v6385 = vmax.f32 %v6321, %v6325
    %v6386 = vmax.f32 %v6322, %v6326
    %v6387 = vmax.f32 %v6327, %v6331
    %v6388 = vmax.f32 %v6328, %v6332
    %v6389 = vmax.f32 %v6329, %v6333
    %v6390 = vmax.f32 %v6330, %v6334
    %v6391 = vmax.f32 %v6335, %v6339
    %v6392 = vmax.f32 %v6336, %v6340
    %v6393 = vmax.f32 %v6337, %v6341
    %v6394 = vmax.f32 %v6338, %v6342
    %v6395 = vmax.f32 %v6343, %v6347
    %v6396 = vmax.f32 %v6344, %v6348
    %v6397 = vmax.f32 %v6345, %v6349
    %v6398 = vmax.f32 %v6346, %v6350
    %v6399 = vmax.f32 %v6351, %v6355
    %v6400 = vmax.f32 %v6352, %v6356
    %v6401 = vmax.f32 %v6353, %v6357
    %v6402 = vmax.f32 %v6354, %v6358
    %v6403 = vmax.f32 %v6359, %v6363
    %v6404 = vmax.f32 %v6360, %v6364
    %v6405 = vmax.f32 %v6361, %v6365
    %v6406 = vmax.f32 %v6362, %v6366
    %v6407 = vmax.f32 %v6367, %v6371
    %v6408 = vmax.f32 %v6368, %v6372
    %v6409 = vmax.f32 %v6369, %v6373
    %v6410 = vmax.f32 %v6370, %v6374
    %v6411 = vmax.f32 %v6375, %v6379
    %v6412 = vmax.f32 %v6376, %v6380
    %v6413 = vmax.f32 %v6377, %v6381
    %v6414 = vmax.f32 %v6378, %v6382
    %v6415 = vpack.c.bf16 %v6383, %v6383
    %v6416 = vpack.c.bf16 %v6384, %v6384
    %v6417 = vpack.c.bf16 %v6385, %v6385
    %v6418 = vpack.c.bf16 %v6386, %v6386
    %v6419 = vpack.c.bf16 %v6387, %v6387
    %v6420 = vpack.c.bf16 %v6388, %v6388
    %v6421 = vpack.c.bf16 %v6389, %v6389
    %v6422 = vpack.c.bf16 %v6390, %v6390
    %v6423 = vpack.c.bf16 %v6391, %v6391
    %v6424 = vpack.c.bf16 %v6392, %v6392
    %v6425 = vpack.c.bf16 %v6393, %v6393
    %v6426 = vpack.c.bf16 %v6394, %v6394
    %v6427 = vpack.c.bf16 %v6395, %v6395
    %v6428 = vpack.c.bf16 %v6396, %v6396
    %v6429 = vpack.c.bf16 %v6397, %v6397
    %v6430 = vpack.c.bf16 %v6398, %v6398
    %v6431 = vpack.c.bf16 %v6399, %v6399
    %v6432 = vpack.c.bf16 %v6400, %v6400
    %v6433 = vpack.c.bf16 %v6401, %v6401
    %v6434 = vpack.c.bf16 %v6402, %v6402
    %v6435 = vpack.c.bf16 %v6403, %v6403
    %v6436 = vpack.c.bf16 %v6404, %v6404
    %v6437 = vpack.c.bf16 %v6405, %v6405
    %v6438 = vpack.c.bf16 %v6406, %v6406
    %v6439 = vpack.c.bf16 %v6407, %v6407
    %v6440 = vpack.c.bf16 %v6408, %v6408
    %v6441 = vpack.c.bf16 %v6409, %v6409
    %v6442 = vpack.c.bf16 %v6410, %v6410
    %v6443 = vpack.c.bf16 %v6411, %v6411
    %v6444 = vpack.c.bf16 %v6412, %v6412
    %v6445 = vpack.c.bf16 %v6413, %v6413
    %v6446 = vpack.c.bf16 %v6414, %v6414
    %v6479 = vunpack.c.l.b16 %v6415
    %v6480 = vunpack.c.l.b16 %v6416
    %v6481 = vunpack.c.l.b16 %v6417
    %v6482 = vunpack.c.l.b16 %v6418
    %v6483 = vunpack.c.l.b16 %v6419
    %v6484 = vunpack.c.l.b16 %v6420
    %v6485 = vunpack.c.l.b16 %v6421
    %v6486 = vunpack.c.l.b16 %v6422
    %v6487 = vunpack.c.l.b16 %v6423
    %v6488 = vunpack.c.l.b16 %v6424
    %v6489 = vunpack.c.l.b16 %v6425
    %v6490 = vunpack.c.l.b16 %v6426
    %v6491 = vunpack.c.l.b16 %v6427
    %v6492 = vunpack.c.l.b16 %v6428
    %v6493 = vunpack.c.l.b16 %v6429
    %v6494 = vunpack.c.l.b16 %v6430
    %v6495 = vunpack.c.l.b16 %v6431
    %v6496 = vunpack.c.l.b16 %v6432
    %v6497 = vunpack.c.l.b16 %v6433
    %v6498 = vunpack.c.l.b16 %v6434
    %v6499 = vunpack.c.l.b16 %v6435
    %v6500 = vunpack.c.l.b16 %v6436
    %v6501 = vunpack.c.l.b16 %v6437
    %v6502 = vunpack.c.l.b16 %v6438
    %v6503 = vunpack.c.l.b16 %v6439
    %v6504 = vunpack.c.l.b16 %v6440
    %v6505 = vunpack.c.l.b16 %v6441
    %v6506 = vunpack.c.l.b16 %v6442
    %v6507 = vunpack.c.l.b16 %v6443
    %v6508 = vunpack.c.l.b16 %v6444
    %v6509 = vunpack.c.l.b16 %v6445
    %v6510 = vunpack.c.l.b16 %v6446
    %v6511 = vpack.c.b16 %v6479, %v6479
    %v6512 = vpack.c.b16 %v6480, %v6480
    %v6513 = vpack.c.b16 %v6481, %v6481
    %v6514 = vpack.c.b16 %v6482, %v6482
    %v6515 = vpack.c.b16 %v6483, %v6483
    %v6516 = vpack.c.b16 %v6484, %v6484
    %v6517 = vpack.c.b16 %v6485, %v6485
    %v6518 = vpack.c.b16 %v6486, %v6486
    %v6519 = vpack.c.b16 %v6487, %v6487
    %v6520 = vpack.c.b16 %v6488, %v6488
    %v6521 = vpack.c.b16 %v6489, %v6489
    %v6522 = vpack.c.b16 %v6490, %v6490
    %v6523 = vpack.c.b16 %v6491, %v6491
    %v6524 = vpack.c.b16 %v6492, %v6492
    %v6525 = vpack.c.b16 %v6493, %v6493
    %v6526 = vpack.c.b16 %v6494, %v6494
    %v6527 = vpack.c.b16 %v6495, %v6495
    %v6528 = vpack.c.b16 %v6496, %v6496
    %v6529 = vpack.c.b16 %v6497, %v6497
    %v6530 = vpack.c.b16 %v6498, %v6498
    %v6531 = vpack.c.b16 %v6499, %v6499
    %v6532 = vpack.c.b16 %v6500, %v6500
    %v6533 = vpack.c.b16 %v6501, %v6501
    %v6534 = vpack.c.b16 %v6502, %v6502
    %v6535 = vpack.c.b16 %v6503, %v6503
    %v6536 = vpack.c.b16 %v6504, %v6504
    %v6537 = vpack.c.b16 %v6505, %v6505
    %v6538 = vpack.c.b16 %v6506, %v6506
    %v6539 = vpack.c.b16 %v6507, %v6507
    %v6540 = vpack.c.b16 %v6508, %v6508
    %v6541 = vpack.c.b16 %v6509, %v6509
    %v6542 = vpack.c.b16 %v6510, %v6510
    %v6543 = vunpack.c.l.b16 %v6511
    %v6544 = vunpack.c.l.b16 %v6512
    %v6545 = vunpack.c.l.b16 %v6513
    %v6546 = vunpack.c.l.b16 %v6514
    %v6547 = vunpack.c.l.b16 %v6515
    %v6548 = vunpack.c.l.b16 %v6516
    %v6549 = vunpack.c.l.b16 %v6517
    %v6550 = vunpack.c.l.b16 %v6518
    %v6551 = vunpack.c.l.b16 %v6519
    %v6552 = vunpack.c.l.b16 %v6520
    %v6553 = vunpack.c.l.b16 %v6521
    %v6554 = vunpack.c.l.b16 %v6522
    %v6555 = vunpack.c.l.b16 %v6523
    %v6556 = vunpack.c.l.b16 %v6524
    %v6557 = vunpack.c.l.b16 %v6525
    %v6558 = vunpack.c.l.b16 %v6526
    %v6559 = vunpack.c.l.b16 %v6527
    %v6560 = vunpack.c.l.b16 %v6528
    %v6561 = vunpack.c.l.b16 %v6529
    %v6562 = vunpack.c.l.b16 %v6530
    %v6563 = vunpack.c.l.b16 %v6531
    %v6564 = vunpack.c.l.b16 %v6532
    %v6565 = vunpack.c.l.b16 %v6533
    %v6566 = vunpack.c.l.b16 %v6534
    %v6567 = vunpack.c.l.b16 %v6535
    %v6568 = vunpack.c.l.b16 %v6536
    %v6569 = vunpack.c.l.b16 %v6537
    %v6570 = vunpack.c.l.b16 %v6538
    %v6571 = vunpack.c.l.b16 %v6539
    %v6572 = vunpack.c.l.b16 %v6540
    %v6573 = vunpack.c.l.b16 %v6541
    %v6574 = vunpack.c.l.b16 %v6542
    %v6575 = vrot.slane %v6544, 7
    %v6576 = vsel %vm4597, %v6575, %v6543
    %v6577 = vrot.slane %v6545, 6
    %v6578 = vsel %vm4600, %v6577, %v6576
    %v6579 = vrot.slane %v6546, 5
    %v6580 = vsel %vm4603, %v6579, %v6578
    %v6581 = vrot.slane %v6548, 7
    %v6582 = vsel %vm4597, %v6581, %v6547
    %v6583 = vrot.slane %v6549, 6
    %v6584 = vsel %vm4600, %v6583, %v6582
    %v6585 = vrot.slane %v6550, 5
    %v6586 = vsel %vm4603, %v6585, %v6584
    %v6587 = vrot.slane %v6552, 7
    %v6588 = vsel %vm4597, %v6587, %v6551
    %v6589 = vrot.slane %v6553, 6
    %v6590 = vsel %vm4600, %v6589, %v6588
    %v6591 = vrot.slane %v6554, 5
    %v6592 = vsel %vm4603, %v6591, %v6590
    %v6593 = vrot.slane %v6556, 7
    %v6594 = vsel %vm4597, %v6593, %v6555
    %v6595 = vrot.slane %v6557, 6
    %v6596 = vsel %vm4600, %v6595, %v6594
    %v6597 = vrot.slane %v6558, 5
    %v6598 = vsel %vm4603, %v6597, %v6596
    %v6599 = vrot.slane %v6560, 7
    %v6600 = vsel %vm4597, %v6599, %v6559
    %v6601 = vrot.slane %v6561, 6
    %v6602 = vsel %vm4600, %v6601, %v6600
    %v6603 = vrot.slane %v6562, 5
    %v6604 = vsel %vm4603, %v6603, %v6602
    %v6605 = vrot.slane %v6564, 7
    %v6606 = vsel %vm4597, %v6605, %v6563
    %v6607 = vrot.slane %v6565, 6
    %v6608 = vsel %vm4600, %v6607, %v6606
    %v6609 = vrot.slane %v6566, 5
    %v6610 = vsel %vm4603, %v6609, %v6608
    %v6611 = vrot.slane %v6568, 7
    %v6612 = vsel %vm4597, %v6611, %v6567
    %v6613 = vrot.slane %v6569, 6
    %v6614 = vsel %vm4600, %v6613, %v6612
    %v6615 = vrot.slane %v6570, 5
    %v6616 = vsel %vm4603, %v6615, %v6614
    %v6617 = vrot.slane %v6572, 7
    %v6618 = vsel %vm4597, %v6617, %v6571
    %v6619 = vrot.slane %v6573, 6
    %v6620 = vsel %vm4600, %v6619, %v6618
    %v6621 = vrot.slane %v6574, 5
    %v6622 = vsel %vm4603, %v6621, %v6620
    %v6623 = vpack.c.b16 %v6580, %v6580
    %v6624 = vpack.c.b16 %v6586, %v6586
    %v6625 = vpack.c.b16 %v6592, %v6592
    %v6626 = vpack.c.b16 %v6598, %v6598
    %v6627 = vpack.c.b16 %v6604, %v6604
    %v6628 = vpack.c.b16 %v6610, %v6610
    %v6629 = vpack.c.b16 %v6616, %v6616
    %v6630 = vpack.c.b16 %v6622, %v6622
    %v6632 = vshrl.u32 %v6623, 16
    %v6634 = vrot.slane %v6632, 7
    %v6635 = vshll.u32 %v6623, 16
    %v6637 = vor.u32 %v6634, %v6635
    %v6639 = vshrl.u32 %v6624, 16
    %v6641 = vrot.slane %v6639, 7
    %v6642 = vshll.u32 %v6624, 16
    %v6644 = vor.u32 %v6641, %v6642
    %v6646 = vshrl.u32 %v6625, 16
    %v6648 = vrot.slane %v6646, 7
    %v6649 = vshll.u32 %v6625, 16
    %v6651 = vor.u32 %v6648, %v6649
    %v6653 = vshrl.u32 %v6626, 16
    %v6655 = vrot.slane %v6653, 7
    %v6656 = vshll.u32 %v6626, 16
    %v6658 = vor.u32 %v6655, %v6656
    %v6660 = vshrl.u32 %v6627, 16
    %v6662 = vrot.slane %v6660, 7
    %v6663 = vshll.u32 %v6627, 16
    %v6665 = vor.u32 %v6662, %v6663
    %v6667 = vshrl.u32 %v6628, 16
    %v6669 = vrot.slane %v6667, 7
    %v6670 = vshll.u32 %v6628, 16
    %v6672 = vor.u32 %v6669, %v6670
    %v6674 = vshrl.u32 %v6629, 16
    %v6676 = vrot.slane %v6674, 7
    %v6677 = vshll.u32 %v6629, 16
    %v6679 = vor.u32 %v6676, %v6677
    %v6681 = vshrl.u32 %v6630, 16
    %v6683 = vrot.slane %v6681, 7
    %v6684 = vshll.u32 %v6630, 16
    %v6686 = vor.u32 %v6683, %v6684
    %v6695 = vsel %vm4981, 0, %v6637
    %v6696 = vsel %vm4981, 0, %v6644
    %v6697 = vsel %vm4981, 0, %v6651
    %v6698 = vsel %vm4981, 0, %v6658
    %v6699 = vsel %vm4981, 0, %v6665
    %v6700 = vsel %vm4981, 0, %v6672
    %v6701 = vsel %vm4981, 0, %v6679
    %v6702 = vsel %vm4981, 0, %v6686
    %vm6703 = vcmask 1042432
    %vm6704 = vsmask.f32 2304
    %vm6705 = vmand %vm6703, %vm6704
    %v6706 = vsel %vm6705, %v4982, 0
    %v6707 = vsel %vm6705, %v6695, 0
    %v6708 = vsel %vm6705, %v6696, 0
    %v6709 = vsel %vm6705, %v6697, 0
    %v6710 = vsel %vm6705, %v6698, 0
    %v6711 = vsel %vm6705, %v6699, 0
    %v6712 = vsel %vm6705, %v6700, 0
    %v6713 = vsel %vm6705, %v6701, 0
    %v6714 = vsel %vm6705, %v6702, 0
    %v6716 = vshrl.u32 %v6706, 16
    %v6718 = vshll.u32 %v6706, 16
    %v6720 = vrot.slane %v6718, 1
    %v6721 = vor.u32 %v6716, %v6720
    %v6723 = vshrl.u32 %v6707, 16
    %v6725 = vshll.u32 %v6707, 16
    %v6727 = vrot.slane %v6725, 1
    %v6728 = vor.u32 %v6723, %v6727
    %v6730 = vshrl.u32 %v6708, 16
    %v6732 = vshll.u32 %v6708, 16
    %v6734 = vrot.slane %v6732, 1
    %v6735 = vor.u32 %v6730, %v6734
    %v6737 = vshrl.u32 %v6709, 16
    %v6739 = vshll.u32 %v6709, 16
    %v6741 = vrot.slane %v6739, 1
    %v6742 = vor.u32 %v6737, %v6741
    %v6744 = vshrl.u32 %v6711, 16
    %v6746 = vshll.u32 %v6711, 16
    %v6748 = vrot.slane %v6746, 1
    %v6749 = vor.u32 %v6744, %v6748
    %v6751 = vshrl.u32 %v6712, 16
    %v6753 = vshll.u32 %v6712, 16
    %v6755 = vrot.slane %v6753, 1
    %v6756 = vor.u32 %v6751, %v6755
    %v6758 = vshrl.u32 %v6713, 16
    %v6760 = vshll.u32 %v6713, 16
    %v6762 = vrot.slane %v6760, 1
    %v6763 = vor.u32 %v6758, %v6762
    %6764 = vrot.lane.b32.xlu0 %v6721, 64
    %v6765 = vpop.permute.xlu0 %6764
    %6766 = vrot.lane.b32.xlu0 %v6728, 64
    %v6767 = vpop.permute.xlu0 %6766
    %6768 = vrot.lane.b32.xlu0 %v6735, 64
    %v6769 = vpop.permute.xlu0 %6768
    %6770 = vrot.lane.b32.xlu0 %v6742, 64
    %v6771 = vpop.permute.xlu0 %6770
    %6772 = vrot.lane.b32.xlu0 %v6749, 64
    %v6773 = vpop.permute.xlu0 %6772
    %6774 = vrot.lane.b32.xlu0 %v6756, 64
    %v6775 = vpop.permute.xlu0 %6774
    %6776 = vrot.lane.b32.xlu0 %v6763, 64
    %v6777 = vpop.permute.xlu0 %6776
    %v6785 = vrot.slane %v6706, 1
    %v6786 = vrot.slane %v6707, 1
    %v6787 = vrot.slane %v6708, 1
    %v6788 = vrot.slane %v6709, 1
    %v6789 = vrot.slane %v6711, 1
    %v6790 = vrot.slane %v6712, 1
    %v6791 = vrot.slane %v6713, 1
    %6794 = vrot.lane.b32.xlu0 %v6707, 64
    %v6795 = vpop.permute.xlu0 %6794
    %6796 = vrot.lane.b32.xlu0 %v6708, 64
    %v6797 = vpop.permute.xlu0 %6796
    %6798 = vrot.lane.b32.xlu0 %v6709, 64
    %v6799 = vpop.permute.xlu0 %6798
    %6800 = vrot.lane.b32.xlu0 %v6710, 64
    %v6801 = vpop.permute.xlu0 %6800
    %6802 = vrot.lane.b32.xlu0 %v6711, 64
    %v6803 = vpop.permute.xlu0 %6802
    %6804 = vrot.lane.b32.xlu0 %v6712, 64
    %v6805 = vpop.permute.xlu0 %6804
    %6806 = vrot.lane.b32.xlu0 %v6713, 64
    %v6807 = vpop.permute.xlu0 %6806
    %6808 = vrot.lane.b32.xlu0 %v6714, 64
    %v6809 = vpop.permute.xlu0 %6808
    %v6811 = vshrl.u32 %v6710, 16
    %v6813 = vshll.u32 %v6710, 16
    %v6815 = vrot.slane %v6813, 1
    %v6816 = vor.u32 %v6811, %v6815
    %v6818 = vshrl.u32 %v6714, 16
    %v6820 = vshll.u32 %v6714, 16
    %v6822 = vrot.slane %v6820, 1
    %v6823 = vor.u32 %v6818, %v6822
    %v6824 = vrot.slane %v6710, 1
    %v6825 = vrot.slane %v6714, 1
    %6826 = vrot.lane.b32.xlu0 %v6786, 64
    %v6827 = vpop.permute.xlu0 %6826
    %6828 = vrot.lane.b32.xlu0 %v6787, 64
    %v6829 = vpop.permute.xlu0 %6828
    %6830 = vrot.lane.b32.xlu0 %v6788, 64
    %v6831 = vpop.permute.xlu0 %6830
    %6832 = vrot.lane.b32.xlu0 %v6824, 64
    %v6833 = vpop.permute.xlu0 %6832
    %6834 = vrot.lane.b32.xlu0 %v6789, 64
    %v6835 = vpop.permute.xlu0 %6834
    %6836 = vrot.lane.b32.xlu0 %v6790, 64
    %v6837 = vpop.permute.xlu0 %6836
    %6838 = vrot.lane.b32.xlu0 %v6791, 64
    %v6839 = vpop.permute.xlu0 %6838
    %6840 = vrot.lane.b32.xlu0 %v6825, 64
    %v6841 = vpop.permute.xlu0 %6840
    %6842 = vrot.lane.b32.xlu0 %v6816, 64
    %v6843 = vpop.permute.xlu0 %6842
    %6844 = vrot.lane.b32.xlu0 %v6823, 64
    %v6845 = vpop.permute.xlu0 %6844
    %v6847 = vsel %vm5387, %v6706, %v6765
    %v6849 = vsel %vm5387, %v6707, %v6767
    %v6851 = vsel %vm5387, %v6708, %v6769
    %v6853 = vsel %vm5387, %v6709, %v6771
    %v6855 = vsel %vm5387, %v6711, %v6773
    %v6857 = vsel %vm5387, %v6712, %v6775
    %v6859 = vsel %vm5387, %v6713, %v6777
    %v6862 = vsel %vm5387, %v6785, %v6795
    %v6865 = vsel %vm5387, %v6786, %v6797
    %v6868 = vsel %vm5387, %v6787, %v6799
    %v6871 = vsel %vm5387, %v6788, %v6801
    %v6873 = vsel %vm5387, %v6785, %v6803
    %v6876 = vsel %vm5387, %v6789, %v6805
    %v6879 = vsel %vm5387, %v6790, %v6807
    %v6882 = vsel %vm5387, %v6791, %v6809
    %v6885 = vsel %vm5387, %v6728, %v6827
    %v6888 = vsel %vm5387, %v6735, %v6829
    %v6891 = vsel %vm5387, %v6742, %v6831
    %v6894 = vsel %vm5387, %v6816, %v6833
    %v6897 = vsel %vm5387, %v6749, %v6835
    %v6900 = vsel %vm5387, %v6756, %v6837
    %v6903 = vsel %vm5387, %v6763, %v6839
    %v6906 = vsel %vm5387, %v6823, %v6841
    %v6908 = vsel %vm5387, %v6710, %v6843
    %v6910 = vsel %vm5387, %v6714, %v6845
    %v6934 = vrot.slane %v6862, 6
    %v6935 = vrot.slane %v6885, 4
    %v6936 = vrot.slane %v6851, 2
    %v6937 = vrot.slane %v6865, 6
    %v6938 = vrot.slane %v6888, 4
    %v6939 = vrot.slane %v6853, 2
    %v6940 = vrot.slane %v6868, 6
    %v6941 = vrot.slane %v6891, 4
    %v6942 = vrot.slane %v6908, 2
    %v6943 = vrot.slane %v6871, 6
    %v6944 = vrot.slane %v6894, 4
    %v6945 = vrot.slane %v6847, 2
    %v6946 = vrot.slane %v6873, 6
    %v6947 = vrot.slane %v6897, 4
    %v6948 = vrot.slane %v6857, 2
    %v6949 = vrot.slane %v6876, 6
    %v6950 = vrot.slane %v6900, 4
    %v6951 = vrot.slane %v6859, 2
    %v6952 = vrot.slane %v6879, 6
    %v6953 = vrot.slane %v6903, 4
    %v6954 = vrot.slane %v6910, 2
    %v6955 = vrot.slane %v6882, 6
    %v6956 = vrot.slane %v6906, 4
    %vm6957 = vcmask 1041408
    %v6959 = vsel %vm6957, %v6847, %v6934
    %vm6960 = vcmask 1045508
    %v6963 = vsel %vm6960, %v6935, %v6936
    %vm6964 = vcmask 1043456
    %v6965 = vsel %vm6964, %v6959, %v6963
    %v6967 = vsel %vm6957, %v6849, %v6937
    %v6970 = vsel %vm6960, %v6938, %v6939
    %v6971 = vsel %vm6964, %v6967, %v6970
    %v6973 = vsel %vm6957, %v6851, %v6940
    %v6976 = vsel %vm6960, %v6941, %v6942
    %v6977 = vsel %vm6964, %v6973, %v6976
    %v6979 = vsel %vm6957, %v6853, %v6943
    %v6982 = vsel %vm6960, %v6944, %v6945
    %v6983 = vsel %vm6964, %v6979, %v6982
    %v6985 = vsel %vm6957, %v6847, %v6946
    %v6988 = vsel %vm6960, %v6947, %v6948
    %v6989 = vsel %vm6964, %v6985, %v6988
    %v6991 = vsel %vm6957, %v6855, %v6949
    %v6994 = vsel %vm6960, %v6950, %v6951
    %v6995 = vsel %vm6964, %v6991, %v6994
    %v6997 = vsel %vm6957, %v6857, %v6952
    %v7000 = vsel %vm6960, %v6953, %v6954
    %v7001 = vsel %vm6964, %v6997, %v7000
    %v7003 = vsel %vm6957, %v6859, %v6955
    %v7005 = vsel %vm6960, %v6956, %v6945
    %v7006 = vsel %vm6964, %v7003, %v7005
    %v7007 = vld [vmem:[%s5] sm:$0xf]
    %v7008 = vld [vmem:[%s5 + $0x4] sm:$0xf]
    %v7009 = vld [vmem:[%s5 + $0x8] sm:$0xf]
    %v7010 = vld [vmem:[%s5 + $0xc] sm:$0xf]
    %v7011 = vld [vmem:[%s5 + $0x10] sm:$0xf]
    %v7012 = vld [vmem:[%s5 + $0x14] sm:$0xf]
    %v7013 = vld [vmem:[%s5 + $0x18] sm:$0xf]
    %v7014 = vld [vmem:[%s5 + $0x1c] sm:$0xf]
    %v7015 = vld [vmem:[%s5 + $0x20] sm:$0xf]
    %v7016 = vld [vmem:[%s5 + $0x24] sm:$0xf]
    %v7017 = vld [vmem:[%s5 + $0x28] sm:$0xf]
    %v7018 = vld [vmem:[%s5 + $0x2c] sm:$0xf]
    %v7019 = vld [vmem:[%s5 + $0x30] sm:$0xf]
    %v7020 = vld [vmem:[%s5 + $0x34] sm:$0xf]
    %v7021 = vld [vmem:[%s5 + $0x38] sm:$0xf]
    %v7022 = vld [vmem:[%s5 + $0x3c] sm:$0xf]
    %v7023 = vld [vmem:[%s5 + $0x40] sm:$0xf]
    %v7024 = vld [vmem:[%s5 + $0x44] sm:$0xf]
    %v7025 = vld [vmem:[%s5 + $0x48] sm:$0xf]
    %v7026 = vld [vmem:[%s5 + $0x4c] sm:$0xf]
    %v7027 = vld [vmem:[%s5 + $0x50] sm:$0xf]
    %v7028 = vld [vmem:[%s5 + $0x54] sm:$0xf]
    %v7029 = vld [vmem:[%s5 + $0x58] sm:$0xf]
    %v7030 = vld [vmem:[%s5 + $0x5c] sm:$0xf]
    %v7031 = vld [vmem:[%s5 + $0x60] sm:$0xf]
    %v7032 = vld [vmem:[%s5 + $0x64] sm:$0xf]
    %v7033 = vld [vmem:[%s5 + $0x68] sm:$0xf]
    %v7034 = vld [vmem:[%s5 + $0x6c] sm:$0xf]
    %v7035 = vld [vmem:[%s5 + $0x70] sm:$0xf]
    %v7036 = vld [vmem:[%s5 + $0x74] sm:$0xf]
    %v7037 = vld [vmem:[%s5 + $0x78] sm:$0xf]
    %v7038 = vld [vmem:[%s5 + $0x7c] sm:$0xf]
    %v7039 = vld [vmem:[%s5 + $0x80] sm:$0xf]
    %v7040 = vld [vmem:[%s5 + $0x84] sm:$0xf]
    %v7041 = vld [vmem:[%s5 + $0x88] sm:$0xf]
    %v7042 = vld [vmem:[%s5 + $0x8c] sm:$0xf]
    %v7043 = vld [vmem:[%s5 + $0x90] sm:$0xf]
    %v7044 = vld [vmem:[%s5 + $0x94] sm:$0xf]
    %v7045 = vld [vmem:[%s5 + $0x98] sm:$0xf]
    %v7046 = vld [vmem:[%s5 + $0x9c] sm:$0xf]
    %v7047 = vld [vmem:[%s5 + $0xa0] sm:$0xf]
    %v7048 = vld [vmem:[%s5 + $0xa4] sm:$0xf]
    %v7049 = vld [vmem:[%s5 + $0xa8] sm:$0xf]
    %v7050 = vld [vmem:[%s5 + $0xac] sm:$0xf]
    %v7051 = vld [vmem:[%s5 + $0xb0] sm:$0xf]
    %v7052 = vld [vmem:[%s5 + $0xb4] sm:$0xf]
    %v7053 = vld [vmem:[%s5 + $0xb8] sm:$0xf]
    %v7054 = vld [vmem:[%s5 + $0xbc] sm:$0xf]
    %v7055 = vld [vmem:[%s5 + $0xc0] sm:$0xf]
    %v7056 = vld [vmem:[%s5 + $0xc4] sm:$0xf]
    %v7057 = vld [vmem:[%s5 + $0xc8] sm:$0xf]
    %v7058 = vld [vmem:[%s5 + $0xcc] sm:$0xf]
    %v7059 = vld [vmem:[%s5 + $0xd0] sm:$0xf]
    %v7060 = vld [vmem:[%s5 + $0xd4] sm:$0xf]
    %v7061 = vld [vmem:[%s5 + $0xd8] sm:$0xf]
    %v7062 = vld [vmem:[%s5 + $0xdc] sm:$0xf]
    %v7063 = vld [vmem:[%s5 + $0xe0] sm:$0xf]
    %v7064 = vld [vmem:[%s5 + $0xe4] sm:$0xf]
    %v7065 = vld [vmem:[%s5 + $0xe8] sm:$0xf]
    %v7066 = vld [vmem:[%s5 + $0xec] sm:$0xf]
    %v7067 = vld [vmem:[%s5 + $0xf0] sm:$0xf]
    %v7068 = vld [vmem:[%s5 + $0xf4] sm:$0xf]
    %v7069 = vld [vmem:[%s5 + $0xf8] sm:$0xf]
    %v7070 = vld [vmem:[%s5 + $0xfc] sm:$0xf]
    %v7071 = vld [vmem:[%s5 + $0x100] sm:$0xf]
    %v7072 = vld [vmem:[%s5 + $0x104] sm:$0xf]
    %v7073 = vld [vmem:[%s5 + $0x108] sm:$0xf]
    %v7074 = vld [vmem:[%s5 + $0x10c] sm:$0xf]
    %v7075 = vld [vmem:[%s5 + $0x110] sm:$0xf]
    %v7076 = vld [vmem:[%s5 + $0x114] sm:$0xf]
    %v7077 = vld [vmem:[%s5 + $0x118] sm:$0xf]
    %v7078 = vld [vmem:[%s5 + $0x11c] sm:$0xf]
    %v7079 = vld [vmem:[%s6] sm:$0x1]
    %v7081 = vperm.slane %v7079, 0
    %7083 = vst [vmem:[#allocation1] ss:$4 sm:$0xff] %v6965
    %s7084 = scalar_lea.vmem [#allocation1], 1
    %7085 = vst [vmem:[%s7084] ss:$4 sm:$0xff] %v6971
    %s7086 = scalar_lea.vmem [#allocation1], 2
    %7087 = vst [vmem:[%s7086] ss:$4 sm:$0xff] %v6977
    %s7088 = scalar_lea.vmem [#allocation1], 3
    %7089 = vst [vmem:[%s7088] ss:$4 sm:$0xff] %v6983
    %s7090 = scalar_lea.vmem [#allocation1], 32
    %7091 = vst [vmem:[%s7090] ss:$4 sm:$0xff] %v6787
    %s7092 = scalar_lea.vmem [#allocation1], 33
    %7093 = vst [vmem:[%s7092] ss:$4 sm:$0xff] %v6788
    %s7095 = scalar_lea.vmem [#allocation1], 34
    %7096 = vst [vmem:[%s7095] ss:$4 sm:$0xff] %v6824
    %s7097 = scalar_lea.vmem [#allocation1], 35
    %7098 = vst [vmem:[%s7097] ss:$4 sm:$0xff] %v6785
    %v7099 = vld.sshfl [vmem:[#allocation1] sm:$0xff pattern:$0x73625140]
    %v7100 = vld.sshfl [vmem:[#allocation1 + $0x8] sm:$0xff pattern:$0x73625140]
    %v7101 = vld.sshfl [vmem:[#allocation1 + $0x10] sm:$0xff pattern:$0x73625140]
    %v7102 = vld.sshfl [vmem:[#allocation1 + $0x18] sm:$0xff pattern:$0x73625140]
    %v7103 = vld.sshfl [vmem:[#allocation1 + $0x20] sm:$0xff pattern:$0x73625140]
    %7104 = vst [vmem:[#allocation1] ss:$4 sm:$0xff] %v6989
    %7105 = vst [vmem:[%s7084] ss:$4 sm:$0xff] %v6995
    %7106 = vst [vmem:[%s7086] ss:$4 sm:$0xff] %v7001
    %7107 = vst [vmem:[%s7088] ss:$4 sm:$0xff] %v7006
    %7108 = vst [vmem:[%s7090] ss:$4 sm:$0xff] %v6790
    %7109 = vst [vmem:[%s7092] ss:$4 sm:$0xff] %v6791
    %7111 = vst [vmem:[%s7095] ss:$4 sm:$0xff] %v6825
    %7112 = vst [vmem:[%s7097] ss:$4 sm:$0xff] %v6785
    %v7113 = vld.sshfl [vmem:[#allocation1] sm:$0xff pattern:$0x73625140]
    %v7114 = vld.sshfl [vmem:[#allocation1 + $0x8] sm:$0xff pattern:$0x73625140]
    %v7115 = vld.sshfl [vmem:[#allocation1 + $0x10] sm:$0xff pattern:$0x73625140]
    %v7116 = vld.sshfl [vmem:[#allocation1 + $0x18] sm:$0xff pattern:$0x73625140]
    %v7117 = vld.sshfl [vmem:[#allocation1 + $0x20] sm:$0xff pattern:$0x73625140]
    %v7198 = vunpack.c.l.b16 %v7007
    %v7199 = vunpack.c.l.b16 %v7008
    %v7200 = vunpack.c.l.b16 %v7009
    %v7201 = vunpack.c.l.b16 %v7010
    %v7202 = vunpack.c.l.b16 %v7011
    %v7203 = vunpack.c.l.b16 %v7012
    %v7204 = vunpack.c.l.b16 %v7013
    %v7205 = vunpack.c.l.b16 %v7014
    %v7206 = vunpack.c.l.b16 %v7015
    %v7207 = vunpack.c.l.b16 %v7016
    %v7208 = vunpack.c.l.b16 %v7017
    %v7209 = vunpack.c.l.b16 %v7018
    %v7210 = vunpack.c.l.b16 %v7019
    %v7211 = vunpack.c.l.b16 %v7020
    %v7212 = vunpack.c.l.b16 %v7021
    %v7213 = vunpack.c.l.b16 %v7022
    %v7214 = vunpack.c.l.b16 %v7023
    %v7215 = vunpack.c.l.b16 %v7024
    %v7216 = vunpack.c.l.b16 %v7025
    %v7217 = vunpack.c.l.b16 %v7026
    %v7218 = vunpack.c.l.b16 %v7027
    %v7219 = vunpack.c.l.b16 %v7028
    %v7220 = vunpack.c.l.b16 %v7029
    %v7221 = vunpack.c.l.b16 %v7030
    %v7222 = vunpack.c.l.b16 %v7031
    %v7223 = vunpack.c.l.b16 %v7032
    %v7224 = vunpack.c.l.b16 %v7033
    %v7225 = vunpack.c.l.b16 %v7034
    %v7226 = vunpack.c.l.b16 %v7035
    %v7227 = vunpack.c.l.b16 %v7036
    %v7228 = vunpack.c.l.b16 %v7037
    %v7229 = vunpack.c.l.b16 %v7038
    %v7230 = vunpack.c.l.b16 %v7039
    %v7231 = vunpack.c.l.b16 %v7040
    %v7232 = vunpack.c.l.b16 %v7041
    %v7233 = vunpack.c.l.b16 %v7042
    %v7234 = vunpack.c.l.b16 %v7043
    %v7235 = vunpack.c.l.b16 %v7044
    %v7236 = vunpack.c.l.b16 %v7045
    %v7237 = vunpack.c.l.b16 %v7046
    %v7238 = vunpack.c.l.b16 %v7047
    %v7239 = vunpack.c.l.b16 %v7048
    %v7240 = vunpack.c.l.b16 %v7049
    %v7241 = vunpack.c.l.b16 %v7050
    %v7242 = vunpack.c.l.b16 %v7051
    %v7243 = vunpack.c.l.b16 %v7052
    %v7244 = vunpack.c.l.b16 %v7053
    %v7245 = vunpack.c.l.b16 %v7054
    %v7246 = vunpack.c.l.b16 %v7055
    %v7247 = vunpack.c.l.b16 %v7056
    %v7248 = vunpack.c.l.b16 %v7057
    %v7249 = vunpack.c.l.b16 %v7058
    %v7250 = vunpack.c.l.b16 %v7059
    %v7251 = vunpack.c.l.b16 %v7060
    %v7252 = vunpack.c.l.b16 %v7061
    %v7253 = vunpack.c.l.b16 %v7062
    %v7254 = vunpack.c.l.b16 %v7063
    %v7255 = vunpack.c.l.b16 %v7064
    %v7256 = vunpack.c.l.b16 %v7065
    %v7257 = vunpack.c.l.b16 %v7066
    %v7258 = vunpack.c.l.b16 %v7067
    %v7259 = vunpack.c.l.b16 %v7068
    %v7260 = vunpack.c.l.b16 %v7069
    %v7261 = vunpack.c.l.b16 %v7070
    %v7262 = vunpack.c.l.b16 %v7071
    %v7263 = vunpack.c.l.b16 %v7072
    %v7264 = vunpack.c.l.b16 %v7073
    %v7265 = vunpack.c.l.b16 %v7074
    %v7266 = vunpack.c.l.b16 %v7075
    %v7267 = vunpack.c.l.b16 %v7076
    %v7268 = vunpack.c.l.b16 %v7077
    %v7269 = vunpack.c.l.b16 %v7078
    %v7270 = vpack.c.b16 %v7199, %v7198
    %v7271 = vpack.c.b16 %v7201, %v7200
    %v7272 = vpack.c.b16 %v7203, %v7202
    %v7273 = vpack.c.b16 %v7205, %v7204
    %v7274 = vpack.c.b16 %v7207, %v7206
    %v7275 = vpack.c.b16 %v7209, %v7208
    %v7276 = vpack.c.b16 %v7211, %v7210
    %v7277 = vpack.c.b16 %v7213, %v7212
    %v7278 = vpack.c.b16 %v7215, %v7214
    %v7279 = vpack.c.b16 %v7217, %v7216
    %v7280 = vpack.c.b16 %v7219, %v7218
    %v7281 = vpack.c.b16 %v7221, %v7220
    %v7282 = vpack.c.b16 %v7223, %v7222
    %v7283 = vpack.c.b16 %v7225, %v7224
    %v7284 = vpack.c.b16 %v7227, %v7226
    %v7285 = vpack.c.b16 %v7229, %v7228
    %v7286 = vpack.c.b16 %v7231, %v7230
    %v7287 = vpack.c.b16 %v7233, %v7232
    %v7288 = vpack.c.b16 %v7235, %v7234
    %v7289 = vpack.c.b16 %v7237, %v7236
    %v7290 = vpack.c.b16 %v7239, %v7238
    %v7291 = vpack.c.b16 %v7241, %v7240
    %v7292 = vpack.c.b16 %v7243, %v7242
    %v7293 = vpack.c.b16 %v7245, %v7244
    %v7294 = vpack.c.b16 %v7247, %v7246
    %v7295 = vpack.c.b16 %v7249, %v7248
    %v7296 = vpack.c.b16 %v7251, %v7250
    %v7297 = vpack.c.b16 %v7253, %v7252
    %v7298 = vpack.c.b16 %v7255, %v7254
    %v7299 = vpack.c.b16 %v7257, %v7256
    %v7300 = vpack.c.b16 %v7259, %v7258
    %v7301 = vpack.c.b16 %v7261, %v7260
    %v7302 = vpack.c.b16 %v7263, %v7262
    %v7303 = vpack.c.b16 %v7265, %v7264
    %v7304 = vpack.c.b16 %v7267, %v7266
    %v7305 = vpack.c.b16 %v7269, %v7268
    %v7342 = vsel %vm5387, %v7103, 0
    %v7344 = vsel %vm5387, %v7117, 0
    %7346 = vmatpush.bf16.msra.mxu0 %v7277
    %7347 = vmatpush.bf16.msra.mxu0 %v7276
    %7348 = vmatpush.bf16.msra.mxu0 %v7275
    %7349 = vmatpush.bf16.msra.mxu0 %v7274
    %7350 = vmatpush.bf16.msra.mxu0 %v7273
    %7351 = vmatpush.bf16.msra.mxu0 %v7272
    %7352 = vmatpush.bf16.msra.mxu0 %v7271
    %7353 = vmatpush.bf16.msra.mxu0 %v7270
    %7354 = vmatmul.bf16.gmra.mxu0 %v7099
    %v7355 = vpop.f32.mrf.mxu0
    %v7356 = vadd.f32 %v7081, %v7355
    %v7357 = vpop.f32.mrf.mxu0
    %v7358 = vadd.f32 %v7081, %v7357
    %7359 = vmatmul.bf16.gmra.mxu0 %v7113
    %v7360 = vpop.f32.mrf.mxu0
    %v7361 = vadd.f32 %v7081, %v7360
    %v7362 = vpop.f32.mrf.mxu0
    %v7363 = vadd.f32 %v7081, %v7362
    %7364 = vdwg.mxu0
    %7365 = vmatpush.bf16.msra.mxu0 %v7285
    %7366 = vmatpush.bf16.msra.mxu0 %v7284
    %7367 = vmatpush.bf16.msra.mxu0 %v7283
    %7368 = vmatpush.bf16.msra.mxu0 %v7282
    %7369 = vmatpush.bf16.msra.mxu0 %v7281
    %7370 = vmatpush.bf16.msra.mxu0 %v7280
    %7371 = vmatpush.bf16.msra.mxu0 %v7279
    %7372 = vmatpush.bf16.msra.mxu0 %v7278
    %7373 = vmatmul.bf16.gmra.mxu0 %v7100
    %v7374 = vpop.f32.mrf.mxu0
    %v7375 = vadd.f32 %v7356, %v7374
    %v7376 = vpop.f32.mrf.mxu0
    %v7377 = vadd.f32 %v7358, %v7376
    %7378 = vmatmul.bf16.gmra.mxu0 %v7114
    %v7379 = vpop.f32.mrf.mxu0
    %v7380 = vadd.f32 %v7361, %v7379
    %v7381 = vpop.f32.mrf.mxu0
    %v7382 = vadd.f32 %v7363, %v7381
    %7383 = vdwg.mxu0
    %7384 = vmatpush.bf16.msra.mxu0 %v7293
    %7385 = vmatpush.bf16.msra.mxu0 %v7292
    %7386 = vmatpush.bf16.msra.mxu0 %v7291
    %7387 = vmatpush.bf16.msra.mxu0 %v7290
    %7388 = vmatpush.bf16.msra.mxu0 %v7289
    %7389 = vmatpush.bf16.msra.mxu0 %v7288
    %7390 = vmatpush.bf16.msra.mxu0 %v7287
    %7391 = vmatpush.bf16.msra.mxu0 %v7286
    %7392 = vmatmul.bf16.gmra.mxu0 %v7101
    %v7393 = vpop.f32.mrf.mxu0
    %v7394 = vadd.f32 %v7375, %v7393
    %v7395 = vpop.f32.mrf.mxu0
    %v7396 = vadd.f32 %v7377, %v7395
    %7397 = vmatmul.bf16.gmra.mxu0 %v7115
    %v7398 = vpop.f32.mrf.mxu0
    %v7399 = vadd.f32 %v7380, %v7398
    %v7400 = vpop.f32.mrf.mxu0
    %v7401 = vadd.f32 %v7382, %v7400
    %7402 = vdwg.mxu0
    %7403 = vmatpush.bf16.msra.mxu0 %v7301
    %7404 = vmatpush.bf16.msra.mxu0 %v7300
    %7405 = vmatpush.bf16.msra.mxu0 %v7299
    %7406 = vmatpush.bf16.msra.mxu0 %v7298
    %7407 = vmatpush.bf16.msra.mxu0 %v7297
    %7408 = vmatpush.bf16.msra.mxu0 %v7296
    %7409 = vmatpush.bf16.msra.mxu0 %v7295
    %7410 = vmatpush.bf16.msra.mxu0 %v7294
    %7411 = vmatmul.bf16.gmra.mxu0 %v7102
    %v7412 = vpop.f32.mrf.mxu0
    %v7413 = vadd.f32 %v7394, %v7412
    %v7414 = vpop.f32.mrf.mxu0
    %v7415 = vadd.f32 %v7396, %v7414
    %7416 = vmatmul.bf16.gmra.mxu0 %v7116
    %v7417 = vpop.f32.mrf.mxu0
    %v7418 = vadd.f32 %v7399, %v7417
    %v7419 = vpop.f32.mrf.mxu0
    %v7420 = vadd.f32 %v7401, %v7419
    %7421 = vdwg.mxu0
    %7422 = vmatpush.bf16.msra.mxu0 0
    %7423 = vmatpush.bf16.msra.mxu0 0
    %7424 = vmatpush.bf16.msra.mxu0 0
    %7425 = vmatpush.bf16.msra.mxu0 0
    %7426 = vmatpush.bf16.msra.mxu0 %v7305
    %7427 = vmatpush.bf16.msra.mxu0 %v7304
    %7428 = vmatpush.bf16.msra.mxu0 %v7303
    %7429 = vmatpush.bf16.msra.mxu0 %v7302
    %7430 = vmatmul.bf16.gmra.mxu0 %v7342
    %v7431 = vpop.f32.mrf.mxu0
    %v7432 = vadd.f32 %v7413, %v7431
    %v7433 = vpop.f32.mrf.mxu0
    %v7434 = vadd.f32 %v7415, %v7433
    %7435 = vmatmul.bf16.gmra.mxu0 %v7344
    %v7436 = vpop.f32.mrf.mxu0
    %v7437 = vadd.f32 %v7418, %v7436
    %v7438 = vpop.f32.mrf.mxu0
    %v7439 = vadd.f32 %v7420, %v7438
    %7440 = vdwg.mxu0
    %v7441 = vmax.f32 %v7432, 0.0
    %v7442 = vmax.f32 %v7434, 0.0
    %v7443 = vmax.f32 %v7437, 0.0
    %v7444 = vmax.f32 %v7439, 0.0
    %v7449 = vrot.slane %v7441, 2
    %v7450 = vrot.slane %v7441, 4
    %v7451 = vrot.slane %v7441, 6
    %v7452 = vrot.slane %v7442, 2
    %v7453 = vrot.slane %v7442, 4
    %v7454 = vrot.slane %v7442, 6
    %v7455 = vrot.slane %v7443, 2
    %v7456 = vrot.slane %v7443, 4
    %v7457 = vrot.slane %v7443, 6
    %v7458 = vrot.slane %v7444, 2
    %v7459 = vrot.slane %v7444, 4
    %v7460 = vrot.slane %v7444, 6
    %v7473 = vrot.slane %v7441, 7
    %v7474 = vrot.slane %v7473, 2
    %v7475 = vrot.slane %v7449, 7
    %v7476 = vrot.slane %v7475, 2
    %v7477 = vrot.slane %v7450, 7
    %v7478 = vrot.slane %v7477, 2
    %v7479 = vrot.slane %v7451, 7
    %v7480 = vrot.slane %v7479, 2
    %v7481 = vrot.slane %v7442, 7
    %v7482 = vrot.slane %v7481, 2
    %v7483 = vrot.slane %v7452, 7
    %v7484 = vrot.slane %v7483, 2
    %v7485 = vrot.slane %v7453, 7
    %v7486 = vrot.slane %v7485, 2
    %v7487 = vrot.slane %v7454, 7
    %v7488 = vrot.slane %v7487, 2
    %v7489 = vrot.slane %v7443, 7
    %v7490 = vrot.slane %v7489, 2
    %v7491 = vrot.slane %v7455, 7
    %v7492 = vrot.slane %v7491, 2
    %v7493 = vrot.slane %v7456, 7
    %v7494 = vrot.slane %v7493, 2
    %v7495 = vrot.slane %v7457, 7
    %v7496 = vrot.slane %v7495, 2
    %v7497 = vrot.slane %v7444, 7
    %v7498 = vrot.slane %v7497, 2
    %v7499 = vrot.slane %v7458, 7
    %v7500 = vrot.slane %v7499, 2
    %v7501 = vrot.slane %v7459, 7
    %v7502 = vrot.slane %v7501, 2
    %v7503 = vrot.slane %v7460, 7
    %v7504 = vrot.slane %v7503, 2
    %v7521 = vmax.f32 %v7441, %v7474
    %v7522 = vmax.f32 %v7449, %v7476
    %v7523 = vmax.f32 %v7450, %v7478
    %v7524 = vmax.f32 %v7451, %v7480
    %v7525 = vmax.f32 %v7442, %v7482
    %v7526 = vmax.f32 %v7452, %v7484
    %v7527 = vmax.f32 %v7453, %v7486
    %v7528 = vmax.f32 %v7454, %v7488
    %v7529 = vmax.f32 %v7443, %v7490
    %v7530 = vmax.f32 %v7455, %v7492
    %v7531 = vmax.f32 %v7456, %v7494
    %v7532 = vmax.f32 %v7457, %v7496
    %v7533 = vmax.f32 %v7444, %v7498
    %v7534 = vmax.f32 %v7458, %v7500
    %v7535 = vmax.f32 %v7459, %v7502
    %v7536 = vmax.f32 %v7460, %v7504
    %v7537 = vmax.f32 %v7521, %v7523
    %v7538 = vmax.f32 %v7522, %v7524
    %v7539 = vmax.f32 %v7525, %v7527
    %v7540 = vmax.f32 %v7526, %v7528
    %v7541 = vmax.f32 %v7529, %v7531
    %v7542 = vmax.f32 %v7530, %v7532
    %v7543 = vmax.f32 %v7533, %v7535
    %v7544 = vmax.f32 %v7534, %v7536
    %v7545 = vpack.c.bf16 %v7537, %v7537
    %v7546 = vpack.c.bf16 %v7538, %v7538
    %v7547 = vpack.c.bf16 %v7539, %v7539
    %v7548 = vpack.c.bf16 %v7540, %v7540
    %v7549 = vpack.c.bf16 %v7541, %v7541
    %v7550 = vpack.c.bf16 %v7542, %v7542
    %v7551 = vpack.c.bf16 %v7543, %v7543
    %v7552 = vpack.c.bf16 %v7544, %v7544
    %v7561 = vunpack.c.l.b16 %v7545
    %v7562 = vunpack.c.l.b16 %v7546
    %v7563 = vunpack.c.l.b16 %v7547
    %v7564 = vunpack.c.l.b16 %v7548
    %v7565 = vunpack.c.l.b16 %v7549
    %v7566 = vunpack.c.l.b16 %v7550
    %v7567 = vunpack.c.l.b16 %v7551
    %v7568 = vunpack.c.l.b16 %v7552
    %v7569 = vpack.c.b16 %v7561, %v7561
    %v7570 = vpack.c.b16 %v7562, %v7562
    %v7571 = vpack.c.b16 %v7563, %v7563
    %v7572 = vpack.c.b16 %v7564, %v7564
    %v7573 = vpack.c.b16 %v7565, %v7565
    %v7574 = vpack.c.b16 %v7566, %v7566
    %v7575 = vpack.c.b16 %v7567, %v7567
    %v7576 = vpack.c.b16 %v7568, %v7568
    %v7577 = vunpack.c.l.b16 %v7569
    %v7578 = vunpack.c.l.b16 %v7570
    %v7579 = vunpack.c.l.b16 %v7571
    %v7580 = vunpack.c.l.b16 %v7572
    %v7581 = vunpack.c.l.b16 %v7573
    %v7582 = vunpack.c.l.b16 %v7574
    %v7583 = vunpack.c.l.b16 %v7575
    %v7584 = vunpack.c.l.b16 %v7576
    %v7585 = vrot.slane %v7578, 7
    %v7586 = vsel %vm4597, %v7585, %v7577
    %v7587 = vrot.slane %v7580, 7
    %v7588 = vsel %vm4597, %v7587, %v7579
    %v7589 = vrot.slane %v7582, 7
    %v7590 = vsel %vm4597, %v7589, %v7581
    %v7591 = vrot.slane %v7584, 7
    %v7592 = vsel %vm4597, %v7591, %v7583
    %v7593 = vpack.c.b16 %v7586, %v7586
    %v7594 = vpack.c.b16 %v7588, %v7588
    %v7595 = vpack.c.b16 %v7590, %v7590
    %v7596 = vpack.c.b16 %v7592, %v7592
    %v7598 = vshrl.u32 %v7593, 16
    %v7600 = vrot.slane %v7598, 7
    %v7601 = vshll.u32 %v7593, 16
    %v7603 = vor.u32 %v7600, %v7601
    %v7605 = vshrl.u32 %v7594, 16
    %v7607 = vrot.slane %v7605, 7
    %v7608 = vshll.u32 %v7594, 16
    %v7610 = vor.u32 %v7607, %v7608
    %v7612 = vshrl.u32 %v7595, 16
    %v7614 = vrot.slane %v7612, 7
    %v7615 = vshll.u32 %v7595, 16
    %v7617 = vor.u32 %v7614, %v7615
    %v7619 = vshrl.u32 %v7596, 16
    %v7621 = vrot.slane %v7619, 7
    %v7622 = vshll.u32 %v7596, 16
    %v7624 = vor.u32 %v7621, %v7622
    %v7629 = vsel %vm4981, 0, %v7603
    %v7630 = vsel %vm4981, 0, %v7610
    %v7631 = vsel %vm4981, 0, %v7617
    %v7632 = vsel %vm4981, 0, %v7624
    %vm7633 = vcmask 1041408
    %vm7634 = vsmask.f32 1280
    %vm7635 = vmand %vm7633, %vm7634
    %v7636 = vsel %vm7635, %v4982, 0
    %v7637 = vsel %vm7635, %v7629, 0
    %v7638 = vsel %vm7635, %v7630, 0
    %v7639 = vsel %vm7635, %v7631, 0
    %v7640 = vsel %vm7635, %v7632, 0
    %v7642 = vshrl.u32 %v7636, 16
    %v7644 = vshll.u32 %v7636, 16
    %v7646 = vrot.slane %v7644, 1
    %v7647 = vor.u32 %v7642, %v7646
    %v7649 = vshrl.u32 %v7637, 16
    %v7651 = vshll.u32 %v7637, 16
    %v7653 = vrot.slane %v7651, 1
    %v7654 = vor.u32 %v7649, %v7653
    %v7656 = vshrl.u32 %v7639, 16
    %v7658 = vshll.u32 %v7639, 16
    %v7660 = vrot.slane %v7658, 1
    %v7661 = vor.u32 %v7656, %v7660
    %v7665 = vrot.slane %v7636, 1
    %v7666 = vrot.slane %v7637, 1
    %v7667 = vrot.slane %v7639, 1
    %v7669 = vshrl.u32 %v7638, 16
    %v7671 = vshll.u32 %v7638, 16
    %v7673 = vrot.slane %v7671, 1
    %v7674 = vor.u32 %v7669, %v7673
    %v7676 = vshrl.u32 %v7640, 16
    %v7678 = vshll.u32 %v7640, 16
    %v7680 = vrot.slane %v7678, 1
    %v7681 = vor.u32 %v7676, %v7680
    %v7684 = vrot.slane %v7638, 1
    %v7685 = vrot.slane %v7640, 1
    %v7686 = vrot.slane %v7647, 7
    %v7687 = vrot.slane %v7665, 6
    %v7688 = vrot.slane %v7637, 5
    %v7689 = vrot.slane %v7654, 4
    %v7690 = vrot.slane %v7666, 3
    %v7691 = vrot.slane %v7638, 2
    %v7692 = vrot.slane %v7674, 1
    %v7693 = vrot.slane %v7654, 7
    %v7694 = vrot.slane %v7666, 6
    %v7695 = vrot.slane %v7638, 5
    %v7696 = vrot.slane %v7674, 4
    %v7697 = vrot.slane %v7684, 3
    %v7698 = vrot.slane %v7636, 2
    %v7699 = vrot.slane %v7647, 1
    %v7700 = vrot.slane %v7639, 5
    %v7701 = vrot.slane %v7661, 4
    %v7702 = vrot.slane %v7667, 3
    %v7703 = vrot.slane %v7640, 2
    %v7704 = vrot.slane %v7681, 1
    %v7705 = vrot.slane %v7661, 7
    %v7706 = vrot.slane %v7667, 6
    %v7707 = vrot.slane %v7640, 5
    %v7708 = vrot.slane %v7681, 4
    %v7709 = vrot.slane %v7685, 3
    %vm7710 = vcmask 1040384
    %v7712 = vsel %vm7710, %v7636, %v7686
    %v7715 = vsel %vm4600, %v7687, %v7688
    %v7716 = vsel %vm6957, %v7712, %v7715
    %v7719 = vsel %vm4606, %v7689, %v7690
    %v7722 = vsel %vm4612, %v7691, %v7692
    %v7723 = vsel %vm6960, %v7719, %v7722
    %v7724 = vsel %vm6964, %v7716, %v7723
    %v7726 = vsel %vm7710, %v7637, %v7693
    %v7729 = vsel %vm4600, %v7694, %v7695
    %v7730 = vsel %vm6957, %v7726, %v7729
    %v7733 = vsel %vm4606, %v7696, %v7697
    %v7736 = vsel %vm4612, %v7698, %v7699
    %v7737 = vsel %vm6960, %v7733, %v7736
    %v7738 = vsel %vm6964, %v7730, %v7737
    %v7740 = vsel %vm4600, %v7687, %v7700
    %v7741 = vsel %vm6957, %v7712, %v7740
    %v7744 = vsel %vm4606, %v7701, %v7702
    %v7747 = vsel %vm4612, %v7703, %v7704
    %v7748 = vsel %vm6960, %v7744, %v7747
    %v7749 = vsel %vm6964, %v7741, %v7748
    %v7751 = vsel %vm7710, %v7639, %v7705
    %v7754 = vsel %vm4600, %v7706, %v7707
    %v7755 = vsel %vm6957, %v7751, %v7754
    %v7758 = vsel %vm4606, %v7708, %v7709
    %v7759 = vsel %vm6960, %v7758, %v7736
    %v7760 = vsel %vm6964, %v7755, %v7759
    %v7761 = vld [vmem:[#allocation2] sm:$0xff]
    %v7762 = vld [vmem:[#allocation2 + $0x8] sm:$0xff]
    %v7763 = vld [vmem:[#allocation2 + $0x10] sm:$0xff]
    %v7764 = vld [vmem:[#allocation2 + $0x18] sm:$0xff]
    %v7765 = vld [vmem:[#allocation2 + $0x20] sm:$0xff]
    %v7766 = vld [vmem:[#allocation2 + $0x28] sm:$0xff]
    %v7767 = vld [vmem:[#allocation2 + $0x30] sm:$0xff]
    %v7768 = vld [vmem:[#allocation2 + $0x38] sm:$0xff]
    %v7769 = vld [vmem:[#allocation2 + $0x40] sm:$0xff]
    %v7770 = vld [vmem:[#allocation2 + $0x48] sm:$0xff]
    %v7771 = vld [vmem:[#allocation2 + $0x50] sm:$0xff]
    %v7772 = vld [vmem:[#allocation2 + $0x58] sm:$0xff]
    %v7773 = vld [vmem:[#allocation2 + $0x60] sm:$0xff]
    %v7774 = vld [vmem:[#allocation2 + $0x68] sm:$0xff]
    %v7775 = vld [vmem:[#allocation2 + $0x70] sm:$0xff]
    %v7776 = vld [vmem:[#allocation2 + $0x78] sm:$0xff]
    %v7777 = vld [vmem:[#allocation2 + $0x80] sm:$0xff]
    %v7778 = vld [vmem:[#allocation2 + $0x88] sm:$0xff]
    %v7779 = vld [vmem:[#allocation2 + $0x90] sm:$0xff]
    %v7780 = vld [vmem:[#allocation2 + $0x98] sm:$0xff]
    %v7781 = vld [vmem:[#allocation2 + $0xa0] sm:$0xff]
    %v7782 = vld [vmem:[#allocation2 + $0xa8] sm:$0xff]
    %v7783 = vld [vmem:[#allocation2 + $0xb0] sm:$0xff]
    %v7784 = vld [vmem:[#allocation2 + $0xb8] sm:$0xff]
    %v7785 = vld [vmem:[#allocation2 + $0xc0] sm:$0xff]
    %v7786 = vld [vmem:[#allocation2 + $0xc8] sm:$0xff]
    %v7787 = vld [vmem:[#allocation2 + $0xd0] sm:$0xff]
    %v7788 = vld [vmem:[#allocation2 + $0xd8] sm:$0xff]
    %v7789 = vld [vmem:[#allocation2 + $0xe0] sm:$0xff]
    %v7790 = vld [vmem:[#allocation2 + $0xe8] sm:$0xff]
    %v7791 = vld [vmem:[#allocation2 + $0xf0] sm:$0xff]
    %v7792 = vld [vmem:[#allocation2 + $0xf8] sm:$0xff]
    %v7793 = vld [vmem:[#allocation2 + $0x100] sm:$0xff]
    %v7794 = vld [vmem:[#allocation2 + $0x108] sm:$0xff]
    %v7795 = vld [vmem:[#allocation2 + $0x110] sm:$0xff]
    %v7796 = vld [vmem:[#allocation2 + $0x118] sm:$0xff]
    %v7797 = vld [vmem:[#allocation2 + $0x120] sm:$0xff]
    %v7798 = vld [vmem:[#allocation2 + $0x128] sm:$0xff]
    %v7799 = vld [vmem:[#allocation2 + $0x130] sm:$0xff]
    %v7800 = vld [vmem:[#allocation2 + $0x138] sm:$0xff]
    %v7801 = vld [vmem:[#allocation2 + $0x140] sm:$0xff]
    %v7802 = vld [vmem:[#allocation2 + $0x148] sm:$0xff]
    %v7803 = vld [vmem:[#allocation2 + $0x150] sm:$0xff]
    %v7804 = vld [vmem:[#allocation2 + $0x158] sm:$0xff]
    %v7805 = vld [vmem:[#allocation2 + $0x160] sm:$0xff]
    %v7806 = vld [vmem:[#allocation2 + $0x168] sm:$0xff]
    %v7807 = vld [vmem:[#allocation2 + $0x170] sm:$0xff]
    %v7808 = vld [vmem:[#allocation2 + $0x178] sm:$0xff]
    %v7809 = vld [vmem:[#allocation2 + $0x180] sm:$0xff]
    %v7810 = vld [vmem:[#allocation2 + $0x188] sm:$0xff]
    %v7811 = vld [vmem:[#allocation2 + $0x190] sm:$0xff]
    %v7812 = vld [vmem:[#allocation2 + $0x198] sm:$0xff]
    %v7813 = vld [vmem:[#allocation2 + $0x1a0] sm:$0xff]
    %v7814 = vld [vmem:[#allocation2 + $0x1a8] sm:$0xff]
    %v7815 = vld [vmem:[#allocation2 + $0x1b0] sm:$0xff]
    %v7816 = vld [vmem:[#allocation2 + $0x1b8] sm:$0xff]
    %v7817 = vld [vmem:[#allocation2 + $0x1c0] sm:$0xff]
    %v7818 = vld [vmem:[#allocation2 + $0x1c8] sm:$0xff]
    %v7819 = vld [vmem:[#allocation2 + $0x1d0] sm:$0xff]
    %v7820 = vld [vmem:[#allocation2 + $0x1d8] sm:$0xff]
    %v7821 = vld [vmem:[#allocation2 + $0x1e0] sm:$0xff]
    %v7822 = vld [vmem:[#allocation2 + $0x1e8] sm:$0xff]
    %v7823 = vld [vmem:[#allocation2 + $0x1f0] sm:$0xff]
    %v7824 = vld [vmem:[#allocation2 + $0x1f8] sm:$0xff]
    %v7825 = vld [vmem:[#allocation2 + $0x200] sm:$0xff]
    %v7826 = vld [vmem:[#allocation2 + $0x208] sm:$0xff]
    %v7827 = vld [vmem:[#allocation2 + $0x210] sm:$0xff]
    %v7828 = vld [vmem:[#allocation2 + $0x218] sm:$0xff]
    %v7829 = vld [vmem:[#allocation2 + $0x220] sm:$0xff]
    %v7830 = vld [vmem:[#allocation2 + $0x228] sm:$0xff]
    %v7831 = vld [vmem:[#allocation2 + $0x230] sm:$0xff]
    %v7832 = vld [vmem:[#allocation2 + $0x238] sm:$0xff]
    %v7833 = vld [vmem:[#allocation2 + $0x240] sm:$0xff]
    %v7834 = vld [vmem:[#allocation2 + $0x248] sm:$0xff]
    %v7835 = vld [vmem:[#allocation2 + $0x250] sm:$0xff]
    %v7836 = vld [vmem:[#allocation2 + $0x258] sm:$0xff]
    %v7837 = vld [vmem:[#allocation2 + $0x260] sm:$0xff]
    %v7838 = vld [vmem:[#allocation2 + $0x268] sm:$0xff]
    %v7839 = vld [vmem:[#allocation2 + $0x270] sm:$0xff]
    %v7840 = vld [vmem:[#allocation2 + $0x278] sm:$0xff]
    %v7841 = vld [vmem:[#allocation2 + $0x280] sm:$0xff]
    %v7842 = vld [vmem:[#allocation2 + $0x288] sm:$0xff]
    %v7843 = vld [vmem:[#allocation2 + $0x290] sm:$0xff]
    %v7844 = vld [vmem:[#allocation2 + $0x298] sm:$0xff]
    %v7845 = vld [vmem:[#allocation2 + $0x2a0] sm:$0xff]
    %v7846 = vld [vmem:[#allocation2 + $0x2a8] sm:$0xff]
    %v7847 = vld [vmem:[#allocation2 + $0x2b0] sm:$0xff]
    %v7848 = vld [vmem:[#allocation2 + $0x2b8] sm:$0xff]
    %v7849 = vld [vmem:[#allocation2 + $0x2c0] sm:$0xff]
    %v7850 = vld [vmem:[#allocation2 + $0x2c8] sm:$0xff]
    %v7851 = vld [vmem:[#allocation2 + $0x2d0] sm:$0xff]
    %v7852 = vld [vmem:[#allocation2 + $0x2d8] sm:$0xff]
    %v7853 = vld [vmem:[#allocation2 + $0x2e0] sm:$0xff]
    %v7854 = vld [vmem:[#allocation2 + $0x2e8] sm:$0xff]
    %v7855 = vld [vmem:[#allocation2 + $0x2f0] sm:$0xff]
    %v7856 = vld [vmem:[#allocation2 + $0x2f8] sm:$0xff]
    %v7857 = vld [vmem:[#allocation2 + $0x300] sm:$0xff]
    %v7858 = vld [vmem:[#allocation2 + $0x308] sm:$0xff]
    %v7859 = vld [vmem:[#allocation2 + $0x310] sm:$0xff]
    %v7860 = vld [vmem:[#allocation2 + $0x318] sm:$0xff]
    %v7861 = vld [vmem:[#allocation2 + $0x320] sm:$0xff]
    %v7862 = vld [vmem:[#allocation2 + $0x328] sm:$0xff]
    %v7863 = vld [vmem:[#allocation2 + $0x330] sm:$0xff]
    %v7864 = vld [vmem:[#allocation2 + $0x338] sm:$0xff]
    %v7865 = vld [vmem:[#allocation2 + $0x340] sm:$0xff]
    %v7866 = vld [vmem:[#allocation2 + $0x348] sm:$0xff]
    %v7867 = vld [vmem:[#allocation2 + $0x350] sm:$0xff]
    %v7868 = vld [vmem:[#allocation2 + $0x358] sm:$0xff]
    %v7869 = vld [vmem:[#allocation2 + $0x360] sm:$0xff]
    %v7870 = vld [vmem:[#allocation2 + $0x368] sm:$0xff]
    %v7871 = vld [vmem:[#allocation2 + $0x370] sm:$0xff]
    %v7872 = vld [vmem:[#allocation2 + $0x378] sm:$0xff]
    %v7873 = vld [vmem:[#allocation2 + $0x380] sm:$0xff]
    %v7874 = vld [vmem:[#allocation2 + $0x388] sm:$0xff]
    %v7875 = vld [vmem:[#allocation2 + $0x390] sm:$0xff]
    %v7876 = vld [vmem:[#allocation2 + $0x398] sm:$0xff]
    %v7877 = vld [vmem:[#allocation2 + $0x3a0] sm:$0xff]
    %v7878 = vld [vmem:[#allocation2 + $0x3a8] sm:$0xff]
    %v7879 = vld [vmem:[#allocation2 + $0x3b0] sm:$0xff]
    %v7880 = vld [vmem:[#allocation2 + $0x3b8] sm:$0xff]
    %v7881 = vld [vmem:[#allocation2 + $0x3c0] sm:$0xff]
    %v7882 = vld [vmem:[#allocation2 + $0x3c8] sm:$0xff]
    %v7883 = vld [vmem:[#allocation2 + $0x3d0] sm:$0xff]
    %v7884 = vld [vmem:[#allocation2 + $0x3d8] sm:$0xff]
    %v7885 = vld [vmem:[#allocation2 + $0x3e0] sm:$0xff]
    %v7886 = vld [vmem:[#allocation2 + $0x3e8] sm:$0xff]
    %v7887 = vld [vmem:[#allocation2 + $0x3f0] sm:$0xff]
    %v7888 = vld [vmem:[#allocation2 + $0x3f8] sm:$0xff]
    %v7889 = vld [vmem:[#allocation2 + $0x400] sm:$0xff]
    %v7890 = vld [vmem:[#allocation2 + $0x408] sm:$0xff]
    %v7891 = vld [vmem:[#allocation2 + $0x410] sm:$0xff]
    %v7892 = vld [vmem:[#allocation2 + $0x418] sm:$0xff]
    %v7893 = vld [vmem:[#allocation2 + $0x420] sm:$0xff]
    %v7894 = vld [vmem:[#allocation2 + $0x428] sm:$0xff]
    %v7895 = vld [vmem:[#allocation2 + $0x430] sm:$0xff]
    %v7896 = vld [vmem:[#allocation2 + $0x438] sm:$0xff]
    %v7897 = vld [vmem:[#allocation2 + $0x440] sm:$0xff]
    %v7898 = vld [vmem:[#allocation2 + $0x448] sm:$0xff]
    %v7899 = vld [vmem:[#allocation2 + $0x450] sm:$0xff]
    %v7900 = vld [vmem:[#allocation2 + $0x458] sm:$0xff]
    %v7901 = vld [vmem:[#allocation2 + $0x460] sm:$0xff]
    %v7902 = vld [vmem:[#allocation2 + $0x468] sm:$0xff]
    %v7903 = vld [vmem:[#allocation2 + $0x470] sm:$0xff]
    %v7904 = vld [vmem:[#allocation2 + $0x478] sm:$0xff]
    %v7905 = vld [vmem:[%s8] sm:$0x3]
    %v7907 = vperm.slane %v7905, 0
    %v7908 = vperm.slane %v7905, 1
    %7911 = vst [vmem:[#allocation1] ss:$9 sm:$0xff] %v7724
    %s7912 = scalar_lea.vmem [#allocation1], 1
    %7913 = vst [vmem:[%s7912] ss:$9 sm:$0xff] %v7738
    %s7914 = scalar_lea.vmem [#allocation1], 2
    %7915 = vst [vmem:[%s7914] ss:$9 sm:$0xff] %v7749
    %s7916 = scalar_lea.vmem [#allocation1], 3
    %7917 = vst [vmem:[%s7916] ss:$9 sm:$0xff] %v7760
    %v7918 = vld [vmem:[#allocation1] sm:$0xff]
    %v7919 = vld [vmem:[#allocation1 + $0x9] sm:$0xff]
    %v7920 = vld [vmem:[#allocation1 + $0x12] sm:$0xff]
    %v7921 = vld [vmem:[#allocation1 + $0x1b] sm:$0xff]
    %v7922 = vld [vmem:[#allocation1 + $0x24] sm:$0xff]
    %v7923 = vld [vmem:[#allocation1 + $0x2d] sm:$0xff]
    %v7924 = vld [vmem:[#allocation1 + $0x36] sm:$0xff]
    %v7925 = vld [vmem:[#allocation1 + $0x3f] sm:$0xff]
    %7927 = vst [vmem:[#allocation1] ss:$9 sm:$0xff] %v7684
    %7929 = vst [vmem:[%s7912] ss:$9 sm:$0xff] %v7665
    %7931 = vst [vmem:[%s7914] ss:$9 sm:$0xff] %v7685
    %7932 = vst [vmem:[%s7916] ss:$9 sm:$0xff] %v7665
    %v7933 = vld [vmem:[#allocation1] sm:$0xff]
    %v8087 = vunpack.c.l.b16 %v7761
    %v8088 = vunpack.c.h.b16 %v7761
    %v8089 = vunpack.c.l.b16 %v7762
    %v8090 = vunpack.c.h.b16 %v7762
    %v8091 = vunpack.c.l.b16 %v7763
    %v8092 = vunpack.c.h.b16 %v7763
    %v8093 = vunpack.c.l.b16 %v7764
    %v8094 = vunpack.c.h.b16 %v7764
    %v8095 = vunpack.c.l.b16 %v7765
    %v8096 = vunpack.c.h.b16 %v7765
    %v8097 = vunpack.c.l.b16 %v7766
    %v8098 = vunpack.c.h.b16 %v7766
    %v8099 = vunpack.c.l.b16 %v7767
    %v8100 = vunpack.c.h.b16 %v7767
    %v8101 = vunpack.c.l.b16 %v7768
    %v8102 = vunpack.c.h.b16 %v7768
    %v8103 = vunpack.c.l.b16 %v7769
    %v8104 = vunpack.c.h.b16 %v7769
    %v8105 = vunpack.c.l.b16 %v7770
    %v8106 = vunpack.c.h.b16 %v7770
    %v8107 = vunpack.c.l.b16 %v7771
    %v8108 = vunpack.c.h.b16 %v7771
    %v8109 = vunpack.c.l.b16 %v7772
    %v8110 = vunpack.c.h.b16 %v7772
    %v8111 = vunpack.c.l.b16 %v7773
    %v8112 = vunpack.c.h.b16 %v7773
    %v8113 = vunpack.c.l.b16 %v7774
    %v8114 = vunpack.c.h.b16 %v7774
    %v8115 = vunpack.c.l.b16 %v7775
    %v8116 = vunpack.c.h.b16 %v7775
    %v8117 = vunpack.c.l.b16 %v7776
    %v8118 = vunpack.c.h.b16 %v7776
    %v8119 = vunpack.c.l.b16 %v7777
    %v8120 = vunpack.c.h.b16 %v7777
    %v8121 = vunpack.c.l.b16 %v7778
    %v8122 = vunpack.c.h.b16 %v7778
    %v8123 = vunpack.c.l.b16 %v7779
    %v8124 = vunpack.c.h.b16 %v7779
    %v8125 = vunpack.c.l.b16 %v7780
    %v8126 = vunpack.c.h.b16 %v7780
    %v8127 = vunpack.c.l.b16 %v7781
    %v8128 = vunpack.c.h.b16 %v7781
    %v8129 = vunpack.c.l.b16 %v7782
    %v8130 = vunpack.c.h.b16 %v7782
    %v8131 = vunpack.c.l.b16 %v7783
    %v8132 = vunpack.c.h.b16 %v7783
    %v8133 = vunpack.c.l.b16 %v7784
    %v8134 = vunpack.c.h.b16 %v7784
    %v8135 = vunpack.c.l.b16 %v7785
    %v8136 = vunpack.c.h.b16 %v7785
    %v8137 = vunpack.c.l.b16 %v7786
    %v8138 = vunpack.c.h.b16 %v7786
    %v8139 = vunpack.c.l.b16 %v7787
    %v8140 = vunpack.c.h.b16 %v7787
    %v8141 = vunpack.c.l.b16 %v7788
    %v8142 = vunpack.c.h.b16 %v7788
    %v8143 = vunpack.c.l.b16 %v7789
    %v8144 = vunpack.c.h.b16 %v7789
    %v8145 = vunpack.c.l.b16 %v7790
    %v8146 = vunpack.c.h.b16 %v7790
    %v8147 = vunpack.c.l.b16 %v7791
    %v8148 = vunpack.c.h.b16 %v7791
    %v8149 = vunpack.c.l.b16 %v7792
    %v8150 = vunpack.c.h.b16 %v7792
    %v8151 = vunpack.c.l.b16 %v7793
    %v8152 = vunpack.c.h.b16 %v7793
    %v8153 = vunpack.c.l.b16 %v7794
    %v8154 = vunpack.c.h.b16 %v7794
    %v8155 = vunpack.c.l.b16 %v7795
    %v8156 = vunpack.c.h.b16 %v7795
    %v8157 = vunpack.c.l.b16 %v7796
    %v8158 = vunpack.c.h.b16 %v7796
    %v8159 = vunpack.c.l.b16 %v7797
    %v8160 = vunpack.c.h.b16 %v7797
    %v8161 = vunpack.c.l.b16 %v7798
    %v8162 = vunpack.c.h.b16 %v7798
    %v8163 = vunpack.c.l.b16 %v7799
    %v8164 = vunpack.c.h.b16 %v7799
    %v8165 = vunpack.c.l.b16 %v7800
    %v8166 = vunpack.c.h.b16 %v7800
    %v8167 = vunpack.c.l.b16 %v7801
    %v8168 = vunpack.c.h.b16 %v7801
    %v8169 = vunpack.c.l.b16 %v7802
    %v8170 = vunpack.c.h.b16 %v7802
    %v8171 = vunpack.c.l.b16 %v7803
    %v8172 = vunpack.c.h.b16 %v7803
    %v8173 = vunpack.c.l.b16 %v7804
    %v8174 = vunpack.c.h.b16 %v7804
    %v8175 = vunpack.c.l.b16 %v7805
    %v8176 = vunpack.c.h.b16 %v7805
    %v8177 = vunpack.c.l.b16 %v7806
    %v8178 = vunpack.c.h.b16 %v7806
    %v8179 = vunpack.c.l.b16 %v7807
    %v8180 = vunpack.c.h.b16 %v7807
    %v8181 = vunpack.c.l.b16 %v7808
    %v8182 = vunpack.c.h.b16 %v7808
    %v8183 = vunpack.c.l.b16 %v7809
    %v8184 = vunpack.c.h.b16 %v7809
    %v8185 = vunpack.c.l.b16 %v7810
    %v8186 = vunpack.c.h.b16 %v7810
    %v8187 = vunpack.c.l.b16 %v7811
    %v8188 = vunpack.c.h.b16 %v7811
    %v8189 = vunpack.c.l.b16 %v7812
    %v8190 = vunpack.c.h.b16 %v7812
    %v8191 = vunpack.c.l.b16 %v7813
    %v8192 = vunpack.c.h.b16 %v7813
    %v8193 = vunpack.c.l.b16 %v7814
    %v8194 = vunpack.c.h.b16 %v7814
    %v8195 = vunpack.c.l.b16 %v7815
    %v8196 = vunpack.c.h.b16 %v7815
    %v8197 = vunpack.c.l.b16 %v7816
    %v8198 = vunpack.c.h.b16 %v7816
    %v8199 = vunpack.c.l.b16 %v7817
    %v8200 = vunpack.c.h.b16 %v7817
    %v8201 = vunpack.c.l.b16 %v7818
    %v8202 = vunpack.c.h.b16 %v7818
    %v8203 = vunpack.c.l.b16 %v7819
    %v8204 = vunpack.c.h.b16 %v7819
    %v8205 = vunpack.c.l.b16 %v7820
    %v8206 = vunpack.c.h.b16 %v7820
    %v8207 = vunpack.c.l.b16 %v7821
    %v8208 = vunpack.c.h.b16 %v7821
    %v8209 = vunpack.c.l.b16 %v7822
    %v8210 = vunpack.c.h.b16 %v7822
    %v8211 = vunpack.c.l.b16 %v7823
    %v8212 = vunpack.c.h.b16 %v7823
    %v8213 = vunpack.c.l.b16 %v7824
    %v8214 = vunpack.c.h.b16 %v7824
    %v8215 = vunpack.c.l.b16 %v7825
    %v8216 = vunpack.c.h.b16 %v7825
    %v8217 = vunpack.c.l.b16 %v7826
    %v8218 = vunpack.c.h.b16 %v7826
    %v8219 = vunpack.c.l.b16 %v7827
    %v8220 = vunpack.c.h.b16 %v7827
    %v8221 = vunpack.c.l.b16 %v7828
    %v8222 = vunpack.c.h.b16 %v7828
    %v8223 = vunpack.c.l.b16 %v7829
    %v8224 = vunpack.c.h.b16 %v7829
    %v8225 = vunpack.c.l.b16 %v7830
    %v8226 = vunpack.c.h.b16 %v7830
    %v8227 = vunpack.c.l.b16 %v7831
    %v8228 = vunpack.c.h.b16 %v7831
    %v8229 = vunpack.c.l.b16 %v7832
    %v8230 = vunpack.c.h.b16 %v7832
    %v8231 = vunpack.c.l.b16 %v7833
    %v8232 = vunpack.c.h.b16 %v7833
    %v8233 = vunpack.c.l.b16 %v7834
    %v8234 = vunpack.c.h.b16 %v7834
    %v8235 = vunpack.c.l.b16 %v7835
    %v8236 = vunpack.c.h.b16 %v7835
    %v8237 = vunpack.c.l.b16 %v7836
    %v8238 = vunpack.c.h.b16 %v7836
    %v8239 = vunpack.c.l.b16 %v7837
    %v8240 = vunpack.c.h.b16 %v7837
    %v8241 = vunpack.c.l.b16 %v7838
    %v8242 = vunpack.c.h.b16 %v7838
    %v8243 = vunpack.c.l.b16 %v7839
    %v8244 = vunpack.c.h.b16 %v7839
    %v8245 = vunpack.c.l.b16 %v7840
    %v8246 = vunpack.c.h.b16 %v7840
    %v8247 = vunpack.c.l.b16 %v7841
    %v8248 = vunpack.c.h.b16 %v7841
    %v8249 = vunpack.c.l.b16 %v7842
    %v8250 = vunpack.c.h.b16 %v7842
    %v8251 = vunpack.c.l.b16 %v7843
    %v8252 = vunpack.c.h.b16 %v7843
    %v8253 = vunpack.c.l.b16 %v7844
    %v8254 = vunpack.c.h.b16 %v7844
    %v8255 = vunpack.c.l.b16 %v7845
    %v8256 = vunpack.c.h.b16 %v7845
    %v8257 = vunpack.c.l.b16 %v7846
    %v8258 = vunpack.c.h.b16 %v7846
    %v8259 = vunpack.c.l.b16 %v7847
    %v8260 = vunpack.c.h.b16 %v7847
    %v8261 = vunpack.c.l.b16 %v7848
    %v8262 = vunpack.c.h.b16 %v7848
    %v8263 = vunpack.c.l.b16 %v7849
    %v8264 = vunpack.c.h.b16 %v7849
    %v8265 = vunpack.c.l.b16 %v7850
    %v8266 = vunpack.c.h.b16 %v7850
    %v8267 = vunpack.c.l.b16 %v7851
    %v8268 = vunpack.c.h.b16 %v7851
    %v8269 = vunpack.c.l.b16 %v7852
    %v8270 = vunpack.c.h.b16 %v7852
    %v8271 = vunpack.c.l.b16 %v7853
    %v8272 = vunpack.c.h.b16 %v7853
    %v8273 = vunpack.c.l.b16 %v7854
    %v8274 = vunpack.c.h.b16 %v7854
    %v8275 = vunpack.c.l.b16 %v7855
    %v8276 = vunpack.c.h.b16 %v7855
    %v8277 = vunpack.c.l.b16 %v7856
    %v8278 = vunpack.c.h.b16 %v7856
    %v8279 = vunpack.c.l.b16 %v7857
    %v8280 = vunpack.c.h.b16 %v7857
    %v8281 = vunpack.c.l.b16 %v7858
    %v8282 = vunpack.c.h.b16 %v7858
    %v8283 = vunpack.c.l.b16 %v7859
    %v8284 = vunpack.c.h.b16 %v7859
    %v8285 = vunpack.c.l.b16 %v7860
    %v8286 = vunpack.c.h.b16 %v7860
    %v8287 = vunpack.c.l.b16 %v7861
    %v8288 = vunpack.c.h.b16 %v7861
    %v8289 = vunpack.c.l.b16 %v7862
    %v8290 = vunpack.c.h.b16 %v7862
    %v8291 = vunpack.c.l.b16 %v7863
    %v8292 = vunpack.c.h.b16 %v7863
    %v8293 = vunpack.c.l.b16 %v7864
    %v8294 = vunpack.c.h.b16 %v7864
    %v8295 = vunpack.c.l.b16 %v7865
    %v8296 = vunpack.c.h.b16 %v7865
    %v8297 = vunpack.c.l.b16 %v7866
    %v8298 = vunpack.c.h.b16 %v7866
    %v8299 = vunpack.c.l.b16 %v7867
    %v8300 = vunpack.c.h.b16 %v7867
    %v8301 = vunpack.c.l.b16 %v7868
    %v8302 = vunpack.c.h.b16 %v7868
    %v8303 = vunpack.c.l.b16 %v7869
    %v8304 = vunpack.c.h.b16 %v7869
    %v8305 = vunpack.c.l.b16 %v7870
    %v8306 = vunpack.c.h.b16 %v7870
    %v8307 = vunpack.c.l.b16 %v7871
    %v8308 = vunpack.c.h.b16 %v7871
    %v8309 = vunpack.c.l.b16 %v7872
    %v8310 = vunpack.c.h.b16 %v7872
    %v8311 = vunpack.c.l.b16 %v7873
    %v8312 = vunpack.c.h.b16 %v7873
    %v8313 = vunpack.c.l.b16 %v7874
    %v8314 = vunpack.c.h.b16 %v7874
    %v8315 = vunpack.c.l.b16 %v7875
    %v8316 = vunpack.c.h.b16 %v7875
    %v8317 = vunpack.c.l.b16 %v7876
    %v8318 = vunpack.c.h.b16 %v7876
    %v8319 = vunpack.c.l.b16 %v7877
    %v8320 = vunpack.c.h.b16 %v7877
    %v8321 = vunpack.c.l.b16 %v7878
    %v8322 = vunpack.c.h.b16 %v7878
    %v8323 = vunpack.c.l.b16 %v7879
    %v8324 = vunpack.c.h.b16 %v7879
    %v8325 = vunpack.c.l.b16 %v7880
    %v8326 = vunpack.c.h.b16 %v7880
    %v8327 = vunpack.c.l.b16 %v7881
    %v8328 = vunpack.c.h.b16 %v7881
    %v8329 = vunpack.c.l.b16 %v7882
    %v8330 = vunpack.c.h.b16 %v7882
    %v8331 = vunpack.c.l.b16 %v7883
    %v8332 = vunpack.c.h.b16 %v7883
    %v8333 = vunpack.c.l.b16 %v7884
    %v8334 = vunpack.c.h.b16 %v7884
    %v8335 = vunpack.c.l.b16 %v7885
    %v8336 = vunpack.c.h.b16 %v7885
    %v8337 = vunpack.c.l.b16 %v7886
    %v8338 = vunpack.c.h.b16 %v7886
    %v8339 = vunpack.c.l.b16 %v7887
    %v8340 = vunpack.c.h.b16 %v7887
    %v8341 = vunpack.c.l.b16 %v7888
    %v8342 = vunpack.c.h.b16 %v7888
    %v8343 = vunpack.c.l.b16 %v7889
    %v8344 = vunpack.c.h.b16 %v7889
    %v8345 = vunpack.c.l.b16 %v7890
    %v8346 = vunpack.c.h.b16 %v7890
    %v8347 = vunpack.c.l.b16 %v7891
    %v8348 = vunpack.c.h.b16 %v7891
    %v8349 = vunpack.c.l.b16 %v7892
    %v8350 = vunpack.c.h.b16 %v7892
    %v8351 = vunpack.c.l.b16 %v7893
    %v8352 = vunpack.c.h.b16 %v7893
    %v8353 = vunpack.c.l.b16 %v7894
    %v8354 = vunpack.c.h.b16 %v7894
    %v8355 = vunpack.c.l.b16 %v7895
    %v8356 = vunpack.c.h.b16 %v7895
    %v8357 = vunpack.c.l.b16 %v7896
    %v8358 = vunpack.c.h.b16 %v7896
    %v8359 = vunpack.c.l.b16 %v7897
    %v8360 = vunpack.c.h.b16 %v7897
    %v8361 = vunpack.c.l.b16 %v7898
    %v8362 = vunpack.c.h.b16 %v7898
    %v8363 = vunpack.c.l.b16 %v7899
    %v8364 = vunpack.c.h.b16 %v7899
    %v8365 = vunpack.c.l.b16 %v7900
    %v8366 = vunpack.c.h.b16 %v7900
    %v8367 = vunpack.c.l.b16 %v7901
    %v8368 = vunpack.c.h.b16 %v7901
    %v8369 = vunpack.c.l.b16 %v7902
    %v8370 = vunpack.c.h.b16 %v7902
    %v8371 = vunpack.c.l.b16 %v7903
    %v8372 = vunpack.c.h.b16 %v7903
    %v8373 = vunpack.c.l.b16 %v7904
    %v8374 = vunpack.c.h.b16 %v7904
    %v8375 = vpack.c.b16 %v8089, %v8087
    %v8376 = vpack.c.b16 %v8090, %v8088
    %v8377 = vpack.c.b16 %v8093, %v8091
    %v8378 = vpack.c.b16 %v8094, %v8092
    %v8379 = vpack.c.b16 %v8097, %v8095
    %v8380 = vpack.c.b16 %v8098, %v8096
    %v8381 = vpack.c.b16 %v8101, %v8099
    %v8382 = vpack.c.b16 %v8102, %v8100
    %v8383 = vpack.c.b16 %v8105, %v8103
    %v8384 = vpack.c.b16 %v8106, %v8104
    %v8385 = vpack.c.b16 %v8109, %v8107
    %v8386 = vpack.c.b16 %v8110, %v8108
    %v8387 = vpack.c.b16 %v8113, %v8111
    %v8388 = vpack.c.b16 %v8114, %v8112
    %v8389 = vpack.c.b16 %v8117, %v8115
    %v8390 = vpack.c.b16 %v8118, %v8116
    %v8391 = vpack.c.b16 %v8121, %v8119
    %v8392 = vpack.c.b16 %v8122, %v8120
    %v8393 = vpack.c.b16 %v8125, %v8123
    %v8394 = vpack.c.b16 %v8126, %v8124
    %v8395 = vpack.c.b16 %v8129, %v8127
    %v8396 = vpack.c.b16 %v8130, %v8128
    %v8397 = vpack.c.b16 %v8133, %v8131
    %v8398 = vpack.c.b16 %v8134, %v8132
    %v8399 = vpack.c.b16 %v8137, %v8135
    %v8400 = vpack.c.b16 %v8138, %v8136
    %v8401 = vpack.c.b16 %v8141, %v8139
    %v8402 = vpack.c.b16 %v8142, %v8140
    %v8403 = vpack.c.b16 %v8145, %v8143
    %v8404 = vpack.c.b16 %v8146, %v8144
    %v8405 = vpack.c.b16 %v8149, %v8147
    %v8406 = vpack.c.b16 %v8150, %v8148
    %v8407 = vpack.c.b16 %v8153, %v8151
    %v8408 = vpack.c.b16 %v8154, %v8152
    %v8409 = vpack.c.b16 %v8157, %v8155
    %v8410 = vpack.c.b16 %v8158, %v8156
    %v8411 = vpack.c.b16 %v8161, %v8159
    %v8412 = vpack.c.b16 %v8162, %v8160
    %v8413 = vpack.c.b16 %v8165, %v8163
    %v8414 = vpack.c.b16 %v8166, %v8164
    %v8415 = vpack.c.b16 %v8169, %v8167
    %v8416 = vpack.c.b16 %v8170, %v8168
    %v8417 = vpack.c.b16 %v8173, %v8171
    %v8418 = vpack.c.b16 %v8174, %v8172
    %v8419 = vpack.c.b16 %v8177, %v8175
    %v8420 = vpack.c.b16 %v8178, %v8176
    %v8421 = vpack.c.b16 %v8181, %v8179
    %v8422 = vpack.c.b16 %v8182, %v8180
    %v8423 = vpack.c.b16 %v8185, %v8183
    %v8424 = vpack.c.b16 %v8186, %v8184
    %v8425 = vpack.c.b16 %v8189, %v8187
    %v8426 = vpack.c.b16 %v8190, %v8188
    %v8427 = vpack.c.b16 %v8193, %v8191
    %v8428 = vpack.c.b16 %v8194, %v8192
    %v8429 = vpack.c.b16 %v8197, %v8195
    %v8430 = vpack.c.b16 %v8198, %v8196
    %v8431 = vpack.c.b16 %v8201, %v8199
    %v8432 = vpack.c.b16 %v8202, %v8200
    %v8433 = vpack.c.b16 %v8205, %v8203
    %v8434 = vpack.c.b16 %v8206, %v8204
    %v8435 = vpack.c.b16 %v8209, %v8207
    %v8436 = vpack.c.b16 %v8210, %v8208
    %v8437 = vpack.c.b16 %v8213, %v8211
    %v8438 = vpack.c.b16 %v8214, %v8212
    %v8439 = vpack.c.b16 %v8217, %v8215
    %v8440 = vpack.c.b16 %v8218, %v8216
    %v8441 = vpack.c.b16 %v8221, %v8219
    %v8442 = vpack.c.b16 %v8222, %v8220
    %v8443 = vpack.c.b16 %v8225, %v8223
    %v8444 = vpack.c.b16 %v8226, %v8224
    %v8445 = vpack.c.b16 %v8229, %v8227
    %v8446 = vpack.c.b16 %v8230, %v8228
    %v8447 = vpack.c.b16 %v8233, %v8231
    %v8448 = vpack.c.b16 %v8234, %v8232
    %v8449 = vpack.c.b16 %v8237, %v8235
    %v8450 = vpack.c.b16 %v8238, %v8236
    %v8451 = vpack.c.b16 %v8241, %v8239
    %v8452 = vpack.c.b16 %v8242, %v8240
    %v8453 = vpack.c.b16 %v8245, %v8243
    %v8454 = vpack.c.b16 %v8246, %v8244
    %v8455 = vpack.c.b16 %v8249, %v8247
    %v8456 = vpack.c.b16 %v8250, %v8248
    %v8457 = vpack.c.b16 %v8253, %v8251
    %v8458 = vpack.c.b16 %v8254, %v8252
    %v8459 = vpack.c.b16 %v8257, %v8255
    %v8460 = vpack.c.b16 %v8258, %v8256
    %v8461 = vpack.c.b16 %v8261, %v8259
    %v8462 = vpack.c.b16 %v8262, %v8260
    %v8463 = vpack.c.b16 %v8265, %v8263
    %v8464 = vpack.c.b16 %v8266, %v8264
    %v8465 = vpack.c.b16 %v8269, %v8267
    %v8466 = vpack.c.b16 %v8270, %v8268
    %v8467 = vpack.c.b16 %v8273, %v8271
    %v8468 = vpack.c.b16 %v8274, %v8272
    %v8469 = vpack.c.b16 %v8277, %v8275
    %v8470 = vpack.c.b16 %v8278, %v8276
    %v8471 = vpack.c.b16 %v8281, %v8279
    %v8472 = vpack.c.b16 %v8282, %v8280
    %v8473 = vpack.c.b16 %v8285, %v8283
    %v8474 = vpack.c.b16 %v8286, %v8284
    %v8475 = vpack.c.b16 %v8289, %v8287
    %v8476 = vpack.c.b16 %v8290, %v8288
    %v8477 = vpack.c.b16 %v8293, %v8291
    %v8478 = vpack.c.b16 %v8294, %v8292
    %v8479 = vpack.c.b16 %v8297, %v8295
    %v8480 = vpack.c.b16 %v8298, %v8296
    %v8481 = vpack.c.b16 %v8301, %v8299
    %v8482 = vpack.c.b16 %v8302, %v8300
    %v8483 = vpack.c.b16 %v8305, %v8303
    %v8484 = vpack.c.b16 %v8306, %v8304
    %v8485 = vpack.c.b16 %v8309, %v8307
    %v8486 = vpack.c.b16 %v8310, %v8308
    %v8487 = vpack.c.b16 %v8313, %v8311
    %v8488 = vpack.c.b16 %v8314, %v8312
    %v8489 = vpack.c.b16 %v8317, %v8315
    %v8490 = vpack.c.b16 %v8318, %v8316
    %v8491 = vpack.c.b16 %v8321, %v8319
    %v8492 = vpack.c.b16 %v8322, %v8320
    %v8493 = vpack.c.b16 %v8325, %v8323
    %v8494 = vpack.c.b16 %v8326, %v8324
    %v8495 = vpack.c.b16 %v8329, %v8327
    %v8496 = vpack.c.b16 %v8330, %v8328
    %v8497 = vpack.c.b16 %v8333, %v8331
    %v8498 = vpack.c.b16 %v8334, %v8332
    %v8499 = vpack.c.b16 %v8337, %v8335
    %v8500 = vpack.c.b16 %v8338, %v8336
    %v8501 = vpack.c.b16 %v8341, %v8339
    %v8502 = vpack.c.b16 %v8342, %v8340
    %v8503 = vpack.c.b16 %v8345, %v8343
    %v8504 = vpack.c.b16 %v8346, %v8344
    %v8505 = vpack.c.b16 %v8349, %v8347
    %v8506 = vpack.c.b16 %v8350, %v8348
    %v8507 = vpack.c.b16 %v8353, %v8351
    %v8508 = vpack.c.b16 %v8354, %v8352
    %v8509 = vpack.c.b16 %v8357, %v8355
    %v8510 = vpack.c.b16 %v8358, %v8356
    %v8511 = vpack.c.b16 %v8361, %v8359
    %v8512 = vpack.c.b16 %v8362, %v8360
    %v8513 = vpack.c.b16 %v8365, %v8363
    %v8514 = vpack.c.b16 %v8366, %v8364
    %v8515 = vpack.c.b16 %v8369, %v8367
    %v8516 = vpack.c.b16 %v8370, %v8368
    %v8517 = vpack.c.b16 %v8373, %v8371
    %v8518 = vpack.c.b16 %v8374, %v8372
    %8663 = vmatpush.bf16.msra.mxu0 %v8389
    %8664 = vmatpush.bf16.msra.mxu0 %v8387
    %8665 = vmatpush.bf16.msra.mxu0 %v8385
    %8666 = vmatpush.bf16.msra.mxu0 %v8383
    %8667 = vmatpush.bf16.msra.mxu0 %v8381
    %8668 = vmatpush.bf16.msra.mxu0 %v8379
    %8669 = vmatpush.bf16.msra.mxu0 %v8377
    %8670 = vmatpush.bf16.msra.mxu0 %v8375
    %8671 = vmatmul.bf16.gmra.mxu0 %v7918
    %v8672 = vpop.f32.mrf.mxu0
    %v8673 = vadd.f32 %v7907, %v8672
    %v8674 = vpop.f32.mrf.mxu0
    %8675 = vdwg.mxu0
    %8676 = vmatpush.bf16.msra.mxu0 %v8405
    %8677 = vmatpush.bf16.msra.mxu0 %v8403
    %8678 = vmatpush.bf16.msra.mxu0 %v8401
    %8679 = vmatpush.bf16.msra.mxu0 %v8399
    %8680 = vmatpush.bf16.msra.mxu0 %v8397
    %8681 = vmatpush.bf16.msra.mxu0 %v8395
    %8682 = vmatpush.bf16.msra.mxu0 %v8393
    %8683 = vmatpush.bf16.msra.mxu0 %v8391
    %8684 = vmatmul.bf16.gmra.mxu0 %v7919
    %v8685 = vpop.f32.mrf.mxu0
    %v8686 = vadd.f32 %v8673, %v8685
    %v8687 = vpop.f32.mrf.mxu0
    %8688 = vdwg.mxu0
    %8689 = vmatpush.bf16.msra.mxu0 %v8421
    %8690 = vmatpush.bf16.msra.mxu0 %v8419
    %8691 = vmatpush.bf16.msra.mxu0 %v8417
    %8692 = vmatpush.bf16.msra.mxu0 %v8415
    %8693 = vmatpush.bf16.msra.mxu0 %v8413
    %8694 = vmatpush.bf16.msra.mxu0 %v8411
    %8695 = vmatpush.bf16.msra.mxu0 %v8409
    %8696 = vmatpush.bf16.msra.mxu0 %v8407
    %8697 = vmatmul.bf16.gmra.mxu0 %v7920
    %v8698 = vpop.f32.mrf.mxu0
    %v8699 = vadd.f32 %v8686, %v8698
    %v8700 = vpop.f32.mrf.mxu0
    %8701 = vdwg.mxu0
    %8702 = vmatpush.bf16.msra.mxu0 %v8437
    %8703 = vmatpush.bf16.msra.mxu0 %v8435
    %8704 = vmatpush.bf16.msra.mxu0 %v8433
    %8705 = vmatpush.bf16.msra.mxu0 %v8431
    %8706 = vmatpush.bf16.msra.mxu0 %v8429
    %8707 = vmatpush.bf16.msra.mxu0 %v8427
    %8708 = vmatpush.bf16.msra.mxu0 %v8425
    %8709 = vmatpush.bf16.msra.mxu0 %v8423
    %8710 = vmatmul.bf16.gmra.mxu0 %v7921
    %v8711 = vpop.f32.mrf.mxu0
    %v8712 = vadd.f32 %v8699, %v8711
    %v8713 = vpop.f32.mrf.mxu0
    %8714 = vdwg.mxu0
    %8715 = vmatpush.bf16.msra.mxu0 %v8453
    %8716 = vmatpush.bf16.msra.mxu0 %v8451
    %8717 = vmatpush.bf16.msra.mxu0 %v8449
    %8718 = vmatpush.bf16.msra.mxu0 %v8447
    %8719 = vmatpush.bf16.msra.mxu0 %v8445
    %8720 = vmatpush.bf16.msra.mxu0 %v8443
    %8721 = vmatpush.bf16.msra.mxu0 %v8441
    %8722 = vmatpush.bf16.msra.mxu0 %v8439
    %8723 = vmatmul.bf16.gmra.mxu0 %v7922
    %v8724 = vpop.f32.mrf.mxu0
    %v8725 = vadd.f32 %v8712, %v8724
    %v8726 = vpop.f32.mrf.mxu0
    %8727 = vdwg.mxu0
    %8728 = vmatpush.bf16.msra.mxu0 %v8469
    %8729 = vmatpush.bf16.msra.mxu0 %v8467
    %8730 = vmatpush.bf16.msra.mxu0 %v8465
    %8731 = vmatpush.bf16.msra.mxu0 %v8463
    %8732 = vmatpush.bf16.msra.mxu0 %v8461
    %8733 = vmatpush.bf16.msra.mxu0 %v8459
    %8734 = vmatpush.bf16.msra.mxu0 %v8457
    %8735 = vmatpush.bf16.msra.mxu0 %v8455
    %8736 = vmatmul.bf16.gmra.mxu0 %v7923
    %v8737 = vpop.f32.mrf.mxu0
    %v8738 = vadd.f32 %v8725, %v8737
    %v8739 = vpop.f32.mrf.mxu0
    %8740 = vdwg.mxu0
    %8741 = vmatpush.bf16.msra.mxu0 %v8485
    %8742 = vmatpush.bf16.msra.mxu0 %v8483
    %8743 = vmatpush.bf16.msra.mxu0 %v8481
    %8744 = vmatpush.bf16.msra.mxu0 %v8479
    %8745 = vmatpush.bf16.msra.mxu0 %v8477
    %8746 = vmatpush.bf16.msra.mxu0 %v8475
    %8747 = vmatpush.bf16.msra.mxu0 %v8473
    %8748 = vmatpush.bf16.msra.mxu0 %v8471
    %8749 = vmatmul.bf16.gmra.mxu0 %v7924
    %v8750 = vpop.f32.mrf.mxu0
    %v8751 = vadd.f32 %v8738, %v8750
    %v8752 = vpop.f32.mrf.mxu0
    %8753 = vdwg.mxu0
    %8754 = vmatpush.bf16.msra.mxu0 %v8501
    %8755 = vmatpush.bf16.msra.mxu0 %v8499
    %8756 = vmatpush.bf16.msra.mxu0 %v8497
    %8757 = vmatpush.bf16.msra.mxu0 %v8495
    %8758 = vmatpush.bf16.msra.mxu0 %v8493
    %8759 = vmatpush.bf16.msra.mxu0 %v8491
    %8760 = vmatpush.bf16.msra.mxu0 %v8489
    %8761 = vmatpush.bf16.msra.mxu0 %v8487
    %8762 = vmatmul.bf16.gmra.mxu0 %v7925
    %v8763 = vpop.f32.mrf.mxu0
    %v8764 = vadd.f32 %v8751, %v8763
    %v8765 = vpop.f32.mrf.mxu0
    %8766 = vdwg.mxu0
    %8767 = vmatpush.bf16.msra.mxu0 %v8517
    %8768 = vmatpush.bf16.msra.mxu0 %v8515
    %8769 = vmatpush.bf16.msra.mxu0 %v8513
    %8770 = vmatpush.bf16.msra.mxu0 %v8511
    %8771 = vmatpush.bf16.msra.mxu0 %v8509
    %8772 = vmatpush.bf16.msra.mxu0 %v8507
    %8773 = vmatpush.bf16.msra.mxu0 %v8505
    %8774 = vmatpush.bf16.msra.mxu0 %v8503
    %8775 = vmatmul.bf16.gmra.mxu0 %v7933
    %v8776 = vpop.f32.mrf.mxu0
    %v8777 = vadd.f32 %v8764, %v8776
    %v8778 = vpop.f32.mrf.mxu0
    %8779 = vdwg.mxu0
    %8780 = vmatpush.bf16.msra.mxu0 %v8390
    %8781 = vmatpush.bf16.msra.mxu0 %v8388
    %8782 = vmatpush.bf16.msra.mxu0 %v8386
    %8783 = vmatpush.bf16.msra.mxu0 %v8384
    %8784 = vmatpush.bf16.msra.mxu0 %v8382
    %8785 = vmatpush.bf16.msra.mxu0 %v8380
    %8786 = vmatpush.bf16.msra.mxu0 %v8378
    %8787 = vmatpush.bf16.msra.mxu0 %v8376
    %8788 = vmatmul.bf16.gmra.mxu0 %v7918
    %v8789 = vpop.f32.mrf.mxu0
    %v8790 = vadd.f32 %v7908, %v8789
    %v8791 = vpop.f32.mrf.mxu0
    %8792 = vdwg.mxu0
    %8793 = vmatpush.bf16.msra.mxu0 %v8406
    %8794 = vmatpush.bf16.msra.mxu0 %v8404
    %8795 = vmatpush.bf16.msra.mxu0 %v8402
    %8796 = vmatpush.bf16.msra.mxu0 %v8400
    %8797 = vmatpush.bf16.msra.mxu0 %v8398
    %8798 = vmatpush.bf16.msra.mxu0 %v8396
    %8799 = vmatpush.bf16.msra.mxu0 %v8394
    %8800 = vmatpush.bf16.msra.mxu0 %v8392
    %8801 = vmatmul.bf16.gmra.mxu0 %v7919
    %v8802 = vpop.f32.mrf.mxu0
    %v8803 = vadd.f32 %v8790, %v8802
    %v8804 = vpop.f32.mrf.mxu0
    %8805 = vdwg.mxu0
    %8806 = vmatpush.bf16.msra.mxu0 %v8422
    %8807 = vmatpush.bf16.msra.mxu0 %v8420
    %8808 = vmatpush.bf16.msra.mxu0 %v8418
    %8809 = vmatpush.bf16.msra.mxu0 %v8416
    %8810 = vmatpush.bf16.msra.mxu0 %v8414
    %8811 = vmatpush.bf16.msra.mxu0 %v8412
    %8812 = vmatpush.bf16.msra.mxu0 %v8410
    %8813 = vmatpush.bf16.msra.mxu0 %v8408
    %8814 = vmatmul.bf16.gmra.mxu0 %v7920
    %v8815 = vpop.f32.mrf.mxu0
    %v8816 = vadd.f32 %v8803, %v8815
    %v8817 = vpop.f32.mrf.mxu0
    %8818 = vdwg.mxu0
    %8819 = vmatpush.bf16.msra.mxu0 %v8438
    %8820 = vmatpush.bf16.msra.mxu0 %v8436
    %8821 = vmatpush.bf16.msra.mxu0 %v8434
    %8822 = vmatpush.bf16.msra.mxu0 %v8432
    %8823 = vmatpush.bf16.msra.mxu0 %v8430
    %8824 = vmatpush.bf16.msra.mxu0 %v8428
    %8825 = vmatpush.bf16.msra.mxu0 %v8426
    %8826 = vmatpush.bf16.msra.mxu0 %v8424
    %8827 = vmatmul.bf16.gmra.mxu0 %v7921
    %v8828 = vpop.f32.mrf.mxu0
    %v8829 = vadd.f32 %v8816, %v8828
    %v8830 = vpop.f32.mrf.mxu0
    %8831 = vdwg.mxu0
    %8832 = vmatpush.bf16.msra.mxu0 %v8454
    %8833 = vmatpush.bf16.msra.mxu0 %v8452
    %8834 = vmatpush.bf16.msra.mxu0 %v8450
    %8835 = vmatpush.bf16.msra.mxu0 %v8448
    %8836 = vmatpush.bf16.msra.mxu0 %v8446
    %8837 = vmatpush.bf16.msra.mxu0 %v8444
    %8838 = vmatpush.bf16.msra.mxu0 %v8442
    %8839 = vmatpush.bf16.msra.mxu0 %v8440
    %8840 = vmatmul.bf16.gmra.mxu0 %v7922
    %v8841 = vpop.f32.mrf.mxu0
    %v8842 = vadd.f32 %v8829, %v8841
    %v8843 = vpop.f32.mrf.mxu0
    %8844 = vdwg.mxu0
    %8845 = vmatpush.bf16.msra.mxu0 %v8470
    %8846 = vmatpush.bf16.msra.mxu0 %v8468
    %8847 = vmatpush.bf16.msra.mxu0 %v8466
    %8848 = vmatpush.bf16.msra.mxu0 %v8464
    %8849 = vmatpush.bf16.msra.mxu0 %v8462
    %8850 = vmatpush.bf16.msra.mxu0 %v8460
    %8851 = vmatpush.bf16.msra.mxu0 %v8458
    %8852 = vmatpush.bf16.msra.mxu0 %v8456
    %8853 = vmatmul.bf16.gmra.mxu0 %v7923
    %v8854 = vpop.f32.mrf.mxu0
    %v8855 = vadd.f32 %v8842, %v8854
    %v8856 = vpop.f32.mrf.mxu0
    %8857 = vdwg.mxu0
    %8858 = vmatpush.bf16.msra.mxu0 %v8486
    %8859 = vmatpush.bf16.msra.mxu0 %v8484
    %8860 = vmatpush.bf16.msra.mxu0 %v8482
    %8861 = vmatpush.bf16.msra.mxu0 %v8480
    %8862 = vmatpush.bf16.msra.mxu0 %v8478
    %8863 = vmatpush.bf16.msra.mxu0 %v8476
    %8864 = vmatpush.bf16.msra.mxu0 %v8474
    %8865 = vmatpush.bf16.msra.mxu0 %v8472
    %8866 = vmatmul.bf16.gmra.mxu0 %v7924
    %v8867 = vpop.f32.mrf.mxu0
    %v8868 = vadd.f32 %v8855, %v8867
    %v8869 = vpop.f32.mrf.mxu0
    %8870 = vdwg.mxu0
    %8871 = vmatpush.bf16.msra.mxu0 %v8502
    %8872 = vmatpush.bf16.msra.mxu0 %v8500
    %8873 = vmatpush.bf16.msra.mxu0 %v8498
    %8874 = vmatpush.bf16.msra.mxu0 %v8496
    %8875 = vmatpush.bf16.msra.mxu0 %v8494
    %8876 = vmatpush.bf16.msra.mxu0 %v8492
    %8877 = vmatpush.bf16.msra.mxu0 %v8490
    %8878 = vmatpush.bf16.msra.mxu0 %v8488
    %8879 = vmatmul.bf16.gmra.mxu0 %v7925
    %v8880 = vpop.f32.mrf.mxu0
    %v8881 = vadd.f32 %v8868, %v8880
    %v8882 = vpop.f32.mrf.mxu0
    %8883 = vdwg.mxu0
    %8884 = vmatpush.bf16.msra.mxu0 %v8518
    %8885 = vmatpush.bf16.msra.mxu0 %v8516
    %8886 = vmatpush.bf16.msra.mxu0 %v8514
    %8887 = vmatpush.bf16.msra.mxu0 %v8512
    %8888 = vmatpush.bf16.msra.mxu0 %v8510
    %8889 = vmatpush.bf16.msra.mxu0 %v8508
    %8890 = vmatpush.bf16.msra.mxu0 %v8506
    %8891 = vmatpush.bf16.msra.mxu0 %v8504
    %8892 = vmatmul.bf16.gmra.mxu0 %v7933
    %v8893 = vpop.f32.mrf.mxu0
    %v8894 = vadd.f32 %v8881, %v8893
    %v8895 = vpop.f32.mrf.mxu0
    %8896 = vdwg.mxu0
    %v8897 = vmax.f32 %v8777, 0.0
    %v8898 = vmax.f32 %v8894, 0.0
    %v8901 = vrot.slane %v8898, 6
    %v8902 = vsel %vm6957, %v8897, %v8901
    %vm8903 = vcmask 1043458
    %v8904 = vsel %vm8903, %v8897, %v8901
    %v8905 = vrot.slane %v8904, 2
    %v8906 = vsel %vm6960, %v8897, %v8901
    %v8907 = vrot.slane %v8906, 4
    %v8908 = vsel %vm2117, %v8901, %v8897
    %v8909 = vrot.slane %v8908, 6
    %v8914 = vrot.slane %v8902, 7
    %v8915 = vrot.slane %v8914, 2
    %v8916 = vrot.slane %v8905, 7
    %v8917 = vrot.slane %v8916, 2
    %v8918 = vrot.slane %v8907, 7
    %v8919 = vrot.slane %v8918, 2
    %v8920 = vrot.slane %v8909, 7
    %v8921 = vrot.slane %v8920, 2
    %v8926 = vmax.f32 %v8902, %v8915
    %v8927 = vmax.f32 %v8905, %v8917
    %v8928 = vmax.f32 %v8907, %v8919
    %v8929 = vmax.f32 %v8909, %v8921
    %v8930 = vmax.f32 %v8926, %v8927
    %v8931 = vmax.f32 %v8928, %v8929
    %v8934 = vperm.slane %v8930, 0
    %v8935 = vperm.slane %v8930, 2
    %v8936 = vperm.slane %v8931, 0
    %v8937 = vperm.slane %v8931, 2
    %v8942 = vpack.c.bf16 %v8934, %v8934
    %v8943 = vpack.c.bf16 %v8935, %v8935
    %v8944 = vpack.c.bf16 %v8936, %v8936
    %v8945 = vpack.c.bf16 %v8937, %v8937
    %v8946 = vld [vmem:[%s9] sm:$0xf]
    %v8947 = vld [vmem:[%s9 + $0x4] sm:$0xf]
    %v8948 = vld [vmem:[%s9 + $0x8] sm:$0xf]
    %v8949 = vld [vmem:[%s9 + $0xc] sm:$0xf]
    %v8950 = vld [vmem:[%s9 + $0x10] sm:$0xf]
    %v8951 = vld [vmem:[%s9 + $0x14] sm:$0xf]
    %v8952 = vld [vmem:[%s9 + $0x18] sm:$0xf]
    %v8953 = vld [vmem:[%s9 + $0x1c] sm:$0xf]
    %v8954 = vld [vmem:[%s9 + $0x20] sm:$0xf]
    %v8955 = vld [vmem:[%s9 + $0x24] sm:$0xf]
    %v8956 = vld [vmem:[%s9 + $0x28] sm:$0xf]
    %v8957 = vld [vmem:[%s9 + $0x2c] sm:$0xf]
    %v8958 = vld [vmem:[%s9 + $0x30] sm:$0xf]
    %v8959 = vld [vmem:[%s9 + $0x34] sm:$0xf]
    %v8960 = vld [vmem:[%s9 + $0x38] sm:$0xf]
    %v8961 = vld [vmem:[%s9 + $0x3c] sm:$0xf]
    %v8962 = vld [vmem:[%s9 + $0x40] sm:$0xf]
    %v8963 = vld [vmem:[%s9 + $0x44] sm:$0xf]
    %v8964 = vld [vmem:[%s9 + $0x48] sm:$0xf]
    %v8965 = vld [vmem:[%s9 + $0x4c] sm:$0xf]
    %v8966 = vld [vmem:[%s9 + $0x50] sm:$0xf]
    %v8967 = vld [vmem:[%s9 + $0x54] sm:$0xf]
    %v8968 = vld [vmem:[%s9 + $0x58] sm:$0xf]
    %v8969 = vld [vmem:[%s9 + $0x5c] sm:$0xf]
    %v8970 = vld [vmem:[%s9 + $0x60] sm:$0xf]
    %v8971 = vld [vmem:[%s9 + $0x64] sm:$0xf]
    %v8972 = vld [vmem:[%s9 + $0x68] sm:$0xf]
    %v8973 = vld [vmem:[%s9 + $0x6c] sm:$0xf]
    %v8974 = vld [vmem:[%s9 + $0x70] sm:$0xf]
    %v8975 = vld [vmem:[%s9 + $0x74] sm:$0xf]
    %v8976 = vld [vmem:[%s9 + $0x78] sm:$0xf]
    %v8977 = vld [vmem:[%s9 + $0x7c] sm:$0xf]
    %v8978 = vld [vmem:[%s10] sm:$0x1]
    %v8980 = vperm.slane %v8978, 0
    %v8986 = vunpack.c.l.b16 %v8942
    %v8987 = vunpack.c.l.b16 %v8943
    %v8988 = vunpack.c.l.b16 %v8944
    %v8989 = vunpack.c.l.b16 %v8945
    %v8990 = vrot.slane %v8988, 7
    %v8991 = vsel %vm4597, %v8990, %v8986
    %v8992 = vrot.slane %v8989, 7
    %v8993 = vsel %vm4597, %v8992, %v8987
    %v8994 = vpack.c.b16 %v8991, %v8991
    %v8995 = vpack.c.b16 %v8993, %v8993
    %v9030 = vunpack.c.l.b16 %v8946
    %v9031 = vunpack.c.l.b16 %v8947
    %v9032 = vunpack.c.l.b16 %v8948
    %v9033 = vunpack.c.l.b16 %v8949
    %v9034 = vunpack.c.l.b16 %v8950
    %v9035 = vunpack.c.l.b16 %v8951
    %v9036 = vunpack.c.l.b16 %v8952
    %v9037 = vunpack.c.l.b16 %v8953
    %v9038 = vunpack.c.l.b16 %v8954
    %v9039 = vunpack.c.l.b16 %v8955
    %v9040 = vunpack.c.l.b16 %v8956
    %v9041 = vunpack.c.l.b16 %v8957
    %v9042 = vunpack.c.l.b16 %v8958
    %v9043 = vunpack.c.l.b16 %v8959
    %v9044 = vunpack.c.l.b16 %v8960
    %v9045 = vunpack.c.l.b16 %v8961
    %v9046 = vunpack.c.l.b16 %v8962
    %v9047 = vunpack.c.l.b16 %v8963
    %v9048 = vunpack.c.l.b16 %v8964
    %v9049 = vunpack.c.l.b16 %v8965
    %v9050 = vunpack.c.l.b16 %v8966
    %v9051 = vunpack.c.l.b16 %v8967
    %v9052 = vunpack.c.l.b16 %v8968
    %v9053 = vunpack.c.l.b16 %v8969
    %v9054 = vunpack.c.l.b16 %v8970
    %v9055 = vunpack.c.l.b16 %v8971
    %v9056 = vunpack.c.l.b16 %v8972
    %v9057 = vunpack.c.l.b16 %v8973
    %v9058 = vunpack.c.l.b16 %v8974
    %v9059 = vunpack.c.l.b16 %v8975
    %v9060 = vunpack.c.l.b16 %v8976
    %v9061 = vunpack.c.l.b16 %v8977
    %v9062 = vpack.c.b16 %v9031, %v9030
    %v9063 = vpack.c.b16 %v9033, %v9032
    %v9064 = vpack.c.b16 %v9035, %v9034
    %v9065 = vpack.c.b16 %v9037, %v9036
    %v9066 = vpack.c.b16 %v9039, %v9038
    %v9067 = vpack.c.b16 %v9041, %v9040
    %v9068 = vpack.c.b16 %v9043, %v9042
    %v9069 = vpack.c.b16 %v9045, %v9044
    %v9070 = vpack.c.b16 %v9047, %v9046
    %v9071 = vpack.c.b16 %v9049, %v9048
    %v9072 = vpack.c.b16 %v9051, %v9050
    %v9073 = vpack.c.b16 %v9053, %v9052
    %v9074 = vpack.c.b16 %v9055, %v9054
    %v9075 = vpack.c.b16 %v9057, %v9056
    %v9076 = vpack.c.b16 %v9059, %v9058
    %v9077 = vpack.c.b16 %v9061, %v9060
    %9094 = vmatpush.bf16.msra.mxu0 %v9069
    %9095 = vmatpush.bf16.msra.mxu0 %v9068
    %9096 = vmatpush.bf16.msra.mxu0 %v9067
    %9097 = vmatpush.bf16.msra.mxu0 %v9066
    %9098 = vmatpush.bf16.msra.mxu0 %v9065
    %9099 = vmatpush.bf16.msra.mxu0 %v9064
    %9100 = vmatpush.bf16.msra.mxu0 %v9063
    %9101 = vmatpush.bf16.msra.mxu0 %v9062
    %9102 = vmatmul.bf16.gmra.mxu0 %v8994
    %v9103 = vpop.f32.mrf.mxu0
    %v9104 = vadd.f32 %v8980, %v9103
    %v9105 = vpop.f32.mrf.mxu0
    %9106 = vdwg.mxu0
    %9107 = vmatpush.bf16.msra.mxu0 %v9077
    %9108 = vmatpush.bf16.msra.mxu0 %v9076
    %9109 = vmatpush.bf16.msra.mxu0 %v9075
    %9110 = vmatpush.bf16.msra.mxu0 %v9074
    %9111 = vmatpush.bf16.msra.mxu0 %v9073
    %9112 = vmatpush.bf16.msra.mxu0 %v9072
    %9113 = vmatpush.bf16.msra.mxu0 %v9071
    %9114 = vmatpush.bf16.msra.mxu0 %v9070
    %9115 = vmatmul.bf16.gmra.mxu0 %v8995
    %v9116 = vpop.f32.mrf.mxu0
    %v9117 = vadd.f32 %v9104, %v9116
    %v9118 = vpop.f32.mrf.mxu0
    %9119 = vdwg.mxu0
    %v9120 = vmax.f32 %v9117, 0.0
    %v9121 = vpack.c.bf16 %v9120, %v9120
    %v9122 = vld [vmem:[%s11] sm:$0xf]
    %v9123 = vld [vmem:[%s11 + $0x4] sm:$0xf]
    %v9124 = vld [vmem:[%s11 + $0x8] sm:$0xf]
    %v9125 = vld [vmem:[%s11 + $0xc] sm:$0xf]
    %v9126 = vld [vmem:[%s11 + $0x10] sm:$0xf]
    %v9127 = vld [vmem:[%s11 + $0x14] sm:$0xf]
    %v9128 = vld [vmem:[%s11 + $0x18] sm:$0xf]
    %v9129 = vld [vmem:[%s11 + $0x1c] sm:$0xf]
    %v9130 = vld [vmem:[%s11 + $0x20] sm:$0xf]
    %v9131 = vld [vmem:[%s11 + $0x24] sm:$0xf]
    %v9132 = vld [vmem:[%s11 + $0x28] sm:$0xf]
    %v9133 = vld [vmem:[%s11 + $0x2c] sm:$0xf]
    %v9134 = vld [vmem:[%s11 + $0x30] sm:$0xf]
    %v9135 = vld [vmem:[%s11 + $0x34] sm:$0xf]
    %v9136 = vld [vmem:[%s11 + $0x38] sm:$0xf]
    %v9137 = vld [vmem:[%s11 + $0x3c] sm:$0xf]
    %v9138 = vld [vmem:[%s12] sm:$0x1]
    %v9140 = vperm.slane %v9138, 0
    %v9158 = vunpack.c.l.b16 %v9122
    %v9159 = vunpack.c.l.b16 %v9123
    %v9160 = vunpack.c.l.b16 %v9124
    %v9161 = vunpack.c.l.b16 %v9125
    %v9162 = vunpack.c.l.b16 %v9126
    %v9163 = vunpack.c.l.b16 %v9127
    %v9164 = vunpack.c.l.b16 %v9128
    %v9165 = vunpack.c.l.b16 %v9129
    %v9166 = vunpack.c.l.b16 %v9130
    %v9167 = vunpack.c.l.b16 %v9131
    %v9168 = vunpack.c.l.b16 %v9132
    %v9169 = vunpack.c.l.b16 %v9133
    %v9170 = vunpack.c.l.b16 %v9134
    %v9171 = vunpack.c.l.b16 %v9135
    %v9172 = vunpack.c.l.b16 %v9136
    %v9173 = vunpack.c.l.b16 %v9137
    %v9174 = vpack.c.b16 %v9159, %v9158
    %v9175 = vpack.c.b16 %v9161, %v9160
    %v9176 = vpack.c.b16 %v9163, %v9162
    %v9177 = vpack.c.b16 %v9165, %v9164
    %v9178 = vpack.c.b16 %v9167, %v9166
    %v9179 = vpack.c.b16 %v9169, %v9168
    %v9180 = vpack.c.b16 %v9171, %v9170
    %v9181 = vpack.c.b16 %v9173, %v9172
    %9190 = vmatpush.bf16.msra.mxu0 %v9181
    %9191 = vmatpush.bf16.msra.mxu0 %v9180
    %9192 = vmatpush.bf16.msra.mxu0 %v9179
    %9193 = vmatpush.bf16.msra.mxu0 %v9178
    %9194 = vmatpush.bf16.msra.mxu0 %v9177
    %9195 = vmatpush.bf16.msra.mxu0 %v9176
    %9196 = vmatpush.bf16.msra.mxu0 %v9175
    %9197 = vmatpush.bf16.msra.mxu0 %v9174
    %9198 = vmatmul.bf16.gmra.mxu0 %v9121
    %v9199 = vpop.f32.mrf.mxu0
    %v9200 = vadd.f32 %v9140, %v9199
    %v9201 = vpop.f32.mrf.mxu0
    %9202 = vdwg.mxu0
    %vm9203 = vcmask 74752
    %9204 = vst.msk [vmem:[#allocation5] sm:$0x3] %vm9203, %v9200
    // Predicated region
    $region58: #{simple_conv_net_forward.1} parent=1 // pred_check
      _
    $region59: #{simple_conv_net_forward.1} parent=1 // pred_check_branch
      %9206 = sbr.rel (0) target = $region61
    $region60: #{simple_conv_net_forward.1} parent=1 // pred_region
      %9208 = vsyncadd [#allocation4], 0
      %s9210 = sshll.u32 [#allocation5], 4
      %s9211 = int_to_ptr.vmem [resolvable:$true] %s9210
      %s9212 = sshll.u32 %s13, 4
      %s9213 = int_to_ptr.hbm [resolvable:$true] %s9212
      %9215 = dma.vmem_to_hbm [thread:$0]  %s9211, 32, %s9213, [#allocation4]
    $region61: #{simple_conv_net_forward.1} parent=1 // pred_fallthru
      _
    // Predicated region
    $region62: #{simple_conv_net_forward.1} parent=1 // pred_check
      _
    $region63: #{simple_conv_net_forward.1} parent=1 // pred_check_branch
      %9217 = sbr.rel (0) target = $region65
    $region64: #{simple_conv_net_forward.1} parent=1 // pred_region
      %9219 = dma.done [#allocation4], 32
    $region65: #{simple_conv_net_forward.1} parent=1 // pred_fallthru
      _
    %9220 = vsyncpa [#allocation3], 1
    %9221 = vsyncpa [#allocation4], 1

</llo_original>
